<compile_context>
chip_gen: v7x
topology: tpu7x:2x2x1
jax: 0.10.0
libtpu: 0.0.40
codegen_flags: <defaults>
</compile_context>

<pallas_src>
import functools

import jax
import jax.numpy as jnp
from jax.experimental import pallas as pl
from jax.experimental.pallas import tpu as pltpu

# Hyper-parameters mirroring the PyTorch module defaults.
ITERS = 3            # SlotAttention iters
EPS = 1e-8           # SlotAttention eps
LN_EPS = 1e-5        # torch.nn.LayerNorm default eps
PROMPT_WEIGHT = 0.5  # prompt_weight
BASE_WARMUP = 10     # base_warmup_iter
BASE_FREQ = 2        # base_update_freq


# ---------------------------------------------------------------------------
# Single fused kernel: SA pass 1 (+ null-prompt fold) -> VQ pool -> embedding
# gather (onehot @ table on the MXU) -> PromptTo2D spread + prompted feature ->
# SA pass 2.  Whole batch per invocation.
# ---------------------------------------------------------------------------
def fused_forward_kernel(feat_ref, cond_ref, kblob_ref, rzblob_ref, oblob_ref,
                         fblob_ref,
                         slots_pair_ref, attn_pair_ref, prompt_pair_ref,
                         idx_ref, commit_ref,
                         *, batch, n_tokens, n_slots, feat_dim, obj_dim,
                         kvq_dim, num_codes, iters, eps, ln_eps, scale,
                         prompt_weight):
    B, N, S = batch, n_tokens, n_slots
    Df, Do, Dk, K = feat_dim, obj_dim, kvq_dim, num_codes
    M = B * S

    # Static row offsets into the packed parameter blobs (see make_params).
    WK, WV, WQ = 0, Df, 2 * Df                       # blob_k  (last dim Dk)
    WRZ, BRZ = 0, Dk + Do                            # blob_rz (last dim 2*Do)
    WIHN, WHHN = 0, Dk                               # blob_o  (last dim Do)
    BIHN, BHHN = Dk + Do, Dk + Do + 1
    LNS_W, LNS_B = Dk + Do + 2, Dk + Do + 3
    CODE = Dk + Do + 4
    LNI_W, LNI_B, NULLP, PEMB = 0, 1, 2, 3           # blob_f  (last dim Df)

    def ln(x, w, b):
        mu = jnp.mean(x, axis=-1, keepdims=True)
        var = jnp.mean((x - mu) ** 2, axis=-1, keepdims=True)
        return (x - mu) * jax.lax.rsqrt(var + ln_eps) * w + b

    def sa_pass(x_all):
        """One SlotAttention pass over the whole batch.

        x_all: (B*N, Df).  Returns slots (B*S, Do) and the last-iteration
        attention (B*S, N) (attn_before_reweighting, n_heads=1).
        Weights are re-read from VMEM refs at use sites (no long live ranges).
        """
        xn = ln(x_all, fblob_ref[pl.ds(LNI_W, 1), :], fblob_ref[pl.ds(LNI_B, 1), :])
        # Batched K/V projections: one MXU push each for all B*N tokens.
        k_all = jnp.dot(xn, kblob_ref[pl.ds(WK, Df), :],
                        preferred_element_type=jnp.float32)           # (B*N, Dk)
        v_all = jnp.dot(xn, kblob_ref[pl.ds(WV, Df), :],
                        preferred_element_type=jnp.float32)           # (B*N, Dk)

        slots = cond_ref[...]                                          # (B*S, Do)
        attn_all = None
        for it in range(iters):                                        # static unroll (3)
            slots_prev = slots
            sn = ln(slots, oblob_ref[pl.ds(LNS_W, 1), :],
                    oblob_ref[pl.ds(LNS_B, 1), :])
            q_all = jnp.dot(sn, kblob_ref[pl.ds(WQ, Do), :],
                            preferred_element_type=jnp.float32)        # (B*S, Dk)

            # Attention + updates stay per-batch (softmax must not mix batches).
            upd_parts, attn_parts = [], []
            for b in range(B):
                q_b = q_all[b * S:(b + 1) * S, :]                      # (S, Dk)
                k_b = k_all[b * N:(b + 1) * N, :]                      # (N, Dk)
                v_b = v_all[b * N:(b + 1) * N, :]                      # (N, Dk)
                dots = jax.lax.dot_general(
                    q_b, k_b, (((1,), (1,)), ((), ())),
                    preferred_element_type=jnp.float32) * scale        # (S, N)
                # softmax over slots (== dots.flatten(1,2).softmax(dim=1), n_heads=1)
                m = jnp.max(dots, axis=0, keepdims=True)
                e = jnp.exp(dots - m)
                attn_b = e * pl.reciprocal(jnp.sum(e, axis=0, keepdims=True),
                                           approx=True)
                # re-normalize over input positions
                a_w = attn_b + eps
                a_w = a_w * pl.reciprocal(jnp.sum(a_w, axis=-1, keepdims=True),
                                          approx=True)
                upd_parts.append(jnp.dot(a_w, v_b,
                                         preferred_element_type=jnp.float32))
                if it == iters - 1:
                    attn_parts.append(attn_b)                          # attn_before_reweighting
            updates = (jnp.concatenate(upd_parts, axis=0)
                       if B > 1 else upd_parts[0])                     # (B*S, Dk)
            if it == iters - 1:
                attn_all = (jnp.concatenate(attn_parts, axis=0)
                            if B > 1 else attn_parts[0])               # (B*S, N)

            # GRUCell over all B*S rows, PyTorch gate order [r|z|n].
            # r/z gates fused into a single matmul on [updates | slots_prev].
            cat = jnp.concatenate([updates, slots_prev], axis=-1)      # (B*S, Dk+Do)
            g_rz = (jnp.dot(cat, rzblob_ref[pl.ds(WRZ, Dk + Do), :],
                            preferred_element_type=jnp.float32)
                    + rzblob_ref[pl.ds(BRZ, 1), :])                    # (B*S, 2*Do)
            r = jax.nn.sigmoid(g_rz[:, :Do])
            z = jax.nn.sigmoid(g_rz[:, Do:])
            gi_n = (jnp.dot(updates, oblob_ref[pl.ds(WIHN, Dk), :],
                            preferred_element_type=jnp.float32)
                    + oblob_ref[pl.ds(BIHN, 1), :])
            gh_n = (jnp.dot(slots_prev, oblob_ref[pl.ds(WHHN, Do), :],
                            preferred_element_type=jnp.float32)
                    + oblob_ref[pl.ds(BHHN, 1), :])
            n = jnp.tanh(gi_n + r * gh_n)
            slots = (1.0 - z) * n + z * slots_prev
            # ff_mlp is None in this configuration -> no residual MLP block.
        return slots, attn_all

    null = fblob_ref[pl.ds(NULLP, 1), :]                               # (1, Df)

    # ---- pass 1: slot attention on (feature + prompt_weight * null_prompt) ----
    slots1, attn1 = sa_pass(feat_ref[...] + prompt_weight * null)
    slots_pair_ref[0] = slots1
    attn_pair_ref[0] = attn1

    # ---- VQ pool over all B*S slots at once ----
    code = oblob_ref[pl.ds(CODE, K), :]                                # (K, Do)
    s2 = jnp.sum(slots1 * slots1, axis=-1, keepdims=True)              # (M, 1)
    c2 = jnp.sum(code * code, axis=-1)                                 # (K,)
    sc = jax.lax.dot_general(slots1, code, (((1,), (1,)), ((), ())),
                             preferred_element_type=jnp.float32)       # (M, K)
    dist = s2 - 2.0 * sc + c2[None, :]                                 # (M, K)

    min_d = jnp.min(dist, axis=-1, keepdims=True)
    lane = jax.lax.broadcasted_iota(jnp.int32, dist.shape, 1)
    # first-argmin; sentinel clamped to K-1 so NaNs can never index OOB
    masked = jnp.where(dist <= min_d, lane, K - 1)
    idx_col = jnp.min(masked, axis=-1, keepdims=True)                  # (M, 1)
    onehot = (lane == idx_col).astype(jnp.float32)                     # (M, K)

    quant = jnp.dot(onehot, code, preferred_element_type=jnp.float32)  # (M, Do)
    # per-slot mean over the feature dim; wrapper takes mean over B*S so the
    # total matches F.mse_loss(slots, quantized) with default 'mean'.
    commit_ref[...] = jnp.mean((slots1 - quant) ** 2, axis=-1).reshape(1, M)
    idx_ref[...] = idx_col.reshape(1, M)

    # Embedding gather as a tiny MXU matmul (onehot @ table).
    pemb_all = jnp.dot(onehot, fblob_ref[pl.ds(PEMB, K), :],
                       preferred_element_type=jnp.float32)             # (M, Df)

    # ---- PromptTo2D spread + prompted feature ----
    # Read pass-1 attention back from its output ref (bounds live ranges).
    attn1_back = attn_pair_ref[0]                                      # (M, N)
    prompt_parts = []
    for b in range(B):
        attn_b = attn1_back[b * S:(b + 1) * S, :]                      # (S, N)
        pemb_b = pemb_all[b * S:(b + 1) * S, :]                        # (S, Df)
        # prompt[n, :] = sum_s attn[s, n] * pemb[s, :]
        prompt_parts.append(
            jax.lax.dot_general(attn_b, pemb_b, (((0,), (0,)), ((), ())),
                                preferred_element_type=jnp.float32))   # (N, Df)
    prompt_all = (jnp.concatenate(prompt_parts, axis=0)
                  if B > 1 else prompt_parts[0])                       # (B*N, Df)
    prompted_all = feat_ref[...] + prompt_weight * prompt_all
    prompt_pair_ref[0] = prompt_all
    prompt_pair_ref[1] = prompted_all

    # ---- pass 2: slot attention on the prompted feature ----
    slots2, attn2 = sa_pass(prompted_all)
    slots_pair_ref[1] = slots2
    attn_pair_ref[1] = attn2


def fused_forward(feature, conditioning, p, prompt_weight=PROMPT_WEIGHT):
    B, N, Df = feature.shape
    _, S, Do = conditioning.shape
    Dk = p["blob_k"].shape[1]
    K = p["blob_f"].shape[0] - 3
    M = B * S

    # Stack batch into rows outside the kernel (free XLA reshape); outputs
    # come back row-stacked and are reshaped to (B, S/N, ...) by the caller.
    feat2d = feature.reshape(B * N, Df)
    cond2d = conditioning.reshape(B * S, Do)

    kern = functools.partial(
        fused_forward_kernel,
        batch=B, n_tokens=N, n_slots=S, feat_dim=Df, obj_dim=Do, kvq_dim=Dk,
        num_codes=K, iters=ITERS, eps=EPS, ln_eps=LN_EPS,
        scale=float(Dk) ** -0.5, prompt_weight=prompt_weight)

    def full_spec(shape):
        nd = len(shape)
        return pl.BlockSpec(shape, lambda i, _nd=nd: (0,) * _nd)

    inputs = (feat2d, cond2d, p["blob_k"], p["blob_rz"], p["blob_o"], p["blob_f"])

    out_shape = [
        jax.ShapeDtypeStruct((2, M, Do), jnp.float32),       # [pre_slots; slots]
        jax.ShapeDtypeStruct((2, M, N), jnp.float32),        # [pre_attn; attn]
        jax.ShapeDtypeStruct((2, B * N, Df), jnp.float32),   # [prompt; prompted_feature]
        jax.ShapeDtypeStruct((1, M), jnp.int32),             # pool indices
        jax.ShapeDtypeStruct((1, M), jnp.float32),           # per-slot commit
    ]

    # grid=(1,): whole batch in one invocation (single TC on v5e/v6e).
    # On v7x, switch to grid=(B,) + dimension_semantics=("parallel",) so both
    # TensorCores split the batch.
    return pl.pallas_call(
        kern,
        grid=(1,),
        in_specs=[full_spec(x.shape) for x in inputs],
        out_specs=[full_spec(s.shape) for s in out_shape],
        out_shape=out_shape,
        compiler_params=pltpu.CompilerParams(
            dimension_semantics=("arbitrary",)),
    )(*inputs)


# ---------------------------------------------------------------------------
# Glue pieces (plain JAX).
# ---------------------------------------------------------------------------
def decode(slots, p):
    # TODO(synk): object_decoder is an externally-injected module of unknown
    # architecture; modeled here as a per-slot linear decoder slots->feature_dim.
    return jnp.einsum("bso,of->bsf", slots, p["w_dec"]) + p["b_dec"]


def forward(feature, conditioning, params,
            prompt_weight=PROMPT_WEIGHT, warmup=BASE_WARMUP, freq=BASE_FREQ,
            step=0):
    # training-schedule bookkeeping (self.iters counter in the torch module)
    train_prompt = (step % freq != 0) if step >= warmup else False

    (slots_pair, attn_pair, prompt_pair, idx_row, commit_row) = fused_forward(
        feature, conditioning, params, prompt_weight)

    B, N, Df = feature.shape
    _, S, Do = conditioning.shape

    pre_slots = slots_pair[0].reshape(B, S, Do)
    slots = slots_pair[1].reshape(B, S, Do)
    pre_attn = attn_pair[0].reshape(B, S, N)
    attn = attn_pair[1].reshape(B, S, N)
    prompt = prompt_pair[0].reshape(B, N, Df)
    prompted_feature = prompt_pair[1].reshape(B, N, Df)
    indices = idx_row.reshape(B, S)
    commit = commit_row.reshape(B, S)

    pre_decoding = decode(pre_slots, params)
    post_decoding = decode(slots, params)

    # slot_mask is None and empty_slot is None -> no masked-slot overwrite
    dec_to_train = post_decoding if train_prompt else pre_decoding

    return {
        "slots": slots,
        "decoder": dec_to_train,
        "prompt": prompt,
        "prompted_feature": prompted_feature,
        "feature": feature,
        "pre_object_decoder": pre_decoding,
        "object_decoder": post_decoding,
        "feature_attributions": attn,
        "is_empty": None,
        "pool_indices": indices,
        # mean over B*S of per-slot feature-dim means == F.mse_loss(...,'mean')
        "commit_loss": commit.mean(),
        "pre_slots": pre_slots,
        "pre_attn": pre_attn,
    }


# ---------------------------------------------------------------------------
# Deterministic parameter construction (packed blob layouts for the kernel).
# Any real weight import must follow the same row order and [r|z|n] GRU gate
# order (PyTorch GRUCell), with projection weights stored transposed.
# ---------------------------------------------------------------------------
def make_params(key, Df, Do, Dk, K):
    ks = jax.random.split(key, 12)
    xavier = lambda k, shape: jax.random.normal(k, shape, jnp.float32) * (
        2.0 / (shape[-2] + shape[-1])) ** 0.5

    wk = xavier(ks[0], (Df, Dk))            # to_k.weight^T
    wv = xavier(ks[1], (Df, Dk))            # to_v.weight^T
    wq = xavier(ks[2], (Do, Dk))            # to_q.weight^T

    # GRUCell weights, transposed, PyTorch gate order [r | z | n]
    wih = jax.random.normal(ks[3], (Dk, 3 * Do), jnp.float32) * Do ** -0.5
    whh = jax.random.normal(ks[4], (Do, 3 * Do), jnp.float32) * Do ** -0.5
    bih = jax.random.normal(ks[5], (1, 3 * Do), jnp.float32) * 0.01
    bhh = jax.random.normal(ks[6], (1, 3 * Do), jnp.float32) * 0.01

    wih_rz, wih_n = wih[:, :2 * Do], wih[:, 2 * Do:]
    whh_rz, whh_n = whh[:, :2 * Do], whh[:, 2 * Do:]
    b_rz = bih[:, :2 * Do] + bhh[:, :2 * Do]           # r/z biases always summed
    bih_n, bhh_n = bih[:, 2 * Do:], bhh[:, 2 * Do:]

    ln_in_w = jnp.ones((1, Df), jnp.float32)
    ln_in_b = jnp.zeros((1, Df), jnp.float32)
    ln_sl_w = jnp.ones((1, Do), jnp.float32)
    ln_sl_b = jnp.zeros((1, Do), jnp.float32)

    null_prompt = xavier(ks[7], (1, Df))                       # xavier_normal (1,1,Df)
    codebook = jax.random.normal(ks[8], (K, Do), jnp.float32)  # pool codebook
    prompt_embed = jax.random.normal(ks[9], (K, Df), jnp.float32) * 0.1

    return {
        # packed blobs, grouped by last dim (row offsets documented in kernel)
        "blob_k": jnp.concatenate([wk, wv, wq], axis=0),                 # (2Df+Do, Dk)
        "blob_rz": jnp.concatenate([wih_rz, whh_rz, b_rz], axis=0),      # (Dk+Do+1, 2Do)
        "blob_o": jnp.concatenate([wih_n, whh_n, bih_n, bhh_n,
                                   ln_sl_w, ln_sl_b, codebook], axis=0), # (Dk+Do+4+K, Do)
        "blob_f": jnp.concatenate([ln_in_w, ln_in_b, null_prompt,
                                   prompt_embed], axis=0),               # (3+K, Df)
        # stand-in linear object decoder (outside the kernel)
        "w_dec": xavier(ks[10], (Do, Df)),
        "b_dec": jnp.zeros((Df,), jnp.float32),
    }


if __name__ == "__main__":
    B, N, S = 2, 16, 8            # batch, tokens (e.g. 4x4 feature map), slots
    Df, Do, Dk = 32, 32, 32       # feature_dim, object_dim, kvq_dim
    K = 16                        # pool.codebook_size

    key = jax.random.PRNGKey(0)
    k_feat, k_cond, k_par = jax.random.split(key, 3)
    feature = jax.random.normal(k_feat, (B, N, Df), jnp.float32)
    conditioning = jax.random.normal(k_cond, (B, S, Do), jnp.float32)
    params = make_params(k_par, Df, Do, Dk, K)

    out = forward(feature, conditioning, params)
    out = jax.block_until_ready(out)

    assert out["slots"].shape == (B, S, Do)
    assert out["feature_attributions"].shape == (B, S, N)
    assert out["prompted_feature"].shape == (B, N, Df)
    assert out["pool_indices"].shape == (B, S)
    print("KERNEL_OK")
</pallas_src>

<mosaic_0001>
module attributes {stable_mosaic.version = 11 : i64} {
  func.func @fused_forward_kernel(%arg0: i32, %arg1: memref<32x32xf32, #tpu.memory_space<vmem>>, %arg2: memref<16x32xf32, #tpu.memory_space<vmem>>, %arg3: memref<96x32xf32, #tpu.memory_space<vmem>>, %arg4: memref<65x64xf32, #tpu.memory_space<vmem>>, %arg5: memref<84x32xf32, #tpu.memory_space<vmem>>, %arg6: memref<19x32xf32, #tpu.memory_space<vmem>>, %arg7: memref<2x16x32xf32, #tpu.memory_space<vmem>>, %arg8: memref<2x16x16xf32, #tpu.memory_space<vmem>>, %arg9: memref<2x32x32xf32, #tpu.memory_space<vmem>>, %arg10: memref<1x16xi32, #tpu.memory_space<vmem>>, %arg11: memref<1x16xf32, #tpu.memory_space<vmem>>) attributes {dimension_semantics = [#tpu.dimension_semantics<arbitrary>], iteration_bounds = array<i64: 1>, scalar_prefetch = 0 : i64, scratch_operands = 0 : i64, tpu.core_type = #tpu.core_type<tc>, window_params = [{pipeline_mode = #tpu.pipeline_mode<synchronous>, transform_indices = @transform_0, window_bounds = array<i64: 32, 32>}, {pipeline_mode = #tpu.pipeline_mode<synchronous>, transform_indices = @transform_1, window_bounds = array<i64: 16, 32>}, {pipeline_mode = #tpu.pipeline_mode<synchronous>, transform_indices = @transform_2, window_bounds = array<i64: 96, 32>}, {pipeline_mode = #tpu.pipeline_mode<synchronous>, transform_indices = @transform_3, window_bounds = array<i64: 65, 64>}, {pipeline_mode = #tpu.pipeline_mode<synchronous>, transform_indices = @transform_4, window_bounds = array<i64: 84, 32>}, {pipeline_mode = #tpu.pipeline_mode<synchronous>, transform_indices = @transform_5, window_bounds = array<i64: 19, 32>}, {pipeline_mode = #tpu.pipeline_mode<synchronous>, transform_indices = @transform_6, window_bounds = array<i64: 2, 16, 32>}, {pipeline_mode = #tpu.pipeline_mode<synchronous>, transform_indices = @transform_7, window_bounds = array<i64: 2, 16, 16>}, {pipeline_mode = #tpu.pipeline_mode<synchronous>, transform_indices = @transform_8, window_bounds = array<i64: 2, 32, 32>}, {pipeline_mode = #tpu.pipeline_mode<synchronous>, transform_indices = @transform_9, window_bounds = array<i64: 1, 16>}, {pipeline_mode = #tpu.pipeline_mode<synchronous>, transform_indices = @transform_10, window_bounds = array<i64: 1, 16>}]} {
    %c2 = arith.constant 2 : index
    %c0 = arith.constant 0 : index
    %0 = vector.load %arg6[%c2, %c0] : memref<19x32xf32, #tpu.memory_space<vmem>>, vector<1x32xf32>
    %c0_0 = arith.constant 0 : index
    %c0_1 = arith.constant 0 : index
    %1 = vector.load %arg1[%c0_0, %c0_1] : memref<32x32xf32, #tpu.memory_space<vmem>>, vector<32x32xf32>
    %cst = arith.constant 5.000000e-01 : f32
    %2 = vector.broadcast %cst : f32 to vector<1x32xf32>
    %3 = arith.mulf %2, %0 : vector<1x32xf32>
    %4 = vector.broadcast %3 : vector<1x32xf32> to vector<32x32xf32>
    %5 = arith.addf %1, %4 : vector<32x32xf32>
    %c0_2 = arith.constant 0 : index
    %c0_3 = arith.constant 0 : index
    %6 = vector.load %arg6[%c0_2, %c0_3] : memref<19x32xf32, #tpu.memory_space<vmem>>, vector<1x32xf32>
    %c1 = arith.constant 1 : index
    %c0_4 = arith.constant 0 : index
    %7 = vector.load %arg6[%c1, %c0_4] : memref<19x32xf32, #tpu.memory_space<vmem>>, vector<1x32xf32>
    %cst_5 = arith.constant dense<0.000000e+00> : vector<32xf32>
    %8 = vector.multi_reduction <add>, %5, %cst_5 [1] : vector<32x32xf32> to vector<32xf32>
    %9 = vector.shape_cast %8 : vector<32xf32> to vector<32x1xf32>
    %cst_6 = arith.constant 3.200000e+01 : f32
    %10 = vector.broadcast %cst_6 : f32 to vector<32x1xf32>
    %11 = arith.divf %9, %10 : vector<32x1xf32>
    %12 = vector.broadcast %11 : vector<32x1xf32> to vector<32x32xf32>
    %13 = arith.subf %5, %12 : vector<32x32xf32>
    %14 = arith.mulf %13, %13 : vector<32x32xf32>
    %cst_7 = arith.constant dense<0.000000e+00> : vector<32xf32>
    %15 = vector.multi_reduction <add>, %14, %cst_7 [1] : vector<32x32xf32> to vector<32xf32>
    %16 = vector.shape_cast %15 : vector<32xf32> to vector<32x1xf32>
    %cst_8 = arith.constant 3.200000e+01 : f32
    %17 = vector.broadcast %cst_8 : f32 to vector<32x1xf32>
    %18 = arith.divf %16, %17 : vector<32x1xf32>
    %19 = vector.broadcast %11 : vector<32x1xf32> to vector<32x32xf32>
    %20 = arith.subf %5, %19 : vector<32x32xf32>
    %cst_9 = arith.constant 9.99999974E-6 : f32
    %21 = vector.broadcast %cst_9 : f32 to vector<32x1xf32>
    %22 = arith.addf %18, %21 : vector<32x1xf32>
    %23 = math.rsqrt %22 : vector<32x1xf32>
    %24 = vector.broadcast %23 : vector<32x1xf32> to vector<32x32xf32>
    %25 = arith.mulf %20, %24 : vector<32x32xf32>
    %26 = vector.broadcast %6 : vector<1x32xf32> to vector<32x32xf32>
    %27 = arith.mulf %25, %26 : vector<32x32xf32>
    %28 = vector.broadcast %7 : vector<1x32xf32> to vector<32x32xf32>
    %29 = arith.addf %27, %28 : vector<32x32xf32>
    %c0_10 = arith.constant 0 : index
    %c0_11 = arith.constant 0 : index
    %30 = vector.load %arg3[%c0_10, %c0_11] : memref<96x32xf32, #tpu.memory_space<vmem>>, vector<32x32xf32>
    %cst_12 = arith.constant dense<0.000000e+00> : vector<32x32xf32>
    %31 = tpu.matmul %29, %30, %cst_12 {dimension_numbers = #tpu.dot_dimension_numbers<[1], [0], [0], [1], [0, 0, 1, 1], [], []>} : vector<32x32xf32>, vector<32x32xf32>, vector<32x32xf32> -> vector<32x32xf32>
    %c32 = arith.constant 32 : index
    %c0_13 = arith.constant 0 : index
    %32 = vector.load %arg3[%c32, %c0_13] : memref<96x32xf32, #tpu.memory_space<vmem>>, vector<32x32xf32>
    %cst_14 = arith.constant dense<0.000000e+00> : vector<32x32xf32>
    %33 = tpu.matmul %29, %32, %cst_14 {dimension_numbers = #tpu.dot_dimension_numbers<[1], [0], [0], [1], [0, 0, 1, 1], [], []>} : vector<32x32xf32>, vector<32x32xf32>, vector<32x32xf32> -> vector<32x32xf32>
    %c0_15 = arith.constant 0 : index
    %c0_16 = arith.constant 0 : index
    %34 = vector.load %arg2[%c0_15, %c0_16] : memref<16x32xf32, #tpu.memory_space<vmem>>, vector<16x32xf32>
    %c66 = arith.constant 66 : index
    %c0_17 = arith.constant 0 : index
    %35 = vector.load %arg5[%c66, %c0_17] : memref<84x32xf32, #tpu.memory_space<vmem>>, vector<1x32xf32>
    %c67 = arith.constant 67 : index
    %c0_18 = arith.constant 0 : index
    %36 = vector.load %arg5[%c67, %c0_18] : memref<84x32xf32, #tpu.memory_space<vmem>>, vector<1x32xf32>
    %cst_19 = arith.constant dense<0.000000e+00> : vector<16xf32>
    %37 = vector.multi_reduction <add>, %34, %cst_19 [1] : vector<16x32xf32> to vector<16xf32>
    %38 = vector.shape_cast %37 : vector<16xf32> to vector<16x1xf32>
    %cst_20 = arith.constant 3.200000e+01 : f32
    %39 = vector.broadcast %cst_20 : f32 to vector<16x1xf32>
    %40 = arith.divf %38, %39 : vector<16x1xf32>
    %41 = vector.broadcast %40 : vector<16x1xf32> to vector<16x32xf32>
    %42 = arith.subf %34, %41 : vector<16x32xf32>
    %43 = arith.mulf %42, %42 : vector<16x32xf32>
    %cst_21 = arith.constant dense<0.000000e+00> : vector<16xf32>
    %44 = vector.multi_reduction <add>, %43, %cst_21 [1] : vector<16x32xf32> to vector<16xf32>
    %45 = vector.shape_cast %44 : vector<16xf32> to vector<16x1xf32>
    %cst_22 = arith.constant 3.200000e+01 : f32
    %46 = vector.broadcast %cst_22 : f32 to vector<16x1xf32>
    %47 = arith.divf %45, %46 : vector<16x1xf32>
    %48 = vector.broadcast %40 : vector<16x1xf32> to vector<16x32xf32>
    %49 = arith.subf %34, %48 : vector<16x32xf32>
    %cst_23 = arith.constant 9.99999974E-6 : f32
    %50 = vector.broadcast %cst_23 : f32 to vector<16x1xf32>
    %51 = arith.addf %47, %50 : vector<16x1xf32>
    %52 = math.rsqrt %51 : vector<16x1xf32>
    %53 = vector.broadcast %52 : vector<16x1xf32> to vector<16x32xf32>
    %54 = arith.mulf %49, %53 : vector<16x32xf32>
    %55 = vector.broadcast %35 : vector<1x32xf32> to vector<16x32xf32>
    %56 = arith.mulf %54, %55 : vector<16x32xf32>
    %57 = vector.broadcast %36 : vector<1x32xf32> to vector<16x32xf32>
    %58 = arith.addf %56, %57 : vector<16x32xf32>
    %c64 = arith.constant 64 : index
    %c0_24 = arith.constant 0 : index
    %59 = vector.load %arg3[%c64, %c0_24] : memref<96x32xf32, #tpu.memory_space<vmem>>, vector<32x32xf32>
    %cst_25 = arith.constant dense<0.000000e+00> : vector<16x32xf32>
    %60 = tpu.matmul %58, %59, %cst_25 {dimension_numbers = #tpu.dot_dimension_numbers<[1], [0], [0], [1], [0, 0, 1, 1], [], []>} : vector<16x32xf32>, vector<32x32xf32>, vector<16x32xf32> -> vector<16x32xf32>
    %61 = vector.extract_strided_slice %60 {offsets = [0, 0], sizes = [8, 32], strides = [1, 1]} : vector<16x32xf32> to vector<8x32xf32>
    %62 = vector.extract_strided_slice %31 {offsets = [0, 0], sizes = [16, 32], strides = [1, 1]} : vector<32x32xf32> to vector<16x32xf32>
    %63 = vector.extract_strided_slice %33 {offsets = [0, 0], sizes = [16, 32], strides = [1, 1]} : vector<32x32xf32> to vector<16x32xf32>
    %cst_26 = arith.constant dense<0.000000e+00> : vector<8x16xf32>
    %64 = tpu.matmul %61, %62, %cst_26 {dimension_numbers = #tpu.dot_dimension_numbers<[1], [1], [0], [0], [0, 0, 1, 0], [], []>} : vector<8x32xf32>, vector<16x32xf32>, vector<8x16xf32> -> vector<8x16xf32>
    %cst_27 = arith.constant 0.176776692 : f32
    %65 = vector.broadcast %cst_27 : f32 to vector<8x16xf32>
    %66 = arith.mulf %64, %65 : vector<8x16xf32>
    %cst_28 = arith.constant dense<0xFF800000> : vector<16xf32>
    %67 = vector.multi_reduction <maximumf>, %66, %cst_28 [0] : vector<8x16xf32> to vector<16xf32>
    %68 = vector.shape_cast %67 : vector<16xf32> to vector<1x16xf32>
    %69 = vector.broadcast %68 : vector<1x16xf32> to vector<8x16xf32>
    %70 = arith.subf %66, %69 : vector<8x16xf32>
    %71 = math.exp %70 : vector<8x16xf32>
    %cst_29 = arith.constant dense<0.000000e+00> : vector<16xf32>
    %72 = vector.multi_reduction <add>, %71, %cst_29 [0] : vector<8x16xf32> to vector<16xf32>
    %73 = vector.shape_cast %72 : vector<16xf32> to vector<1x16xf32>
    %74 = tpu.reciprocal %73 {approx = true} : vector<1x16xf32> -> vector<1x16xf32>
    %75 = vector.broadcast %74 : vector<1x16xf32> to vector<8x16xf32>
    %76 = arith.mulf %71, %75 : vector<8x16xf32>
    %cst_30 = arith.constant 9.99999993E-9 : f32
    %77 = vector.broadcast %cst_30 : f32 to vector<8x16xf32>
    %78 = arith.addf %76, %77 : vector<8x16xf32>
    %cst_31 = arith.constant dense<0.000000e+00> : vector<8xf32>
    %79 = vector.multi_reduction <add>, %78, %cst_31 [1] : vector<8x16xf32> to vector<8xf32>
    %80 = vector.shape_cast %79 : vector<8xf32> to vector<8x1xf32>
    %81 = tpu.reciprocal %80 {approx = true} : vector<8x1xf32> -> vector<8x1xf32>
    %82 = vector.broadcast %81 : vector<8x1xf32> to vector<8x16xf32>
    %83 = arith.mulf %78, %82 : vector<8x16xf32>
    %cst_32 = arith.constant dense<0.000000e+00> : vector<8x32xf32>
    %84 = tpu.matmul %83, %63, %cst_32 {dimension_numbers = #tpu.dot_dimension_numbers<[1], [0], [0], [1], [0, 0, 1, 1], [], []>} : vector<8x16xf32>, vector<16x32xf32>, vector<8x32xf32> -> vector<8x32xf32>
    %85 = vector.extract_strided_slice %60 {offsets = [8, 0], sizes = [8, 32], strides = [1, 1]} : vector<16x32xf32> to vector<8x32xf32>
    %86 = vector.extract_strided_slice %31 {offsets = [16, 0], sizes = [16, 32], strides = [1, 1]} : vector<32x32xf32> to vector<16x32xf32>
    %87 = vector.extract_strided_slice %33 {offsets = [16, 0], sizes = [16, 32], strides = [1, 1]} : vector<32x32xf32> to vector<16x32xf32>
    %cst_33 = arith.constant dense<0.000000e+00> : vector<8x16xf32>
    %88 = tpu.matmul %85, %86, %cst_33 {dimension_numbers = #tpu.dot_dimension_numbers<[1], [1], [0], [0], [0, 0, 1, 0], [], []>} : vector<8x32xf32>, vector<16x32xf32>, vector<8x16xf32> -> vector<8x16xf32>
    %cst_34 = arith.constant 0.176776692 : f32
    %89 = vector.broadcast %cst_34 : f32 to vector<8x16xf32>
    %90 = arith.mulf %88, %89 : vector<8x16xf32>
    %cst_35 = arith.constant dense<0xFF800000> : vector<16xf32>
    %91 = vector.multi_reduction <maximumf>, %90, %cst_35 [0] : vector<8x16xf32> to vector<16xf32>
    %92 = vector.shape_cast %91 : vector<16xf32> to vector<1x16xf32>
    %93 = vector.broadcast %92 : vector<1x16xf32> to vector<8x16xf32>
    %94 = arith.subf %90, %93 : vector<8x16xf32>
    %95 = math.exp %94 : vector<8x16xf32>
    %cst_36 = arith.constant dense<0.000000e+00> : vector<16xf32>
    %96 = vector.multi_reduction <add>, %95, %cst_36 [0] : vector<8x16xf32> to vector<16xf32>
    %97 = vector.shape_cast %96 : vector<16xf32> to vector<1x16xf32>
    %98 = tpu.reciprocal %97 {approx = true} : vector<1x16xf32> -> vector<1x16xf32>
    %99 = vector.broadcast %98 : vector<1x16xf32> to vector<8x16xf32>
    %100 = arith.mulf %95, %99 : vector<8x16xf32>
    %cst_37 = arith.constant 9.99999993E-9 : f32
    %101 = vector.broadcast %cst_37 : f32 to vector<8x16xf32>
    %102 = arith.addf %100, %101 : vector<8x16xf32>
    %cst_38 = arith.constant dense<0.000000e+00> : vector<8xf32>
    %103 = vector.multi_reduction <add>, %102, %cst_38 [1] : vector<8x16xf32> to vector<8xf32>
    %104 = vector.shape_cast %103 : vector<8xf32> to vector<8x1xf32>
    %105 = tpu.reciprocal %104 {approx = true} : vector<8x1xf32> -> vector<8x1xf32>
    %106 = vector.broadcast %105 : vector<8x1xf32> to vector<8x16xf32>
    %107 = arith.mulf %102, %106 : vector<8x16xf32>
    %cst_39 = arith.constant dense<0.000000e+00> : vector<8x32xf32>
    %108 = tpu.matmul %107, %87, %cst_39 {dimension_numbers = #tpu.dot_dimension_numbers<[1], [0], [0], [1], [0, 0, 1, 1], [], []>} : vector<8x16xf32>, vector<16x32xf32>, vector<8x32xf32> -> vector<8x32xf32>
    %109 = tpu.concatenate %84, %108 in 0 : vector<8x32xf32>, vector<8x32xf32> -> vector<16x32xf32>
    %110 = tpu.concatenate %109, %34 in 1 : vector<16x32xf32>, vector<16x32xf32> -> vector<16x64xf32>
    %c0_40 = arith.constant 0 : index
    %c0_41 = arith.constant 0 : index
    %111 = vector.load %arg4[%c0_40, %c0_41] : memref<65x64xf32, #tpu.memory_space<vmem>>, vector<64x64xf32>
    %cst_42 = arith.constant dense<0.000000e+00> : vector<16x64xf32>
    %112 = tpu.matmul %110, %111, %cst_42 {dimension_numbers = #tpu.dot_dimension_numbers<[1], [0], [0], [1], [0, 0, 1, 1], [], []>} : vector<16x64xf32>, vector<64x64xf32>, vector<16x64xf32> -> vector<16x64xf32>
    %c64_43 = arith.constant 64 : index
    %c0_44 = arith.constant 0 : index
    %113 = vector.load %arg4[%c64_43, %c0_44] : memref<65x64xf32, #tpu.memory_space<vmem>>, vector<1x64xf32>
    %114 = vector.broadcast %113 : vector<1x64xf32> to vector<16x64xf32>
    %115 = arith.addf %112, %114 : vector<16x64xf32>
    %116 = vector.extract_strided_slice %115 {offsets = [0, 0], sizes = [16, 32], strides = [1, 1]} : vector<16x64xf32> to vector<16x32xf32>
    %117 = arith.negf %116 : vector<16x32xf32>
    %118 = math.exp %117 : vector<16x32xf32>
    %cst_45 = arith.constant 1.000000e+00 : f32
    %119 = vector.broadcast %cst_45 : f32 to vector<16x32xf32>
    %120 = arith.addf %119, %118 : vector<16x32xf32>
    %121 = arith.divf %119, %120 : vector<16x32xf32>
    %122 = vector.extract_strided_slice %115 {offsets = [0, 32], sizes = [16, 32], strides = [1, 1]} : vector<16x64xf32> to vector<16x32xf32>
    %123 = arith.negf %122 : vector<16x32xf32>
    %124 = math.exp %123 : vector<16x32xf32>
    %cst_46 = arith.constant 1.000000e+00 : f32
    %125 = vector.broadcast %cst_46 : f32 to vector<16x32xf32>
    %126 = arith.addf %125, %124 : vector<16x32xf32>
    %127 = arith.divf %125, %126 : vector<16x32xf32>
    %c0_47 = arith.constant 0 : index
    %c0_48 = arith.constant 0 : index
    %128 = vector.load %arg5[%c0_47, %c0_48] : memref<84x32xf32, #tpu.memory_space<vmem>>, vector<32x32xf32>
    %cst_49 = arith.constant dense<0.000000e+00> : vector<16x32xf32>
    %129 = tpu.matmul %109, %128, %cst_49 {dimension_numbers = #tpu.dot_dimension_numbers<[1], [0], [0], [1], [0, 0, 1, 1], [], []>} : vector<16x32xf32>, vector<32x32xf32>, vector<16x32xf32> -> vector<16x32xf32>
    %c64_50 = arith.constant 64 : index
    %c0_51 = arith.constant 0 : index
    %130 = vector.load %arg5[%c64_50, %c0_51] : memref<84x32xf32, #tpu.memory_space<vmem>>, vector<1x32xf32>
    %131 = vector.broadcast %130 : vector<1x32xf32> to vector<16x32xf32>
    %132 = arith.addf %129, %131 : vector<16x32xf32>
    %c32_52 = arith.constant 32 : index
    %c0_53 = arith.constant 0 : index
    %133 = vector.load %arg5[%c32_52, %c0_53] : memref<84x32xf32, #tpu.memory_space<vmem>>, vector<32x32xf32>
    %cst_54 = arith.constant dense<0.000000e+00> : vector<16x32xf32>
    %134 = tpu.matmul %34, %133, %cst_54 {dimension_numbers = #tpu.dot_dimension_numbers<[1], [0], [0], [1], [0, 0, 1, 1], [], []>} : vector<16x32xf32>, vector<32x32xf32>, vector<16x32xf32> -> vector<16x32xf32>
    %c65 = arith.constant 65 : index
    %c0_55 = arith.constant 0 : index
    %135 = vector.load %arg5[%c65, %c0_55] : memref<84x32xf32, #tpu.memory_space<vmem>>, vector<1x32xf32>
    %136 = vector.broadcast %135 : vector<1x32xf32> to vector<16x32xf32>
    %137 = arith.addf %134, %136 : vector<16x32xf32>
    %138 = arith.mulf %121, %137 : vector<16x32xf32>
    %139 = arith.addf %132, %138 : vector<16x32xf32>
    %140 = math.tanh %139 : vector<16x32xf32>
    %cst_56 = arith.constant 1.000000e+00 : f32
    %141 = vector.broadcast %cst_56 : f32 to vector<16x32xf32>
    %142 = arith.subf %141, %127 : vector<16x32xf32>
    %143 = arith.mulf %142, %140 : vector<16x32xf32>
    %144 = arith.mulf %127, %34 : vector<16x32xf32>
    %145 = arith.addf %143, %144 : vector<16x32xf32>
    %c66_57 = arith.constant 66 : index
    %c0_58 = arith.constant 0 : index
    %146 = vector.load %arg5[%c66_57, %c0_58] : memref<84x32xf32, #tpu.memory_space<vmem>>, vector<1x32xf32>
    %c67_59 = arith.constant 67 : index
    %c0_60 = arith.constant 0 : index
    %147 = vector.load %arg5[%c67_59, %c0_60] : memref<84x32xf32, #tpu.memory_space<vmem>>, vector<1x32xf32>
    %cst_61 = arith.constant dense<0.000000e+00> : vector<16xf32>
    %148 = vector.multi_reduction <add>, %145, %cst_61 [1] : vector<16x32xf32> to vector<16xf32>
    %149 = vector.shape_cast %148 : vector<16xf32> to vector<16x1xf32>
    %cst_62 = arith.constant 3.200000e+01 : f32
    %150 = vector.broadcast %cst_62 : f32 to vector<16x1xf32>
    %151 = arith.divf %149, %150 : vector<16x1xf32>
    %152 = vector.broadcast %151 : vector<16x1xf32> to vector<16x32xf32>
    %153 = arith.subf %145, %152 : vector<16x32xf32>
    %154 = arith.mulf %153, %153 : vector<16x32xf32>
    %cst_63 = arith.constant dense<0.000000e+00> : vector<16xf32>
    %155 = vector.multi_reduction <add>, %154, %cst_63 [1] : vector<16x32xf32> to vector<16xf32>
    %156 = vector.shape_cast %155 : vector<16xf32> to vector<16x1xf32>
    %cst_64 = arith.constant 3.200000e+01 : f32
    %157 = vector.broadcast %cst_64 : f32 to vector<16x1xf32>
    %158 = arith.divf %156, %157 : vector<16x1xf32>
    %159 = vector.broadcast %151 : vector<16x1xf32> to vector<16x32xf32>
    %160 = arith.subf %145, %159 : vector<16x32xf32>
    %cst_65 = arith.constant 9.99999974E-6 : f32
    %161 = vector.broadcast %cst_65 : f32 to vector<16x1xf32>
    %162 = arith.addf %158, %161 : vector<16x1xf32>
    %163 = math.rsqrt %162 : vector<16x1xf32>
    %164 = vector.broadcast %163 : vector<16x1xf32> to vector<16x32xf32>
    %165 = arith.mulf %160, %164 : vector<16x32xf32>
    %166 = vector.broadcast %146 : vector<1x32xf32> to vector<16x32xf32>
    %167 = arith.mulf %165, %166 : vector<16x32xf32>
    %168 = vector.broadcast %147 : vector<1x32xf32> to vector<16x32xf32>
    %169 = arith.addf %167, %168 : vector<16x32xf32>
    %c64_66 = arith.constant 64 : index
    %c0_67 = arith.constant 0 : index
    %170 = vector.load %arg3[%c64_66, %c0_67] : memref<96x32xf32, #tpu.memory_space<vmem>>, vector<32x32xf32>
    %cst_68 = arith.constant dense<0.000000e+00> : vector<16x32xf32>
    %171 = tpu.matmul %169, %170, %cst_68 {dimension_numbers = #tpu.dot_dimension_numbers<[1], [0], [0], [1], [0, 0, 1, 1], [], []>} : vector<16x32xf32>, vector<32x32xf32>, vector<16x32xf32> -> vector<16x32xf32>
    %172 = vector.extract_strided_slice %171 {offsets = [0, 0], sizes = [8, 32], strides = [1, 1]} : vector<16x32xf32> to vector<8x32xf32>
    %173 = vector.extract_strided_slice %31 {offsets = [0, 0], sizes = [16, 32], strides = [1, 1]} : vector<32x32xf32> to vector<16x32xf32>
    %174 = vector.extract_strided_slice %33 {offsets = [0, 0], sizes = [16, 32], strides = [1, 1]} : vector<32x32xf32> to vector<16x32xf32>
    %cst_69 = arith.constant dense<0.000000e+00> : vector<8x16xf32>
    %175 = tpu.matmul %172, %173, %cst_69 {dimension_numbers = #tpu.dot_dimension_numbers<[1], [1], [0], [0], [0, 0, 1, 0], [], []>} : vector<8x32xf32>, vector<16x32xf32>, vector<8x16xf32> -> vector<8x16xf32>
    %cst_70 = arith.constant 0.176776692 : f32
    %176 = vector.broadcast %cst_70 : f32 to vector<8x16xf32>
    %177 = arith.mulf %175, %176 : vector<8x16xf32>
    %cst_71 = arith.constant dense<0xFF800000> : vector<16xf32>
    %178 = vector.multi_reduction <maximumf>, %177, %cst_71 [0] : vector<8x16xf32> to vector<16xf32>
    %179 = vector.shape_cast %178 : vector<16xf32> to vector<1x16xf32>
    %180 = vector.broadcast %179 : vector<1x16xf32> to vector<8x16xf32>
    %181 = arith.subf %177, %180 : vector<8x16xf32>
    %182 = math.exp %181 : vector<8x16xf32>
    %cst_72 = arith.constant dense<0.000000e+00> : vector<16xf32>
    %183 = vector.multi_reduction <add>, %182, %cst_72 [0] : vector<8x16xf32> to vector<16xf32>
    %184 = vector.shape_cast %183 : vector<16xf32> to vector<1x16xf32>
    %185 = tpu.reciprocal %184 {approx = true} : vector<1x16xf32> -> vector<1x16xf32>
    %186 = vector.broadcast %185 : vector<1x16xf32> to vector<8x16xf32>
    %187 = arith.mulf %182, %186 : vector<8x16xf32>
    %cst_73 = arith.constant 9.99999993E-9 : f32
    %188 = vector.broadcast %cst_73 : f32 to vector<8x16xf32>
    %189 = arith.addf %187, %188 : vector<8x16xf32>
    %cst_74 = arith.constant dense<0.000000e+00> : vector<8xf32>
    %190 = vector.multi_reduction <add>, %189, %cst_74 [1] : vector<8x16xf32> to vector<8xf32>
    %191 = vector.shape_cast %190 : vector<8xf32> to vector<8x1xf32>
    %192 = tpu.reciprocal %191 {approx = true} : vector<8x1xf32> -> vector<8x1xf32>
    %193 = vector.broadcast %192 : vector<8x1xf32> to vector<8x16xf32>
    %194 = arith.mulf %189, %193 : vector<8x16xf32>
    %cst_75 = arith.constant dense<0.000000e+00> : vector<8x32xf32>
    %195 = tpu.matmul %194, %174, %cst_75 {dimension_numbers = #tpu.dot_dimension_numbers<[1], [0], [0], [1], [0, 0, 1, 1], [], []>} : vector<8x16xf32>, vector<16x32xf32>, vector<8x32xf32> -> vector<8x32xf32>
    %196 = vector.extract_strided_slice %171 {offsets = [8, 0], sizes = [8, 32], strides = [1, 1]} : vector<16x32xf32> to vector<8x32xf32>
    %197 = vector.extract_strided_slice %31 {offsets = [16, 0], sizes = [16, 32], strides = [1, 1]} : vector<32x32xf32> to vector<16x32xf32>
    %198 = vector.extract_strided_slice %33 {offsets = [16, 0], sizes = [16, 32], strides = [1, 1]} : vector<32x32xf32> to vector<16x32xf32>
    %cst_76 = arith.constant dense<0.000000e+00> : vector<8x16xf32>
    %199 = tpu.matmul %196, %197, %cst_76 {dimension_numbers = #tpu.dot_dimension_numbers<[1], [1], [0], [0], [0, 0, 1, 0], [], []>} : vector<8x32xf32>, vector<16x32xf32>, vector<8x16xf32> -> vector<8x16xf32>
    %cst_77 = arith.constant 0.176776692 : f32
    %200 = vector.broadcast %cst_77 : f32 to vector<8x16xf32>
    %201 = arith.mulf %199, %200 : vector<8x16xf32>
    %cst_78 = arith.constant dense<0xFF800000> : vector<16xf32>
    %202 = vector.multi_reduction <maximumf>, %201, %cst_78 [0] : vector<8x16xf32> to vector<16xf32>
    %203 = vector.shape_cast %202 : vector<16xf32> to vector<1x16xf32>
    %204 = vector.broadcast %203 : vector<1x16xf32> to vector<8x16xf32>
    %205 = arith.subf %201, %204 : vector<8x16xf32>
    %206 = math.exp %205 : vector<8x16xf32>
    %cst_79 = arith.constant dense<0.000000e+00> : vector<16xf32>
    %207 = vector.multi_reduction <add>, %206, %cst_79 [0] : vector<8x16xf32> to vector<16xf32>
    %208 = vector.shape_cast %207 : vector<16xf32> to vector<1x16xf32>
    %209 = tpu.reciprocal %208 {approx = true} : vector<1x16xf32> -> vector<1x16xf32>
    %210 = vector.broadcast %209 : vector<1x16xf32> to vector<8x16xf32>
    %211 = arith.mulf %206, %210 : vector<8x16xf32>
    %cst_80 = arith.constant 9.99999993E-9 : f32
    %212 = vector.broadcast %cst_80 : f32 to vector<8x16xf32>
    %213 = arith.addf %211, %212 : vector<8x16xf32>
    %cst_81 = arith.constant dense<0.000000e+00> : vector<8xf32>
    %214 = vector.multi_reduction <add>, %213, %cst_81 [1] : vector<8x16xf32> to vector<8xf32>
    %215 = vector.shape_cast %214 : vector<8xf32> to vector<8x1xf32>
    %216 = tpu.reciprocal %215 {approx = true} : vector<8x1xf32> -> vector<8x1xf32>
    %217 = vector.broadcast %216 : vector<8x1xf32> to vector<8x16xf32>
    %218 = arith.mulf %213, %217 : vector<8x16xf32>
    %cst_82 = arith.constant dense<0.000000e+00> : vector<8x32xf32>
    %219 = tpu.matmul %218, %198, %cst_82 {dimension_numbers = #tpu.dot_dimension_numbers<[1], [0], [0], [1], [0, 0, 1, 1], [], []>} : vector<8x16xf32>, vector<16x32xf32>, vector<8x32xf32> -> vector<8x32xf32>
    %220 = tpu.concatenate %195, %219 in 0 : vector<8x32xf32>, vector<8x32xf32> -> vector<16x32xf32>
    %221 = tpu.concatenate %220, %145 in 1 : vector<16x32xf32>, vector<16x32xf32> -> vector<16x64xf32>
    %c0_83 = arith.constant 0 : index
    %c0_84 = arith.constant 0 : index
    %222 = vector.load %arg4[%c0_83, %c0_84] : memref<65x64xf32, #tpu.memory_space<vmem>>, vector<64x64xf32>
    %cst_85 = arith.constant dense<0.000000e+00> : vector<16x64xf32>
    %223 = tpu.matmul %221, %222, %cst_85 {dimension_numbers = #tpu.dot_dimension_numbers<[1], [0], [0], [1], [0, 0, 1, 1], [], []>} : vector<16x64xf32>, vector<64x64xf32>, vector<16x64xf32> -> vector<16x64xf32>
    %c64_86 = arith.constant 64 : index
    %c0_87 = arith.constant 0 : index
    %224 = vector.load %arg4[%c64_86, %c0_87] : memref<65x64xf32, #tpu.memory_space<vmem>>, vector<1x64xf32>
    %225 = vector.broadcast %224 : vector<1x64xf32> to vector<16x64xf32>
    %226 = arith.addf %223, %225 : vector<16x64xf32>
    %227 = vector.extract_strided_slice %226 {offsets = [0, 0], sizes = [16, 32], strides = [1, 1]} : vector<16x64xf32> to vector<16x32xf32>
    %228 = arith.negf %227 : vector<16x32xf32>
    %229 = math.exp %228 : vector<16x32xf32>
    %cst_88 = arith.constant 1.000000e+00 : f32
    %230 = vector.broadcast %cst_88 : f32 to vector<16x32xf32>
    %231 = arith.addf %230, %229 : vector<16x32xf32>
    %232 = arith.divf %230, %231 : vector<16x32xf32>
    %233 = vector.extract_strided_slice %226 {offsets = [0, 32], sizes = [16, 32], strides = [1, 1]} : vector<16x64xf32> to vector<16x32xf32>
    %234 = arith.negf %233 : vector<16x32xf32>
    %235 = math.exp %234 : vector<16x32xf32>
    %cst_89 = arith.constant 1.000000e+00 : f32
    %236 = vector.broadcast %cst_89 : f32 to vector<16x32xf32>
    %237 = arith.addf %236, %235 : vector<16x32xf32>
    %238 = arith.divf %236, %237 : vector<16x32xf32>
    %c0_90 = arith.constant 0 : index
    %c0_91 = arith.constant 0 : index
    %239 = vector.load %arg5[%c0_90, %c0_91] : memref<84x32xf32, #tpu.memory_space<vmem>>, vector<32x32xf32>
    %cst_92 = arith.constant dense<0.000000e+00> : vector<16x32xf32>
    %240 = tpu.matmul %220, %239, %cst_92 {dimension_numbers = #tpu.dot_dimension_numbers<[1], [0], [0], [1], [0, 0, 1, 1], [], []>} : vector<16x32xf32>, vector<32x32xf32>, vector<16x32xf32> -> vector<16x32xf32>
    %c64_93 = arith.constant 64 : index
    %c0_94 = arith.constant 0 : index
    %241 = vector.load %arg5[%c64_93, %c0_94] : memref<84x32xf32, #tpu.memory_space<vmem>>, vector<1x32xf32>
    %242 = vector.broadcast %241 : vector<1x32xf32> to vector<16x32xf32>
    %243 = arith.addf %240, %242 : vector<16x32xf32>
    %c32_95 = arith.constant 32 : index
    %c0_96 = arith.constant 0 : index
    %244 = vector.load %arg5[%c32_95, %c0_96] : memref<84x32xf32, #tpu.memory_space<vmem>>, vector<32x32xf32>
    %cst_97 = arith.constant dense<0.000000e+00> : vector<16x32xf32>
    %245 = tpu.matmul %145, %244, %cst_97 {dimension_numbers = #tpu.dot_dimension_numbers<[1], [0], [0], [1], [0, 0, 1, 1], [], []>} : vector<16x32xf32>, vector<32x32xf32>, vector<16x32xf32> -> vector<16x32xf32>
    %c65_98 = arith.constant 65 : index
    %c0_99 = arith.constant 0 : index
    %246 = vector.load %arg5[%c65_98, %c0_99] : memref<84x32xf32, #tpu.memory_space<vmem>>, vector<1x32xf32>
    %247 = vector.broadcast %246 : vector<1x32xf32> to vector<16x32xf32>
    %248 = arith.addf %245, %247 : vector<16x32xf32>
    %249 = arith.mulf %232, %248 : vector<16x32xf32>
    %250 = arith.addf %243, %249 : vector<16x32xf32>
    %251 = math.tanh %250 : vector<16x32xf32>
    %cst_100 = arith.constant 1.000000e+00 : f32
    %252 = vector.broadcast %cst_100 : f32 to vector<16x32xf32>
    %253 = arith.subf %252, %238 : vector<16x32xf32>
    %254 = arith.mulf %253, %251 : vector<16x32xf32>
    %255 = arith.mulf %238, %145 : vector<16x32xf32>
    %256 = arith.addf %254, %255 : vector<16x32xf32>
    %c66_101 = arith.constant 66 : index
    %c0_102 = arith.constant 0 : index
    %257 = vector.load %arg5[%c66_101, %c0_102] : memref<84x32xf32, #tpu.memory_space<vmem>>, vector<1x32xf32>
    %c67_103 = arith.constant 67 : index
    %c0_104 = arith.constant 0 : index
    %258 = vector.load %arg5[%c67_103, %c0_104] : memref<84x32xf32, #tpu.memory_space<vmem>>, vector<1x32xf32>
    %cst_105 = arith.constant dense<0.000000e+00> : vector<16xf32>
    %259 = vector.multi_reduction <add>, %256, %cst_105 [1] : vector<16x32xf32> to vector<16xf32>
    %260 = vector.shape_cast %259 : vector<16xf32> to vector<16x1xf32>
    %cst_106 = arith.constant 3.200000e+01 : f32
    %261 = vector.broadcast %cst_106 : f32 to vector<16x1xf32>
    %262 = arith.divf %260, %261 : vector<16x1xf32>
    %263 = vector.broadcast %262 : vector<16x1xf32> to vector<16x32xf32>
    %264 = arith.subf %256, %263 : vector<16x32xf32>
    %265 = arith.mulf %264, %264 : vector<16x32xf32>
    %cst_107 = arith.constant dense<0.000000e+00> : vector<16xf32>
    %266 = vector.multi_reduction <add>, %265, %cst_107 [1] : vector<16x32xf32> to vector<16xf32>
    %267 = vector.shape_cast %266 : vector<16xf32> to vector<16x1xf32>
    %cst_108 = arith.constant 3.200000e+01 : f32
    %268 = vector.broadcast %cst_108 : f32 to vector<16x1xf32>
    %269 = arith.divf %267, %268 : vector<16x1xf32>
    %270 = vector.broadcast %262 : vector<16x1xf32> to vector<16x32xf32>
    %271 = arith.subf %256, %270 : vector<16x32xf32>
    %cst_109 = arith.constant 9.99999974E-6 : f32
    %272 = vector.broadcast %cst_109 : f32 to vector<16x1xf32>
    %273 = arith.addf %269, %272 : vector<16x1xf32>
    %274 = math.rsqrt %273 : vector<16x1xf32>
    %275 = vector.broadcast %274 : vector<16x1xf32> to vector<16x32xf32>
    %276 = arith.mulf %271, %275 : vector<16x32xf32>
    %277 = vector.broadcast %257 : vector<1x32xf32> to vector<16x32xf32>
    %278 = arith.mulf %276, %277 : vector<16x32xf32>
    %279 = vector.broadcast %258 : vector<1x32xf32> to vector<16x32xf32>
    %280 = arith.addf %278, %279 : vector<16x32xf32>
    %c64_110 = arith.constant 64 : index
    %c0_111 = arith.constant 0 : index
    %281 = vector.load %arg3[%c64_110, %c0_111] : memref<96x32xf32, #tpu.memory_space<vmem>>, vector<32x32xf32>
    %cst_112 = arith.constant dense<0.000000e+00> : vector<16x32xf32>
    %282 = tpu.matmul %280, %281, %cst_112 {dimension_numbers = #tpu.dot_dimension_numbers<[1], [0], [0], [1], [0, 0, 1, 1], [], []>} : vector<16x32xf32>, vector<32x32xf32>, vector<16x32xf32> -> vector<16x32xf32>
    %283 = vector.extract_strided_slice %282 {offsets = [0, 0], sizes = [8, 32], strides = [1, 1]} : vector<16x32xf32> to vector<8x32xf32>
    %284 = vector.extract_strided_slice %31 {offsets = [0, 0], sizes = [16, 32], strides = [1, 1]} : vector<32x32xf32> to vector<16x32xf32>
    %285 = vector.extract_strided_slice %33 {offsets = [0, 0], sizes = [16, 32], strides = [1, 1]} : vector<32x32xf32> to vector<16x32xf32>
    %cst_113 = arith.constant dense<0.000000e+00> : vector<8x16xf32>
    %286 = tpu.matmul %283, %284, %cst_113 {dimension_numbers = #tpu.dot_dimension_numbers<[1], [1], [0], [0], [0, 0, 1, 0], [], []>} : vector<8x32xf32>, vector<16x32xf32>, vector<8x16xf32> -> vector<8x16xf32>
    %cst_114 = arith.constant 0.176776692 : f32
    %287 = vector.broadcast %cst_114 : f32 to vector<8x16xf32>
    %288 = arith.mulf %286, %287 : vector<8x16xf32>
    %cst_115 = arith.constant dense<0xFF800000> : vector<16xf32>
    %289 = vector.multi_reduction <maximumf>, %288, %cst_115 [0] : vector<8x16xf32> to vector<16xf32>
    %290 = vector.shape_cast %289 : vector<16xf32> to vector<1x16xf32>
    %291 = vector.broadcast %290 : vector<1x16xf32> to vector<8x16xf32>
    %292 = arith.subf %288, %291 : vector<8x16xf32>
    %293 = math.exp %292 : vector<8x16xf32>
    %cst_116 = arith.constant dense<0.000000e+00> : vector<16xf32>
    %294 = vector.multi_reduction <add>, %293, %cst_116 [0] : vector<8x16xf32> to vector<16xf32>
    %295 = vector.shape_cast %294 : vector<16xf32> to vector<1x16xf32>
    %296 = tpu.reciprocal %295 {approx = true} : vector<1x16xf32> -> vector<1x16xf32>
    %297 = vector.broadcast %296 : vector<1x16xf32> to vector<8x16xf32>
    %298 = arith.mulf %293, %297 : vector<8x16xf32>
    %cst_117 = arith.constant 9.99999993E-9 : f32
    %299 = vector.broadcast %cst_117 : f32 to vector<8x16xf32>
    %300 = arith.addf %298, %299 : vector<8x16xf32>
    %cst_118 = arith.constant dense<0.000000e+00> : vector<8xf32>
    %301 = vector.multi_reduction <add>, %300, %cst_118 [1] : vector<8x16xf32> to vector<8xf32>
    %302 = vector.shape_cast %301 : vector<8xf32> to vector<8x1xf32>
    %303 = tpu.reciprocal %302 {approx = true} : vector<8x1xf32> -> vector<8x1xf32>
    %304 = vector.broadcast %303 : vector<8x1xf32> to vector<8x16xf32>
    %305 = arith.mulf %300, %304 : vector<8x16xf32>
    %cst_119 = arith.constant dense<0.000000e+00> : vector<8x32xf32>
    %306 = tpu.matmul %305, %285, %cst_119 {dimension_numbers = #tpu.dot_dimension_numbers<[1], [0], [0], [1], [0, 0, 1, 1], [], []>} : vector<8x16xf32>, vector<16x32xf32>, vector<8x32xf32> -> vector<8x32xf32>
    %307 = vector.extract_strided_slice %282 {offsets = [8, 0], sizes = [8, 32], strides = [1, 1]} : vector<16x32xf32> to vector<8x32xf32>
    %308 = vector.extract_strided_slice %31 {offsets = [16, 0], sizes = [16, 32], strides = [1, 1]} : vector<32x32xf32> to vector<16x32xf32>
    %309 = vector.extract_strided_slice %33 {offsets = [16, 0], sizes = [16, 32], strides = [1, 1]} : vector<32x32xf32> to vector<16x32xf32>
    %cst_120 = arith.constant dense<0.000000e+00> : vector<8x16xf32>
    %310 = tpu.matmul %307, %308, %cst_120 {dimension_numbers = #tpu.dot_dimension_numbers<[1], [1], [0], [0], [0, 0, 1, 0], [], []>} : vector<8x32xf32>, vector<16x32xf32>, vector<8x16xf32> -> vector<8x16xf32>
    %cst_121 = arith.constant 0.176776692 : f32
    %311 = vector.broadcast %cst_121 : f32 to vector<8x16xf32>
    %312 = arith.mulf %310, %311 : vector<8x16xf32>
    %cst_122 = arith.constant dense<0xFF800000> : vector<16xf32>
    %313 = vector.multi_reduction <maximumf>, %312, %cst_122 [0] : vector<8x16xf32> to vector<16xf32>
    %314 = vector.shape_cast %313 : vector<16xf32> to vector<1x16xf32>
    %315 = vector.broadcast %314 : vector<1x16xf32> to vector<8x16xf32>
    %316 = arith.subf %312, %315 : vector<8x16xf32>
    %317 = math.exp %316 : vector<8x16xf32>
    %cst_123 = arith.constant dense<0.000000e+00> : vector<16xf32>
    %318 = vector.multi_reduction <add>, %317, %cst_123 [0] : vector<8x16xf32> to vector<16xf32>
    %319 = vector.shape_cast %318 : vector<16xf32> to vector<1x16xf32>
    %320 = tpu.reciprocal %319 {approx = true} : vector<1x16xf32> -> vector<1x16xf32>
    %321 = vector.broadcast %320 : vector<1x16xf32> to vector<8x16xf32>
    %322 = arith.mulf %317, %321 : vector<8x16xf32>
    %cst_124 = arith.constant 9.99999993E-9 : f32
    %323 = vector.broadcast %cst_124 : f32 to vector<8x16xf32>
    %324 = arith.addf %322, %323 : vector<8x16xf32>
    %cst_125 = arith.constant dense<0.000000e+00> : vector<8xf32>
    %325 = vector.multi_reduction <add>, %324, %cst_125 [1] : vector<8x16xf32> to vector<8xf32>
    %326 = vector.shape_cast %325 : vector<8xf32> to vector<8x1xf32>
    %327 = tpu.reciprocal %326 {approx = true} : vector<8x1xf32> -> vector<8x1xf32>
    %328 = vector.broadcast %327 : vector<8x1xf32> to vector<8x16xf32>
    %329 = arith.mulf %324, %328 : vector<8x16xf32>
    %cst_126 = arith.constant dense<0.000000e+00> : vector<8x32xf32>
    %330 = tpu.matmul %329, %309, %cst_126 {dimension_numbers = #tpu.dot_dimension_numbers<[1], [0], [0], [1], [0, 0, 1, 1], [], []>} : vector<8x16xf32>, vector<16x32xf32>, vector<8x32xf32> -> vector<8x32xf32>
    %331 = tpu.concatenate %306, %330 in 0 : vector<8x32xf32>, vector<8x32xf32> -> vector<16x32xf32>
    %332 = tpu.concatenate %298, %322 in 0 : vector<8x16xf32>, vector<8x16xf32> -> vector<16x16xf32>
    %333 = tpu.concatenate %331, %256 in 1 : vector<16x32xf32>, vector<16x32xf32> -> vector<16x64xf32>
    %c0_127 = arith.constant 0 : index
    %c0_128 = arith.constant 0 : index
    %334 = vector.load %arg4[%c0_127, %c0_128] : memref<65x64xf32, #tpu.memory_space<vmem>>, vector<64x64xf32>
    %cst_129 = arith.constant dense<0.000000e+00> : vector<16x64xf32>
    %335 = tpu.matmul %333, %334, %cst_129 {dimension_numbers = #tpu.dot_dimension_numbers<[1], [0], [0], [1], [0, 0, 1, 1], [], []>} : vector<16x64xf32>, vector<64x64xf32>, vector<16x64xf32> -> vector<16x64xf32>
    %c64_130 = arith.constant 64 : index
    %c0_131 = arith.constant 0 : index
    %336 = vector.load %arg4[%c64_130, %c0_131] : memref<65x64xf32, #tpu.memory_space<vmem>>, vector<1x64xf32>
    %337 = vector.broadcast %336 : vector<1x64xf32> to vector<16x64xf32>
    %338 = arith.addf %335, %337 : vector<16x64xf32>
    %339 = vector.extract_strided_slice %338 {offsets = [0, 0], sizes = [16, 32], strides = [1, 1]} : vector<16x64xf32> to vector<16x32xf32>
    %340 = arith.negf %339 : vector<16x32xf32>
    %341 = math.exp %340 : vector<16x32xf32>
    %cst_132 = arith.constant 1.000000e+00 : f32
    %342 = vector.broadcast %cst_132 : f32 to vector<16x32xf32>
    %343 = arith.addf %342, %341 : vector<16x32xf32>
    %344 = arith.divf %342, %343 : vector<16x32xf32>
    %345 = vector.extract_strided_slice %338 {offsets = [0, 32], sizes = [16, 32], strides = [1, 1]} : vector<16x64xf32> to vector<16x32xf32>
    %346 = arith.negf %345 : vector<16x32xf32>
    %347 = math.exp %346 : vector<16x32xf32>
    %cst_133 = arith.constant 1.000000e+00 : f32
    %348 = vector.broadcast %cst_133 : f32 to vector<16x32xf32>
    %349 = arith.addf %348, %347 : vector<16x32xf32>
    %350 = arith.divf %348, %349 : vector<16x32xf32>
    %c0_134 = arith.constant 0 : index
    %c0_135 = arith.constant 0 : index
    %351 = vector.load %arg5[%c0_134, %c0_135] : memref<84x32xf32, #tpu.memory_space<vmem>>, vector<32x32xf32>
    %cst_136 = arith.constant dense<0.000000e+00> : vector<16x32xf32>
    %352 = tpu.matmul %331, %351, %cst_136 {dimension_numbers = #tpu.dot_dimension_numbers<[1], [0], [0], [1], [0, 0, 1, 1], [], []>} : vector<16x32xf32>, vector<32x32xf32>, vector<16x32xf32> -> vector<16x32xf32>
    %c64_137 = arith.constant 64 : index
    %c0_138 = arith.constant 0 : index
    %353 = vector.load %arg5[%c64_137, %c0_138] : memref<84x32xf32, #tpu.memory_space<vmem>>, vector<1x32xf32>
    %354 = vector.broadcast %353 : vector<1x32xf32> to vector<16x32xf32>
    %355 = arith.addf %352, %354 : vector<16x32xf32>
    %c32_139 = arith.constant 32 : index
    %c0_140 = arith.constant 0 : index
    %356 = vector.load %arg5[%c32_139, %c0_140] : memref<84x32xf32, #tpu.memory_space<vmem>>, vector<32x32xf32>
    %cst_141 = arith.constant dense<0.000000e+00> : vector<16x32xf32>
    %357 = tpu.matmul %256, %356, %cst_141 {dimension_numbers = #tpu.dot_dimension_numbers<[1], [0], [0], [1], [0, 0, 1, 1], [], []>} : vector<16x32xf32>, vector<32x32xf32>, vector<16x32xf32> -> vector<16x32xf32>
    %c65_142 = arith.constant 65 : index
    %c0_143 = arith.constant 0 : index
    %358 = vector.load %arg5[%c65_142, %c0_143] : memref<84x32xf32, #tpu.memory_space<vmem>>, vector<1x32xf32>
    %359 = vector.broadcast %358 : vector<1x32xf32> to vector<16x32xf32>
    %360 = arith.addf %357, %359 : vector<16x32xf32>
    %361 = arith.mulf %344, %360 : vector<16x32xf32>
    %362 = arith.addf %355, %361 : vector<16x32xf32>
    %363 = math.tanh %362 : vector<16x32xf32>
    %cst_144 = arith.constant 1.000000e+00 : f32
    %364 = vector.broadcast %cst_144 : f32 to vector<16x32xf32>
    %365 = arith.subf %364, %350 : vector<16x32xf32>
    %366 = arith.mulf %365, %363 : vector<16x32xf32>
    %367 = arith.mulf %350, %256 : vector<16x32xf32>
    %368 = arith.addf %366, %367 : vector<16x32xf32>
    %c0_145 = arith.constant 0 : index
    %c0_146 = arith.constant 0 : index
    %c0_147 = arith.constant 0 : index
    %369 = vector.load %arg7[%c0_145, %c0_146, %c0_147] : memref<2x16x32xf32, #tpu.memory_space<vmem>>, vector<1x16x32xf32>
    %370 = vector.shape_cast %369 : vector<1x16x32xf32> to vector<16x32xf32>
    %371 = vector.shape_cast %368 : vector<16x32xf32> to vector<1x16x32xf32>
    tpu.vector_store %arg7[%c0_145, %c0_146, %c0_147], %371 {strides = array<i32>} : memref<2x16x32xf32, #tpu.memory_space<vmem>>, vector<1x16x32xf32>,
    %c0_148 = arith.constant 0 : index
    %c0_149 = arith.constant 0 : index
    %c0_150 = arith.constant 0 : index
    %372 = vector.load %arg8[%c0_148, %c0_149, %c0_150] : memref<2x16x16xf32, #tpu.memory_space<vmem>>, vector<1x16x16xf32>
    %373 = vector.shape_cast %372 : vector<1x16x16xf32> to vector<16x16xf32>
    %374 = vector.shape_cast %332 : vector<16x16xf32> to vector<1x16x16xf32>
    tpu.vector_store %arg8[%c0_148, %c0_149, %c0_150], %374 {strides = array<i32>} : memref<2x16x16xf32, #tpu.memory_space<vmem>>, vector<1x16x16xf32>,
    %c68 = arith.constant 68 : index
    %c0_151 = arith.constant 0 : index
    %375 = vector.load %arg5[%c68, %c0_151] : memref<84x32xf32, #tpu.memory_space<vmem>>, vector<16x32xf32>
    %376 = arith.mulf %368, %368 : vector<16x32xf32>
    %cst_152 = arith.constant dense<0.000000e+00> : vector<16xf32>
    %377 = vector.multi_reduction <add>, %376, %cst_152 [1] : vector<16x32xf32> to vector<16xf32>
    %378 = vector.shape_cast %377 : vector<16xf32> to vector<16x1xf32>
    %379 = arith.mulf %375, %375 : vector<16x32xf32>
    %cst_153 = arith.constant dense<0.000000e+00> : vector<16xf32>
    %380 = vector.multi_reduction <add>, %379, %cst_153 [1] : vector<16x32xf32> to vector<16xf32>
    %cst_154 = arith.constant dense<0.000000e+00> : vector<16x16xf32>
    %381 = tpu.matmul %368, %375, %cst_154 {dimension_numbers = #tpu.dot_dimension_numbers<[1], [1], [0], [0], [0, 0, 1, 0], [], []>} : vector<16x32xf32>, vector<16x32xf32>, vector<16x16xf32> -> vector<16x16xf32>
    %cst_155 = arith.constant 2.000000e+00 : f32
    %382 = vector.broadcast %cst_155 : f32 to vector<16x16xf32>
    %383 = arith.mulf %382, %381 : vector<16x16xf32>
    %384 = vector.broadcast %378 : vector<16x1xf32> to vector<16x16xf32>
    %385 = arith.subf %384, %383 : vector<16x16xf32>
    %386 = vector.shape_cast %380 : vector<16xf32> to vector<1x16xf32>
    %387 = vector.broadcast %386 : vector<1x16xf32> to vector<16x16xf32>
    %388 = arith.addf %385, %387 : vector<16x16xf32>
    %cst_156 = arith.constant dense<0x7F800000> : vector<16xf32>
    %389 = vector.multi_reduction <minimumf>, %388, %cst_156 [1] : vector<16x16xf32> to vector<16xf32>
    %390 = vector.shape_cast %389 : vector<16xf32> to vector<16x1xf32>
    %391 = tpu.iota {dimensions = array<i32: 1>} : vector<16x16xi32>
    %392 = vector.broadcast %390 : vector<16x1xf32> to vector<16x16xf32>
    %393 = arith.cmpf ole, %388, %392 : vector<16x16xf32>
    %c15_i32 = arith.constant 15 : i32
    %394 = vector.broadcast %c15_i32 : i32 to vector<16x16xi32>
    %395 = arith.select %393, %391, %394 : vector<16x16xi1>, vector<16x16xi32>
    %cst_157 = arith.constant dense<2147483647> : vector<16xi32>
    %396 = vector.multi_reduction <minsi>, %395, %cst_157 [1] : vector<16x16xi32> to vector<16xi32>
    %397 = vector.shape_cast %396 : vector<16xi32> to vector<16x1xi32>
    %398 = vector.broadcast %397 : vector<16x1xi32> to vector<16x16xi32>
    %399 = arith.cmpi eq, %391, %398 : vector<16x16xi32>
    %400 = arith.extui %399 : vector<16x16xi1> to vector<16x16xi32>
    %401 = arith.sitofp %400 : vector<16x16xi32> to vector<16x16xf32>
    %cst_158 = arith.constant dense<0.000000e+00> : vector<16x32xf32>
    %402 = tpu.matmul %401, %375, %cst_158 {dimension_numbers = #tpu.dot_dimension_numbers<[1], [0], [0], [1], [0, 0, 1, 1], [], []>} : vector<16x16xf32>, vector<16x32xf32>, vector<16x32xf32> -> vector<16x32xf32>
    %403 = arith.subf %368, %402 : vector<16x32xf32>
    %404 = arith.mulf %403, %403 : vector<16x32xf32>
    %cst_159 = arith.constant dense<0.000000e+00> : vector<16xf32>
    %405 = vector.multi_reduction <add>, %404, %cst_159 [1] : vector<16x32xf32> to vector<16xf32>
    %cst_160 = arith.constant 3.200000e+01 : f32
    %406 = vector.broadcast %cst_160 : f32 to vector<16xf32>
    %407 = arith.divf %405, %406 : vector<16xf32>
    %408 = vector.shape_cast %407 : vector<16xf32> to vector<1x16xf32>
    %c0_161 = arith.constant 0 : index
    %c0_162 = arith.constant 0 : index
    %409 = vector.load %arg11[%c0_161, %c0_162] : memref<1x16xf32, #tpu.memory_space<vmem>>, vector<1x16xf32>
    tpu.vector_store %arg11[%c0_161, %c0_162], %408 {strides = array<i32>} : memref<1x16xf32, #tpu.memory_space<vmem>>, vector<1x16xf32>,
    %410 = vector.shape_cast %397 : vector<16x1xi32> to vector<1x16xi32>
    %c0_163 = arith.constant 0 : index
    %c0_164 = arith.constant 0 : index
    %411 = vector.load %arg10[%c0_163, %c0_164] : memref<1x16xi32, #tpu.memory_space<vmem>>, vector<1x16xi32>
    tpu.vector_store %arg10[%c0_163, %c0_164], %410 {strides = array<i32>} : memref<1x16xi32, #tpu.memory_space<vmem>>, vector<1x16xi32>,
    %c3 = arith.constant 3 : index
    %c0_165 = arith.constant 0 : index
    %412 = vector.load %arg6[%c3, %c0_165] : memref<19x32xf32, #tpu.memory_space<vmem>>, vector<16x32xf32>
    %cst_166 = arith.constant dense<0.000000e+00> : vector<16x32xf32>
    %413 = tpu.matmul %401, %412, %cst_166 {dimension_numbers = #tpu.dot_dimension_numbers<[1], [0], [0], [1], [0, 0, 1, 1], [], []>} : vector<16x16xf32>, vector<16x32xf32>, vector<16x32xf32> -> vector<16x32xf32>
    %c0_167 = arith.constant 0 : index
    %c0_168 = arith.constant 0 : index
    %c0_169 = arith.constant 0 : index
    %414 = vector.load %arg8[%c0_167, %c0_168, %c0_169] : memref<2x16x16xf32, #tpu.memory_space<vmem>>, vector<1x16x16xf32>
    %415 = vector.shape_cast %414 : vector<1x16x16xf32> to vector<16x16xf32>
    %416 = vector.extract_strided_slice %415 {offsets = [0, 0], sizes = [8, 16], strides = [1, 1]} : vector<16x16xf32> to vector<8x16xf32>
    %417 = vector.extract_strided_slice %413 {offsets = [0, 0], sizes = [8, 32], strides = [1, 1]} : vector<16x32xf32> to vector<8x32xf32>
    %cst_170 = arith.constant dense<0.000000e+00> : vector<16x32xf32>
    %418 = tpu.matmul %416, %417, %cst_170 {dimension_numbers = #tpu.dot_dimension_numbers<[0], [0], [1], [1], [0, 1, 1, 1], [], []>} : vector<8x16xf32>, vector<8x32xf32>, vector<16x32xf32> -> vector<16x32xf32>
    %419 = vector.extract_strided_slice %415 {offsets = [8, 0], sizes = [8, 16], strides = [1, 1]} : vector<16x16xf32> to vector<8x16xf32>
    %420 = vector.extract_strided_slice %413 {offsets = [8, 0], sizes = [8, 32], strides = [1, 1]} : vector<16x32xf32> to vector<8x32xf32>
    %cst_171 = arith.constant dense<0.000000e+00> : vector<16x32xf32>
    %421 = tpu.matmul %419, %420, %cst_171 {dimension_numbers = #tpu.dot_dimension_numbers<[0], [0], [1], [1], [0, 1, 1, 1], [], []>} : vector<8x16xf32>, vector<8x32xf32>, vector<16x32xf32> -> vector<16x32xf32>
    %422 = tpu.concatenate %418, %421 in 0 : vector<16x32xf32>, vector<16x32xf32> -> vector<32x32xf32>
    %c0_172 = arith.constant 0 : index
    %c0_173 = arith.constant 0 : index
    %423 = vector.load %arg1[%c0_172, %c0_173] : memref<32x32xf32, #tpu.memory_space<vmem>>, vector<32x32xf32>
    %cst_174 = arith.constant 5.000000e-01 : f32
    %424 = vector.broadcast %cst_174 : f32 to vector<32x32xf32>
    %425 = arith.mulf %424, %422 : vector<32x32xf32>
    %426 = arith.addf %423, %425 : vector<32x32xf32>
    %c0_175 = arith.constant 0 : index
    %c0_176 = arith.constant 0 : index
    %c0_177 = arith.constant 0 : index
    %427 = vector.load %arg9[%c0_175, %c0_176, %c0_177] : memref<2x32x32xf32, #tpu.memory_space<vmem>>, vector<1x32x32xf32>
    %428 = vector.shape_cast %427 : vector<1x32x32xf32> to vector<32x32xf32>
    %429 = vector.shape_cast %422 : vector<32x32xf32> to vector<1x32x32xf32>
    tpu.vector_store %arg9[%c0_175, %c0_176, %c0_177], %429 {strides = array<i32>} : memref<2x32x32xf32, #tpu.memory_space<vmem>>, vector<1x32x32xf32>,
    %c1_178 = arith.constant 1 : index
    %c0_179 = arith.constant 0 : index
    %c0_180 = arith.constant 0 : index
    %430 = vector.load %arg9[%c1_178, %c0_179, %c0_180] : memref<2x32x32xf32, #tpu.memory_space<vmem>>, vector<1x32x32xf32>
    %431 = vector.shape_cast %430 : vector<1x32x32xf32> to vector<32x32xf32>
    %432 = vector.shape_cast %426 : vector<32x32xf32> to vector<1x32x32xf32>
    tpu.vector_store %arg9[%c1_178, %c0_179, %c0_180], %432 {strides = array<i32>} : memref<2x32x32xf32, #tpu.memory_space<vmem>>, vector<1x32x32xf32>,
    %c0_181 = arith.constant 0 : index
    %c0_182 = arith.constant 0 : index
    %433 = vector.load %arg6[%c0_181, %c0_182] : memref<19x32xf32, #tpu.memory_space<vmem>>, vector<1x32xf32>
    %c1_183 = arith.constant 1 : index
    %c0_184 = arith.constant 0 : index
    %434 = vector.load %arg6[%c1_183, %c0_184] : memref<19x32xf32, #tpu.memory_space<vmem>>, vector<1x32xf32>
    %cst_185 = arith.constant dense<0.000000e+00> : vector<32xf32>
    %435 = vector.multi_reduction <add>, %426, %cst_185 [1] : vector<32x32xf32> to vector<32xf32>
    %436 = vector.shape_cast %435 : vector<32xf32> to vector<32x1xf32>
    %cst_186 = arith.constant 3.200000e+01 : f32
    %437 = vector.broadcast %cst_186 : f32 to vector<32x1xf32>
    %438 = arith.divf %436, %437 : vector<32x1xf32>
    %439 = vector.broadcast %438 : vector<32x1xf32> to vector<32x32xf32>
    %440 = arith.subf %426, %439 : vector<32x32xf32>
    %441 = arith.mulf %440, %440 : vector<32x32xf32>
    %cst_187 = arith.constant dense<0.000000e+00> : vector<32xf32>
    %442 = vector.multi_reduction <add>, %441, %cst_187 [1] : vector<32x32xf32> to vector<32xf32>
    %443 = vector.shape_cast %442 : vector<32xf32> to vector<32x1xf32>
    %cst_188 = arith.constant 3.200000e+01 : f32
    %444 = vector.broadcast %cst_188 : f32 to vector<32x1xf32>
    %445 = arith.divf %443, %444 : vector<32x1xf32>
    %446 = vector.broadcast %438 : vector<32x1xf32> to vector<32x32xf32>
    %447 = arith.subf %426, %446 : vector<32x32xf32>
    %cst_189 = arith.constant 9.99999974E-6 : f32
    %448 = vector.broadcast %cst_189 : f32 to vector<32x1xf32>
    %449 = arith.addf %445, %448 : vector<32x1xf32>
    %450 = math.rsqrt %449 : vector<32x1xf32>
    %451 = vector.broadcast %450 : vector<32x1xf32> to vector<32x32xf32>
    %452 = arith.mulf %447, %451 : vector<32x32xf32>
    %453 = vector.broadcast %433 : vector<1x32xf32> to vector<32x32xf32>
    %454 = arith.mulf %452, %453 : vector<32x32xf32>
    %455 = vector.broadcast %434 : vector<1x32xf32> to vector<32x32xf32>
    %456 = arith.addf %454, %455 : vector<32x32xf32>
    %c0_190 = arith.constant 0 : index
    %c0_191 = arith.constant 0 : index
    %457 = vector.load %arg3[%c0_190, %c0_191] : memref<96x32xf32, #tpu.memory_space<vmem>>, vector<32x32xf32>
    %cst_192 = arith.constant dense<0.000000e+00> : vector<32x32xf32>
    %458 = tpu.matmul %456, %457, %cst_192 {dimension_numbers = #tpu.dot_dimension_numbers<[1], [0], [0], [1], [0, 0, 1, 1], [], []>} : vector<32x32xf32>, vector<32x32xf32>, vector<32x32xf32> -> vector<32x32xf32>
    %c32_193 = arith.constant 32 : index
    %c0_194 = arith.constant 0 : index
    %459 = vector.load %arg3[%c32_193, %c0_194] : memref<96x32xf32, #tpu.memory_space<vmem>>, vector<32x32xf32>
    %cst_195 = arith.constant dense<0.000000e+00> : vector<32x32xf32>
    %460 = tpu.matmul %456, %459, %cst_195 {dimension_numbers = #tpu.dot_dimension_numbers<[1], [0], [0], [1], [0, 0, 1, 1], [], []>} : vector<32x32xf32>, vector<32x32xf32>, vector<32x32xf32> -> vector<32x32xf32>
    %c0_196 = arith.constant 0 : index
    %c0_197 = arith.constant 0 : index
    %461 = vector.load %arg2[%c0_196, %c0_197] : memref<16x32xf32, #tpu.memory_space<vmem>>, vector<16x32xf32>
    %c66_198 = arith.constant 66 : index
    %c0_199 = arith.constant 0 : index
    %462 = vector.load %arg5[%c66_198, %c0_199] : memref<84x32xf32, #tpu.memory_space<vmem>>, vector<1x32xf32>
    %c67_200 = arith.constant 67 : index
    %c0_201 = arith.constant 0 : index
    %463 = vector.load %arg5[%c67_200, %c0_201] : memref<84x32xf32, #tpu.memory_space<vmem>>, vector<1x32xf32>
    %cst_202 = arith.constant dense<0.000000e+00> : vector<16xf32>
    %464 = vector.multi_reduction <add>, %461, %cst_202 [1] : vector<16x32xf32> to vector<16xf32>
    %465 = vector.shape_cast %464 : vector<16xf32> to vector<16x1xf32>
    %cst_203 = arith.constant 3.200000e+01 : f32
    %466 = vector.broadcast %cst_203 : f32 to vector<16x1xf32>
    %467 = arith.divf %465, %466 : vector<16x1xf32>
    %468 = vector.broadcast %467 : vector<16x1xf32> to vector<16x32xf32>
    %469 = arith.subf %461, %468 : vector<16x32xf32>
    %470 = arith.mulf %469, %469 : vector<16x32xf32>
    %cst_204 = arith.constant dense<0.000000e+00> : vector<16xf32>
    %471 = vector.multi_reduction <add>, %470, %cst_204 [1] : vector<16x32xf32> to vector<16xf32>
    %472 = vector.shape_cast %471 : vector<16xf32> to vector<16x1xf32>
    %cst_205 = arith.constant 3.200000e+01 : f32
    %473 = vector.broadcast %cst_205 : f32 to vector<16x1xf32>
    %474 = arith.divf %472, %473 : vector<16x1xf32>
    %475 = vector.broadcast %467 : vector<16x1xf32> to vector<16x32xf32>
    %476 = arith.subf %461, %475 : vector<16x32xf32>
    %cst_206 = arith.constant 9.99999974E-6 : f32
    %477 = vector.broadcast %cst_206 : f32 to vector<16x1xf32>
    %478 = arith.addf %474, %477 : vector<16x1xf32>
    %479 = math.rsqrt %478 : vector<16x1xf32>
    %480 = vector.broadcast %479 : vector<16x1xf32> to vector<16x32xf32>
    %481 = arith.mulf %476, %480 : vector<16x32xf32>
    %482 = vector.broadcast %462 : vector<1x32xf32> to vector<16x32xf32>
    %483 = arith.mulf %481, %482 : vector<16x32xf32>
    %484 = vector.broadcast %463 : vector<1x32xf32> to vector<16x32xf32>
    %485 = arith.addf %483, %484 : vector<16x32xf32>
    %c64_207 = arith.constant 64 : index
    %c0_208 = arith.constant 0 : index
    %486 = vector.load %arg3[%c64_207, %c0_208] : memref<96x32xf32, #tpu.memory_space<vmem>>, vector<32x32xf32>
    %cst_209 = arith.constant dense<0.000000e+00> : vector<16x32xf32>
    %487 = tpu.matmul %485, %486, %cst_209 {dimension_numbers = #tpu.dot_dimension_numbers<[1], [0], [0], [1], [0, 0, 1, 1], [], []>} : vector<16x32xf32>, vector<32x32xf32>, vector<16x32xf32> -> vector<16x32xf32>
    %488 = vector.extract_strided_slice %487 {offsets = [0, 0], sizes = [8, 32], strides = [1, 1]} : vector<16x32xf32> to vector<8x32xf32>
    %489 = vector.extract_strided_slice %458 {offsets = [0, 0], sizes = [16, 32], strides = [1, 1]} : vector<32x32xf32> to vector<16x32xf32>
    %490 = vector.extract_strided_slice %460 {offsets = [0, 0], sizes = [16, 32], strides = [1, 1]} : vector<32x32xf32> to vector<16x32xf32>
    %cst_210 = arith.constant dense<0.000000e+00> : vector<8x16xf32>
    %491 = tpu.matmul %488, %489, %cst_210 {dimension_numbers = #tpu.dot_dimension_numbers<[1], [1], [0], [0], [0, 0, 1, 0], [], []>} : vector<8x32xf32>, vector<16x32xf32>, vector<8x16xf32> -> vector<8x16xf32>
    %cst_211 = arith.constant 0.176776692 : f32
    %492 = vector.broadcast %cst_211 : f32 to vector<8x16xf32>
    %493 = arith.mulf %491, %492 : vector<8x16xf32>
    %cst_212 = arith.constant dense<0xFF800000> : vector<16xf32>
    %494 = vector.multi_reduction <maximumf>, %493, %cst_212 [0] : vector<8x16xf32> to vector<16xf32>
    %495 = vector.shape_cast %494 : vector<16xf32> to vector<1x16xf32>
    %496 = vector.broadcast %495 : vector<1x16xf32> to vector<8x16xf32>
    %497 = arith.subf %493, %496 : vector<8x16xf32>
    %498 = math.exp %497 : vector<8x16xf32>
    %cst_213 = arith.constant dense<0.000000e+00> : vector<16xf32>
    %499 = vector.multi_reduction <add>, %498, %cst_213 [0] : vector<8x16xf32> to vector<16xf32>
    %500 = vector.shape_cast %499 : vector<16xf32> to vector<1x16xf32>
    %501 = tpu.reciprocal %500 {approx = true} : vector<1x16xf32> -> vector<1x16xf32>
    %502 = vector.broadcast %501 : vector<1x16xf32> to vector<8x16xf32>
    %503 = arith.mulf %498, %502 : vector<8x16xf32>
    %cst_214 = arith.constant 9.99999993E-9 : f32
    %504 = vector.broadcast %cst_214 : f32 to vector<8x16xf32>
    %505 = arith.addf %503, %504 : vector<8x16xf32>
    %cst_215 = arith.constant dense<0.000000e+00> : vector<8xf32>
    %506 = vector.multi_reduction <add>, %505, %cst_215 [1] : vector<8x16xf32> to vector<8xf32>
    %507 = vector.shape_cast %506 : vector<8xf32> to vector<8x1xf32>
    %508 = tpu.reciprocal %507 {approx = true} : vector<8x1xf32> -> vector<8x1xf32>
    %509 = vector.broadcast %508 : vector<8x1xf32> to vector<8x16xf32>
    %510 = arith.mulf %505, %509 : vector<8x16xf32>
    %cst_216 = arith.constant dense<0.000000e+00> : vector<8x32xf32>
    %511 = tpu.matmul %510, %490, %cst_216 {dimension_numbers = #tpu.dot_dimension_numbers<[1], [0], [0], [1], [0, 0, 1, 1], [], []>} : vector<8x16xf32>, vector<16x32xf32>, vector<8x32xf32> -> vector<8x32xf32>
    %512 = vector.extract_strided_slice %487 {offsets = [8, 0], sizes = [8, 32], strides = [1, 1]} : vector<16x32xf32> to vector<8x32xf32>
    %513 = vector.extract_strided_slice %458 {offsets = [16, 0], sizes = [16, 32], strides = [1, 1]} : vector<32x32xf32> to vector<16x32xf32>
    %514 = vector.extract_strided_slice %460 {offsets = [16, 0], sizes = [16, 32], strides = [1, 1]} : vector<32x32xf32> to vector<16x32xf32>
    %cst_217 = arith.constant dense<0.000000e+00> : vector<8x16xf32>
    %515 = tpu.matmul %512, %513, %cst_217 {dimension_numbers = #tpu.dot_dimension_numbers<[1], [1], [0], [0], [0, 0, 1, 0], [], []>} : vector<8x32xf32>, vector<16x32xf32>, vector<8x16xf32> -> vector<8x16xf32>
    %cst_218 = arith.constant 0.176776692 : f32
    %516 = vector.broadcast %cst_218 : f32 to vector<8x16xf32>
    %517 = arith.mulf %515, %516 : vector<8x16xf32>
    %cst_219 = arith.constant dense<0xFF800000> : vector<16xf32>
    %518 = vector.multi_reduction <maximumf>, %517, %cst_219 [0] : vector<8x16xf32> to vector<16xf32>
    %519 = vector.shape_cast %518 : vector<16xf32> to vector<1x16xf32>
    %520 = vector.broadcast %519 : vector<1x16xf32> to vector<8x16xf32>
    %521 = arith.subf %517, %520 : vector<8x16xf32>
    %522 = math.exp %521 : vector<8x16xf32>
    %cst_220 = arith.constant dense<0.000000e+00> : vector<16xf32>
    %523 = vector.multi_reduction <add>, %522, %cst_220 [0] : vector<8x16xf32> to vector<16xf32>
    %524 = vector.shape_cast %523 : vector<16xf32> to vector<1x16xf32>
    %525 = tpu.reciprocal %524 {approx = true} : vector<1x16xf32> -> vector<1x16xf32>
    %526 = vector.broadcast %525 : vector<1x16xf32> to vector<8x16xf32>
    %527 = arith.mulf %522, %526 : vector<8x16xf32>
    %cst_221 = arith.constant 9.99999993E-9 : f32
    %528 = vector.broadcast %cst_221 : f32 to vector<8x16xf32>
    %529 = arith.addf %527, %528 : vector<8x16xf32>
    %cst_222 = arith.constant dense<0.000000e+00> : vector<8xf32>
    %530 = vector.multi_reduction <add>, %529, %cst_222 [1] : vector<8x16xf32> to vector<8xf32>
    %531 = vector.shape_cast %530 : vector<8xf32> to vector<8x1xf32>
    %532 = tpu.reciprocal %531 {approx = true} : vector<8x1xf32> -> vector<8x1xf32>
    %533 = vector.broadcast %532 : vector<8x1xf32> to vector<8x16xf32>
    %534 = arith.mulf %529, %533 : vector<8x16xf32>
    %cst_223 = arith.constant dense<0.000000e+00> : vector<8x32xf32>
    %535 = tpu.matmul %534, %514, %cst_223 {dimension_numbers = #tpu.dot_dimension_numbers<[1], [0], [0], [1], [0, 0, 1, 1], [], []>} : vector<8x16xf32>, vector<16x32xf32>, vector<8x32xf32> -> vector<8x32xf32>
    %536 = tpu.concatenate %511, %535 in 0 : vector<8x32xf32>, vector<8x32xf32> -> vector<16x32xf32>
    %537 = tpu.concatenate %536, %461 in 1 : vector<16x32xf32>, vector<16x32xf32> -> vector<16x64xf32>
    %c0_224 = arith.constant 0 : index
    %c0_225 = arith.constant 0 : index
    %538 = vector.load %arg4[%c0_224, %c0_225] : memref<65x64xf32, #tpu.memory_space<vmem>>, vector<64x64xf32>
    %cst_226 = arith.constant dense<0.000000e+00> : vector<16x64xf32>
    %539 = tpu.matmul %537, %538, %cst_226 {dimension_numbers = #tpu.dot_dimension_numbers<[1], [0], [0], [1], [0, 0, 1, 1], [], []>} : vector<16x64xf32>, vector<64x64xf32>, vector<16x64xf32> -> vector<16x64xf32>
    %c64_227 = arith.constant 64 : index
    %c0_228 = arith.constant 0 : index
    %540 = vector.load %arg4[%c64_227, %c0_228] : memref<65x64xf32, #tpu.memory_space<vmem>>, vector<1x64xf32>
    %541 = vector.broadcast %540 : vector<1x64xf32> to vector<16x64xf32>
    %542 = arith.addf %539, %541 : vector<16x64xf32>
    %543 = vector.extract_strided_slice %542 {offsets = [0, 0], sizes = [16, 32], strides = [1, 1]} : vector<16x64xf32> to vector<16x32xf32>
    %544 = arith.negf %543 : vector<16x32xf32>
    %545 = math.exp %544 : vector<16x32xf32>
    %cst_229 = arith.constant 1.000000e+00 : f32
    %546 = vector.broadcast %cst_229 : f32 to vector<16x32xf32>
    %547 = arith.addf %546, %545 : vector<16x32xf32>
    %548 = arith.divf %546, %547 : vector<16x32xf32>
    %549 = vector.extract_strided_slice %542 {offsets = [0, 32], sizes = [16, 32], strides = [1, 1]} : vector<16x64xf32> to vector<16x32xf32>
    %550 = arith.negf %549 : vector<16x32xf32>
    %551 = math.exp %550 : vector<16x32xf32>
    %cst_230 = arith.constant 1.000000e+00 : f32
    %552 = vector.broadcast %cst_230 : f32 to vector<16x32xf32>
    %553 = arith.addf %552, %551 : vector<16x32xf32>
    %554 = arith.divf %552, %553 : vector<16x32xf32>
    %c0_231 = arith.constant 0 : index
    %c0_232 = arith.constant 0 : index
    %555 = vector.load %arg5[%c0_231, %c0_232] : memref<84x32xf32, #tpu.memory_space<vmem>>, vector<32x32xf32>
    %cst_233 = arith.constant dense<0.000000e+00> : vector<16x32xf32>
    %556 = tpu.matmul %536, %555, %cst_233 {dimension_numbers = #tpu.dot_dimension_numbers<[1], [0], [0], [1], [0, 0, 1, 1], [], []>} : vector<16x32xf32>, vector<32x32xf32>, vector<16x32xf32> -> vector<16x32xf32>
    %c64_234 = arith.constant 64 : index
    %c0_235 = arith.constant 0 : index
    %557 = vector.load %arg5[%c64_234, %c0_235] : memref<84x32xf32, #tpu.memory_space<vmem>>, vector<1x32xf32>
    %558 = vector.broadcast %557 : vector<1x32xf32> to vector<16x32xf32>
    %559 = arith.addf %556, %558 : vector<16x32xf32>
    %c32_236 = arith.constant 32 : index
    %c0_237 = arith.constant 0 : index
    %560 = vector.load %arg5[%c32_236, %c0_237] : memref<84x32xf32, #tpu.memory_space<vmem>>, vector<32x32xf32>
    %cst_238 = arith.constant dense<0.000000e+00> : vector<16x32xf32>
    %561 = tpu.matmul %461, %560, %cst_238 {dimension_numbers = #tpu.dot_dimension_numbers<[1], [0], [0], [1], [0, 0, 1, 1], [], []>} : vector<16x32xf32>, vector<32x32xf32>, vector<16x32xf32> -> vector<16x32xf32>
    %c65_239 = arith.constant 65 : index
    %c0_240 = arith.constant 0 : index
    %562 = vector.load %arg5[%c65_239, %c0_240] : memref<84x32xf32, #tpu.memory_space<vmem>>, vector<1x32xf32>
    %563 = vector.broadcast %562 : vector<1x32xf32> to vector<16x32xf32>
    %564 = arith.addf %561, %563 : vector<16x32xf32>
    %565 = arith.mulf %548, %564 : vector<16x32xf32>
    %566 = arith.addf %559, %565 : vector<16x32xf32>
    %567 = math.tanh %566 : vector<16x32xf32>
    %cst_241 = arith.constant 1.000000e+00 : f32
    %568 = vector.broadcast %cst_241 : f32 to vector<16x32xf32>
    %569 = arith.subf %568, %554 : vector<16x32xf32>
    %570 = arith.mulf %569, %567 : vector<16x32xf32>
    %571 = arith.mulf %554, %461 : vector<16x32xf32>
    %572 = arith.addf %570, %571 : vector<16x32xf32>
    %c66_242 = arith.constant 66 : index
    %c0_243 = arith.constant 0 : index
    %573 = vector.load %arg5[%c66_242, %c0_243] : memref<84x32xf32, #tpu.memory_space<vmem>>, vector<1x32xf32>
    %c67_244 = arith.constant 67 : index
    %c0_245 = arith.constant 0 : index
    %574 = vector.load %arg5[%c67_244, %c0_245] : memref<84x32xf32, #tpu.memory_space<vmem>>, vector<1x32xf32>
    %cst_246 = arith.constant dense<0.000000e+00> : vector<16xf32>
    %575 = vector.multi_reduction <add>, %572, %cst_246 [1] : vector<16x32xf32> to vector<16xf32>
    %576 = vector.shape_cast %575 : vector<16xf32> to vector<16x1xf32>
    %cst_247 = arith.constant 3.200000e+01 : f32
    %577 = vector.broadcast %cst_247 : f32 to vector<16x1xf32>
    %578 = arith.divf %576, %577 : vector<16x1xf32>
    %579 = vector.broadcast %578 : vector<16x1xf32> to vector<16x32xf32>
    %580 = arith.subf %572, %579 : vector<16x32xf32>
    %581 = arith.mulf %580, %580 : vector<16x32xf32>
    %cst_248 = arith.constant dense<0.000000e+00> : vector<16xf32>
    %582 = vector.multi_reduction <add>, %581, %cst_248 [1] : vector<16x32xf32> to vector<16xf32>
    %583 = vector.shape_cast %582 : vector<16xf32> to vector<16x1xf32>
    %cst_249 = arith.constant 3.200000e+01 : f32
    %584 = vector.broadcast %cst_249 : f32 to vector<16x1xf32>
    %585 = arith.divf %583, %584 : vector<16x1xf32>
    %586 = vector.broadcast %578 : vector<16x1xf32> to vector<16x32xf32>
    %587 = arith.subf %572, %586 : vector<16x32xf32>
    %cst_250 = arith.constant 9.99999974E-6 : f32
    %588 = vector.broadcast %cst_250 : f32 to vector<16x1xf32>
    %589 = arith.addf %585, %588 : vector<16x1xf32>
    %590 = math.rsqrt %589 : vector<16x1xf32>
    %591 = vector.broadcast %590 : vector<16x1xf32> to vector<16x32xf32>
    %592 = arith.mulf %587, %591 : vector<16x32xf32>
    %593 = vector.broadcast %573 : vector<1x32xf32> to vector<16x32xf32>
    %594 = arith.mulf %592, %593 : vector<16x32xf32>
    %595 = vector.broadcast %574 : vector<1x32xf32> to vector<16x32xf32>
    %596 = arith.addf %594, %595 : vector<16x32xf32>
    %c64_251 = arith.constant 64 : index
    %c0_252 = arith.constant 0 : index
    %597 = vector.load %arg3[%c64_251, %c0_252] : memref<96x32xf32, #tpu.memory_space<vmem>>, vector<32x32xf32>
    %cst_253 = arith.constant dense<0.000000e+00> : vector<16x32xf32>
    %598 = tpu.matmul %596, %597, %cst_253 {dimension_numbers = #tpu.dot_dimension_numbers<[1], [0], [0], [1], [0, 0, 1, 1], [], []>} : vector<16x32xf32>, vector<32x32xf32>, vector<16x32xf32> -> vector<16x32xf32>
    %599 = vector.extract_strided_slice %598 {offsets = [0, 0], sizes = [8, 32], strides = [1, 1]} : vector<16x32xf32> to vector<8x32xf32>
    %600 = vector.extract_strided_slice %458 {offsets = [0, 0], sizes = [16, 32], strides = [1, 1]} : vector<32x32xf32> to vector<16x32xf32>
    %601 = vector.extract_strided_slice %460 {offsets = [0, 0], sizes = [16, 32], strides = [1, 1]} : vector<32x32xf32> to vector<16x32xf32>
    %cst_254 = arith.constant dense<0.000000e+00> : vector<8x16xf32>
    %602 = tpu.matmul %599, %600, %cst_254 {dimension_numbers = #tpu.dot_dimension_numbers<[1], [1], [0], [0], [0, 0, 1, 0], [], []>} : vector<8x32xf32>, vector<16x32xf32>, vector<8x16xf32> -> vector<8x16xf32>
    %cst_255 = arith.constant 0.176776692 : f32
    %603 = vector.broadcast %cst_255 : f32 to vector<8x16xf32>
    %604 = arith.mulf %602, %603 : vector<8x16xf32>
    %cst_256 = arith.constant dense<0xFF800000> : vector<16xf32>
    %605 = vector.multi_reduction <maximumf>, %604, %cst_256 [0] : vector<8x16xf32> to vector<16xf32>
    %606 = vector.shape_cast %605 : vector<16xf32> to vector<1x16xf32>
    %607 = vector.broadcast %606 : vector<1x16xf32> to vector<8x16xf32>
    %608 = arith.subf %604, %607 : vector<8x16xf32>
    %609 = math.exp %608 : vector<8x16xf32>
    %cst_257 = arith.constant dense<0.000000e+00> : vector<16xf32>
    %610 = vector.multi_reduction <add>, %609, %cst_257 [0] : vector<8x16xf32> to vector<16xf32>
    %611 = vector.shape_cast %610 : vector<16xf32> to vector<1x16xf32>
    %612 = tpu.reciprocal %611 {approx = true} : vector<1x16xf32> -> vector<1x16xf32>
    %613 = vector.broadcast %612 : vector<1x16xf32> to vector<8x16xf32>
    %614 = arith.mulf %609, %613 : vector<8x16xf32>
    %cst_258 = arith.constant 9.99999993E-9 : f32
    %615 = vector.broadcast %cst_258 : f32 to vector<8x16xf32>
    %616 = arith.addf %614, %615 : vector<8x16xf32>
    %cst_259 = arith.constant dense<0.000000e+00> : vector<8xf32>
    %617 = vector.multi_reduction <add>, %616, %cst_259 [1] : vector<8x16xf32> to vector<8xf32>
    %618 = vector.shape_cast %617 : vector<8xf32> to vector<8x1xf32>
    %619 = tpu.reciprocal %618 {approx = true} : vector<8x1xf32> -> vector<8x1xf32>
    %620 = vector.broadcast %619 : vector<8x1xf32> to vector<8x16xf32>
    %621 = arith.mulf %616, %620 : vector<8x16xf32>
    %cst_260 = arith.constant dense<0.000000e+00> : vector<8x32xf32>
    %622 = tpu.matmul %621, %601, %cst_260 {dimension_numbers = #tpu.dot_dimension_numbers<[1], [0], [0], [1], [0, 0, 1, 1], [], []>} : vector<8x16xf32>, vector<16x32xf32>, vector<8x32xf32> -> vector<8x32xf32>
    %623 = vector.extract_strided_slice %598 {offsets = [8, 0], sizes = [8, 32], strides = [1, 1]} : vector<16x32xf32> to vector<8x32xf32>
    %624 = vector.extract_strided_slice %458 {offsets = [16, 0], sizes = [16, 32], strides = [1, 1]} : vector<32x32xf32> to vector<16x32xf32>
    %625 = vector.extract_strided_slice %460 {offsets = [16, 0], sizes = [16, 32], strides = [1, 1]} : vector<32x32xf32> to vector<16x32xf32>
    %cst_261 = arith.constant dense<0.000000e+00> : vector<8x16xf32>
    %626 = tpu.matmul %623, %624, %cst_261 {dimension_numbers = #tpu.dot_dimension_numbers<[1], [1], [0], [0], [0, 0, 1, 0], [], []>} : vector<8x32xf32>, vector<16x32xf32>, vector<8x16xf32> -> vector<8x16xf32>
    %cst_262 = arith.constant 0.176776692 : f32
    %627 = vector.broadcast %cst_262 : f32 to vector<8x16xf32>
    %628 = arith.mulf %626, %627 : vector<8x16xf32>
    %cst_263 = arith.constant dense<0xFF800000> : vector<16xf32>
    %629 = vector.multi_reduction <maximumf>, %628, %cst_263 [0] : vector<8x16xf32> to vector<16xf32>
    %630 = vector.shape_cast %629 : vector<16xf32> to vector<1x16xf32>
    %631 = vector.broadcast %630 : vector<1x16xf32> to vector<8x16xf32>
    %632 = arith.subf %628, %631 : vector<8x16xf32>
    %633 = math.exp %632 : vector<8x16xf32>
    %cst_264 = arith.constant dense<0.000000e+00> : vector<16xf32>
    %634 = vector.multi_reduction <add>, %633, %cst_264 [0] : vector<8x16xf32> to vector<16xf32>
    %635 = vector.shape_cast %634 : vector<16xf32> to vector<1x16xf32>
    %636 = tpu.reciprocal %635 {approx = true} : vector<1x16xf32> -> vector<1x16xf32>
    %637 = vector.broadcast %636 : vector<1x16xf32> to vector<8x16xf32>
    %638 = arith.mulf %633, %637 : vector<8x16xf32>
    %cst_265 = arith.constant 9.99999993E-9 : f32
    %639 = vector.broadcast %cst_265 : f32 to vector<8x16xf32>
    %640 = arith.addf %638, %639 : vector<8x16xf32>
    %cst_266 = arith.constant dense<0.000000e+00> : vector<8xf32>
    %641 = vector.multi_reduction <add>, %640, %cst_266 [1] : vector<8x16xf32> to vector<8xf32>
    %642 = vector.shape_cast %641 : vector<8xf32> to vector<8x1xf32>
    %643 = tpu.reciprocal %642 {approx = true} : vector<8x1xf32> -> vector<8x1xf32>
    %644 = vector.broadcast %643 : vector<8x1xf32> to vector<8x16xf32>
    %645 = arith.mulf %640, %644 : vector<8x16xf32>
    %cst_267 = arith.constant dense<0.000000e+00> : vector<8x32xf32>
    %646 = tpu.matmul %645, %625, %cst_267 {dimension_numbers = #tpu.dot_dimension_numbers<[1], [0], [0], [1], [0, 0, 1, 1], [], []>} : vector<8x16xf32>, vector<16x32xf32>, vector<8x32xf32> -> vector<8x32xf32>
    %647 = tpu.concatenate %622, %646 in 0 : vector<8x32xf32>, vector<8x32xf32> -> vector<16x32xf32>
    %648 = tpu.concatenate %647, %572 in 1 : vector<16x32xf32>, vector<16x32xf32> -> vector<16x64xf32>
    %c0_268 = arith.constant 0 : index
    %c0_269 = arith.constant 0 : index
    %649 = vector.load %arg4[%c0_268, %c0_269] : memref<65x64xf32, #tpu.memory_space<vmem>>, vector<64x64xf32>
    %cst_270 = arith.constant dense<0.000000e+00> : vector<16x64xf32>
    %650 = tpu.matmul %648, %649, %cst_270 {dimension_numbers = #tpu.dot_dimension_numbers<[1], [0], [0], [1], [0, 0, 1, 1], [], []>} : vector<16x64xf32>, vector<64x64xf32>, vector<16x64xf32> -> vector<16x64xf32>
    %c64_271 = arith.constant 64 : index
    %c0_272 = arith.constant 0 : index
    %651 = vector.load %arg4[%c64_271, %c0_272] : memref<65x64xf32, #tpu.memory_space<vmem>>, vector<1x64xf32>
    %652 = vector.broadcast %651 : vector<1x64xf32> to vector<16x64xf32>
    %653 = arith.addf %650, %652 : vector<16x64xf32>
    %654 = vector.extract_strided_slice %653 {offsets = [0, 0], sizes = [16, 32], strides = [1, 1]} : vector<16x64xf32> to vector<16x32xf32>
    %655 = arith.negf %654 : vector<16x32xf32>
    %656 = math.exp %655 : vector<16x32xf32>
    %cst_273 = arith.constant 1.000000e+00 : f32
    %657 = vector.broadcast %cst_273 : f32 to vector<16x32xf32>
    %658 = arith.addf %657, %656 : vector<16x32xf32>
    %659 = arith.divf %657, %658 : vector<16x32xf32>
    %660 = vector.extract_strided_slice %653 {offsets = [0, 32], sizes = [16, 32], strides = [1, 1]} : vector<16x64xf32> to vector<16x32xf32>
    %661 = arith.negf %660 : vector<16x32xf32>
    %662 = math.exp %661 : vector<16x32xf32>
    %cst_274 = arith.constant 1.000000e+00 : f32
    %663 = vector.broadcast %cst_274 : f32 to vector<16x32xf32>
    %664 = arith.addf %663, %662 : vector<16x32xf32>
    %665 = arith.divf %663, %664 : vector<16x32xf32>
    %c0_275 = arith.constant 0 : index
    %c0_276 = arith.constant 0 : index
    %666 = vector.load %arg5[%c0_275, %c0_276] : memref<84x32xf32, #tpu.memory_space<vmem>>, vector<32x32xf32>
    %cst_277 = arith.constant dense<0.000000e+00> : vector<16x32xf32>
    %667 = tpu.matmul %647, %666, %cst_277 {dimension_numbers = #tpu.dot_dimension_numbers<[1], [0], [0], [1], [0, 0, 1, 1], [], []>} : vector<16x32xf32>, vector<32x32xf32>, vector<16x32xf32> -> vector<16x32xf32>
    %c64_278 = arith.constant 64 : index
    %c0_279 = arith.constant 0 : index
    %668 = vector.load %arg5[%c64_278, %c0_279] : memref<84x32xf32, #tpu.memory_space<vmem>>, vector<1x32xf32>
    %669 = vector.broadcast %668 : vector<1x32xf32> to vector<16x32xf32>
    %670 = arith.addf %667, %669 : vector<16x32xf32>
    %c32_280 = arith.constant 32 : index
    %c0_281 = arith.constant 0 : index
    %671 = vector.load %arg5[%c32_280, %c0_281] : memref<84x32xf32, #tpu.memory_space<vmem>>, vector<32x32xf32>
    %cst_282 = arith.constant dense<0.000000e+00> : vector<16x32xf32>
    %672 = tpu.matmul %572, %671, %cst_282 {dimension_numbers = #tpu.dot_dimension_numbers<[1], [0], [0], [1], [0, 0, 1, 1], [], []>} : vector<16x32xf32>, vector<32x32xf32>, vector<16x32xf32> -> vector<16x32xf32>
    %c65_283 = arith.constant 65 : index
    %c0_284 = arith.constant 0 : index
    %673 = vector.load %arg5[%c65_283, %c0_284] : memref<84x32xf32, #tpu.memory_space<vmem>>, vector<1x32xf32>
    %674 = vector.broadcast %673 : vector<1x32xf32> to vector<16x32xf32>
    %675 = arith.addf %672, %674 : vector<16x32xf32>
    %676 = arith.mulf %659, %675 : vector<16x32xf32>
    %677 = arith.addf %670, %676 : vector<16x32xf32>
    %678 = math.tanh %677 : vector<16x32xf32>
    %cst_285 = arith.constant 1.000000e+00 : f32
    %679 = vector.broadcast %cst_285 : f32 to vector<16x32xf32>
    %680 = arith.subf %679, %665 : vector<16x32xf32>
    %681 = arith.mulf %680, %678 : vector<16x32xf32>
    %682 = arith.mulf %665, %572 : vector<16x32xf32>
    %683 = arith.addf %681, %682 : vector<16x32xf32>
    %c66_286 = arith.constant 66 : index
    %c0_287 = arith.constant 0 : index
    %684 = vector.load %arg5[%c66_286, %c0_287] : memref<84x32xf32, #tpu.memory_space<vmem>>, vector<1x32xf32>
    %c67_288 = arith.constant 67 : index
    %c0_289 = arith.constant 0 : index
    %685 = vector.load %arg5[%c67_288, %c0_289] : memref<84x32xf32, #tpu.memory_space<vmem>>, vector<1x32xf32>
    %cst_290 = arith.constant dense<0.000000e+00> : vector<16xf32>
    %686 = vector.multi_reduction <add>, %683, %cst_290 [1] : vector<16x32xf32> to vector<16xf32>
    %687 = vector.shape_cast %686 : vector<16xf32> to vector<16x1xf32>
    %cst_291 = arith.constant 3.200000e+01 : f32
    %688 = vector.broadcast %cst_291 : f32 to vector<16x1xf32>
    %689 = arith.divf %687, %688 : vector<16x1xf32>
    %690 = vector.broadcast %689 : vector<16x1xf32> to vector<16x32xf32>
    %691 = arith.subf %683, %690 : vector<16x32xf32>
    %692 = arith.mulf %691, %691 : vector<16x32xf32>
    %cst_292 = arith.constant dense<0.000000e+00> : vector<16xf32>
    %693 = vector.multi_reduction <add>, %692, %cst_292 [1] : vector<16x32xf32> to vector<16xf32>
    %694 = vector.shape_cast %693 : vector<16xf32> to vector<16x1xf32>
    %cst_293 = arith.constant 3.200000e+01 : f32
    %695 = vector.broadcast %cst_293 : f32 to vector<16x1xf32>
    %696 = arith.divf %694, %695 : vector<16x1xf32>
    %697 = vector.broadcast %689 : vector<16x1xf32> to vector<16x32xf32>
    %698 = arith.subf %683, %697 : vector<16x32xf32>
    %cst_294 = arith.constant 9.99999974E-6 : f32
    %699 = vector.broadcast %cst_294 : f32 to vector<16x1xf32>
    %700 = arith.addf %696, %699 : vector<16x1xf32>
    %701 = math.rsqrt %700 : vector<16x1xf32>
    %702 = vector.broadcast %701 : vector<16x1xf32> to vector<16x32xf32>
    %703 = arith.mulf %698, %702 : vector<16x32xf32>
    %704 = vector.broadcast %684 : vector<1x32xf32> to vector<16x32xf32>
    %705 = arith.mulf %703, %704 : vector<16x32xf32>
    %706 = vector.broadcast %685 : vector<1x32xf32> to vector<16x32xf32>
    %707 = arith.addf %705, %706 : vector<16x32xf32>
    %c64_295 = arith.constant 64 : index
    %c0_296 = arith.constant 0 : index
    %708 = vector.load %arg3[%c64_295, %c0_296] : memref<96x32xf32, #tpu.memory_space<vmem>>, vector<32x32xf32>
    %cst_297 = arith.constant dense<0.000000e+00> : vector<16x32xf32>
    %709 = tpu.matmul %707, %708, %cst_297 {dimension_numbers = #tpu.dot_dimension_numbers<[1], [0], [0], [1], [0, 0, 1, 1], [], []>} : vector<16x32xf32>, vector<32x32xf32>, vector<16x32xf32> -> vector<16x32xf32>
    %710 = vector.extract_strided_slice %709 {offsets = [0, 0], sizes = [8, 32], strides = [1, 1]} : vector<16x32xf32> to vector<8x32xf32>
    %711 = vector.extract_strided_slice %458 {offsets = [0, 0], sizes = [16, 32], strides = [1, 1]} : vector<32x32xf32> to vector<16x32xf32>
    %712 = vector.extract_strided_slice %460 {offsets = [0, 0], sizes = [16, 32], strides = [1, 1]} : vector<32x32xf32> to vector<16x32xf32>
    %cst_298 = arith.constant dense<0.000000e+00> : vector<8x16xf32>
    %713 = tpu.matmul %710, %711, %cst_298 {dimension_numbers = #tpu.dot_dimension_numbers<[1], [1], [0], [0], [0, 0, 1, 0], [], []>} : vector<8x32xf32>, vector<16x32xf32>, vector<8x16xf32> -> vector<8x16xf32>
    %cst_299 = arith.constant 0.176776692 : f32
    %714 = vector.broadcast %cst_299 : f32 to vector<8x16xf32>
    %715 = arith.mulf %713, %714 : vector<8x16xf32>
    %cst_300 = arith.constant dense<0xFF800000> : vector<16xf32>
    %716 = vector.multi_reduction <maximumf>, %715, %cst_300 [0] : vector<8x16xf32> to vector<16xf32>
    %717 = vector.shape_cast %716 : vector<16xf32> to vector<1x16xf32>
    %718 = vector.broadcast %717 : vector<1x16xf32> to vector<8x16xf32>
    %719 = arith.subf %715, %718 : vector<8x16xf32>
    %720 = math.exp %719 : vector<8x16xf32>
    %cst_301 = arith.constant dense<0.000000e+00> : vector<16xf32>
    %721 = vector.multi_reduction <add>, %720, %cst_301 [0] : vector<8x16xf32> to vector<16xf32>
    %722 = vector.shape_cast %721 : vector<16xf32> to vector<1x16xf32>
    %723 = tpu.reciprocal %722 {approx = true} : vector<1x16xf32> -> vector<1x16xf32>
    %724 = vector.broadcast %723 : vector<1x16xf32> to vector<8x16xf32>
    %725 = arith.mulf %720, %724 : vector<8x16xf32>
    %cst_302 = arith.constant 9.99999993E-9 : f32
    %726 = vector.broadcast %cst_302 : f32 to vector<8x16xf32>
    %727 = arith.addf %725, %726 : vector<8x16xf32>
    %cst_303 = arith.constant dense<0.000000e+00> : vector<8xf32>
    %728 = vector.multi_reduction <add>, %727, %cst_303 [1] : vector<8x16xf32> to vector<8xf32>
    %729 = vector.shape_cast %728 : vector<8xf32> to vector<8x1xf32>
    %730 = tpu.reciprocal %729 {approx = true} : vector<8x1xf32> -> vector<8x1xf32>
    %731 = vector.broadcast %730 : vector<8x1xf32> to vector<8x16xf32>
    %732 = arith.mulf %727, %731 : vector<8x16xf32>
    %cst_304 = arith.constant dense<0.000000e+00> : vector<8x32xf32>
    %733 = tpu.matmul %732, %712, %cst_304 {dimension_numbers = #tpu.dot_dimension_numbers<[1], [0], [0], [1], [0, 0, 1, 1], [], []>} : vector<8x16xf32>, vector<16x32xf32>, vector<8x32xf32> -> vector<8x32xf32>
    %734 = vector.extract_strided_slice %709 {offsets = [8, 0], sizes = [8, 32], strides = [1, 1]} : vector<16x32xf32> to vector<8x32xf32>
    %735 = vector.extract_strided_slice %458 {offsets = [16, 0], sizes = [16, 32], strides = [1, 1]} : vector<32x32xf32> to vector<16x32xf32>
    %736 = vector.extract_strided_slice %460 {offsets = [16, 0], sizes = [16, 32], strides = [1, 1]} : vector<32x32xf32> to vector<16x32xf32>
    %cst_305 = arith.constant dense<0.000000e+00> : vector<8x16xf32>
    %737 = tpu.matmul %734, %735, %cst_305 {dimension_numbers = #tpu.dot_dimension_numbers<[1], [1], [0], [0], [0, 0, 1, 0], [], []>} : vector<8x32xf32>, vector<16x32xf32>, vector<8x16xf32> -> vector<8x16xf32>
    %cst_306 = arith.constant 0.176776692 : f32
    %738 = vector.broadcast %cst_306 : f32 to vector<8x16xf32>
    %739 = arith.mulf %737, %738 : vector<8x16xf32>
    %cst_307 = arith.constant dense<0xFF800000> : vector<16xf32>
    %740 = vector.multi_reduction <maximumf>, %739, %cst_307 [0] : vector<8x16xf32> to vector<16xf32>
    %741 = vector.shape_cast %740 : vector<16xf32> to vector<1x16xf32>
    %742 = vector.broadcast %741 : vector<1x16xf32> to vector<8x16xf32>
    %743 = arith.subf %739, %742 : vector<8x16xf32>
    %744 = math.exp %743 : vector<8x16xf32>
    %cst_308 = arith.constant dense<0.000000e+00> : vector<16xf32>
    %745 = vector.multi_reduction <add>, %744, %cst_308 [0] : vector<8x16xf32> to vector<16xf32>
    %746 = vector.shape_cast %745 : vector<16xf32> to vector<1x16xf32>
    %747 = tpu.reciprocal %746 {approx = true} : vector<1x16xf32> -> vector<1x16xf32>
    %748 = vector.broadcast %747 : vector<1x16xf32> to vector<8x16xf32>
    %749 = arith.mulf %744, %748 : vector<8x16xf32>
    %cst_309 = arith.constant 9.99999993E-9 : f32
    %750 = vector.broadcast %cst_309 : f32 to vector<8x16xf32>
    %751 = arith.addf %749, %750 : vector<8x16xf32>
    %cst_310 = arith.constant dense<0.000000e+00> : vector<8xf32>
    %752 = vector.multi_reduction <add>, %751, %cst_310 [1] : vector<8x16xf32> to vector<8xf32>
    %753 = vector.shape_cast %752 : vector<8xf32> to vector<8x1xf32>
    %754 = tpu.reciprocal %753 {approx = true} : vector<8x1xf32> -> vector<8x1xf32>
    %755 = vector.broadcast %754 : vector<8x1xf32> to vector<8x16xf32>
    %756 = arith.mulf %751, %755 : vector<8x16xf32>
    %cst_311 = arith.constant dense<0.000000e+00> : vector<8x32xf32>
    %757 = tpu.matmul %756, %736, %cst_311 {dimension_numbers = #tpu.dot_dimension_numbers<[1], [0], [0], [1], [0, 0, 1, 1], [], []>} : vector<8x16xf32>, vector<16x32xf32>, vector<8x32xf32> -> vector<8x32xf32>
    %758 = tpu.concatenate %733, %757 in 0 : vector<8x32xf32>, vector<8x32xf32> -> vector<16x32xf32>
    %759 = tpu.concatenate %725, %749 in 0 : vector<8x16xf32>, vector<8x16xf32> -> vector<16x16xf32>
    %760 = tpu.concatenate %758, %683 in 1 : vector<16x32xf32>, vector<16x32xf32> -> vector<16x64xf32>
    %c0_312 = arith.constant 0 : index
    %c0_313 = arith.constant 0 : index
    %761 = vector.load %arg4[%c0_312, %c0_313] : memref<65x64xf32, #tpu.memory_space<vmem>>, vector<64x64xf32>
    %cst_314 = arith.constant dense<0.000000e+00> : vector<16x64xf32>
    %762 = tpu.matmul %760, %761, %cst_314 {dimension_numbers = #tpu.dot_dimension_numbers<[1], [0], [0], [1], [0, 0, 1, 1], [], []>} : vector<16x64xf32>, vector<64x64xf32>, vector<16x64xf32> -> vector<16x64xf32>
    %c64_315 = arith.constant 64 : index
    %c0_316 = arith.constant 0 : index
    %763 = vector.load %arg4[%c64_315, %c0_316] : memref<65x64xf32, #tpu.memory_space<vmem>>, vector<1x64xf32>
    %764 = vector.broadcast %763 : vector<1x64xf32> to vector<16x64xf32>
    %765 = arith.addf %762, %764 : vector<16x64xf32>
    %766 = vector.extract_strided_slice %765 {offsets = [0, 0], sizes = [16, 32], strides = [1, 1]} : vector<16x64xf32> to vector<16x32xf32>
    %767 = arith.negf %766 : vector<16x32xf32>
    %768 = math.exp %767 : vector<16x32xf32>
    %cst_317 = arith.constant 1.000000e+00 : f32
    %769 = vector.broadcast %cst_317 : f32 to vector<16x32xf32>
    %770 = arith.addf %769, %768 : vector<16x32xf32>
    %771 = arith.divf %769, %770 : vector<16x32xf32>
    %772 = vector.extract_strided_slice %765 {offsets = [0, 32], sizes = [16, 32], strides = [1, 1]} : vector<16x64xf32> to vector<16x32xf32>
    %773 = arith.negf %772 : vector<16x32xf32>
    %774 = math.exp %773 : vector<16x32xf32>
    %cst_318 = arith.constant 1.000000e+00 : f32
    %775 = vector.broadcast %cst_318 : f32 to vector<16x32xf32>
    %776 = arith.addf %775, %774 : vector<16x32xf32>
    %777 = arith.divf %775, %776 : vector<16x32xf32>
    %c0_319 = arith.constant 0 : index
    %c0_320 = arith.constant 0 : index
    %778 = vector.load %arg5[%c0_319, %c0_320] : memref<84x32xf32, #tpu.memory_space<vmem>>, vector<32x32xf32>
    %cst_321 = arith.constant dense<0.000000e+00> : vector<16x32xf32>
    %779 = tpu.matmul %758, %778, %cst_321 {dimension_numbers = #tpu.dot_dimension_numbers<[1], [0], [0], [1], [0, 0, 1, 1], [], []>} : vector<16x32xf32>, vector<32x32xf32>, vector<16x32xf32> -> vector<16x32xf32>
    %c64_322 = arith.constant 64 : index
    %c0_323 = arith.constant 0 : index
    %780 = vector.load %arg5[%c64_322, %c0_323] : memref<84x32xf32, #tpu.memory_space<vmem>>, vector<1x32xf32>
    %781 = vector.broadcast %780 : vector<1x32xf32> to vector<16x32xf32>
    %782 = arith.addf %779, %781 : vector<16x32xf32>
    %c32_324 = arith.constant 32 : index
    %c0_325 = arith.constant 0 : index
    %783 = vector.load %arg5[%c32_324, %c0_325] : memref<84x32xf32, #tpu.memory_space<vmem>>, vector<32x32xf32>
    %cst_326 = arith.constant dense<0.000000e+00> : vector<16x32xf32>
    %784 = tpu.matmul %683, %783, %cst_326 {dimension_numbers = #tpu.dot_dimension_numbers<[1], [0], [0], [1], [0, 0, 1, 1], [], []>} : vector<16x32xf32>, vector<32x32xf32>, vector<16x32xf32> -> vector<16x32xf32>
    %c65_327 = arith.constant 65 : index
    %c0_328 = arith.constant 0 : index
    %785 = vector.load %arg5[%c65_327, %c0_328] : memref<84x32xf32, #tpu.memory_space<vmem>>, vector<1x32xf32>
    %786 = vector.broadcast %785 : vector<1x32xf32> to vector<16x32xf32>
    %787 = arith.addf %784, %786 : vector<16x32xf32>
    %788 = arith.mulf %771, %787 : vector<16x32xf32>
    %789 = arith.addf %782, %788 : vector<16x32xf32>
    %790 = math.tanh %789 : vector<16x32xf32>
    %cst_329 = arith.constant 1.000000e+00 : f32
    %791 = vector.broadcast %cst_329 : f32 to vector<16x32xf32>
    %792 = arith.subf %791, %777 : vector<16x32xf32>
    %793 = arith.mulf %792, %790 : vector<16x32xf32>
    %794 = arith.mulf %777, %683 : vector<16x32xf32>
    %795 = arith.addf %793, %794 : vector<16x32xf32>
    %c1_330 = arith.constant 1 : index
    %c0_331 = arith.constant 0 : index
    %c0_332 = arith.constant 0 : index
    %796 = vector.load %arg7[%c1_330, %c0_331, %c0_332] : memref<2x16x32xf32, #tpu.memory_space<vmem>>, vector<1x16x32xf32>
    %797 = vector.shape_cast %796 : vector<1x16x32xf32> to vector<16x32xf32>
    %798 = vector.shape_cast %795 : vector<16x32xf32> to vector<1x16x32xf32>
    tpu.vector_store %arg7[%c1_330, %c0_331, %c0_332], %798 {strides = array<i32>} : memref<2x16x32xf32, #tpu.memory_space<vmem>>, vector<1x16x32xf32>,
    %c1_333 = arith.constant 1 : index
    %c0_334 = arith.constant 0 : index
    %c0_335 = arith.constant 0 : index
    %799 = vector.load %arg8[%c1_333, %c0_334, %c0_335] : memref<2x16x16xf32, #tpu.memory_space<vmem>>, vector<1x16x16xf32>
    %800 = vector.shape_cast %799 : vector<1x16x16xf32> to vector<16x16xf32>
    %801 = vector.shape_cast %759 : vector<16x16xf32> to vector<1x16x16xf32>
    tpu.vector_store %arg8[%c1_333, %c0_334, %c0_335], %801 {strides = array<i32>} : memref<2x16x16xf32, #tpu.memory_space<vmem>>, vector<1x16x16xf32>,
    return
  }
  func.func @transform_0(%arg0: i32) -> (i32, i32) {
    %c0_i32 = arith.constant 0 : i32
    %c0_i32_0 = arith.constant 0 : i32
    %c0_i32_1 = arith.constant 0 : i32
    return %c0_i32, %c0_i32_0 : i32, i32
  }
  func.func @transform_1(%arg0: i32) -> (i32, i32) {
    %c0_i32 = arith.constant 0 : i32
    %c0_i32_0 = arith.constant 0 : i32
    %c0_i32_1 = arith.constant 0 : i32
    return %c0_i32, %c0_i32_0 : i32, i32
  }
  func.func @transform_2(%arg0: i32) -> (i32, i32) {
    %c0_i32 = arith.constant 0 : i32
    %c0_i32_0 = arith.constant 0 : i32
    %c0_i32_1 = arith.constant 0 : i32
    return %c0_i32, %c0_i32_0 : i32, i32
  }
  func.func @transform_3(%arg0: i32) -> (i32, i32) {
    %c0_i32 = arith.constant 0 : i32
    %c0_i32_0 = arith.constant 0 : i32
    %c0_i32_1 = arith.constant 0 : i32
    return %c0_i32, %c0_i32_0 : i32, i32
  }
  func.func @transform_4(%arg0: i32) -> (i32, i32) {
    %c0_i32 = arith.constant 0 : i32
    %c0_i32_0 = arith.constant 0 : i32
    %c0_i32_1 = arith.constant 0 : i32
    return %c0_i32, %c0_i32_0 : i32, i32
  }
  func.func @transform_5(%arg0: i32) -> (i32, i32) {
    %c0_i32 = arith.constant 0 : i32
    %c0_i32_0 = arith.constant 0 : i32
    %c0_i32_1 = arith.constant 0 : i32
    return %c0_i32, %c0_i32_0 : i32, i32
  }
  func.func @transform_6(%arg0: i32) -> (i32, i32, i32) {
    %c0_i32 = arith.constant 0 : i32
    %c0_i32_0 = arith.constant 0 : i32
    %c0_i32_1 = arith.constant 0 : i32
    %c0_i32_2 = arith.constant 0 : i32
    return %c0_i32, %c0_i32_0, %c0_i32_1 : i32, i32, i32
  }
  func.func @transform_7(%arg0: i32) -> (i32, i32, i32) {
    %c0_i32 = arith.constant 0 : i32
    %c0_i32_0 = arith.constant 0 : i32
    %c0_i32_1 = arith.constant 0 : i32
    %c0_i32_2 = arith.constant 0 : i32
    return %c0_i32, %c0_i32_0, %c0_i32_1 : i32, i32, i32
  }
  func.func @transform_8(%arg0: i32) -> (i32, i32, i32) {
    %c0_i32 = arith.constant 0 : i32
    %c0_i32_0 = arith.constant 0 : i32
    %c0_i32_1 = arith.constant 0 : i32
    %c0_i32_2 = arith.constant 0 : i32
    return %c0_i32, %c0_i32_0, %c0_i32_1 : i32, i32, i32
  }
  func.func @transform_9(%arg0: i32) -> (i32, i32) {
    %c0_i32 = arith.constant 0 : i32
    %c0_i32_0 = arith.constant 0 : i32
    %c0_i32_1 = arith.constant 0 : i32
    return %c0_i32, %c0_i32_0 : i32, i32
  }
  func.func @transform_10(%arg0: i32) -> (i32, i32) {
    %c0_i32 = arith.constant 0 : i32
    %c0_i32_0 = arith.constant 0 : i32
    %c0_i32_1 = arith.constant 0 : i32
    return %c0_i32, %c0_i32_0 : i32, i32
  }
}

</mosaic_0001>

<llo_original>
// kernel: tpu_custom_call.1
$region0: #{tpu_custom_call.1}
  #allocation0 [shape = 'u32[]', space=smem, size = 0x4, offset = 0x4, fixed_abs, tag = 'smem constant byte address 0x4 - core index']
  #allocation1 [shape = 'u32[144,128]{1,0:T(1,128)}', space=vmem, size = 0x12000, scoped, tag = 'internal scratch']
  %s0 = inlined_call_operand.vmem [shape: f32[32,32], index: 0, kind: input, shape index: {}]
  %s1 = inlined_call_operand.vmem [shape: f32[16,32], index: 1, kind: input, shape index: {}]
  %s2 = inlined_call_operand.vmem [shape: f32[96,32], index: 2, kind: input, shape index: {}]
  %s3 = inlined_call_operand.vmem [shape: f32[65,64], index: 3, kind: input, shape index: {}]
  %s4 = inlined_call_operand.vmem [shape: f32[84,32], index: 4, kind: input, shape index: {}]
  %s5 = inlined_call_operand.vmem [shape: f32[19,32], index: 5, kind: input, shape index: {}]
  %s6 = inlined_call_operand.hbm [shape: f32[2,16,32], index: 6, kind: output, shape index: {0}]
  %s7 = inlined_call_operand.hbm [shape: f32[2,16,16], index: 7, kind: output, shape index: {1}]
  %s8 = inlined_call_operand.hbm [shape: f32[2,32,32], index: 8, kind: output, shape index: {2}]
  %s9 = inlined_call_operand.hbm [shape: s32[1,16], index: 9, kind: output, shape index: {3}]
  %s10 = inlined_call_operand.hbm [shape: f32[1,16], index: 10, kind: output, shape index: {4}]
  %11 = xla_tuple %s6, %s7, %s8, %s9, %s10
  %s12 = sld [smem:[#allocation0]]
  $region66: #{tpu_custom_call.1} parent=0
    _
  %s14 = ssub.s32 1, %s12
  %s15 = scalar_select 0, %s14, %s12
  $region1: #{tpu_custom_call.1} parent=0
    #allocation2 [shape = 'u8[16384]{0}', space=vmem, size = 0x4000, scoped, tag = 'output window, operand 0, single buffered']
    #allocation3 [shape = 's32[1]{0}', space=sflag, size = 0x4, scoped, tag = 'scoped memory for tpu_custom_call.1']
    #allocation4 [shape = 'u8[16384]{0}', space=vmem, size = 0x4000, scoped, tag = 'output window, operand 1, single buffered']
    #allocation5 [shape = 's32[1]{0}', space=sflag, size = 0x4, scoped, tag = 'scoped memory for tpu_custom_call.1']
    #allocation6 [shape = 'u8[32768]{0}', space=vmem, size = 0x8000, scoped, tag = 'output window, operand 2, single buffered']
    #allocation7 [shape = 'u8[512]{0}', space=vmem, size = 0x400, scoped, tag = 'output window, operand 3, single buffered']
    #allocation8 [shape = 's32[1]{0}', space=sflag, size = 0x4, scoped, tag = 'scoped memory for tpu_custom_call.1']
    #allocation9 [shape = 'u8[512]{0}', space=vmem, size = 0x400, scoped, tag = 'output window, operand 4, single buffered']
    %16 = vsyncpa [#allocation3], 0
    %17 = vsyncpa [#allocation5], 0
    %18 = vsyncpa [#allocation8], 0
    // Predicated region
    $region2: #{tpu_custom_call.1} parent=1 // pred_check
      _
    $region3: #{tpu_custom_call.1} parent=1 // pred_check_branch
      %20 = sbr.rel (0) target = $region5
    $region4: #{tpu_custom_call.1} parent=1 // pred_region
      _
    $region5: #{tpu_custom_call.1} parent=1 // pred_fallthru
      _
    // Predicated region
    $region6: #{tpu_custom_call.1} parent=1 // pred_check
      _
    $region7: #{tpu_custom_call.1} parent=1 // pred_check_branch
      %22 = sbr.rel (0) target = $region9
    $region8: #{tpu_custom_call.1} parent=1 // pred_region
      _
    $region9: #{tpu_custom_call.1} parent=1 // pred_fallthru
      _
    // Predicated region
    $region10: #{tpu_custom_call.1} parent=1 // pred_check
      _
    $region11: #{tpu_custom_call.1} parent=1 // pred_check_branch
      %24 = sbr.rel (0) target = $region13
    $region12: #{tpu_custom_call.1} parent=1 // pred_region
      _
    $region13: #{tpu_custom_call.1} parent=1 // pred_fallthru
      _
    // Predicated region
    $region14: #{tpu_custom_call.1} parent=1 // pred_check
      _
    $region15: #{tpu_custom_call.1} parent=1 // pred_check_branch
      %26 = sbr.rel (0) target = $region17
    $region16: #{tpu_custom_call.1} parent=1 // pred_region
      _
    $region17: #{tpu_custom_call.1} parent=1 // pred_fallthru
      _
    // Predicated region
    $region18: #{tpu_custom_call.1} parent=1 // pred_check
      _
    $region19: #{tpu_custom_call.1} parent=1 // pred_check_branch
      %28 = sbr.rel (0) target = $region21
    $region20: #{tpu_custom_call.1} parent=1 // pred_region
      _
    $region21: #{tpu_custom_call.1} parent=1 // pred_fallthru
      _
    // Predicated region
    $region22: #{tpu_custom_call.1} parent=1 // pred_check
      _
    $region23: #{tpu_custom_call.1} parent=1 // pred_check_branch
      %30 = sbr.rel (0) target = $region25
    $region24: #{tpu_custom_call.1} parent=1 // pred_region
      _
    $region25: #{tpu_custom_call.1} parent=1 // pred_fallthru
      _
    %v31 = vld [vmem:[%s5 + $0x2] sm:$0x1]
    %v32 = vld [vmem:[%s0] sm:$0xff]
    %v33 = vld [vmem:[%s0 + $0x8] sm:$0xff]
    %v34 = vld [vmem:[%s0 + $0x10] sm:$0xff]
    %v35 = vld [vmem:[%s0 + $0x18] sm:$0xff]
    %v36 = vmul.f32 %v31, 0.5
    %v37 = vlaneseq
    %v38 = vshrl.u32 %v37, 7
    %v39 = vsub.s32 0, %v38
    %v40 = vrot.slane %v36, %v39
    %v41 = vadd.f32 %v32, %v40
    %v42 = vadd.f32 %v33, %v40
    %v43 = vadd.f32 %v34, %v40
    %v44 = vadd.f32 %v35, %v40
    %v45 = vld [vmem:[%s5] sm:$0x1]
    %v46 = vld [vmem:[%s5 + $0x1] sm:$0x1]
    %vm47 = vcmask 261120
    %v48 = vsel %vm47, %v41, 0.0
    %49 = vadd.xlane.f32.xlu0 %v48
    %v50 = vpop.xlane.xlu0 %49
    %v51 = vsel %vm47, %v42, 0.0
    %52 = vadd.xlane.f32.xlu0 %v51
    %v53 = vpop.xlane.xlu0 %52
    %v54 = vsel %vm47, %v43, 0.0
    %55 = vadd.xlane.f32.xlu0 %v54
    %v56 = vpop.xlane.xlu0 %55
    %v57 = vsel %vm47, %v44, 0.0
    %58 = vadd.xlane.f32.xlu0 %v57
    %v59 = vpop.xlane.xlu0 %58
    %v60 = vrcp.pop 32.0
    %v61 = vmul.f32 %v50, %v60
    %v62 = vmul.f32 %v53, %v60
    %v63 = vmul.f32 %v56, %v60
    %v64 = vmul.f32 %v59, %v60
    %v65 = vsub.f32 %v41, %v61
    %v66 = vsub.f32 %v42, %v62
    %v67 = vsub.f32 %v43, %v63
    %v68 = vsub.f32 %v44, %v64
    %v69 = vmul.f32 %v65, %v65
    %v70 = vmul.f32 %v66, %v66
    %v71 = vmul.f32 %v67, %v67
    %v72 = vmul.f32 %v68, %v68
    %v73 = vsel %vm47, %v69, 0.0
    %74 = vadd.xlane.f32.xlu0 %v73
    %v75 = vpop.xlane.xlu0 %74
    %v76 = vsel %vm47, %v70, 0.0
    %77 = vadd.xlane.f32.xlu0 %v76
    %v78 = vpop.xlane.xlu0 %77
    %v79 = vsel %vm47, %v71, 0.0
    %80 = vadd.xlane.f32.xlu0 %v79
    %v81 = vpop.xlane.xlu0 %80
    %v82 = vsel %vm47, %v72, 0.0
    %83 = vadd.xlane.f32.xlu0 %v82
    %v84 = vpop.xlane.xlu0 %83
    %v85 = vmul.f32 %v75, %v60
    %v86 = vmul.f32 %v78, %v60
    %v87 = vmul.f32 %v81, %v60
    %v88 = vmul.f32 %v84, %v60
    %v89 = vadd.f32 %v85, 1e-05
    %v90 = vadd.f32 %v86, 1e-05
    %v91 = vadd.f32 %v87, 1e-05
    %v92 = vadd.f32 %v88, 1e-05
    %v93 = vrsqrt.pop %v89
    %v94 = vrsqrt.pop %v90
    %v95 = vrsqrt.pop %v91
    %v96 = vrsqrt.pop %v92
    %v97 = vmul.f32 %v65, %v93
    %v98 = vmul.f32 %v66, %v94
    %v99 = vmul.f32 %v67, %v95
    %v100 = vmul.f32 %v68, %v96
    %v101 = vlaneseq
    %v102 = vshrl.u32 %v101, 7
    %v103 = vsub.s32 0, %v102
    %v104 = vrot.slane %v45, %v103
    %v105 = vmul.f32 %v97, %v104
    %v106 = vmul.f32 %v98, %v104
    %v107 = vmul.f32 %v99, %v104
    %v108 = vmul.f32 %v100, %v104
    %v109 = vlaneseq
    %v110 = vshrl.u32 %v109, 7
    %v111 = vsub.s32 0, %v110
    %v112 = vrot.slane %v46, %v111
    %v113 = vadd.f32 %v105, %v112
    %v114 = vadd.f32 %v106, %v112
    %v115 = vadd.f32 %v107, %v112
    %v116 = vadd.f32 %v108, %v112
    %v117 = vld [vmem:[%s2] sm:$0xff]
    %v118 = vld [vmem:[%s2 + $0x8] sm:$0xff]
    %v119 = vld [vmem:[%s2 + $0x10] sm:$0xff]
    %v120 = vld [vmem:[%s2 + $0x18] sm:$0xff]
    %v122 = vsel %vm47, %v113, 0
    %v125 = vsel %vm47, %v114, 0
    %v128 = vsel %vm47, %v115, 0
    %v131 = vsel %vm47, %v116, 0
    %133 = vmatprep.subr.mxu0 0.0
    %134 = vmatpush1.msra.mxu0 %v117
    %135 = vmatprep.subr.mxu0 0.0
    %136 = vmatpush1.msra.mxu0 %v118
    %137 = vmatprep.subr.mxu0 0.0
    %138 = vmatpush1.msra.mxu0 %v119
    %139 = vmatprep.subr.mxu0 0.0
    %140 = vmatpush1.msra.mxu0 %v120
    %141 = vmatprep.subr.mxu0 0.0
    %142 = vmatpush1.msra.mxu0 0.0
    %143 = vmatprep.subr.mxu0 0.0
    %144 = vmatpush1.msra.mxu0 0.0
    %145 = vmatprep.subr.mxu0 0.0
    %146 = vmatpush1.msra.mxu0 0.0
    %147 = vmatprep.subr.mxu0 0.0
    %148 = vmatpush1.msra.mxu0 0.0
    %149 = vmatprep.subr.mxu0 0.0
    %150 = vmatpush1.msra.mxu0 0.0
    %151 = vmatprep.subr.mxu0 0.0
    %152 = vmatpush1.msra.mxu0 0.0
    %153 = vmatprep.subr.mxu0 0.0
    %154 = vmatpush1.msra.mxu0 0.0
    %155 = vmatprep.subr.mxu0 0.0
    %156 = vmatpush1.msra.mxu0 0.0
    %157 = vmatprep.subr.mxu0 0.0
    %158 = vmatpush1.msra.mxu0 0.0
    %159 = vmatprep.subr.mxu0 0.0
    %160 = vmatpush1.msra.mxu0 0.0
    %161 = vmatprep.subr.mxu0 0.0
    %162 = vmatpush1.msra.mxu0 0.0
    %163 = vmatprep.subr.mxu0 0.0
    %164 = vmatpush1.msra.mxu0 0.0
    %165 = vmatprep.subr.mxu0 0.0
    %166 = vmatpush1.msra.mxu0 0.0
    %167 = vmatprep.subr.mxu0 0.0
    %168 = vmatpush1.msra.mxu0 0.0
    %169 = vmatprep.subr.mxu0 0.0
    %170 = vmatpush1.msra.mxu0 0.0
    %171 = vmatprep.subr.mxu0 0.0
    %172 = vmatpush1.msra.mxu0 0.0
    %173 = vmatprep.subr.mxu0 0.0
    %174 = vmatpush1.msra.mxu0 0.0
    %175 = vmatprep.subr.mxu0 0.0
    %176 = vmatpush1.msra.mxu0 0.0
    %177 = vmatprep.subr.mxu0 0.0
    %178 = vmatpush1.msra.mxu0 0.0
    %179 = vmatprep.subr.mxu0 0.0
    %180 = vmatpush1.msra.mxu0 0.0
    %181 = vmatprep.subr.mxu0 0.0
    %182 = vmatpush1.msra.mxu0 0.0
    %183 = vmatprep.subr.mxu0 0.0
    %184 = vmatpush1.msra.mxu0 0.0
    %185 = vmatprep.subr.mxu0 0.0
    %186 = vmatpush1.msra.mxu0 0.0
    %187 = vmatprep.subr.mxu0 0.0
    %188 = vmatpush1.msra.mxu0 0.0
    %189 = vmatprep.subr.mxu0 0.0
    %190 = vmatpush1.msra.mxu0 0.0
    %191 = vmatprep.subr.mxu0 0.0
    %192 = vmatpush1.msra.mxu0 0.0
    %193 = vmatprep.subr.mxu0 0.0
    %194 = vmatpush1.msra.mxu0 0.0
    %195 = vmatprep.subr.mxu0 0.0
    %196 = vmatpush1.msra.mxu0 0.0
    %197 = vmatprep.mubr.f32.mxu0 0.0
    %198 = vmatmul.mubr.f32.gmra.mrb[0].mxu0 %v122
    %v199 = vpop.f32.mrb[0].mxu0
    %v200 = vadd.f32 0.0, %v199
    %v201 = vpop.f32.mrb[0].mxu0
    %202 = vmatprep.mubr.f32.mxu0 0.0
    %203 = vmatmul.mubr.f32.gmra.mrb[0].mxu0 %v125
    %v204 = vpop.f32.mrb[0].mxu0
    %v205 = vadd.f32 0.0, %v204
    %v206 = vpop.f32.mrb[0].mxu0
    %207 = vmatprep.mubr.f32.mxu0 0.0
    %208 = vmatmul.mubr.f32.gmra.mrb[0].mxu0 %v128
    %v209 = vpop.f32.mrb[0].mxu0
    %v210 = vadd.f32 0.0, %v209
    %v211 = vpop.f32.mrb[0].mxu0
    %212 = vmatprep.mubr.f32.mxu0 0.0
    %213 = vmatmul.mubr.f32.gmra.mrb[0].mxu0 %v131
    %v214 = vpop.f32.mrb[0].mxu0
    %v215 = vadd.f32 0.0, %v214
    %v216 = vpop.f32.mrb[0].mxu0
    %217 = vdwg.mxu0
    %v218 = vld [vmem:[%s2 + $0x20] sm:$0xff]
    %v219 = vld [vmem:[%s2 + $0x28] sm:$0xff]
    %v220 = vld [vmem:[%s2 + $0x30] sm:$0xff]
    %v221 = vld [vmem:[%s2 + $0x38] sm:$0xff]
    %222 = vmatprep.subr.mxu0 0.0
    %223 = vmatpush1.msra.mxu0 %v218
    %224 = vmatprep.subr.mxu0 0.0
    %225 = vmatpush1.msra.mxu0 %v219
    %226 = vmatprep.subr.mxu0 0.0
    %227 = vmatpush1.msra.mxu0 %v220
    %228 = vmatprep.subr.mxu0 0.0
    %229 = vmatpush1.msra.mxu0 %v221
    %230 = vmatprep.subr.mxu0 0.0
    %231 = vmatpush1.msra.mxu0 0.0
    %232 = vmatprep.subr.mxu0 0.0
    %233 = vmatpush1.msra.mxu0 0.0
    %234 = vmatprep.subr.mxu0 0.0
    %235 = vmatpush1.msra.mxu0 0.0
    %236 = vmatprep.subr.mxu0 0.0
    %237 = vmatpush1.msra.mxu0 0.0
    %238 = vmatprep.subr.mxu0 0.0
    %239 = vmatpush1.msra.mxu0 0.0
    %240 = vmatprep.subr.mxu0 0.0
    %241 = vmatpush1.msra.mxu0 0.0
    %242 = vmatprep.subr.mxu0 0.0
    %243 = vmatpush1.msra.mxu0 0.0
    %244 = vmatprep.subr.mxu0 0.0
    %245 = vmatpush1.msra.mxu0 0.0
    %246 = vmatprep.subr.mxu0 0.0
    %247 = vmatpush1.msra.mxu0 0.0
    %248 = vmatprep.subr.mxu0 0.0
    %249 = vmatpush1.msra.mxu0 0.0
    %250 = vmatprep.subr.mxu0 0.0
    %251 = vmatpush1.msra.mxu0 0.0
    %252 = vmatprep.subr.mxu0 0.0
    %253 = vmatpush1.msra.mxu0 0.0
    %254 = vmatprep.subr.mxu0 0.0
    %255 = vmatpush1.msra.mxu0 0.0
    %256 = vmatprep.subr.mxu0 0.0
    %257 = vmatpush1.msra.mxu0 0.0
    %258 = vmatprep.subr.mxu0 0.0
    %259 = vmatpush1.msra.mxu0 0.0
    %260 = vmatprep.subr.mxu0 0.0
    %261 = vmatpush1.msra.mxu0 0.0
    %262 = vmatprep.subr.mxu0 0.0
    %263 = vmatpush1.msra.mxu0 0.0
    %264 = vmatprep.subr.mxu0 0.0
    %265 = vmatpush1.msra.mxu0 0.0
    %266 = vmatprep.subr.mxu0 0.0
    %267 = vmatpush1.msra.mxu0 0.0
    %268 = vmatprep.subr.mxu0 0.0
    %269 = vmatpush1.msra.mxu0 0.0
    %270 = vmatprep.subr.mxu0 0.0
    %271 = vmatpush1.msra.mxu0 0.0
    %272 = vmatprep.subr.mxu0 0.0
    %273 = vmatpush1.msra.mxu0 0.0
    %274 = vmatprep.subr.mxu0 0.0
    %275 = vmatpush1.msra.mxu0 0.0
    %276 = vmatprep.subr.mxu0 0.0
    %277 = vmatpush1.msra.mxu0 0.0
    %278 = vmatprep.subr.mxu0 0.0
    %279 = vmatpush1.msra.mxu0 0.0
    %280 = vmatprep.subr.mxu0 0.0
    %281 = vmatpush1.msra.mxu0 0.0
    %282 = vmatprep.subr.mxu0 0.0
    %283 = vmatpush1.msra.mxu0 0.0
    %284 = vmatprep.subr.mxu0 0.0
    %285 = vmatpush1.msra.mxu0 0.0
    %286 = vmatprep.mubr.f32.mxu0 0.0
    %287 = vmatmul.mubr.f32.gmra.mrb[0].mxu0 %v122
    %v288 = vpop.f32.mrb[0].mxu0
    %v289 = vadd.f32 0.0, %v288
    %v290 = vpop.f32.mrb[0].mxu0
    %291 = vmatprep.mubr.f32.mxu0 0.0
    %292 = vmatmul.mubr.f32.gmra.mrb[0].mxu0 %v125
    %v293 = vpop.f32.mrb[0].mxu0
    %v294 = vadd.f32 0.0, %v293
    %v295 = vpop.f32.mrb[0].mxu0
    %296 = vmatprep.mubr.f32.mxu0 0.0
    %297 = vmatmul.mubr.f32.gmra.mrb[0].mxu0 %v128
    %v298 = vpop.f32.mrb[0].mxu0
    %v299 = vadd.f32 0.0, %v298
    %v300 = vpop.f32.mrb[0].mxu0
    %301 = vmatprep.mubr.f32.mxu0 0.0
    %302 = vmatmul.mubr.f32.gmra.mrb[0].mxu0 %v131
    %v303 = vpop.f32.mrb[0].mxu0
    %v304 = vadd.f32 0.0, %v303
    %v305 = vpop.f32.mrb[0].mxu0
    %306 = vdwg.mxu0
    %v307 = vld [vmem:[%s1] sm:$0xff]
    %v308 = vld [vmem:[%s1 + $0x8] sm:$0xff]
    %v309 = vld [vmem:[%s4 + $0x42] sm:$0x1]
    %v310 = vld [vmem:[%s4 + $0x43] sm:$0x1]
    %v311 = vsel %vm47, %v307, 0.0
    %312 = vadd.xlane.f32.xlu0 %v311
    %v313 = vpop.xlane.xlu0 %312
    %v314 = vsel %vm47, %v308, 0.0
    %315 = vadd.xlane.f32.xlu0 %v314
    %v316 = vpop.xlane.xlu0 %315
    %v317 = vmul.f32 %v313, %v60
    %v318 = vmul.f32 %v316, %v60
    %v319 = vsub.f32 %v307, %v317
    %v320 = vsub.f32 %v308, %v318
    %v321 = vmul.f32 %v319, %v319
    %v322 = vmul.f32 %v320, %v320
    %v323 = vsel %vm47, %v321, 0.0
    %324 = vadd.xlane.f32.xlu0 %v323
    %v325 = vpop.xlane.xlu0 %324
    %v326 = vsel %vm47, %v322, 0.0
    %327 = vadd.xlane.f32.xlu0 %v326
    %v328 = vpop.xlane.xlu0 %327
    %v329 = vmul.f32 %v325, %v60
    %v330 = vmul.f32 %v328, %v60
    %v331 = vadd.f32 %v329, 1e-05
    %v332 = vadd.f32 %v330, 1e-05
    %v333 = vrsqrt.pop %v331
    %v334 = vrsqrt.pop %v332
    %v335 = vmul.f32 %v319, %v333
    %v336 = vmul.f32 %v320, %v334
    %v337 = vlaneseq
    %v338 = vshrl.u32 %v337, 7
    %v339 = vsub.s32 0, %v338
    %v340 = vrot.slane %v309, %v339
    %v341 = vmul.f32 %v335, %v340
    %v342 = vmul.f32 %v336, %v340
    %v343 = vlaneseq
    %v344 = vshrl.u32 %v343, 7
    %v345 = vsub.s32 0, %v344
    %v346 = vrot.slane %v310, %v345
    %v347 = vadd.f32 %v341, %v346
    %v348 = vadd.f32 %v342, %v346
    %v349 = vld [vmem:[%s2 + $0x40] sm:$0xff]
    %v350 = vld [vmem:[%s2 + $0x48] sm:$0xff]
    %v351 = vld [vmem:[%s2 + $0x50] sm:$0xff]
    %v352 = vld [vmem:[%s2 + $0x58] sm:$0xff]
    %v354 = vsel %vm47, %v347, 0
    %v357 = vsel %vm47, %v348, 0
    %359 = vmatprep.subr.mxu0 0.0
    %360 = vmatpush1.msra.mxu0 %v349
    %361 = vmatprep.subr.mxu0 0.0
    %362 = vmatpush1.msra.mxu0 %v350
    %363 = vmatprep.subr.mxu0 0.0
    %364 = vmatpush1.msra.mxu0 %v351
    %365 = vmatprep.subr.mxu0 0.0
    %366 = vmatpush1.msra.mxu0 %v352
    %367 = vmatprep.subr.mxu0 0.0
    %368 = vmatpush1.msra.mxu0 0.0
    %369 = vmatprep.subr.mxu0 0.0
    %370 = vmatpush1.msra.mxu0 0.0
    %371 = vmatprep.subr.mxu0 0.0
    %372 = vmatpush1.msra.mxu0 0.0
    %373 = vmatprep.subr.mxu0 0.0
    %374 = vmatpush1.msra.mxu0 0.0
    %375 = vmatprep.subr.mxu0 0.0
    %376 = vmatpush1.msra.mxu0 0.0
    %377 = vmatprep.subr.mxu0 0.0
    %378 = vmatpush1.msra.mxu0 0.0
    %379 = vmatprep.subr.mxu0 0.0
    %380 = vmatpush1.msra.mxu0 0.0
    %381 = vmatprep.subr.mxu0 0.0
    %382 = vmatpush1.msra.mxu0 0.0
    %383 = vmatprep.subr.mxu0 0.0
    %384 = vmatpush1.msra.mxu0 0.0
    %385 = vmatprep.subr.mxu0 0.0
    %386 = vmatpush1.msra.mxu0 0.0
    %387 = vmatprep.subr.mxu0 0.0
    %388 = vmatpush1.msra.mxu0 0.0
    %389 = vmatprep.subr.mxu0 0.0
    %390 = vmatpush1.msra.mxu0 0.0
    %391 = vmatprep.subr.mxu0 0.0
    %392 = vmatpush1.msra.mxu0 0.0
    %393 = vmatprep.subr.mxu0 0.0
    %394 = vmatpush1.msra.mxu0 0.0
    %395 = vmatprep.subr.mxu0 0.0
    %396 = vmatpush1.msra.mxu0 0.0
    %397 = vmatprep.subr.mxu0 0.0
    %398 = vmatpush1.msra.mxu0 0.0
    %399 = vmatprep.subr.mxu0 0.0
    %400 = vmatpush1.msra.mxu0 0.0
    %401 = vmatprep.subr.mxu0 0.0
    %402 = vmatpush1.msra.mxu0 0.0
    %403 = vmatprep.subr.mxu0 0.0
    %404 = vmatpush1.msra.mxu0 0.0
    %405 = vmatprep.subr.mxu0 0.0
    %406 = vmatpush1.msra.mxu0 0.0
    %407 = vmatprep.subr.mxu0 0.0
    %408 = vmatpush1.msra.mxu0 0.0
    %409 = vmatprep.subr.mxu0 0.0
    %410 = vmatpush1.msra.mxu0 0.0
    %411 = vmatprep.subr.mxu0 0.0
    %412 = vmatpush1.msra.mxu0 0.0
    %413 = vmatprep.subr.mxu0 0.0
    %414 = vmatpush1.msra.mxu0 0.0
    %415 = vmatprep.subr.mxu0 0.0
    %416 = vmatpush1.msra.mxu0 0.0
    %417 = vmatprep.subr.mxu0 0.0
    %418 = vmatpush1.msra.mxu0 0.0
    %419 = vmatprep.subr.mxu0 0.0
    %420 = vmatpush1.msra.mxu0 0.0
    %421 = vmatprep.subr.mxu0 0.0
    %422 = vmatpush1.msra.mxu0 0.0
    %423 = vmatprep.mubr.f32.mxu0 0.0
    %424 = vmatmul.mubr.f32.gmra.mrb[0].mxu0 %v354
    %v425 = vpop.f32.mrb[0].mxu0
    %v426 = vadd.f32 0.0, %v425
    %v427 = vpop.f32.mrb[0].mxu0
    %428 = vmatprep.mubr.f32.mxu0 0.0
    %429 = vmatmul.mubr.f32.gmra.mrb[0].mxu0 %v357
    %v430 = vpop.f32.mrb[0].mxu0
    %v431 = vadd.f32 0.0, %v430
    %v432 = vpop.f32.mrb[0].mxu0
    %433 = vdwg.mxu0
    %v435 = vsel %vm47, %v426, 0
    %v438 = vsel %vm47, %v200, 0
    %v441 = vsel %vm47, %v205, 0
    %443 = vmatprep.subr.mxu0 0.0
    %444 = vmatpush1.xpose.msra.mxu0 %v438
    %445 = vmatprep.subr.mxu0 0.0
    %446 = vmatpush1.xpose.msra.mxu0 %v441
    %447 = vmatprep.subr.mxu0 0.0
    %448 = vmatpush1.xpose.msra.mxu0 0.0
    %449 = vmatprep.subr.mxu0 0.0
    %450 = vmatpush1.xpose.msra.mxu0 0.0
    %451 = vmatprep.subr.mxu0 0.0
    %452 = vmatpush1.xpose.msra.mxu0 0.0
    %453 = vmatprep.subr.mxu0 0.0
    %454 = vmatpush1.xpose.msra.mxu0 0.0
    %455 = vmatprep.subr.mxu0 0.0
    %456 = vmatpush1.xpose.msra.mxu0 0.0
    %457 = vmatprep.subr.mxu0 0.0
    %458 = vmatpush1.xpose.msra.mxu0 0.0
    %459 = vmatprep.subr.mxu0 0.0
    %460 = vmatpush1.xpose.msra.mxu0 0.0
    %461 = vmatprep.subr.mxu0 0.0
    %462 = vmatpush1.xpose.msra.mxu0 0.0
    %463 = vmatprep.subr.mxu0 0.0
    %464 = vmatpush1.xpose.msra.mxu0 0.0
    %465 = vmatprep.subr.mxu0 0.0
    %466 = vmatpush1.xpose.msra.mxu0 0.0
    %467 = vmatprep.subr.mxu0 0.0
    %468 = vmatpush1.xpose.msra.mxu0 0.0
    %469 = vmatprep.subr.mxu0 0.0
    %470 = vmatpush1.xpose.msra.mxu0 0.0
    %471 = vmatprep.subr.mxu0 0.0
    %472 = vmatpush1.xpose.msra.mxu0 0.0
    %473 = vmatprep.subr.mxu0 0.0
    %474 = vmatpush1.xpose.msra.mxu0 0.0
    %475 = vmatprep.subr.mxu0 0.0
    %476 = vmatpush1.xpose.msra.mxu0 0.0
    %477 = vmatprep.subr.mxu0 0.0
    %478 = vmatpush1.xpose.msra.mxu0 0.0
    %479 = vmatprep.subr.mxu0 0.0
    %480 = vmatpush1.xpose.msra.mxu0 0.0
    %481 = vmatprep.subr.mxu0 0.0
    %482 = vmatpush1.xpose.msra.mxu0 0.0
    %483 = vmatprep.subr.mxu0 0.0
    %484 = vmatpush1.xpose.msra.mxu0 0.0
    %485 = vmatprep.subr.mxu0 0.0
    %486 = vmatpush1.xpose.msra.mxu0 0.0
    %487 = vmatprep.subr.mxu0 0.0
    %488 = vmatpush1.xpose.msra.mxu0 0.0
    %489 = vmatprep.subr.mxu0 0.0
    %490 = vmatpush1.xpose.msra.mxu0 0.0
    %491 = vmatprep.subr.mxu0 0.0
    %492 = vmatpush1.xpose.msra.mxu0 0.0
    %493 = vmatprep.subr.mxu0 0.0
    %494 = vmatpush1.xpose.msra.mxu0 0.0
    %495 = vmatprep.subr.mxu0 0.0
    %496 = vmatpush1.xpose.msra.mxu0 0.0
    %497 = vmatprep.subr.mxu0 0.0
    %498 = vmatpush1.xpose.msra.mxu0 0.0
    %499 = vmatprep.subr.mxu0 0.0
    %500 = vmatpush1.xpose.msra.mxu0 0.0
    %501 = vmatprep.subr.mxu0 0.0
    %502 = vmatpush1.xpose.msra.mxu0 0.0
    %503 = vmatprep.subr.mxu0 0.0
    %504 = vmatpush1.xpose.msra.mxu0 0.0
    %505 = vmatprep.subr.mxu0 0.0
    %506 = vmatpush1.xpose.msra.mxu0 0.0
    %507 = vmatprep.mubr.f32.mxu0 0.0
    %508 = vmatmul.mubr.f32.gmra.mrb[0].mxu0 %v435
    %v509 = vpop.f32.mrb[0].mxu0
    %v510 = vadd.f32 0.0, %v509
    %v511 = vpop.f32.mrb[0].mxu0
    %512 = vdwg.mxu0
    %v513 = vmul.f32 %v510, 0.17677669
    %vm514 = vcmask 130048
    %v515 = vsel %vm514, %v513, -inf
    %v516 = vrot.slane %v515, 4
    %v517 = vmax.f32 %v515, %v516
    %v518 = vrot.slane %v517, 2
    %v519 = vmax.f32 %v517, %v518
    %v520 = vrot.slane %v519, 1
    %v521 = vmax.f32 %v519, %v520
    %v522 = vsub.f32 %v513, %v521
    %v523 = vmul.f32 %v522, 1.442695
    %v524 = vpow.pop %v523
    %v525 = vsel %vm514, %v524, 0.0
    %v526 = vrot.slane %v525, 4
    %v527 = vadd.f32 %v525, %v526
    %v528 = vrot.slane %v527, 2
    %v529 = vadd.f32 %v527, %v528
    %v530 = vrot.slane %v529, 1
    %v531 = vadd.f32 %v529, %v530
    %v532 = vrcp.pop %v531
    %v533 = vmul.f32 %v524, %v532
    %v534 = vadd.f32 %v533, 1e-08
    %v535 = vsel %vm514, %v534, 0.0
    %536 = vadd.xlane.f32.xlu0 %v535
    %v537 = vpop.xlane.xlu0 %536
    %v538 = vrcp.pop %v537
    %v539 = vmul.f32 %v534, %v538
    %v541 = vsel %vm514, %v539, 0
    %543 = vmatprep.subr.mxu0 0.0
    %544 = vmatpush1.msra.mxu0 %v289
    %545 = vmatprep.subr.mxu0 0.0
    %546 = vmatpush1.msra.mxu0 %v294
    %547 = vmatprep.subr.mxu0 0.0
    %548 = vmatpush1.msra.mxu0 0.0
    %549 = vmatprep.subr.mxu0 0.0
    %550 = vmatpush1.msra.mxu0 0.0
    %551 = vmatprep.subr.mxu0 0.0
    %552 = vmatpush1.msra.mxu0 0.0
    %553 = vmatprep.subr.mxu0 0.0
    %554 = vmatpush1.msra.mxu0 0.0
    %555 = vmatprep.subr.mxu0 0.0
    %556 = vmatpush1.msra.mxu0 0.0
    %557 = vmatprep.subr.mxu0 0.0
    %558 = vmatpush1.msra.mxu0 0.0
    %559 = vmatprep.subr.mxu0 0.0
    %560 = vmatpush1.msra.mxu0 0.0
    %561 = vmatprep.subr.mxu0 0.0
    %562 = vmatpush1.msra.mxu0 0.0
    %563 = vmatprep.subr.mxu0 0.0
    %564 = vmatpush1.msra.mxu0 0.0
    %565 = vmatprep.subr.mxu0 0.0
    %566 = vmatpush1.msra.mxu0 0.0
    %567 = vmatprep.subr.mxu0 0.0
    %568 = vmatpush1.msra.mxu0 0.0
    %569 = vmatprep.subr.mxu0 0.0
    %570 = vmatpush1.msra.mxu0 0.0
    %571 = vmatprep.subr.mxu0 0.0
    %572 = vmatpush1.msra.mxu0 0.0
    %573 = vmatprep.subr.mxu0 0.0
    %574 = vmatpush1.msra.mxu0 0.0
    %575 = vmatprep.subr.mxu0 0.0
    %576 = vmatpush1.msra.mxu0 0.0
    %577 = vmatprep.subr.mxu0 0.0
    %578 = vmatpush1.msra.mxu0 0.0
    %579 = vmatprep.subr.mxu0 0.0
    %580 = vmatpush1.msra.mxu0 0.0
    %581 = vmatprep.subr.mxu0 0.0
    %582 = vmatpush1.msra.mxu0 0.0
    %583 = vmatprep.subr.mxu0 0.0
    %584 = vmatpush1.msra.mxu0 0.0
    %585 = vmatprep.subr.mxu0 0.0
    %586 = vmatpush1.msra.mxu0 0.0
    %587 = vmatprep.subr.mxu0 0.0
    %588 = vmatpush1.msra.mxu0 0.0
    %589 = vmatprep.subr.mxu0 0.0
    %590 = vmatpush1.msra.mxu0 0.0
    %591 = vmatprep.subr.mxu0 0.0
    %592 = vmatpush1.msra.mxu0 0.0
    %593 = vmatprep.subr.mxu0 0.0
    %594 = vmatpush1.msra.mxu0 0.0
    %595 = vmatprep.subr.mxu0 0.0
    %596 = vmatpush1.msra.mxu0 0.0
    %597 = vmatprep.subr.mxu0 0.0
    %598 = vmatpush1.msra.mxu0 0.0
    %599 = vmatprep.subr.mxu0 0.0
    %600 = vmatpush1.msra.mxu0 0.0
    %601 = vmatprep.subr.mxu0 0.0
    %602 = vmatpush1.msra.mxu0 0.0
    %603 = vmatprep.subr.mxu0 0.0
    %604 = vmatpush1.msra.mxu0 0.0
    %605 = vmatprep.subr.mxu0 0.0
    %606 = vmatpush1.msra.mxu0 0.0
    %607 = vmatprep.mubr.f32.mxu0 0.0
    %608 = vmatmul.mubr.f32.gmra.mrb[0].mxu0 %v541
    %v609 = vpop.f32.mrb[0].mxu0
    %v610 = vadd.f32 0.0, %v609
    %v611 = vpop.f32.mrb[0].mxu0
    %612 = vdwg.mxu0
    %v614 = vsel %vm47, %v431, 0
    %v617 = vsel %vm47, %v210, 0
    %v620 = vsel %vm47, %v215, 0
    %622 = vmatprep.subr.mxu0 0.0
    %623 = vmatpush1.xpose.msra.mxu0 %v617
    %624 = vmatprep.subr.mxu0 0.0
    %625 = vmatpush1.xpose.msra.mxu0 %v620
    %626 = vmatprep.subr.mxu0 0.0
    %627 = vmatpush1.xpose.msra.mxu0 0.0
    %628 = vmatprep.subr.mxu0 0.0
    %629 = vmatpush1.xpose.msra.mxu0 0.0
    %630 = vmatprep.subr.mxu0 0.0
    %631 = vmatpush1.xpose.msra.mxu0 0.0
    %632 = vmatprep.subr.mxu0 0.0
    %633 = vmatpush1.xpose.msra.mxu0 0.0
    %634 = vmatprep.subr.mxu0 0.0
    %635 = vmatpush1.xpose.msra.mxu0 0.0
    %636 = vmatprep.subr.mxu0 0.0
    %637 = vmatpush1.xpose.msra.mxu0 0.0
    %638 = vmatprep.subr.mxu0 0.0
    %639 = vmatpush1.xpose.msra.mxu0 0.0
    %640 = vmatprep.subr.mxu0 0.0
    %641 = vmatpush1.xpose.msra.mxu0 0.0
    %642 = vmatprep.subr.mxu0 0.0
    %643 = vmatpush1.xpose.msra.mxu0 0.0
    %644 = vmatprep.subr.mxu0 0.0
    %645 = vmatpush1.xpose.msra.mxu0 0.0
    %646 = vmatprep.subr.mxu0 0.0
    %647 = vmatpush1.xpose.msra.mxu0 0.0
    %648 = vmatprep.subr.mxu0 0.0
    %649 = vmatpush1.xpose.msra.mxu0 0.0
    %650 = vmatprep.subr.mxu0 0.0
    %651 = vmatpush1.xpose.msra.mxu0 0.0
    %652 = vmatprep.subr.mxu0 0.0
    %653 = vmatpush1.xpose.msra.mxu0 0.0
    %654 = vmatprep.subr.mxu0 0.0
    %655 = vmatpush1.xpose.msra.mxu0 0.0
    %656 = vmatprep.subr.mxu0 0.0
    %657 = vmatpush1.xpose.msra.mxu0 0.0
    %658 = vmatprep.subr.mxu0 0.0
    %659 = vmatpush1.xpose.msra.mxu0 0.0
    %660 = vmatprep.subr.mxu0 0.0
    %661 = vmatpush1.xpose.msra.mxu0 0.0
    %662 = vmatprep.subr.mxu0 0.0
    %663 = vmatpush1.xpose.msra.mxu0 0.0
    %664 = vmatprep.subr.mxu0 0.0
    %665 = vmatpush1.xpose.msra.mxu0 0.0
    %666 = vmatprep.subr.mxu0 0.0
    %667 = vmatpush1.xpose.msra.mxu0 0.0
    %668 = vmatprep.subr.mxu0 0.0
    %669 = vmatpush1.xpose.msra.mxu0 0.0
    %670 = vmatprep.subr.mxu0 0.0
    %671 = vmatpush1.xpose.msra.mxu0 0.0
    %672 = vmatprep.subr.mxu0 0.0
    %673 = vmatpush1.xpose.msra.mxu0 0.0
    %674 = vmatprep.subr.mxu0 0.0
    %675 = vmatpush1.xpose.msra.mxu0 0.0
    %676 = vmatprep.subr.mxu0 0.0
    %677 = vmatpush1.xpose.msra.mxu0 0.0
    %678 = vmatprep.subr.mxu0 0.0
    %679 = vmatpush1.xpose.msra.mxu0 0.0
    %680 = vmatprep.subr.mxu0 0.0
    %681 = vmatpush1.xpose.msra.mxu0 0.0
    %682 = vmatprep.subr.mxu0 0.0
    %683 = vmatpush1.xpose.msra.mxu0 0.0
    %684 = vmatprep.subr.mxu0 0.0
    %685 = vmatpush1.xpose.msra.mxu0 0.0
    %686 = vmatprep.mubr.f32.mxu0 0.0
    %687 = vmatmul.mubr.f32.gmra.mrb[0].mxu0 %v614
    %v688 = vpop.f32.mrb[0].mxu0
    %v689 = vadd.f32 0.0, %v688
    %v690 = vpop.f32.mrb[0].mxu0
    %691 = vdwg.mxu0
    %v692 = vmul.f32 %v689, 0.17677669
    %v693 = vsel %vm514, %v692, -inf
    %v694 = vrot.slane %v693, 4
    %v695 = vmax.f32 %v693, %v694
    %v696 = vrot.slane %v695, 2
    %v697 = vmax.f32 %v695, %v696
    %v698 = vrot.slane %v697, 1
    %v699 = vmax.f32 %v697, %v698
    %v700 = vsub.f32 %v692, %v699
    %v701 = vmul.f32 %v700, 1.442695
    %v702 = vpow.pop %v701
    %v703 = vsel %vm514, %v702, 0.0
    %v704 = vrot.slane %v703, 4
    %v705 = vadd.f32 %v703, %v704
    %v706 = vrot.slane %v705, 2
    %v707 = vadd.f32 %v705, %v706
    %v708 = vrot.slane %v707, 1
    %v709 = vadd.f32 %v707, %v708
    %v710 = vrcp.pop %v709
    %v711 = vmul.f32 %v702, %v710
    %v712 = vadd.f32 %v711, 1e-08
    %v713 = vsel %vm514, %v712, 0.0
    %714 = vadd.xlane.f32.xlu0 %v713
    %v715 = vpop.xlane.xlu0 %714
    %v716 = vrcp.pop %v715
    %v717 = vmul.f32 %v712, %v716
    %v719 = vsel %vm514, %v717, 0
    %721 = vmatprep.subr.mxu0 0.0
    %722 = vmatpush1.msra.mxu0 %v299
    %723 = vmatprep.subr.mxu0 0.0
    %724 = vmatpush1.msra.mxu0 %v304
    %725 = vmatprep.subr.mxu0 0.0
    %726 = vmatpush1.msra.mxu0 0.0
    %727 = vmatprep.subr.mxu0 0.0
    %728 = vmatpush1.msra.mxu0 0.0
    %729 = vmatprep.subr.mxu0 0.0
    %730 = vmatpush1.msra.mxu0 0.0
    %731 = vmatprep.subr.mxu0 0.0
    %732 = vmatpush1.msra.mxu0 0.0
    %733 = vmatprep.subr.mxu0 0.0
    %734 = vmatpush1.msra.mxu0 0.0
    %735 = vmatprep.subr.mxu0 0.0
    %736 = vmatpush1.msra.mxu0 0.0
    %737 = vmatprep.subr.mxu0 0.0
    %738 = vmatpush1.msra.mxu0 0.0
    %739 = vmatprep.subr.mxu0 0.0
    %740 = vmatpush1.msra.mxu0 0.0
    %741 = vmatprep.subr.mxu0 0.0
    %742 = vmatpush1.msra.mxu0 0.0
    %743 = vmatprep.subr.mxu0 0.0
    %744 = vmatpush1.msra.mxu0 0.0
    %745 = vmatprep.subr.mxu0 0.0
    %746 = vmatpush1.msra.mxu0 0.0
    %747 = vmatprep.subr.mxu0 0.0
    %748 = vmatpush1.msra.mxu0 0.0
    %749 = vmatprep.subr.mxu0 0.0
    %750 = vmatpush1.msra.mxu0 0.0
    %751 = vmatprep.subr.mxu0 0.0
    %752 = vmatpush1.msra.mxu0 0.0
    %753 = vmatprep.subr.mxu0 0.0
    %754 = vmatpush1.msra.mxu0 0.0
    %755 = vmatprep.subr.mxu0 0.0
    %756 = vmatpush1.msra.mxu0 0.0
    %757 = vmatprep.subr.mxu0 0.0
    %758 = vmatpush1.msra.mxu0 0.0
    %759 = vmatprep.subr.mxu0 0.0
    %760 = vmatpush1.msra.mxu0 0.0
    %761 = vmatprep.subr.mxu0 0.0
    %762 = vmatpush1.msra.mxu0 0.0
    %763 = vmatprep.subr.mxu0 0.0
    %764 = vmatpush1.msra.mxu0 0.0
    %765 = vmatprep.subr.mxu0 0.0
    %766 = vmatpush1.msra.mxu0 0.0
    %767 = vmatprep.subr.mxu0 0.0
    %768 = vmatpush1.msra.mxu0 0.0
    %769 = vmatprep.subr.mxu0 0.0
    %770 = vmatpush1.msra.mxu0 0.0
    %771 = vmatprep.subr.mxu0 0.0
    %772 = vmatpush1.msra.mxu0 0.0
    %773 = vmatprep.subr.mxu0 0.0
    %774 = vmatpush1.msra.mxu0 0.0
    %775 = vmatprep.subr.mxu0 0.0
    %776 = vmatpush1.msra.mxu0 0.0
    %777 = vmatprep.subr.mxu0 0.0
    %778 = vmatpush1.msra.mxu0 0.0
    %779 = vmatprep.subr.mxu0 0.0
    %780 = vmatpush1.msra.mxu0 0.0
    %781 = vmatprep.subr.mxu0 0.0
    %782 = vmatpush1.msra.mxu0 0.0
    %783 = vmatprep.subr.mxu0 0.0
    %784 = vmatpush1.msra.mxu0 0.0
    %785 = vmatprep.mubr.f32.mxu0 0.0
    %786 = vmatmul.mubr.f32.gmra.mrb[0].mxu0 %v719
    %v787 = vpop.f32.mrb[0].mxu0
    %v788 = vadd.f32 0.0, %v787
    %v789 = vpop.f32.mrb[0].mxu0
    %790 = vdwg.mxu0
    %793 = vrot.lane.b32.xlu0 %v307, 32
    %v794 = vpop.permute.xlu0 %793
    %795 = vrot.lane.b32.xlu0 %v308, 32
    %v796 = vpop.permute.xlu0 %795
    %v799 = vsel %vm47, %v610, %v794
    %v800 = vsel %vm47, %v788, %v796
    %v801 = vld [vmem:[%s3] sm:$0xff]
    %v802 = vld [vmem:[%s3 + $0x8] sm:$0xff]
    %v803 = vld [vmem:[%s3 + $0x10] sm:$0xff]
    %v804 = vld [vmem:[%s3 + $0x18] sm:$0xff]
    %v805 = vld [vmem:[%s3 + $0x20] sm:$0xff]
    %v806 = vld [vmem:[%s3 + $0x28] sm:$0xff]
    %v807 = vld [vmem:[%s3 + $0x30] sm:$0xff]
    %v808 = vld [vmem:[%s3 + $0x38] sm:$0xff]
    %v809 = vld [vmem:[%s3 + $0x40] sm:$0x1]
    %v810 = vlaneseq
    %v811 = vshrl.u32 %v810, 7
    %v812 = vsub.s32 0, %v811
    %v813 = vrot.slane %v809, %v812
    %vm814 = vcmask 523264
    %v816 = vsel %vm814, %v799, 0
    %v819 = vsel %vm814, %v800, 0
    %821 = vmatprep.subr.mxu0 0.0
    %822 = vmatpush1.msra.mxu0 %v801
    %823 = vmatprep.subr.mxu0 0.0
    %824 = vmatpush1.msra.mxu0 %v802
    %825 = vmatprep.subr.mxu0 0.0
    %826 = vmatpush1.msra.mxu0 %v803
    %827 = vmatprep.subr.mxu0 0.0
    %828 = vmatpush1.msra.mxu0 %v804
    %829 = vmatprep.subr.mxu0 0.0
    %830 = vmatpush1.msra.mxu0 %v805
    %831 = vmatprep.subr.mxu0 0.0
    %832 = vmatpush1.msra.mxu0 %v806
    %833 = vmatprep.subr.mxu0 0.0
    %834 = vmatpush1.msra.mxu0 %v807
    %835 = vmatprep.subr.mxu0 0.0
    %836 = vmatpush1.msra.mxu0 %v808
    %837 = vmatprep.subr.mxu0 0.0
    %838 = vmatpush1.msra.mxu0 0.0
    %839 = vmatprep.subr.mxu0 0.0
    %840 = vmatpush1.msra.mxu0 0.0
    %841 = vmatprep.subr.mxu0 0.0
    %842 = vmatpush1.msra.mxu0 0.0
    %843 = vmatprep.subr.mxu0 0.0
    %844 = vmatpush1.msra.mxu0 0.0
    %845 = vmatprep.subr.mxu0 0.0
    %846 = vmatpush1.msra.mxu0 0.0
    %847 = vmatprep.subr.mxu0 0.0
    %848 = vmatpush1.msra.mxu0 0.0
    %849 = vmatprep.subr.mxu0 0.0
    %850 = vmatpush1.msra.mxu0 0.0
    %851 = vmatprep.subr.mxu0 0.0
    %852 = vmatpush1.msra.mxu0 0.0
    %853 = vmatprep.subr.mxu0 0.0
    %854 = vmatpush1.msra.mxu0 0.0
    %855 = vmatprep.subr.mxu0 0.0
    %856 = vmatpush1.msra.mxu0 0.0
    %857 = vmatprep.subr.mxu0 0.0
    %858 = vmatpush1.msra.mxu0 0.0
    %859 = vmatprep.subr.mxu0 0.0
    %860 = vmatpush1.msra.mxu0 0.0
    %861 = vmatprep.subr.mxu0 0.0
    %862 = vmatpush1.msra.mxu0 0.0
    %863 = vmatprep.subr.mxu0 0.0
    %864 = vmatpush1.msra.mxu0 0.0
    %865 = vmatprep.subr.mxu0 0.0
    %866 = vmatpush1.msra.mxu0 0.0
    %867 = vmatprep.subr.mxu0 0.0
    %868 = vmatpush1.msra.mxu0 0.0
    %869 = vmatprep.subr.mxu0 0.0
    %870 = vmatpush1.msra.mxu0 0.0
    %871 = vmatprep.subr.mxu0 0.0
    %872 = vmatpush1.msra.mxu0 0.0
    %873 = vmatprep.subr.mxu0 0.0
    %874 = vmatpush1.msra.mxu0 0.0
    %875 = vmatprep.subr.mxu0 0.0
    %876 = vmatpush1.msra.mxu0 0.0
    %877 = vmatprep.subr.mxu0 0.0
    %878 = vmatpush1.msra.mxu0 0.0
    %879 = vmatprep.subr.mxu0 0.0
    %880 = vmatpush1.msra.mxu0 0.0
    %881 = vmatprep.subr.mxu0 0.0
    %882 = vmatpush1.msra.mxu0 0.0
    %883 = vmatprep.subr.mxu0 0.0
    %884 = vmatpush1.msra.mxu0 0.0
    %885 = vmatprep.mubr.f32.mxu0 0.0
    %886 = vmatmul.mubr.f32.gmra.mrb[0].mxu0 %v816
    %v887 = vpop.f32.mrb[0].mxu0
    %v888 = vadd.f32 %v813, %v887
    %v889 = vpop.f32.mrb[0].mxu0
    %890 = vmatprep.mubr.f32.mxu0 0.0
    %891 = vmatmul.mubr.f32.gmra.mrb[0].mxu0 %v819
    %v892 = vpop.f32.mrb[0].mxu0
    %v893 = vadd.f32 %v813, %v892
    %v894 = vpop.f32.mrb[0].mxu0
    %895 = vdwg.mxu0
    %v896 = vxor.u32 %v888, 2147483648
    %v897 = vxor.u32 %v893, 2147483648
    %v898 = vmul.f32 %v896, 1.442695
    %v899 = vpow.pop %v898
    %v900 = vmul.f32 %v897, 1.442695
    %v901 = vpow.pop %v900
    %v902 = vadd.f32 %v899, 1.0
    %v903 = vadd.f32 %v901, 1.0
    %v904 = vrcp.pop %v902
    %v905 = vmul.f32 1.0, %v904
    %v906 = vrcp.pop %v903
    %v907 = vmul.f32 1.0, %v906
    %v908 = vld [vmem:[%s4] sm:$0xff]
    %v909 = vld [vmem:[%s4 + $0x8] sm:$0xff]
    %v910 = vld [vmem:[%s4 + $0x10] sm:$0xff]
    %v911 = vld [vmem:[%s4 + $0x18] sm:$0xff]
    %v912 = vld [vmem:[%s4 + $0x40] sm:$0x1]
    %v913 = vlaneseq
    %v914 = vshrl.u32 %v913, 7
    %v915 = vsub.s32 0, %v914
    %v916 = vrot.slane %v912, %v915
    %v918 = vsel %vm47, %v610, 0
    %v921 = vsel %vm47, %v788, 0
    %923 = vmatprep.subr.mxu0 0.0
    %924 = vmatpush1.msra.mxu0 %v908
    %925 = vmatprep.subr.mxu0 0.0
    %926 = vmatpush1.msra.mxu0 %v909
    %927 = vmatprep.subr.mxu0 0.0
    %928 = vmatpush1.msra.mxu0 %v910
    %929 = vmatprep.subr.mxu0 0.0
    %930 = vmatpush1.msra.mxu0 %v911
    %931 = vmatprep.subr.mxu0 0.0
    %932 = vmatpush1.msra.mxu0 0.0
    %933 = vmatprep.subr.mxu0 0.0
    %934 = vmatpush1.msra.mxu0 0.0
    %935 = vmatprep.subr.mxu0 0.0
    %936 = vmatpush1.msra.mxu0 0.0
    %937 = vmatprep.subr.mxu0 0.0
    %938 = vmatpush1.msra.mxu0 0.0
    %939 = vmatprep.subr.mxu0 0.0
    %940 = vmatpush1.msra.mxu0 0.0
    %941 = vmatprep.subr.mxu0 0.0
    %942 = vmatpush1.msra.mxu0 0.0
    %943 = vmatprep.subr.mxu0 0.0
    %944 = vmatpush1.msra.mxu0 0.0
    %945 = vmatprep.subr.mxu0 0.0
    %946 = vmatpush1.msra.mxu0 0.0
    %947 = vmatprep.subr.mxu0 0.0
    %948 = vmatpush1.msra.mxu0 0.0
    %949 = vmatprep.subr.mxu0 0.0
    %950 = vmatpush1.msra.mxu0 0.0
    %951 = vmatprep.subr.mxu0 0.0
    %952 = vmatpush1.msra.mxu0 0.0
    %953 = vmatprep.subr.mxu0 0.0
    %954 = vmatpush1.msra.mxu0 0.0
    %955 = vmatprep.subr.mxu0 0.0
    %956 = vmatpush1.msra.mxu0 0.0
    %957 = vmatprep.subr.mxu0 0.0
    %958 = vmatpush1.msra.mxu0 0.0
    %959 = vmatprep.subr.mxu0 0.0
    %960 = vmatpush1.msra.mxu0 0.0
    %961 = vmatprep.subr.mxu0 0.0
    %962 = vmatpush1.msra.mxu0 0.0
    %963 = vmatprep.subr.mxu0 0.0
    %964 = vmatpush1.msra.mxu0 0.0
    %965 = vmatprep.subr.mxu0 0.0
    %966 = vmatpush1.msra.mxu0 0.0
    %967 = vmatprep.subr.mxu0 0.0
    %968 = vmatpush1.msra.mxu0 0.0
    %969 = vmatprep.subr.mxu0 0.0
    %970 = vmatpush1.msra.mxu0 0.0
    %971 = vmatprep.subr.mxu0 0.0
    %972 = vmatpush1.msra.mxu0 0.0
    %973 = vmatprep.subr.mxu0 0.0
    %974 = vmatpush1.msra.mxu0 0.0
    %975 = vmatprep.subr.mxu0 0.0
    %976 = vmatpush1.msra.mxu0 0.0
    %977 = vmatprep.subr.mxu0 0.0
    %978 = vmatpush1.msra.mxu0 0.0
    %979 = vmatprep.subr.mxu0 0.0
    %980 = vmatpush1.msra.mxu0 0.0
    %981 = vmatprep.subr.mxu0 0.0
    %982 = vmatpush1.msra.mxu0 0.0
    %983 = vmatprep.subr.mxu0 0.0
    %984 = vmatpush1.msra.mxu0 0.0
    %985 = vmatprep.subr.mxu0 0.0
    %986 = vmatpush1.msra.mxu0 0.0
    %987 = vmatprep.mubr.f32.mxu0 0.0
    %988 = vmatmul.mubr.f32.gmra.mrb[0].mxu0 %v918
    %v989 = vpop.f32.mrb[0].mxu0
    %v990 = vadd.f32 %v916, %v989
    %v991 = vpop.f32.mrb[0].mxu0
    %992 = vmatprep.mubr.f32.mxu0 0.0
    %993 = vmatmul.mubr.f32.gmra.mrb[0].mxu0 %v921
    %v994 = vpop.f32.mrb[0].mxu0
    %v995 = vadd.f32 %v916, %v994
    %v996 = vpop.f32.mrb[0].mxu0
    %997 = vdwg.mxu0
    %v998 = vld [vmem:[%s4 + $0x20] sm:$0xff]
    %v999 = vld [vmem:[%s4 + $0x28] sm:$0xff]
    %v1000 = vld [vmem:[%s4 + $0x30] sm:$0xff]
    %v1001 = vld [vmem:[%s4 + $0x38] sm:$0xff]
    %v1002 = vld [vmem:[%s4 + $0x41] sm:$0x1]
    %v1003 = vlaneseq
    %v1004 = vshrl.u32 %v1003, 7
    %v1005 = vsub.s32 0, %v1004
    %v1006 = vrot.slane %v1002, %v1005
    %v1007 = vsel %vm47, %v307, 0
    %v1009 = vsel %vm47, %v308, 0
    %1011 = vmatprep.subr.mxu0 0.0
    %1012 = vmatpush1.msra.mxu0 %v998
    %1013 = vmatprep.subr.mxu0 0.0
    %1014 = vmatpush1.msra.mxu0 %v999
    %1015 = vmatprep.subr.mxu0 0.0
    %1016 = vmatpush1.msra.mxu0 %v1000
    %1017 = vmatprep.subr.mxu0 0.0
    %1018 = vmatpush1.msra.mxu0 %v1001
    %1019 = vmatprep.subr.mxu0 0.0
    %1020 = vmatpush1.msra.mxu0 0.0
    %1021 = vmatprep.subr.mxu0 0.0
    %1022 = vmatpush1.msra.mxu0 0.0
    %1023 = vmatprep.subr.mxu0 0.0
    %1024 = vmatpush1.msra.mxu0 0.0
    %1025 = vmatprep.subr.mxu0 0.0
    %1026 = vmatpush1.msra.mxu0 0.0
    %1027 = vmatprep.subr.mxu0 0.0
    %1028 = vmatpush1.msra.mxu0 0.0
    %1029 = vmatprep.subr.mxu0 0.0
    %1030 = vmatpush1.msra.mxu0 0.0
    %1031 = vmatprep.subr.mxu0 0.0
    %1032 = vmatpush1.msra.mxu0 0.0
    %1033 = vmatprep.subr.mxu0 0.0
    %1034 = vmatpush1.msra.mxu0 0.0
    %1035 = vmatprep.subr.mxu0 0.0
    %1036 = vmatpush1.msra.mxu0 0.0
    %1037 = vmatprep.subr.mxu0 0.0
    %1038 = vmatpush1.msra.mxu0 0.0
    %1039 = vmatprep.subr.mxu0 0.0
    %1040 = vmatpush1.msra.mxu0 0.0
    %1041 = vmatprep.subr.mxu0 0.0
    %1042 = vmatpush1.msra.mxu0 0.0
    %1043 = vmatprep.subr.mxu0 0.0
    %1044 = vmatpush1.msra.mxu0 0.0
    %1045 = vmatprep.subr.mxu0 0.0
    %1046 = vmatpush1.msra.mxu0 0.0
    %1047 = vmatprep.subr.mxu0 0.0
    %1048 = vmatpush1.msra.mxu0 0.0
    %1049 = vmatprep.subr.mxu0 0.0
    %1050 = vmatpush1.msra.mxu0 0.0
    %1051 = vmatprep.subr.mxu0 0.0
    %1052 = vmatpush1.msra.mxu0 0.0
    %1053 = vmatprep.subr.mxu0 0.0
    %1054 = vmatpush1.msra.mxu0 0.0
    %1055 = vmatprep.subr.mxu0 0.0
    %1056 = vmatpush1.msra.mxu0 0.0
    %1057 = vmatprep.subr.mxu0 0.0
    %1058 = vmatpush1.msra.mxu0 0.0
    %1059 = vmatprep.subr.mxu0 0.0
    %1060 = vmatpush1.msra.mxu0 0.0
    %1061 = vmatprep.subr.mxu0 0.0
    %1062 = vmatpush1.msra.mxu0 0.0
    %1063 = vmatprep.subr.mxu0 0.0
    %1064 = vmatpush1.msra.mxu0 0.0
    %1065 = vmatprep.subr.mxu0 0.0
    %1066 = vmatpush1.msra.mxu0 0.0
    %1067 = vmatprep.subr.mxu0 0.0
    %1068 = vmatpush1.msra.mxu0 0.0
    %1069 = vmatprep.subr.mxu0 0.0
    %1070 = vmatpush1.msra.mxu0 0.0
    %1071 = vmatprep.subr.mxu0 0.0
    %1072 = vmatpush1.msra.mxu0 0.0
    %1073 = vmatprep.subr.mxu0 0.0
    %1074 = vmatpush1.msra.mxu0 0.0
    %1075 = vmatprep.mubr.f32.mxu0 0.0
    %1076 = vmatmul.mubr.f32.gmra.mrb[0].mxu0 %v1007
    %v1077 = vpop.f32.mrb[0].mxu0
    %v1078 = vadd.f32 %v1006, %v1077
    %v1079 = vpop.f32.mrb[0].mxu0
    %1080 = vmatprep.mubr.f32.mxu0 0.0
    %1081 = vmatmul.mubr.f32.gmra.mrb[0].mxu0 %v1009
    %v1082 = vpop.f32.mrb[0].mxu0
    %v1083 = vadd.f32 %v1006, %v1082
    %v1084 = vpop.f32.mrb[0].mxu0
    %1085 = vdwg.mxu0
    %v1086 = vmul.f32 %v905, %v1078
    %v1087 = vmul.f32 %v907, %v1083
    %v1088 = vadd.f32 %v990, %v1086
    %v1089 = vadd.f32 %v995, %v1087
    %v1090 = vtanh.pop %v1088
    %v1091 = vtanh.pop %v1089
    %v1092 = vsub.f32 1.0, %v905
    %v1093 = vsub.f32 1.0, %v907
    %1096 = vrot.lane.b32.xlu0 %v1090, 32
    %v1097 = vpop.permute.xlu0 %1096
    %1098 = vrot.lane.b32.xlu0 %v1091, 32
    %v1099 = vpop.permute.xlu0 %1098
    %v1102 = vmul.f32 %v1092, %v1097
    %v1103 = vmul.f32 %v1093, %v1099
    %v1104 = vmul.f32 %v905, %v794
    %v1105 = vmul.f32 %v907, %v796
    %v1106 = vadd.f32 %v1102, %v1104
    %v1107 = vadd.f32 %v1103, %v1105
    %1110 = vrot.lane.b32.xlu0 %v1106, 96
    %v1111 = vpop.permute.xlu0 %1110
    %1112 = vrot.lane.b32.xlu0 %v1107, 96
    %v1113 = vpop.permute.xlu0 %1112
    %v1116 = vsel %vm47, %v1111, 0.0
    %1117 = vadd.xlane.f32.xlu0 %v1116
    %v1118 = vpop.xlane.xlu0 %1117
    %v1119 = vsel %vm47, %v1113, 0.0
    %1120 = vadd.xlane.f32.xlu0 %v1119
    %v1121 = vpop.xlane.xlu0 %1120
    %v1122 = vmul.f32 %v1118, %v60
    %v1123 = vmul.f32 %v1121, %v60
    %v1124 = vsub.f32 %v1106, %v1122
    %v1125 = vsub.f32 %v1107, %v1123
    %v1126 = vmul.f32 %v1124, %v1124
    %v1127 = vmul.f32 %v1125, %v1125
    %1130 = vrot.lane.b32.xlu0 %v1126, 96
    %v1131 = vpop.permute.xlu0 %1130
    %1132 = vrot.lane.b32.xlu0 %v1127, 96
    %v1133 = vpop.permute.xlu0 %1132
    %v1136 = vsel %vm47, %v1131, 0.0
    %1137 = vadd.xlane.f32.xlu0 %v1136
    %v1138 = vpop.xlane.xlu0 %1137
    %v1139 = vsel %vm47, %v1133, 0.0
    %1140 = vadd.xlane.f32.xlu0 %v1139
    %v1141 = vpop.xlane.xlu0 %1140
    %v1142 = vmul.f32 %v1138, %v60
    %v1143 = vmul.f32 %v1141, %v60
    %v1144 = vadd.f32 %v1142, 1e-05
    %v1145 = vadd.f32 %v1143, 1e-05
    %v1146 = vrsqrt.pop %v1144
    %v1147 = vrsqrt.pop %v1145
    %v1148 = vmul.f32 %v1124, %v1146
    %v1149 = vmul.f32 %v1125, %v1147
    %1151 = vrot.lane.b32.xlu0 %v340, 32
    %v1152 = vpop.permute.xlu0 %1151
    %v1154 = vmul.f32 %v1148, %v1152
    %v1155 = vmul.f32 %v1149, %v1152
    %1157 = vrot.lane.b32.xlu0 %v346, 32
    %v1158 = vpop.permute.xlu0 %1157
    %v1160 = vadd.f32 %v1154, %v1158
    %v1161 = vadd.f32 %v1155, %v1158
    %1164 = vrot.lane.b32.xlu0 %v1160, 96
    %v1165 = vpop.permute.xlu0 %1164
    %1166 = vrot.lane.b32.xlu0 %v1161, 96
    %v1167 = vpop.permute.xlu0 %1166
    %v1168 = vsel %vm47, %v1165, 0
    %v1170 = vsel %vm47, %v1167, 0
    %1172 = vmatprep.subr.mxu0 0.0
    %1173 = vmatpush1.msra.mxu0 %v349
    %1174 = vmatprep.subr.mxu0 0.0
    %1175 = vmatpush1.msra.mxu0 %v350
    %1176 = vmatprep.subr.mxu0 0.0
    %1177 = vmatpush1.msra.mxu0 %v351
    %1178 = vmatprep.subr.mxu0 0.0
    %1179 = vmatpush1.msra.mxu0 %v352
    %1180 = vmatprep.subr.mxu0 0.0
    %1181 = vmatpush1.msra.mxu0 0.0
    %1182 = vmatprep.subr.mxu0 0.0
    %1183 = vmatpush1.msra.mxu0 0.0
    %1184 = vmatprep.subr.mxu0 0.0
    %1185 = vmatpush1.msra.mxu0 0.0
    %1186 = vmatprep.subr.mxu0 0.0
    %1187 = vmatpush1.msra.mxu0 0.0
    %1188 = vmatprep.subr.mxu0 0.0
    %1189 = vmatpush1.msra.mxu0 0.0
    %1190 = vmatprep.subr.mxu0 0.0
    %1191 = vmatpush1.msra.mxu0 0.0
    %1192 = vmatprep.subr.mxu0 0.0
    %1193 = vmatpush1.msra.mxu0 0.0
    %1194 = vmatprep.subr.mxu0 0.0
    %1195 = vmatpush1.msra.mxu0 0.0
    %1196 = vmatprep.subr.mxu0 0.0
    %1197 = vmatpush1.msra.mxu0 0.0
    %1198 = vmatprep.subr.mxu0 0.0
    %1199 = vmatpush1.msra.mxu0 0.0
    %1200 = vmatprep.subr.mxu0 0.0
    %1201 = vmatpush1.msra.mxu0 0.0
    %1202 = vmatprep.subr.mxu0 0.0
    %1203 = vmatpush1.msra.mxu0 0.0
    %1204 = vmatprep.subr.mxu0 0.0
    %1205 = vmatpush1.msra.mxu0 0.0
    %1206 = vmatprep.subr.mxu0 0.0
    %1207 = vmatpush1.msra.mxu0 0.0
    %1208 = vmatprep.subr.mxu0 0.0
    %1209 = vmatpush1.msra.mxu0 0.0
    %1210 = vmatprep.subr.mxu0 0.0
    %1211 = vmatpush1.msra.mxu0 0.0
    %1212 = vmatprep.subr.mxu0 0.0
    %1213 = vmatpush1.msra.mxu0 0.0
    %1214 = vmatprep.subr.mxu0 0.0
    %1215 = vmatpush1.msra.mxu0 0.0
    %1216 = vmatprep.subr.mxu0 0.0
    %1217 = vmatpush1.msra.mxu0 0.0
    %1218 = vmatprep.subr.mxu0 0.0
    %1219 = vmatpush1.msra.mxu0 0.0
    %1220 = vmatprep.subr.mxu0 0.0
    %1221 = vmatpush1.msra.mxu0 0.0
    %1222 = vmatprep.subr.mxu0 0.0
    %1223 = vmatpush1.msra.mxu0 0.0
    %1224 = vmatprep.subr.mxu0 0.0
    %1225 = vmatpush1.msra.mxu0 0.0
    %1226 = vmatprep.subr.mxu0 0.0
    %1227 = vmatpush1.msra.mxu0 0.0
    %1228 = vmatprep.subr.mxu0 0.0
    %1229 = vmatpush1.msra.mxu0 0.0
    %1230 = vmatprep.subr.mxu0 0.0
    %1231 = vmatpush1.msra.mxu0 0.0
    %1232 = vmatprep.subr.mxu0 0.0
    %1233 = vmatpush1.msra.mxu0 0.0
    %1234 = vmatprep.subr.mxu0 0.0
    %1235 = vmatpush1.msra.mxu0 0.0
    %1236 = vmatprep.mubr.f32.mxu0 0.0
    %1237 = vmatmul.mubr.f32.gmra.mrb[0].mxu0 %v1168
    %v1238 = vpop.f32.mrb[0].mxu0
    %v1239 = vadd.f32 0.0, %v1238
    %v1240 = vpop.f32.mrb[0].mxu0
    %1241 = vmatprep.mubr.f32.mxu0 0.0
    %1242 = vmatmul.mubr.f32.gmra.mrb[0].mxu0 %v1170
    %v1243 = vpop.f32.mrb[0].mxu0
    %v1244 = vadd.f32 0.0, %v1243
    %v1245 = vpop.f32.mrb[0].mxu0
    %1246 = vdwg.mxu0
    %v1248 = vsel %vm47, %v1239, 0
    %1250 = vmatprep.subr.mxu0 0.0
    %1251 = vmatpush1.xpose.msra.mxu0 %v438
    %1252 = vmatprep.subr.mxu0 0.0
    %1253 = vmatpush1.xpose.msra.mxu0 %v441
    %1254 = vmatprep.subr.mxu0 0.0
    %1255 = vmatpush1.xpose.msra.mxu0 0.0
    %1256 = vmatprep.subr.mxu0 0.0
    %1257 = vmatpush1.xpose.msra.mxu0 0.0
    %1258 = vmatprep.subr.mxu0 0.0
    %1259 = vmatpush1.xpose.msra.mxu0 0.0
    %1260 = vmatprep.subr.mxu0 0.0
    %1261 = vmatpush1.xpose.msra.mxu0 0.0
    %1262 = vmatprep.subr.mxu0 0.0
    %1263 = vmatpush1.xpose.msra.mxu0 0.0
    %1264 = vmatprep.subr.mxu0 0.0
    %1265 = vmatpush1.xpose.msra.mxu0 0.0
    %1266 = vmatprep.subr.mxu0 0.0
    %1267 = vmatpush1.xpose.msra.mxu0 0.0
    %1268 = vmatprep.subr.mxu0 0.0
    %1269 = vmatpush1.xpose.msra.mxu0 0.0
    %1270 = vmatprep.subr.mxu0 0.0
    %1271 = vmatpush1.xpose.msra.mxu0 0.0
    %1272 = vmatprep.subr.mxu0 0.0
    %1273 = vmatpush1.xpose.msra.mxu0 0.0
    %1274 = vmatprep.subr.mxu0 0.0
    %1275 = vmatpush1.xpose.msra.mxu0 0.0
    %1276 = vmatprep.subr.mxu0 0.0
    %1277 = vmatpush1.xpose.msra.mxu0 0.0
    %1278 = vmatprep.subr.mxu0 0.0
    %1279 = vmatpush1.xpose.msra.mxu0 0.0
    %1280 = vmatprep.subr.mxu0 0.0
    %1281 = vmatpush1.xpose.msra.mxu0 0.0
    %1282 = vmatprep.subr.mxu0 0.0
    %1283 = vmatpush1.xpose.msra.mxu0 0.0
    %1284 = vmatprep.subr.mxu0 0.0
    %1285 = vmatpush1.xpose.msra.mxu0 0.0
    %1286 = vmatprep.subr.mxu0 0.0
    %1287 = vmatpush1.xpose.msra.mxu0 0.0
    %1288 = vmatprep.subr.mxu0 0.0
    %1289 = vmatpush1.xpose.msra.mxu0 0.0
    %1290 = vmatprep.subr.mxu0 0.0
    %1291 = vmatpush1.xpose.msra.mxu0 0.0
    %1292 = vmatprep.subr.mxu0 0.0
    %1293 = vmatpush1.xpose.msra.mxu0 0.0
    %1294 = vmatprep.subr.mxu0 0.0
    %1295 = vmatpush1.xpose.msra.mxu0 0.0
    %1296 = vmatprep.subr.mxu0 0.0
    %1297 = vmatpush1.xpose.msra.mxu0 0.0
    %1298 = vmatprep.subr.mxu0 0.0
    %1299 = vmatpush1.xpose.msra.mxu0 0.0
    %1300 = vmatprep.subr.mxu0 0.0
    %1301 = vmatpush1.xpose.msra.mxu0 0.0
    %1302 = vmatprep.subr.mxu0 0.0
    %1303 = vmatpush1.xpose.msra.mxu0 0.0
    %1304 = vmatprep.subr.mxu0 0.0
    %1305 = vmatpush1.xpose.msra.mxu0 0.0
    %1306 = vmatprep.subr.mxu0 0.0
    %1307 = vmatpush1.xpose.msra.mxu0 0.0
    %1308 = vmatprep.subr.mxu0 0.0
    %1309 = vmatpush1.xpose.msra.mxu0 0.0
    %1310 = vmatprep.subr.mxu0 0.0
    %1311 = vmatpush1.xpose.msra.mxu0 0.0
    %1312 = vmatprep.subr.mxu0 0.0
    %1313 = vmatpush1.xpose.msra.mxu0 0.0
    %1314 = vmatprep.mubr.f32.mxu0 0.0
    %1315 = vmatmul.mubr.f32.gmra.mrb[0].mxu0 %v1248
    %v1316 = vpop.f32.mrb[0].mxu0
    %v1317 = vadd.f32 0.0, %v1316
    %v1318 = vpop.f32.mrb[0].mxu0
    %1319 = vdwg.mxu0
    %v1320 = vmul.f32 %v1317, 0.17677669
    %v1321 = vsel %vm514, %v1320, -inf
    %v1322 = vrot.slane %v1321, 4
    %v1323 = vmax.f32 %v1321, %v1322
    %v1324 = vrot.slane %v1323, 2
    %v1325 = vmax.f32 %v1323, %v1324
    %v1326 = vrot.slane %v1325, 1
    %v1327 = vmax.f32 %v1325, %v1326
    %v1328 = vsub.f32 %v1320, %v1327
    %v1329 = vmul.f32 %v1328, 1.442695
    %v1330 = vpow.pop %v1329
    %v1331 = vsel %vm514, %v1330, 0.0
    %v1332 = vrot.slane %v1331, 4
    %v1333 = vadd.f32 %v1331, %v1332
    %v1334 = vrot.slane %v1333, 2
    %v1335 = vadd.f32 %v1333, %v1334
    %v1336 = vrot.slane %v1335, 1
    %v1337 = vadd.f32 %v1335, %v1336
    %v1338 = vrcp.pop %v1337
    %v1339 = vmul.f32 %v1330, %v1338
    %v1340 = vadd.f32 %v1339, 1e-08
    %v1341 = vsel %vm514, %v1340, 0.0
    %1342 = vadd.xlane.f32.xlu0 %v1341
    %v1343 = vpop.xlane.xlu0 %1342
    %v1344 = vrcp.pop %v1343
    %v1345 = vmul.f32 %v1340, %v1344
    %v1347 = vsel %vm514, %v1345, 0
    %1349 = vmatprep.subr.mxu0 0.0
    %1350 = vmatpush1.msra.mxu0 %v289
    %1351 = vmatprep.subr.mxu0 0.0
    %1352 = vmatpush1.msra.mxu0 %v294
    %1353 = vmatprep.subr.mxu0 0.0
    %1354 = vmatpush1.msra.mxu0 0.0
    %1355 = vmatprep.subr.mxu0 0.0
    %1356 = vmatpush1.msra.mxu0 0.0
    %1357 = vmatprep.subr.mxu0 0.0
    %1358 = vmatpush1.msra.mxu0 0.0
    %1359 = vmatprep.subr.mxu0 0.0
    %1360 = vmatpush1.msra.mxu0 0.0
    %1361 = vmatprep.subr.mxu0 0.0
    %1362 = vmatpush1.msra.mxu0 0.0
    %1363 = vmatprep.subr.mxu0 0.0
    %1364 = vmatpush1.msra.mxu0 0.0
    %1365 = vmatprep.subr.mxu0 0.0
    %1366 = vmatpush1.msra.mxu0 0.0
    %1367 = vmatprep.subr.mxu0 0.0
    %1368 = vmatpush1.msra.mxu0 0.0
    %1369 = vmatprep.subr.mxu0 0.0
    %1370 = vmatpush1.msra.mxu0 0.0
    %1371 = vmatprep.subr.mxu0 0.0
    %1372 = vmatpush1.msra.mxu0 0.0
    %1373 = vmatprep.subr.mxu0 0.0
    %1374 = vmatpush1.msra.mxu0 0.0
    %1375 = vmatprep.subr.mxu0 0.0
    %1376 = vmatpush1.msra.mxu0 0.0
    %1377 = vmatprep.subr.mxu0 0.0
    %1378 = vmatpush1.msra.mxu0 0.0
    %1379 = vmatprep.subr.mxu0 0.0
    %1380 = vmatpush1.msra.mxu0 0.0
    %1381 = vmatprep.subr.mxu0 0.0
    %1382 = vmatpush1.msra.mxu0 0.0
    %1383 = vmatprep.subr.mxu0 0.0
    %1384 = vmatpush1.msra.mxu0 0.0
    %1385 = vmatprep.subr.mxu0 0.0
    %1386 = vmatpush1.msra.mxu0 0.0
    %1387 = vmatprep.subr.mxu0 0.0
    %1388 = vmatpush1.msra.mxu0 0.0
    %1389 = vmatprep.subr.mxu0 0.0
    %1390 = vmatpush1.msra.mxu0 0.0
    %1391 = vmatprep.subr.mxu0 0.0
    %1392 = vmatpush1.msra.mxu0 0.0
    %1393 = vmatprep.subr.mxu0 0.0
    %1394 = vmatpush1.msra.mxu0 0.0
    %1395 = vmatprep.subr.mxu0 0.0
    %1396 = vmatpush1.msra.mxu0 0.0
    %1397 = vmatprep.subr.mxu0 0.0
    %1398 = vmatpush1.msra.mxu0 0.0
    %1399 = vmatprep.subr.mxu0 0.0
    %1400 = vmatpush1.msra.mxu0 0.0
    %1401 = vmatprep.subr.mxu0 0.0
    %1402 = vmatpush1.msra.mxu0 0.0
    %1403 = vmatprep.subr.mxu0 0.0
    %1404 = vmatpush1.msra.mxu0 0.0
    %1405 = vmatprep.subr.mxu0 0.0
    %1406 = vmatpush1.msra.mxu0 0.0
    %1407 = vmatprep.subr.mxu0 0.0
    %1408 = vmatpush1.msra.mxu0 0.0
    %1409 = vmatprep.subr.mxu0 0.0
    %1410 = vmatpush1.msra.mxu0 0.0
    %1411 = vmatprep.subr.mxu0 0.0
    %1412 = vmatpush1.msra.mxu0 0.0
    %1413 = vmatprep.mubr.f32.mxu0 0.0
    %1414 = vmatmul.mubr.f32.gmra.mrb[0].mxu0 %v1347
    %v1415 = vpop.f32.mrb[0].mxu0
    %v1416 = vadd.f32 0.0, %v1415
    %v1417 = vpop.f32.mrb[0].mxu0
    %1418 = vdwg.mxu0
    %v1420 = vsel %vm47, %v1244, 0
    %1422 = vmatprep.subr.mxu0 0.0
    %1423 = vmatpush1.xpose.msra.mxu0 %v617
    %1424 = vmatprep.subr.mxu0 0.0
    %1425 = vmatpush1.xpose.msra.mxu0 %v620
    %1426 = vmatprep.subr.mxu0 0.0
    %1427 = vmatpush1.xpose.msra.mxu0 0.0
    %1428 = vmatprep.subr.mxu0 0.0
    %1429 = vmatpush1.xpose.msra.mxu0 0.0
    %1430 = vmatprep.subr.mxu0 0.0
    %1431 = vmatpush1.xpose.msra.mxu0 0.0
    %1432 = vmatprep.subr.mxu0 0.0
    %1433 = vmatpush1.xpose.msra.mxu0 0.0
    %1434 = vmatprep.subr.mxu0 0.0
    %1435 = vmatpush1.xpose.msra.mxu0 0.0
    %1436 = vmatprep.subr.mxu0 0.0
    %1437 = vmatpush1.xpose.msra.mxu0 0.0
    %1438 = vmatprep.subr.mxu0 0.0
    %1439 = vmatpush1.xpose.msra.mxu0 0.0
    %1440 = vmatprep.subr.mxu0 0.0
    %1441 = vmatpush1.xpose.msra.mxu0 0.0
    %1442 = vmatprep.subr.mxu0 0.0
    %1443 = vmatpush1.xpose.msra.mxu0 0.0
    %1444 = vmatprep.subr.mxu0 0.0
    %1445 = vmatpush1.xpose.msra.mxu0 0.0
    %1446 = vmatprep.subr.mxu0 0.0
    %1447 = vmatpush1.xpose.msra.mxu0 0.0
    %1448 = vmatprep.subr.mxu0 0.0
    %1449 = vmatpush1.xpose.msra.mxu0 0.0
    %1450 = vmatprep.subr.mxu0 0.0
    %1451 = vmatpush1.xpose.msra.mxu0 0.0
    %1452 = vmatprep.subr.mxu0 0.0
    %1453 = vmatpush1.xpose.msra.mxu0 0.0
    %1454 = vmatprep.subr.mxu0 0.0
    %1455 = vmatpush1.xpose.msra.mxu0 0.0
    %1456 = vmatprep.subr.mxu0 0.0
    %1457 = vmatpush1.xpose.msra.mxu0 0.0
    %1458 = vmatprep.subr.mxu0 0.0
    %1459 = vmatpush1.xpose.msra.mxu0 0.0
    %1460 = vmatprep.subr.mxu0 0.0
    %1461 = vmatpush1.xpose.msra.mxu0 0.0
    %1462 = vmatprep.subr.mxu0 0.0
    %1463 = vmatpush1.xpose.msra.mxu0 0.0
    %1464 = vmatprep.subr.mxu0 0.0
    %1465 = vmatpush1.xpose.msra.mxu0 0.0
    %1466 = vmatprep.subr.mxu0 0.0
    %1467 = vmatpush1.xpose.msra.mxu0 0.0
    %1468 = vmatprep.subr.mxu0 0.0
    %1469 = vmatpush1.xpose.msra.mxu0 0.0
    %1470 = vmatprep.subr.mxu0 0.0
    %1471 = vmatpush1.xpose.msra.mxu0 0.0
    %1472 = vmatprep.subr.mxu0 0.0
    %1473 = vmatpush1.xpose.msra.mxu0 0.0
    %1474 = vmatprep.subr.mxu0 0.0
    %1475 = vmatpush1.xpose.msra.mxu0 0.0
    %1476 = vmatprep.subr.mxu0 0.0
    %1477 = vmatpush1.xpose.msra.mxu0 0.0
    %1478 = vmatprep.subr.mxu0 0.0
    %1479 = vmatpush1.xpose.msra.mxu0 0.0
    %1480 = vmatprep.subr.mxu0 0.0
    %1481 = vmatpush1.xpose.msra.mxu0 0.0
    %1482 = vmatprep.subr.mxu0 0.0
    %1483 = vmatpush1.xpose.msra.mxu0 0.0
    %1484 = vmatprep.subr.mxu0 0.0
    %1485 = vmatpush1.xpose.msra.mxu0 0.0
    %1486 = vmatprep.mubr.f32.mxu0 0.0
    %1487 = vmatmul.mubr.f32.gmra.mrb[0].mxu0 %v1420
    %v1488 = vpop.f32.mrb[0].mxu0
    %v1489 = vadd.f32 0.0, %v1488
    %v1490 = vpop.f32.mrb[0].mxu0
    %1491 = vdwg.mxu0
    %v1492 = vmul.f32 %v1489, 0.17677669
    %v1493 = vsel %vm514, %v1492, -inf
    %v1494 = vrot.slane %v1493, 4
    %v1495 = vmax.f32 %v1493, %v1494
    %v1496 = vrot.slane %v1495, 2
    %v1497 = vmax.f32 %v1495, %v1496
    %v1498 = vrot.slane %v1497, 1
    %v1499 = vmax.f32 %v1497, %v1498
    %v1500 = vsub.f32 %v1492, %v1499
    %v1501 = vmul.f32 %v1500, 1.442695
    %v1502 = vpow.pop %v1501
    %v1503 = vsel %vm514, %v1502, 0.0
    %v1504 = vrot.slane %v1503, 4
    %v1505 = vadd.f32 %v1503, %v1504
    %v1506 = vrot.slane %v1505, 2
    %v1507 = vadd.f32 %v1505, %v1506
    %v1508 = vrot.slane %v1507, 1
    %v1509 = vadd.f32 %v1507, %v1508
    %v1510 = vrcp.pop %v1509
    %v1511 = vmul.f32 %v1502, %v1510
    %v1512 = vadd.f32 %v1511, 1e-08
    %v1513 = vsel %vm514, %v1512, 0.0
    %1514 = vadd.xlane.f32.xlu0 %v1513
    %v1515 = vpop.xlane.xlu0 %1514
    %v1516 = vrcp.pop %v1515
    %v1517 = vmul.f32 %v1512, %v1516
    %v1519 = vsel %vm514, %v1517, 0
    %1521 = vmatprep.subr.mxu0 0.0
    %1522 = vmatpush1.msra.mxu0 %v299
    %1523 = vmatprep.subr.mxu0 0.0
    %1524 = vmatpush1.msra.mxu0 %v304
    %1525 = vmatprep.subr.mxu0 0.0
    %1526 = vmatpush1.msra.mxu0 0.0
    %1527 = vmatprep.subr.mxu0 0.0
    %1528 = vmatpush1.msra.mxu0 0.0
    %1529 = vmatprep.subr.mxu0 0.0
    %1530 = vmatpush1.msra.mxu0 0.0
    %1531 = vmatprep.subr.mxu0 0.0
    %1532 = vmatpush1.msra.mxu0 0.0
    %1533 = vmatprep.subr.mxu0 0.0
    %1534 = vmatpush1.msra.mxu0 0.0
    %1535 = vmatprep.subr.mxu0 0.0
    %1536 = vmatpush1.msra.mxu0 0.0
    %1537 = vmatprep.subr.mxu0 0.0
    %1538 = vmatpush1.msra.mxu0 0.0
    %1539 = vmatprep.subr.mxu0 0.0
    %1540 = vmatpush1.msra.mxu0 0.0
    %1541 = vmatprep.subr.mxu0 0.0
    %1542 = vmatpush1.msra.mxu0 0.0
    %1543 = vmatprep.subr.mxu0 0.0
    %1544 = vmatpush1.msra.mxu0 0.0
    %1545 = vmatprep.subr.mxu0 0.0
    %1546 = vmatpush1.msra.mxu0 0.0
    %1547 = vmatprep.subr.mxu0 0.0
    %1548 = vmatpush1.msra.mxu0 0.0
    %1549 = vmatprep.subr.mxu0 0.0
    %1550 = vmatpush1.msra.mxu0 0.0
    %1551 = vmatprep.subr.mxu0 0.0
    %1552 = vmatpush1.msra.mxu0 0.0
    %1553 = vmatprep.subr.mxu0 0.0
    %1554 = vmatpush1.msra.mxu0 0.0
    %1555 = vmatprep.subr.mxu0 0.0
    %1556 = vmatpush1.msra.mxu0 0.0
    %1557 = vmatprep.subr.mxu0 0.0
    %1558 = vmatpush1.msra.mxu0 0.0
    %1559 = vmatprep.subr.mxu0 0.0
    %1560 = vmatpush1.msra.mxu0 0.0
    %1561 = vmatprep.subr.mxu0 0.0
    %1562 = vmatpush1.msra.mxu0 0.0
    %1563 = vmatprep.subr.mxu0 0.0
    %1564 = vmatpush1.msra.mxu0 0.0
    %1565 = vmatprep.subr.mxu0 0.0
    %1566 = vmatpush1.msra.mxu0 0.0
    %1567 = vmatprep.subr.mxu0 0.0
    %1568 = vmatpush1.msra.mxu0 0.0
    %1569 = vmatprep.subr.mxu0 0.0
    %1570 = vmatpush1.msra.mxu0 0.0
    %1571 = vmatprep.subr.mxu0 0.0
    %1572 = vmatpush1.msra.mxu0 0.0
    %1573 = vmatprep.subr.mxu0 0.0
    %1574 = vmatpush1.msra.mxu0 0.0
    %1575 = vmatprep.subr.mxu0 0.0
    %1576 = vmatpush1.msra.mxu0 0.0
    %1577 = vmatprep.subr.mxu0 0.0
    %1578 = vmatpush1.msra.mxu0 0.0
    %1579 = vmatprep.subr.mxu0 0.0
    %1580 = vmatpush1.msra.mxu0 0.0
    %1581 = vmatprep.subr.mxu0 0.0
    %1582 = vmatpush1.msra.mxu0 0.0
    %1583 = vmatprep.subr.mxu0 0.0
    %1584 = vmatpush1.msra.mxu0 0.0
    %1585 = vmatprep.mubr.f32.mxu0 0.0
    %1586 = vmatmul.mubr.f32.gmra.mrb[0].mxu0 %v1519
    %v1587 = vpop.f32.mrb[0].mxu0
    %v1588 = vadd.f32 0.0, %v1587
    %v1589 = vpop.f32.mrb[0].mxu0
    %1590 = vdwg.mxu0
    %v1591 = vsel %vm47, %v1416, %v1106
    %v1592 = vsel %vm47, %v1588, %v1107
    %v1594 = vsel %vm814, %v1591, 0
    %v1597 = vsel %vm814, %v1592, 0
    %1599 = vmatprep.subr.mxu0 0.0
    %1600 = vmatpush1.msra.mxu0 %v801
    %1601 = vmatprep.subr.mxu0 0.0
    %1602 = vmatpush1.msra.mxu0 %v802
    %1603 = vmatprep.subr.mxu0 0.0
    %1604 = vmatpush1.msra.mxu0 %v803
    %1605 = vmatprep.subr.mxu0 0.0
    %1606 = vmatpush1.msra.mxu0 %v804
    %1607 = vmatprep.subr.mxu0 0.0
    %1608 = vmatpush1.msra.mxu0 %v805
    %1609 = vmatprep.subr.mxu0 0.0
    %1610 = vmatpush1.msra.mxu0 %v806
    %1611 = vmatprep.subr.mxu0 0.0
    %1612 = vmatpush1.msra.mxu0 %v807
    %1613 = vmatprep.subr.mxu0 0.0
    %1614 = vmatpush1.msra.mxu0 %v808
    %1615 = vmatprep.subr.mxu0 0.0
    %1616 = vmatpush1.msra.mxu0 0.0
    %1617 = vmatprep.subr.mxu0 0.0
    %1618 = vmatpush1.msra.mxu0 0.0
    %1619 = vmatprep.subr.mxu0 0.0
    %1620 = vmatpush1.msra.mxu0 0.0
    %1621 = vmatprep.subr.mxu0 0.0
    %1622 = vmatpush1.msra.mxu0 0.0
    %1623 = vmatprep.subr.mxu0 0.0
    %1624 = vmatpush1.msra.mxu0 0.0
    %1625 = vmatprep.subr.mxu0 0.0
    %1626 = vmatpush1.msra.mxu0 0.0
    %1627 = vmatprep.subr.mxu0 0.0
    %1628 = vmatpush1.msra.mxu0 0.0
    %1629 = vmatprep.subr.mxu0 0.0
    %1630 = vmatpush1.msra.mxu0 0.0
    %1631 = vmatprep.subr.mxu0 0.0
    %1632 = vmatpush1.msra.mxu0 0.0
    %1633 = vmatprep.subr.mxu0 0.0
    %1634 = vmatpush1.msra.mxu0 0.0
    %1635 = vmatprep.subr.mxu0 0.0
    %1636 = vmatpush1.msra.mxu0 0.0
    %1637 = vmatprep.subr.mxu0 0.0
    %1638 = vmatpush1.msra.mxu0 0.0
    %1639 = vmatprep.subr.mxu0 0.0
    %1640 = vmatpush1.msra.mxu0 0.0
    %1641 = vmatprep.subr.mxu0 0.0
    %1642 = vmatpush1.msra.mxu0 0.0
    %1643 = vmatprep.subr.mxu0 0.0
    %1644 = vmatpush1.msra.mxu0 0.0
    %1645 = vmatprep.subr.mxu0 0.0
    %1646 = vmatpush1.msra.mxu0 0.0
    %1647 = vmatprep.subr.mxu0 0.0
    %1648 = vmatpush1.msra.mxu0 0.0
    %1649 = vmatprep.subr.mxu0 0.0
    %1650 = vmatpush1.msra.mxu0 0.0
    %1651 = vmatprep.subr.mxu0 0.0
    %1652 = vmatpush1.msra.mxu0 0.0
    %1653 = vmatprep.subr.mxu0 0.0
    %1654 = vmatpush1.msra.mxu0 0.0
    %1655 = vmatprep.subr.mxu0 0.0
    %1656 = vmatpush1.msra.mxu0 0.0
    %1657 = vmatprep.subr.mxu0 0.0
    %1658 = vmatpush1.msra.mxu0 0.0
    %1659 = vmatprep.subr.mxu0 0.0
    %1660 = vmatpush1.msra.mxu0 0.0
    %1661 = vmatprep.subr.mxu0 0.0
    %1662 = vmatpush1.msra.mxu0 0.0
    %1663 = vmatprep.mubr.f32.mxu0 0.0
    %1664 = vmatmul.mubr.f32.gmra.mrb[0].mxu0 %v1594
    %v1665 = vpop.f32.mrb[0].mxu0
    %v1666 = vadd.f32 %v813, %v1665
    %v1667 = vpop.f32.mrb[0].mxu0
    %1668 = vmatprep.mubr.f32.mxu0 0.0
    %1669 = vmatmul.mubr.f32.gmra.mrb[0].mxu0 %v1597
    %v1670 = vpop.f32.mrb[0].mxu0
    %v1671 = vadd.f32 %v813, %v1670
    %v1672 = vpop.f32.mrb[0].mxu0
    %1673 = vdwg.mxu0
    %v1674 = vxor.u32 %v1666, 2147483648
    %v1675 = vxor.u32 %v1671, 2147483648
    %v1676 = vmul.f32 %v1674, 1.442695
    %v1677 = vpow.pop %v1676
    %v1678 = vmul.f32 %v1675, 1.442695
    %v1679 = vpow.pop %v1678
    %v1680 = vadd.f32 %v1677, 1.0
    %v1681 = vadd.f32 %v1679, 1.0
    %v1682 = vrcp.pop %v1680
    %v1683 = vmul.f32 1.0, %v1682
    %v1684 = vrcp.pop %v1681
    %v1685 = vmul.f32 1.0, %v1684
    %v1687 = vsel %vm47, %v1416, 0
    %v1690 = vsel %vm47, %v1588, 0
    %1692 = vmatprep.subr.mxu0 0.0
    %1693 = vmatpush1.msra.mxu0 %v908
    %1694 = vmatprep.subr.mxu0 0.0
    %1695 = vmatpush1.msra.mxu0 %v909
    %1696 = vmatprep.subr.mxu0 0.0
    %1697 = vmatpush1.msra.mxu0 %v910
    %1698 = vmatprep.subr.mxu0 0.0
    %1699 = vmatpush1.msra.mxu0 %v911
    %1700 = vmatprep.subr.mxu0 0.0
    %1701 = vmatpush1.msra.mxu0 0.0
    %1702 = vmatprep.subr.mxu0 0.0
    %1703 = vmatpush1.msra.mxu0 0.0
    %1704 = vmatprep.subr.mxu0 0.0
    %1705 = vmatpush1.msra.mxu0 0.0
    %1706 = vmatprep.subr.mxu0 0.0
    %1707 = vmatpush1.msra.mxu0 0.0
    %1708 = vmatprep.subr.mxu0 0.0
    %1709 = vmatpush1.msra.mxu0 0.0
    %1710 = vmatprep.subr.mxu0 0.0
    %1711 = vmatpush1.msra.mxu0 0.0
    %1712 = vmatprep.subr.mxu0 0.0
    %1713 = vmatpush1.msra.mxu0 0.0
    %1714 = vmatprep.subr.mxu0 0.0
    %1715 = vmatpush1.msra.mxu0 0.0
    %1716 = vmatprep.subr.mxu0 0.0
    %1717 = vmatpush1.msra.mxu0 0.0
    %1718 = vmatprep.subr.mxu0 0.0
    %1719 = vmatpush1.msra.mxu0 0.0
    %1720 = vmatprep.subr.mxu0 0.0
    %1721 = vmatpush1.msra.mxu0 0.0
    %1722 = vmatprep.subr.mxu0 0.0
    %1723 = vmatpush1.msra.mxu0 0.0
    %1724 = vmatprep.subr.mxu0 0.0
    %1725 = vmatpush1.msra.mxu0 0.0
    %1726 = vmatprep.subr.mxu0 0.0
    %1727 = vmatpush1.msra.mxu0 0.0
    %1728 = vmatprep.subr.mxu0 0.0
    %1729 = vmatpush1.msra.mxu0 0.0
    %1730 = vmatprep.subr.mxu0 0.0
    %1731 = vmatpush1.msra.mxu0 0.0
    %1732 = vmatprep.subr.mxu0 0.0
    %1733 = vmatpush1.msra.mxu0 0.0
    %1734 = vmatprep.subr.mxu0 0.0
    %1735 = vmatpush1.msra.mxu0 0.0
    %1736 = vmatprep.subr.mxu0 0.0
    %1737 = vmatpush1.msra.mxu0 0.0
    %1738 = vmatprep.subr.mxu0 0.0
    %1739 = vmatpush1.msra.mxu0 0.0
    %1740 = vmatprep.subr.mxu0 0.0
    %1741 = vmatpush1.msra.mxu0 0.0
    %1742 = vmatprep.subr.mxu0 0.0
    %1743 = vmatpush1.msra.mxu0 0.0
    %1744 = vmatprep.subr.mxu0 0.0
    %1745 = vmatpush1.msra.mxu0 0.0
    %1746 = vmatprep.subr.mxu0 0.0
    %1747 = vmatpush1.msra.mxu0 0.0
    %1748 = vmatprep.subr.mxu0 0.0
    %1749 = vmatpush1.msra.mxu0 0.0
    %1750 = vmatprep.subr.mxu0 0.0
    %1751 = vmatpush1.msra.mxu0 0.0
    %1752 = vmatprep.subr.mxu0 0.0
    %1753 = vmatpush1.msra.mxu0 0.0
    %1754 = vmatprep.subr.mxu0 0.0
    %1755 = vmatpush1.msra.mxu0 0.0
    %1756 = vmatprep.mubr.f32.mxu0 0.0
    %1757 = vmatmul.mubr.f32.gmra.mrb[0].mxu0 %v1687
    %v1758 = vpop.f32.mrb[0].mxu0
    %v1759 = vadd.f32 %v916, %v1758
    %v1760 = vpop.f32.mrb[0].mxu0
    %1761 = vmatprep.mubr.f32.mxu0 0.0
    %1762 = vmatmul.mubr.f32.gmra.mrb[0].mxu0 %v1690
    %v1763 = vpop.f32.mrb[0].mxu0
    %v1764 = vadd.f32 %v916, %v1763
    %v1765 = vpop.f32.mrb[0].mxu0
    %1766 = vdwg.mxu0
    %v1767 = vsel %vm47, %v1111, 0
    %v1769 = vsel %vm47, %v1113, 0
    %1771 = vmatprep.subr.mxu0 0.0
    %1772 = vmatpush1.msra.mxu0 %v998
    %1773 = vmatprep.subr.mxu0 0.0
    %1774 = vmatpush1.msra.mxu0 %v999
    %1775 = vmatprep.subr.mxu0 0.0
    %1776 = vmatpush1.msra.mxu0 %v1000
    %1777 = vmatprep.subr.mxu0 0.0
    %1778 = vmatpush1.msra.mxu0 %v1001
    %1779 = vmatprep.subr.mxu0 0.0
    %1780 = vmatpush1.msra.mxu0 0.0
    %1781 = vmatprep.subr.mxu0 0.0
    %1782 = vmatpush1.msra.mxu0 0.0
    %1783 = vmatprep.subr.mxu0 0.0
    %1784 = vmatpush1.msra.mxu0 0.0
    %1785 = vmatprep.subr.mxu0 0.0
    %1786 = vmatpush1.msra.mxu0 0.0
    %1787 = vmatprep.subr.mxu0 0.0
    %1788 = vmatpush1.msra.mxu0 0.0
    %1789 = vmatprep.subr.mxu0 0.0
    %1790 = vmatpush1.msra.mxu0 0.0
    %1791 = vmatprep.subr.mxu0 0.0
    %1792 = vmatpush1.msra.mxu0 0.0
    %1793 = vmatprep.subr.mxu0 0.0
    %1794 = vmatpush1.msra.mxu0 0.0
    %1795 = vmatprep.subr.mxu0 0.0
    %1796 = vmatpush1.msra.mxu0 0.0
    %1797 = vmatprep.subr.mxu0 0.0
    %1798 = vmatpush1.msra.mxu0 0.0
    %1799 = vmatprep.subr.mxu0 0.0
    %1800 = vmatpush1.msra.mxu0 0.0
    %1801 = vmatprep.subr.mxu0 0.0
    %1802 = vmatpush1.msra.mxu0 0.0
    %1803 = vmatprep.subr.mxu0 0.0
    %1804 = vmatpush1.msra.mxu0 0.0
    %1805 = vmatprep.subr.mxu0 0.0
    %1806 = vmatpush1.msra.mxu0 0.0
    %1807 = vmatprep.subr.mxu0 0.0
    %1808 = vmatpush1.msra.mxu0 0.0
    %1809 = vmatprep.subr.mxu0 0.0
    %1810 = vmatpush1.msra.mxu0 0.0
    %1811 = vmatprep.subr.mxu0 0.0
    %1812 = vmatpush1.msra.mxu0 0.0
    %1813 = vmatprep.subr.mxu0 0.0
    %1814 = vmatpush1.msra.mxu0 0.0
    %1815 = vmatprep.subr.mxu0 0.0
    %1816 = vmatpush1.msra.mxu0 0.0
    %1817 = vmatprep.subr.mxu0 0.0
    %1818 = vmatpush1.msra.mxu0 0.0
    %1819 = vmatprep.subr.mxu0 0.0
    %1820 = vmatpush1.msra.mxu0 0.0
    %1821 = vmatprep.subr.mxu0 0.0
    %1822 = vmatpush1.msra.mxu0 0.0
    %1823 = vmatprep.subr.mxu0 0.0
    %1824 = vmatpush1.msra.mxu0 0.0
    %1825 = vmatprep.subr.mxu0 0.0
    %1826 = vmatpush1.msra.mxu0 0.0
    %1827 = vmatprep.subr.mxu0 0.0
    %1828 = vmatpush1.msra.mxu0 0.0
    %1829 = vmatprep.subr.mxu0 0.0
    %1830 = vmatpush1.msra.mxu0 0.0
    %1831 = vmatprep.subr.mxu0 0.0
    %1832 = vmatpush1.msra.mxu0 0.0
    %1833 = vmatprep.subr.mxu0 0.0
    %1834 = vmatpush1.msra.mxu0 0.0
    %1835 = vmatprep.mubr.f32.mxu0 0.0
    %1836 = vmatmul.mubr.f32.gmra.mrb[0].mxu0 %v1767
    %v1837 = vpop.f32.mrb[0].mxu0
    %v1838 = vadd.f32 %v1006, %v1837
    %v1839 = vpop.f32.mrb[0].mxu0
    %1840 = vmatprep.mubr.f32.mxu0 0.0
    %1841 = vmatmul.mubr.f32.gmra.mrb[0].mxu0 %v1769
    %v1842 = vpop.f32.mrb[0].mxu0
    %v1843 = vadd.f32 %v1006, %v1842
    %v1844 = vpop.f32.mrb[0].mxu0
    %1845 = vdwg.mxu0
    %v1846 = vmul.f32 %v1683, %v1838
    %v1847 = vmul.f32 %v1685, %v1843
    %v1848 = vadd.f32 %v1759, %v1846
    %v1849 = vadd.f32 %v1764, %v1847
    %v1850 = vtanh.pop %v1848
    %v1851 = vtanh.pop %v1849
    %v1852 = vsub.f32 1.0, %v1683
    %v1853 = vsub.f32 1.0, %v1685
    %1856 = vrot.lane.b32.xlu0 %v1850, 32
    %v1857 = vpop.permute.xlu0 %1856
    %1858 = vrot.lane.b32.xlu0 %v1851, 32
    %v1859 = vpop.permute.xlu0 %1858
    %v1862 = vmul.f32 %v1852, %v1857
    %v1863 = vmul.f32 %v1853, %v1859
    %v1864 = vmul.f32 %v1683, %v1106
    %v1865 = vmul.f32 %v1685, %v1107
    %v1866 = vadd.f32 %v1862, %v1864
    %v1867 = vadd.f32 %v1863, %v1865
    %1870 = vrot.lane.b32.xlu0 %v1866, 96
    %v1871 = vpop.permute.xlu0 %1870
    %1872 = vrot.lane.b32.xlu0 %v1867, 96
    %v1873 = vpop.permute.xlu0 %1872
    %v1876 = vsel %vm47, %v1871, 0.0
    %1877 = vadd.xlane.f32.xlu0 %v1876
    %v1878 = vpop.xlane.xlu0 %1877
    %v1879 = vsel %vm47, %v1873, 0.0
    %1880 = vadd.xlane.f32.xlu0 %v1879
    %v1881 = vpop.xlane.xlu0 %1880
    %v1882 = vmul.f32 %v1878, %v60
    %v1883 = vmul.f32 %v1881, %v60
    %v1884 = vsub.f32 %v1866, %v1882
    %v1885 = vsub.f32 %v1867, %v1883
    %v1886 = vmul.f32 %v1884, %v1884
    %v1887 = vmul.f32 %v1885, %v1885
    %1890 = vrot.lane.b32.xlu0 %v1886, 96
    %v1891 = vpop.permute.xlu0 %1890
    %1892 = vrot.lane.b32.xlu0 %v1887, 96
    %v1893 = vpop.permute.xlu0 %1892
    %v1896 = vsel %vm47, %v1891, 0.0
    %1897 = vadd.xlane.f32.xlu0 %v1896
    %v1898 = vpop.xlane.xlu0 %1897
    %v1899 = vsel %vm47, %v1893, 0.0
    %1900 = vadd.xlane.f32.xlu0 %v1899
    %v1901 = vpop.xlane.xlu0 %1900
    %v1902 = vmul.f32 %v1898, %v60
    %v1903 = vmul.f32 %v1901, %v60
    %v1904 = vadd.f32 %v1902, 1e-05
    %v1905 = vadd.f32 %v1903, 1e-05
    %v1906 = vrsqrt.pop %v1904
    %v1907 = vrsqrt.pop %v1905
    %v1908 = vmul.f32 %v1884, %v1906
    %v1909 = vmul.f32 %v1885, %v1907
    %v1910 = vmul.f32 %v1908, %v1152
    %v1911 = vmul.f32 %v1909, %v1152
    %v1912 = vadd.f32 %v1910, %v1158
    %v1913 = vadd.f32 %v1911, %v1158
    %1916 = vrot.lane.b32.xlu0 %v1912, 96
    %v1917 = vpop.permute.xlu0 %1916
    %1918 = vrot.lane.b32.xlu0 %v1913, 96
    %v1919 = vpop.permute.xlu0 %1918
    %v1920 = vsel %vm47, %v1917, 0
    %v1922 = vsel %vm47, %v1919, 0
    %1924 = vmatprep.subr.mxu0 0.0
    %1925 = vmatpush1.msra.mxu0 %v349
    %1926 = vmatprep.subr.mxu0 0.0
    %1927 = vmatpush1.msra.mxu0 %v350
    %1928 = vmatprep.subr.mxu0 0.0
    %1929 = vmatpush1.msra.mxu0 %v351
    %1930 = vmatprep.subr.mxu0 0.0
    %1931 = vmatpush1.msra.mxu0 %v352
    %1932 = vmatprep.subr.mxu0 0.0
    %1933 = vmatpush1.msra.mxu0 0.0
    %1934 = vmatprep.subr.mxu0 0.0
    %1935 = vmatpush1.msra.mxu0 0.0
    %1936 = vmatprep.subr.mxu0 0.0
    %1937 = vmatpush1.msra.mxu0 0.0
    %1938 = vmatprep.subr.mxu0 0.0
    %1939 = vmatpush1.msra.mxu0 0.0
    %1940 = vmatprep.subr.mxu0 0.0
    %1941 = vmatpush1.msra.mxu0 0.0
    %1942 = vmatprep.subr.mxu0 0.0
    %1943 = vmatpush1.msra.mxu0 0.0
    %1944 = vmatprep.subr.mxu0 0.0
    %1945 = vmatpush1.msra.mxu0 0.0
    %1946 = vmatprep.subr.mxu0 0.0
    %1947 = vmatpush1.msra.mxu0 0.0
    %1948 = vmatprep.subr.mxu0 0.0
    %1949 = vmatpush1.msra.mxu0 0.0
    %1950 = vmatprep.subr.mxu0 0.0
    %1951 = vmatpush1.msra.mxu0 0.0
    %1952 = vmatprep.subr.mxu0 0.0
    %1953 = vmatpush1.msra.mxu0 0.0
    %1954 = vmatprep.subr.mxu0 0.0
    %1955 = vmatpush1.msra.mxu0 0.0
    %1956 = vmatprep.subr.mxu0 0.0
    %1957 = vmatpush1.msra.mxu0 0.0
    %1958 = vmatprep.subr.mxu0 0.0
    %1959 = vmatpush1.msra.mxu0 0.0
    %1960 = vmatprep.subr.mxu0 0.0
    %1961 = vmatpush1.msra.mxu0 0.0
    %1962 = vmatprep.subr.mxu0 0.0
    %1963 = vmatpush1.msra.mxu0 0.0
    %1964 = vmatprep.subr.mxu0 0.0
    %1965 = vmatpush1.msra.mxu0 0.0
    %1966 = vmatprep.subr.mxu0 0.0
    %1967 = vmatpush1.msra.mxu0 0.0
    %1968 = vmatprep.subr.mxu0 0.0
    %1969 = vmatpush1.msra.mxu0 0.0
    %1970 = vmatprep.subr.mxu0 0.0
    %1971 = vmatpush1.msra.mxu0 0.0
    %1972 = vmatprep.subr.mxu0 0.0
    %1973 = vmatpush1.msra.mxu0 0.0
    %1974 = vmatprep.subr.mxu0 0.0
    %1975 = vmatpush1.msra.mxu0 0.0
    %1976 = vmatprep.subr.mxu0 0.0
    %1977 = vmatpush1.msra.mxu0 0.0
    %1978 = vmatprep.subr.mxu0 0.0
    %1979 = vmatpush1.msra.mxu0 0.0
    %1980 = vmatprep.subr.mxu0 0.0
    %1981 = vmatpush1.msra.mxu0 0.0
    %1982 = vmatprep.subr.mxu0 0.0
    %1983 = vmatpush1.msra.mxu0 0.0
    %1984 = vmatprep.subr.mxu0 0.0
    %1985 = vmatpush1.msra.mxu0 0.0
    %1986 = vmatprep.subr.mxu0 0.0
    %1987 = vmatpush1.msra.mxu0 0.0
    %1988 = vmatprep.mubr.f32.mxu0 0.0
    %1989 = vmatmul.mubr.f32.gmra.mrb[0].mxu0 %v1920
    %v1990 = vpop.f32.mrb[0].mxu0
    %v1991 = vadd.f32 0.0, %v1990
    %v1992 = vpop.f32.mrb[0].mxu0
    %1993 = vmatprep.mubr.f32.mxu0 0.0
    %1994 = vmatmul.mubr.f32.gmra.mrb[0].mxu0 %v1922
    %v1995 = vpop.f32.mrb[0].mxu0
    %v1996 = vadd.f32 0.0, %v1995
    %v1997 = vpop.f32.mrb[0].mxu0
    %1998 = vdwg.mxu0
    %v2000 = vsel %vm47, %v1991, 0
    %2002 = vmatprep.subr.mxu0 0.0
    %2003 = vmatpush1.xpose.msra.mxu0 %v438
    %2004 = vmatprep.subr.mxu0 0.0
    %2005 = vmatpush1.xpose.msra.mxu0 %v441
    %2006 = vmatprep.subr.mxu0 0.0
    %2007 = vmatpush1.xpose.msra.mxu0 0.0
    %2008 = vmatprep.subr.mxu0 0.0
    %2009 = vmatpush1.xpose.msra.mxu0 0.0
    %2010 = vmatprep.subr.mxu0 0.0
    %2011 = vmatpush1.xpose.msra.mxu0 0.0
    %2012 = vmatprep.subr.mxu0 0.0
    %2013 = vmatpush1.xpose.msra.mxu0 0.0
    %2014 = vmatprep.subr.mxu0 0.0
    %2015 = vmatpush1.xpose.msra.mxu0 0.0
    %2016 = vmatprep.subr.mxu0 0.0
    %2017 = vmatpush1.xpose.msra.mxu0 0.0
    %2018 = vmatprep.subr.mxu0 0.0
    %2019 = vmatpush1.xpose.msra.mxu0 0.0
    %2020 = vmatprep.subr.mxu0 0.0
    %2021 = vmatpush1.xpose.msra.mxu0 0.0
    %2022 = vmatprep.subr.mxu0 0.0
    %2023 = vmatpush1.xpose.msra.mxu0 0.0
    %2024 = vmatprep.subr.mxu0 0.0
    %2025 = vmatpush1.xpose.msra.mxu0 0.0
    %2026 = vmatprep.subr.mxu0 0.0
    %2027 = vmatpush1.xpose.msra.mxu0 0.0
    %2028 = vmatprep.subr.mxu0 0.0
    %2029 = vmatpush1.xpose.msra.mxu0 0.0
    %2030 = vmatprep.subr.mxu0 0.0
    %2031 = vmatpush1.xpose.msra.mxu0 0.0
    %2032 = vmatprep.subr.mxu0 0.0
    %2033 = vmatpush1.xpose.msra.mxu0 0.0
    %2034 = vmatprep.subr.mxu0 0.0
    %2035 = vmatpush1.xpose.msra.mxu0 0.0
    %2036 = vmatprep.subr.mxu0 0.0
    %2037 = vmatpush1.xpose.msra.mxu0 0.0
    %2038 = vmatprep.subr.mxu0 0.0
    %2039 = vmatpush1.xpose.msra.mxu0 0.0
    %2040 = vmatprep.subr.mxu0 0.0
    %2041 = vmatpush1.xpose.msra.mxu0 0.0
    %2042 = vmatprep.subr.mxu0 0.0
    %2043 = vmatpush1.xpose.msra.mxu0 0.0
    %2044 = vmatprep.subr.mxu0 0.0
    %2045 = vmatpush1.xpose.msra.mxu0 0.0
    %2046 = vmatprep.subr.mxu0 0.0
    %2047 = vmatpush1.xpose.msra.mxu0 0.0
    %2048 = vmatprep.subr.mxu0 0.0
    %2049 = vmatpush1.xpose.msra.mxu0 0.0
    %2050 = vmatprep.subr.mxu0 0.0
    %2051 = vmatpush1.xpose.msra.mxu0 0.0
    %2052 = vmatprep.subr.mxu0 0.0
    %2053 = vmatpush1.xpose.msra.mxu0 0.0
    %2054 = vmatprep.subr.mxu0 0.0
    %2055 = vmatpush1.xpose.msra.mxu0 0.0
    %2056 = vmatprep.subr.mxu0 0.0
    %2057 = vmatpush1.xpose.msra.mxu0 0.0
    %2058 = vmatprep.subr.mxu0 0.0
    %2059 = vmatpush1.xpose.msra.mxu0 0.0
    %2060 = vmatprep.subr.mxu0 0.0
    %2061 = vmatpush1.xpose.msra.mxu0 0.0
    %2062 = vmatprep.subr.mxu0 0.0
    %2063 = vmatpush1.xpose.msra.mxu0 0.0
    %2064 = vmatprep.subr.mxu0 0.0
    %2065 = vmatpush1.xpose.msra.mxu0 0.0
    %2066 = vmatprep.mubr.f32.mxu0 0.0
    %2067 = vmatmul.mubr.f32.gmra.mrb[0].mxu0 %v2000
    %v2068 = vpop.f32.mrb[0].mxu0
    %v2069 = vadd.f32 0.0, %v2068
    %v2070 = vpop.f32.mrb[0].mxu0
    %2071 = vdwg.mxu0
    %v2072 = vmul.f32 %v2069, 0.17677669
    %v2073 = vsel %vm514, %v2072, -inf
    %v2074 = vrot.slane %v2073, 4
    %v2075 = vmax.f32 %v2073, %v2074
    %v2076 = vrot.slane %v2075, 2
    %v2077 = vmax.f32 %v2075, %v2076
    %v2078 = vrot.slane %v2077, 1
    %v2079 = vmax.f32 %v2077, %v2078
    %v2080 = vsub.f32 %v2072, %v2079
    %v2081 = vmul.f32 %v2080, 1.442695
    %v2082 = vpow.pop %v2081
    %v2083 = vsel %vm514, %v2082, 0.0
    %v2084 = vrot.slane %v2083, 4
    %v2085 = vadd.f32 %v2083, %v2084
    %v2086 = vrot.slane %v2085, 2
    %v2087 = vadd.f32 %v2085, %v2086
    %v2088 = vrot.slane %v2087, 1
    %v2089 = vadd.f32 %v2087, %v2088
    %v2090 = vrcp.pop %v2089
    %v2091 = vmul.f32 %v2082, %v2090
    %v2092 = vadd.f32 %v2091, 1e-08
    %v2093 = vsel %vm514, %v2092, 0.0
    %2094 = vadd.xlane.f32.xlu0 %v2093
    %v2095 = vpop.xlane.xlu0 %2094
    %v2096 = vrcp.pop %v2095
    %v2097 = vmul.f32 %v2092, %v2096
    %v2099 = vsel %vm514, %v2097, 0
    %2101 = vmatprep.subr.mxu0 0.0
    %2102 = vmatpush1.msra.mxu0 %v289
    %2103 = vmatprep.subr.mxu0 0.0
    %2104 = vmatpush1.msra.mxu0 %v294
    %2105 = vmatprep.subr.mxu0 0.0
    %2106 = vmatpush1.msra.mxu0 0.0
    %2107 = vmatprep.subr.mxu0 0.0
    %2108 = vmatpush1.msra.mxu0 0.0
    %2109 = vmatprep.subr.mxu0 0.0
    %2110 = vmatpush1.msra.mxu0 0.0
    %2111 = vmatprep.subr.mxu0 0.0
    %2112 = vmatpush1.msra.mxu0 0.0
    %2113 = vmatprep.subr.mxu0 0.0
    %2114 = vmatpush1.msra.mxu0 0.0
    %2115 = vmatprep.subr.mxu0 0.0
    %2116 = vmatpush1.msra.mxu0 0.0
    %2117 = vmatprep.subr.mxu0 0.0
    %2118 = vmatpush1.msra.mxu0 0.0
    %2119 = vmatprep.subr.mxu0 0.0
    %2120 = vmatpush1.msra.mxu0 0.0
    %2121 = vmatprep.subr.mxu0 0.0
    %2122 = vmatpush1.msra.mxu0 0.0
    %2123 = vmatprep.subr.mxu0 0.0
    %2124 = vmatpush1.msra.mxu0 0.0
    %2125 = vmatprep.subr.mxu0 0.0
    %2126 = vmatpush1.msra.mxu0 0.0
    %2127 = vmatprep.subr.mxu0 0.0
    %2128 = vmatpush1.msra.mxu0 0.0
    %2129 = vmatprep.subr.mxu0 0.0
    %2130 = vmatpush1.msra.mxu0 0.0
    %2131 = vmatprep.subr.mxu0 0.0
    %2132 = vmatpush1.msra.mxu0 0.0
    %2133 = vmatprep.subr.mxu0 0.0
    %2134 = vmatpush1.msra.mxu0 0.0
    %2135 = vmatprep.subr.mxu0 0.0
    %2136 = vmatpush1.msra.mxu0 0.0
    %2137 = vmatprep.subr.mxu0 0.0
    %2138 = vmatpush1.msra.mxu0 0.0
    %2139 = vmatprep.subr.mxu0 0.0
    %2140 = vmatpush1.msra.mxu0 0.0
    %2141 = vmatprep.subr.mxu0 0.0
    %2142 = vmatpush1.msra.mxu0 0.0
    %2143 = vmatprep.subr.mxu0 0.0
    %2144 = vmatpush1.msra.mxu0 0.0
    %2145 = vmatprep.subr.mxu0 0.0
    %2146 = vmatpush1.msra.mxu0 0.0
    %2147 = vmatprep.subr.mxu0 0.0
    %2148 = vmatpush1.msra.mxu0 0.0
    %2149 = vmatprep.subr.mxu0 0.0
    %2150 = vmatpush1.msra.mxu0 0.0
    %2151 = vmatprep.subr.mxu0 0.0
    %2152 = vmatpush1.msra.mxu0 0.0
    %2153 = vmatprep.subr.mxu0 0.0
    %2154 = vmatpush1.msra.mxu0 0.0
    %2155 = vmatprep.subr.mxu0 0.0
    %2156 = vmatpush1.msra.mxu0 0.0
    %2157 = vmatprep.subr.mxu0 0.0
    %2158 = vmatpush1.msra.mxu0 0.0
    %2159 = vmatprep.subr.mxu0 0.0
    %2160 = vmatpush1.msra.mxu0 0.0
    %2161 = vmatprep.subr.mxu0 0.0
    %2162 = vmatpush1.msra.mxu0 0.0
    %2163 = vmatprep.subr.mxu0 0.0
    %2164 = vmatpush1.msra.mxu0 0.0
    %2165 = vmatprep.mubr.f32.mxu0 0.0
    %2166 = vmatmul.mubr.f32.gmra.mrb[0].mxu0 %v2099
    %v2167 = vpop.f32.mrb[0].mxu0
    %v2168 = vadd.f32 0.0, %v2167
    %v2169 = vpop.f32.mrb[0].mxu0
    %2170 = vdwg.mxu0
    %v2172 = vsel %vm47, %v1996, 0
    %2174 = vmatprep.subr.mxu0 0.0
    %2175 = vmatpush1.xpose.msra.mxu0 %v617
    %2176 = vmatprep.subr.mxu0 0.0
    %2177 = vmatpush1.xpose.msra.mxu0 %v620
    %2178 = vmatprep.subr.mxu0 0.0
    %2179 = vmatpush1.xpose.msra.mxu0 0.0
    %2180 = vmatprep.subr.mxu0 0.0
    %2181 = vmatpush1.xpose.msra.mxu0 0.0
    %2182 = vmatprep.subr.mxu0 0.0
    %2183 = vmatpush1.xpose.msra.mxu0 0.0
    %2184 = vmatprep.subr.mxu0 0.0
    %2185 = vmatpush1.xpose.msra.mxu0 0.0
    %2186 = vmatprep.subr.mxu0 0.0
    %2187 = vmatpush1.xpose.msra.mxu0 0.0
    %2188 = vmatprep.subr.mxu0 0.0
    %2189 = vmatpush1.xpose.msra.mxu0 0.0
    %2190 = vmatprep.subr.mxu0 0.0
    %2191 = vmatpush1.xpose.msra.mxu0 0.0
    %2192 = vmatprep.subr.mxu0 0.0
    %2193 = vmatpush1.xpose.msra.mxu0 0.0
    %2194 = vmatprep.subr.mxu0 0.0
    %2195 = vmatpush1.xpose.msra.mxu0 0.0
    %2196 = vmatprep.subr.mxu0 0.0
    %2197 = vmatpush1.xpose.msra.mxu0 0.0
    %2198 = vmatprep.subr.mxu0 0.0
    %2199 = vmatpush1.xpose.msra.mxu0 0.0
    %2200 = vmatprep.subr.mxu0 0.0
    %2201 = vmatpush1.xpose.msra.mxu0 0.0
    %2202 = vmatprep.subr.mxu0 0.0
    %2203 = vmatpush1.xpose.msra.mxu0 0.0
    %2204 = vmatprep.subr.mxu0 0.0
    %2205 = vmatpush1.xpose.msra.mxu0 0.0
    %2206 = vmatprep.subr.mxu0 0.0
    %2207 = vmatpush1.xpose.msra.mxu0 0.0
    %2208 = vmatprep.subr.mxu0 0.0
    %2209 = vmatpush1.xpose.msra.mxu0 0.0
    %2210 = vmatprep.subr.mxu0 0.0
    %2211 = vmatpush1.xpose.msra.mxu0 0.0
    %2212 = vmatprep.subr.mxu0 0.0
    %2213 = vmatpush1.xpose.msra.mxu0 0.0
    %2214 = vmatprep.subr.mxu0 0.0
    %2215 = vmatpush1.xpose.msra.mxu0 0.0
    %2216 = vmatprep.subr.mxu0 0.0
    %2217 = vmatpush1.xpose.msra.mxu0 0.0
    %2218 = vmatprep.subr.mxu0 0.0
    %2219 = vmatpush1.xpose.msra.mxu0 0.0
    %2220 = vmatprep.subr.mxu0 0.0
    %2221 = vmatpush1.xpose.msra.mxu0 0.0
    %2222 = vmatprep.subr.mxu0 0.0
    %2223 = vmatpush1.xpose.msra.mxu0 0.0
    %2224 = vmatprep.subr.mxu0 0.0
    %2225 = vmatpush1.xpose.msra.mxu0 0.0
    %2226 = vmatprep.subr.mxu0 0.0
    %2227 = vmatpush1.xpose.msra.mxu0 0.0
    %2228 = vmatprep.subr.mxu0 0.0
    %2229 = vmatpush1.xpose.msra.mxu0 0.0
    %2230 = vmatprep.subr.mxu0 0.0
    %2231 = vmatpush1.xpose.msra.mxu0 0.0
    %2232 = vmatprep.subr.mxu0 0.0
    %2233 = vmatpush1.xpose.msra.mxu0 0.0
    %2234 = vmatprep.subr.mxu0 0.0
    %2235 = vmatpush1.xpose.msra.mxu0 0.0
    %2236 = vmatprep.subr.mxu0 0.0
    %2237 = vmatpush1.xpose.msra.mxu0 0.0
    %2238 = vmatprep.mubr.f32.mxu0 0.0
    %2239 = vmatmul.mubr.f32.gmra.mrb[0].mxu0 %v2172
    %v2240 = vpop.f32.mrb[0].mxu0
    %v2241 = vadd.f32 0.0, %v2240
    %v2242 = vpop.f32.mrb[0].mxu0
    %2243 = vdwg.mxu0
    %v2244 = vmul.f32 %v2241, 0.17677669
    %v2245 = vsel %vm514, %v2244, -inf
    %v2246 = vrot.slane %v2245, 4
    %v2247 = vmax.f32 %v2245, %v2246
    %v2248 = vrot.slane %v2247, 2
    %v2249 = vmax.f32 %v2247, %v2248
    %v2250 = vrot.slane %v2249, 1
    %v2251 = vmax.f32 %v2249, %v2250
    %v2252 = vsub.f32 %v2244, %v2251
    %v2253 = vmul.f32 %v2252, 1.442695
    %v2254 = vpow.pop %v2253
    %v2255 = vsel %vm514, %v2254, 0.0
    %v2256 = vrot.slane %v2255, 4
    %v2257 = vadd.f32 %v2255, %v2256
    %v2258 = vrot.slane %v2257, 2
    %v2259 = vadd.f32 %v2257, %v2258
    %v2260 = vrot.slane %v2259, 1
    %v2261 = vadd.f32 %v2259, %v2260
    %v2262 = vrcp.pop %v2261
    %v2263 = vmul.f32 %v2254, %v2262
    %v2264 = vadd.f32 %v2263, 1e-08
    %v2265 = vsel %vm514, %v2264, 0.0
    %2266 = vadd.xlane.f32.xlu0 %v2265
    %v2267 = vpop.xlane.xlu0 %2266
    %v2268 = vrcp.pop %v2267
    %v2269 = vmul.f32 %v2264, %v2268
    %v2271 = vsel %vm514, %v2269, 0
    %2273 = vmatprep.subr.mxu0 0.0
    %2274 = vmatpush1.msra.mxu0 %v299
    %2275 = vmatprep.subr.mxu0 0.0
    %2276 = vmatpush1.msra.mxu0 %v304
    %2277 = vmatprep.subr.mxu0 0.0
    %2278 = vmatpush1.msra.mxu0 0.0
    %2279 = vmatprep.subr.mxu0 0.0
    %2280 = vmatpush1.msra.mxu0 0.0
    %2281 = vmatprep.subr.mxu0 0.0
    %2282 = vmatpush1.msra.mxu0 0.0
    %2283 = vmatprep.subr.mxu0 0.0
    %2284 = vmatpush1.msra.mxu0 0.0
    %2285 = vmatprep.subr.mxu0 0.0
    %2286 = vmatpush1.msra.mxu0 0.0
    %2287 = vmatprep.subr.mxu0 0.0
    %2288 = vmatpush1.msra.mxu0 0.0
    %2289 = vmatprep.subr.mxu0 0.0
    %2290 = vmatpush1.msra.mxu0 0.0
    %2291 = vmatprep.subr.mxu0 0.0
    %2292 = vmatpush1.msra.mxu0 0.0
    %2293 = vmatprep.subr.mxu0 0.0
    %2294 = vmatpush1.msra.mxu0 0.0
    %2295 = vmatprep.subr.mxu0 0.0
    %2296 = vmatpush1.msra.mxu0 0.0
    %2297 = vmatprep.subr.mxu0 0.0
    %2298 = vmatpush1.msra.mxu0 0.0
    %2299 = vmatprep.subr.mxu0 0.0
    %2300 = vmatpush1.msra.mxu0 0.0
    %2301 = vmatprep.subr.mxu0 0.0
    %2302 = vmatpush1.msra.mxu0 0.0
    %2303 = vmatprep.subr.mxu0 0.0
    %2304 = vmatpush1.msra.mxu0 0.0
    %2305 = vmatprep.subr.mxu0 0.0
    %2306 = vmatpush1.msra.mxu0 0.0
    %2307 = vmatprep.subr.mxu0 0.0
    %2308 = vmatpush1.msra.mxu0 0.0
    %2309 = vmatprep.subr.mxu0 0.0
    %2310 = vmatpush1.msra.mxu0 0.0
    %2311 = vmatprep.subr.mxu0 0.0
    %2312 = vmatpush1.msra.mxu0 0.0
    %2313 = vmatprep.subr.mxu0 0.0
    %2314 = vmatpush1.msra.mxu0 0.0
    %2315 = vmatprep.subr.mxu0 0.0
    %2316 = vmatpush1.msra.mxu0 0.0
    %2317 = vmatprep.subr.mxu0 0.0
    %2318 = vmatpush1.msra.mxu0 0.0
    %2319 = vmatprep.subr.mxu0 0.0
    %2320 = vmatpush1.msra.mxu0 0.0
    %2321 = vmatprep.subr.mxu0 0.0
    %2322 = vmatpush1.msra.mxu0 0.0
    %2323 = vmatprep.subr.mxu0 0.0
    %2324 = vmatpush1.msra.mxu0 0.0
    %2325 = vmatprep.subr.mxu0 0.0
    %2326 = vmatpush1.msra.mxu0 0.0
    %2327 = vmatprep.subr.mxu0 0.0
    %2328 = vmatpush1.msra.mxu0 0.0
    %2329 = vmatprep.subr.mxu0 0.0
    %2330 = vmatpush1.msra.mxu0 0.0
    %2331 = vmatprep.subr.mxu0 0.0
    %2332 = vmatpush1.msra.mxu0 0.0
    %2333 = vmatprep.subr.mxu0 0.0
    %2334 = vmatpush1.msra.mxu0 0.0
    %2335 = vmatprep.subr.mxu0 0.0
    %2336 = vmatpush1.msra.mxu0 0.0
    %2337 = vmatprep.mubr.f32.mxu0 0.0
    %2338 = vmatmul.mubr.f32.gmra.mrb[0].mxu0 %v2271
    %v2339 = vpop.f32.mrb[0].mxu0
    %v2340 = vadd.f32 0.0, %v2339
    %v2341 = vpop.f32.mrb[0].mxu0
    %2342 = vdwg.mxu0
    %v2343 = vsel %vm47, %v2168, %v1866
    %v2344 = vsel %vm47, %v2340, %v1867
    %v2346 = vsel %vm814, %v2343, 0
    %v2349 = vsel %vm814, %v2344, 0
    %2351 = vmatprep.subr.mxu0 0.0
    %2352 = vmatpush1.msra.mxu0 %v801
    %2353 = vmatprep.subr.mxu0 0.0
    %2354 = vmatpush1.msra.mxu0 %v802
    %2355 = vmatprep.subr.mxu0 0.0
    %2356 = vmatpush1.msra.mxu0 %v803
    %2357 = vmatprep.subr.mxu0 0.0
    %2358 = vmatpush1.msra.mxu0 %v804
    %2359 = vmatprep.subr.mxu0 0.0
    %2360 = vmatpush1.msra.mxu0 %v805
    %2361 = vmatprep.subr.mxu0 0.0
    %2362 = vmatpush1.msra.mxu0 %v806
    %2363 = vmatprep.subr.mxu0 0.0
    %2364 = vmatpush1.msra.mxu0 %v807
    %2365 = vmatprep.subr.mxu0 0.0
    %2366 = vmatpush1.msra.mxu0 %v808
    %2367 = vmatprep.subr.mxu0 0.0
    %2368 = vmatpush1.msra.mxu0 0.0
    %2369 = vmatprep.subr.mxu0 0.0
    %2370 = vmatpush1.msra.mxu0 0.0
    %2371 = vmatprep.subr.mxu0 0.0
    %2372 = vmatpush1.msra.mxu0 0.0
    %2373 = vmatprep.subr.mxu0 0.0
    %2374 = vmatpush1.msra.mxu0 0.0
    %2375 = vmatprep.subr.mxu0 0.0
    %2376 = vmatpush1.msra.mxu0 0.0
    %2377 = vmatprep.subr.mxu0 0.0
    %2378 = vmatpush1.msra.mxu0 0.0
    %2379 = vmatprep.subr.mxu0 0.0
    %2380 = vmatpush1.msra.mxu0 0.0
    %2381 = vmatprep.subr.mxu0 0.0
    %2382 = vmatpush1.msra.mxu0 0.0
    %2383 = vmatprep.subr.mxu0 0.0
    %2384 = vmatpush1.msra.mxu0 0.0
    %2385 = vmatprep.subr.mxu0 0.0
    %2386 = vmatpush1.msra.mxu0 0.0
    %2387 = vmatprep.subr.mxu0 0.0
    %2388 = vmatpush1.msra.mxu0 0.0
    %2389 = vmatprep.subr.mxu0 0.0
    %2390 = vmatpush1.msra.mxu0 0.0
    %2391 = vmatprep.subr.mxu0 0.0
    %2392 = vmatpush1.msra.mxu0 0.0
    %2393 = vmatprep.subr.mxu0 0.0
    %2394 = vmatpush1.msra.mxu0 0.0
    %2395 = vmatprep.subr.mxu0 0.0
    %2396 = vmatpush1.msra.mxu0 0.0
    %2397 = vmatprep.subr.mxu0 0.0
    %2398 = vmatpush1.msra.mxu0 0.0
    %2399 = vmatprep.subr.mxu0 0.0
    %2400 = vmatpush1.msra.mxu0 0.0
    %2401 = vmatprep.subr.mxu0 0.0
    %2402 = vmatpush1.msra.mxu0 0.0
    %2403 = vmatprep.subr.mxu0 0.0
    %2404 = vmatpush1.msra.mxu0 0.0
    %2405 = vmatprep.subr.mxu0 0.0
    %2406 = vmatpush1.msra.mxu0 0.0
    %2407 = vmatprep.subr.mxu0 0.0
    %2408 = vmatpush1.msra.mxu0 0.0
    %2409 = vmatprep.subr.mxu0 0.0
    %2410 = vmatpush1.msra.mxu0 0.0
    %2411 = vmatprep.subr.mxu0 0.0
    %2412 = vmatpush1.msra.mxu0 0.0
    %2413 = vmatprep.subr.mxu0 0.0
    %2414 = vmatpush1.msra.mxu0 0.0
    %2415 = vmatprep.mubr.f32.mxu0 0.0
    %2416 = vmatmul.mubr.f32.gmra.mrb[0].mxu0 %v2346
    %v2417 = vpop.f32.mrb[0].mxu0
    %v2418 = vadd.f32 %v813, %v2417
    %v2419 = vpop.f32.mrb[0].mxu0
    %2420 = vmatprep.mubr.f32.mxu0 0.0
    %2421 = vmatmul.mubr.f32.gmra.mrb[0].mxu0 %v2349
    %v2422 = vpop.f32.mrb[0].mxu0
    %v2423 = vadd.f32 %v813, %v2422
    %v2424 = vpop.f32.mrb[0].mxu0
    %2425 = vdwg.mxu0
    %v2426 = vxor.u32 %v2418, 2147483648
    %v2427 = vxor.u32 %v2423, 2147483648
    %v2428 = vmul.f32 %v2426, 1.442695
    %v2429 = vpow.pop %v2428
    %v2430 = vmul.f32 %v2427, 1.442695
    %v2431 = vpow.pop %v2430
    %v2432 = vadd.f32 %v2429, 1.0
    %v2433 = vadd.f32 %v2431, 1.0
    %v2434 = vrcp.pop %v2432
    %v2435 = vmul.f32 1.0, %v2434
    %v2436 = vrcp.pop %v2433
    %v2437 = vmul.f32 1.0, %v2436
    %v2439 = vsel %vm47, %v2168, 0
    %v2442 = vsel %vm47, %v2340, 0
    %2444 = vmatprep.subr.mxu0 0.0
    %2445 = vmatpush1.msra.mxu0 %v908
    %2446 = vmatprep.subr.mxu0 0.0
    %2447 = vmatpush1.msra.mxu0 %v909
    %2448 = vmatprep.subr.mxu0 0.0
    %2449 = vmatpush1.msra.mxu0 %v910
    %2450 = vmatprep.subr.mxu0 0.0
    %2451 = vmatpush1.msra.mxu0 %v911
    %2452 = vmatprep.subr.mxu0 0.0
    %2453 = vmatpush1.msra.mxu0 0.0
    %2454 = vmatprep.subr.mxu0 0.0
    %2455 = vmatpush1.msra.mxu0 0.0
    %2456 = vmatprep.subr.mxu0 0.0
    %2457 = vmatpush1.msra.mxu0 0.0
    %2458 = vmatprep.subr.mxu0 0.0
    %2459 = vmatpush1.msra.mxu0 0.0
    %2460 = vmatprep.subr.mxu0 0.0
    %2461 = vmatpush1.msra.mxu0 0.0
    %2462 = vmatprep.subr.mxu0 0.0
    %2463 = vmatpush1.msra.mxu0 0.0
    %2464 = vmatprep.subr.mxu0 0.0
    %2465 = vmatpush1.msra.mxu0 0.0
    %2466 = vmatprep.subr.mxu0 0.0
    %2467 = vmatpush1.msra.mxu0 0.0
    %2468 = vmatprep.subr.mxu0 0.0
    %2469 = vmatpush1.msra.mxu0 0.0
    %2470 = vmatprep.subr.mxu0 0.0
    %2471 = vmatpush1.msra.mxu0 0.0
    %2472 = vmatprep.subr.mxu0 0.0
    %2473 = vmatpush1.msra.mxu0 0.0
    %2474 = vmatprep.subr.mxu0 0.0
    %2475 = vmatpush1.msra.mxu0 0.0
    %2476 = vmatprep.subr.mxu0 0.0
    %2477 = vmatpush1.msra.mxu0 0.0
    %2478 = vmatprep.subr.mxu0 0.0
    %2479 = vmatpush1.msra.mxu0 0.0
    %2480 = vmatprep.subr.mxu0 0.0
    %2481 = vmatpush1.msra.mxu0 0.0
    %2482 = vmatprep.subr.mxu0 0.0
    %2483 = vmatpush1.msra.mxu0 0.0
    %2484 = vmatprep.subr.mxu0 0.0
    %2485 = vmatpush1.msra.mxu0 0.0
    %2486 = vmatprep.subr.mxu0 0.0
    %2487 = vmatpush1.msra.mxu0 0.0
    %2488 = vmatprep.subr.mxu0 0.0
    %2489 = vmatpush1.msra.mxu0 0.0
    %2490 = vmatprep.subr.mxu0 0.0
    %2491 = vmatpush1.msra.mxu0 0.0
    %2492 = vmatprep.subr.mxu0 0.0
    %2493 = vmatpush1.msra.mxu0 0.0
    %2494 = vmatprep.subr.mxu0 0.0
    %2495 = vmatpush1.msra.mxu0 0.0
    %2496 = vmatprep.subr.mxu0 0.0
    %2497 = vmatpush1.msra.mxu0 0.0
    %2498 = vmatprep.subr.mxu0 0.0
    %2499 = vmatpush1.msra.mxu0 0.0
    %2500 = vmatprep.subr.mxu0 0.0
    %2501 = vmatpush1.msra.mxu0 0.0
    %2502 = vmatprep.subr.mxu0 0.0
    %2503 = vmatpush1.msra.mxu0 0.0
    %2504 = vmatprep.subr.mxu0 0.0
    %2505 = vmatpush1.msra.mxu0 0.0
    %2506 = vmatprep.subr.mxu0 0.0
    %2507 = vmatpush1.msra.mxu0 0.0
    %2508 = vmatprep.mubr.f32.mxu0 0.0
    %2509 = vmatmul.mubr.f32.gmra.mrb[0].mxu0 %v2439
    %v2510 = vpop.f32.mrb[0].mxu0
    %v2511 = vadd.f32 %v916, %v2510
    %v2512 = vpop.f32.mrb[0].mxu0
    %2513 = vmatprep.mubr.f32.mxu0 0.0
    %2514 = vmatmul.mubr.f32.gmra.mrb[0].mxu0 %v2442
    %v2515 = vpop.f32.mrb[0].mxu0
    %v2516 = vadd.f32 %v916, %v2515
    %v2517 = vpop.f32.mrb[0].mxu0
    %2518 = vdwg.mxu0
    %v2519 = vsel %vm47, %v1871, 0
    %v2521 = vsel %vm47, %v1873, 0
    %2523 = vmatprep.subr.mxu0 0.0
    %2524 = vmatpush1.msra.mxu0 %v998
    %2525 = vmatprep.subr.mxu0 0.0
    %2526 = vmatpush1.msra.mxu0 %v999
    %2527 = vmatprep.subr.mxu0 0.0
    %2528 = vmatpush1.msra.mxu0 %v1000
    %2529 = vmatprep.subr.mxu0 0.0
    %2530 = vmatpush1.msra.mxu0 %v1001
    %2531 = vmatprep.subr.mxu0 0.0
    %2532 = vmatpush1.msra.mxu0 0.0
    %2533 = vmatprep.subr.mxu0 0.0
    %2534 = vmatpush1.msra.mxu0 0.0
    %2535 = vmatprep.subr.mxu0 0.0
    %2536 = vmatpush1.msra.mxu0 0.0
    %2537 = vmatprep.subr.mxu0 0.0
    %2538 = vmatpush1.msra.mxu0 0.0
    %2539 = vmatprep.subr.mxu0 0.0
    %2540 = vmatpush1.msra.mxu0 0.0
    %2541 = vmatprep.subr.mxu0 0.0
    %2542 = vmatpush1.msra.mxu0 0.0
    %2543 = vmatprep.subr.mxu0 0.0
    %2544 = vmatpush1.msra.mxu0 0.0
    %2545 = vmatprep.subr.mxu0 0.0
    %2546 = vmatpush1.msra.mxu0 0.0
    %2547 = vmatprep.subr.mxu0 0.0
    %2548 = vmatpush1.msra.mxu0 0.0
    %2549 = vmatprep.subr.mxu0 0.0
    %2550 = vmatpush1.msra.mxu0 0.0
    %2551 = vmatprep.subr.mxu0 0.0
    %2552 = vmatpush1.msra.mxu0 0.0
    %2553 = vmatprep.subr.mxu0 0.0
    %2554 = vmatpush1.msra.mxu0 0.0
    %2555 = vmatprep.subr.mxu0 0.0
    %2556 = vmatpush1.msra.mxu0 0.0
    %2557 = vmatprep.subr.mxu0 0.0
    %2558 = vmatpush1.msra.mxu0 0.0
    %2559 = vmatprep.subr.mxu0 0.0
    %2560 = vmatpush1.msra.mxu0 0.0
    %2561 = vmatprep.subr.mxu0 0.0
    %2562 = vmatpush1.msra.mxu0 0.0
    %2563 = vmatprep.subr.mxu0 0.0
    %2564 = vmatpush1.msra.mxu0 0.0
    %2565 = vmatprep.subr.mxu0 0.0
    %2566 = vmatpush1.msra.mxu0 0.0
    %2567 = vmatprep.subr.mxu0 0.0
    %2568 = vmatpush1.msra.mxu0 0.0
    %2569 = vmatprep.subr.mxu0 0.0
    %2570 = vmatpush1.msra.mxu0 0.0
    %2571 = vmatprep.subr.mxu0 0.0
    %2572 = vmatpush1.msra.mxu0 0.0
    %2573 = vmatprep.subr.mxu0 0.0
    %2574 = vmatpush1.msra.mxu0 0.0
    %2575 = vmatprep.subr.mxu0 0.0
    %2576 = vmatpush1.msra.mxu0 0.0
    %2577 = vmatprep.subr.mxu0 0.0
    %2578 = vmatpush1.msra.mxu0 0.0
    %2579 = vmatprep.subr.mxu0 0.0
    %2580 = vmatpush1.msra.mxu0 0.0
    %2581 = vmatprep.subr.mxu0 0.0
    %2582 = vmatpush1.msra.mxu0 0.0
    %2583 = vmatprep.subr.mxu0 0.0
    %2584 = vmatpush1.msra.mxu0 0.0
    %2585 = vmatprep.subr.mxu0 0.0
    %2586 = vmatpush1.msra.mxu0 0.0
    %2587 = vmatprep.mubr.f32.mxu0 0.0
    %2588 = vmatmul.mubr.f32.gmra.mrb[0].mxu0 %v2519
    %v2589 = vpop.f32.mrb[0].mxu0
    %v2590 = vadd.f32 %v1006, %v2589
    %v2591 = vpop.f32.mrb[0].mxu0
    %2592 = vmatprep.mubr.f32.mxu0 0.0
    %2593 = vmatmul.mubr.f32.gmra.mrb[0].mxu0 %v2521
    %v2594 = vpop.f32.mrb[0].mxu0
    %v2595 = vadd.f32 %v1006, %v2594
    %v2596 = vpop.f32.mrb[0].mxu0
    %2597 = vdwg.mxu0
    %v2598 = vmul.f32 %v2435, %v2590
    %v2599 = vmul.f32 %v2437, %v2595
    %v2600 = vadd.f32 %v2511, %v2598
    %v2601 = vadd.f32 %v2516, %v2599
    %v2602 = vtanh.pop %v2600
    %v2603 = vtanh.pop %v2601
    %v2604 = vsub.f32 1.0, %v2435
    %v2605 = vsub.f32 1.0, %v2437
    %2608 = vrot.lane.b32.xlu0 %v2602, 32
    %v2609 = vpop.permute.xlu0 %2608
    %2610 = vrot.lane.b32.xlu0 %v2603, 32
    %v2611 = vpop.permute.xlu0 %2610
    %v2614 = vmul.f32 %v2604, %v2609
    %v2615 = vmul.f32 %v2605, %v2611
    %v2616 = vmul.f32 %v2435, %v1866
    %v2617 = vmul.f32 %v2437, %v1867
    %v2618 = vadd.f32 %v2614, %v2616
    %v2619 = vadd.f32 %v2615, %v2617
    %2622 = vrot.lane.b32.xlu0 %v2618, 96
    %v2623 = vpop.permute.xlu0 %2622
    %2624 = vrot.lane.b32.xlu0 %v2619, 96
    %v2625 = vpop.permute.xlu0 %2624
    %2628 = vst.msk [vmem:[#allocation2] sm:$0xff] %vm47, %v2623
    %2629 = vst.msk [vmem:[#allocation2 + $0x8] sm:$0xff] %vm47, %v2625
    %2630 = vst.msk [vmem:[#allocation4] sm:$0xff] %vm514, %v2091
    %2631 = vst.msk [vmem:[#allocation4 + $0x8] sm:$0xff] %vm514, %v2263
    %v2632 = vld [vmem:[%s4 + $0x44] sm:$0xff]
    %v2633 = vld [vmem:[%s4 + $0x4c] sm:$0xff]
    %v2634 = vmul.f32 %v2618, %v2618
    %v2635 = vmul.f32 %v2619, %v2619
    %2638 = vrot.lane.b32.xlu0 %v2634, 96
    %v2639 = vpop.permute.xlu0 %2638
    %2640 = vrot.lane.b32.xlu0 %v2635, 96
    %v2641 = vpop.permute.xlu0 %2640
    %v2644 = vsel %vm47, %v2639, 0.0
    %2645 = vadd.xlane.f32.xlu0 %v2644
    %v2646 = vpop.xlane.xlu0 %2645
    %v2647 = vsel %vm47, %v2641, 0.0
    %2648 = vadd.xlane.f32.xlu0 %v2647
    %v2649 = vpop.xlane.xlu0 %2648
    %v2650 = vmul.f32 %v2632, %v2632
    %v2651 = vmul.f32 %v2633, %v2633
    %v2652 = vsel %vm47, %v2650, 0.0
    %2653 = vadd.xlane.f32.xlu0 %v2652
    %v2654 = vpop.xlane.xlu0 %2653
    %v2655 = vsel %vm47, %v2651, 0.0
    %2656 = vadd.xlane.f32.xlu0 %v2655
    %v2657 = vpop.xlane.xlu0 %2656
    %v2658 = vsel %vm47, %v2623, 0
    %v2660 = vsel %vm47, %v2625, 0
    %v2663 = vsel %vm47, %v2632, 0
    %v2666 = vsel %vm47, %v2633, 0
    %2668 = vmatprep.subr.mxu0 0.0
    %2669 = vmatpush1.xpose.msra.mxu0 %v2663
    %2670 = vmatprep.subr.mxu0 0.0
    %2671 = vmatpush1.xpose.msra.mxu0 %v2666
    %2672 = vmatprep.subr.mxu0 0.0
    %2673 = vmatpush1.xpose.msra.mxu0 0.0
    %2674 = vmatprep.subr.mxu0 0.0
    %2675 = vmatpush1.xpose.msra.mxu0 0.0
    %2676 = vmatprep.subr.mxu0 0.0
    %2677 = vmatpush1.xpose.msra.mxu0 0.0
    %2678 = vmatprep.subr.mxu0 0.0
    %2679 = vmatpush1.xpose.msra.mxu0 0.0
    %2680 = vmatprep.subr.mxu0 0.0
    %2681 = vmatpush1.xpose.msra.mxu0 0.0
    %2682 = vmatprep.subr.mxu0 0.0
    %2683 = vmatpush1.xpose.msra.mxu0 0.0
    %2684 = vmatprep.subr.mxu0 0.0
    %2685 = vmatpush1.xpose.msra.mxu0 0.0
    %2686 = vmatprep.subr.mxu0 0.0
    %2687 = vmatpush1.xpose.msra.mxu0 0.0
    %2688 = vmatprep.subr.mxu0 0.0
    %2689 = vmatpush1.xpose.msra.mxu0 0.0
    %2690 = vmatprep.subr.mxu0 0.0
    %2691 = vmatpush1.xpose.msra.mxu0 0.0
    %2692 = vmatprep.subr.mxu0 0.0
    %2693 = vmatpush1.xpose.msra.mxu0 0.0
    %2694 = vmatprep.subr.mxu0 0.0
    %2695 = vmatpush1.xpose.msra.mxu0 0.0
    %2696 = vmatprep.subr.mxu0 0.0
    %2697 = vmatpush1.xpose.msra.mxu0 0.0
    %2698 = vmatprep.subr.mxu0 0.0
    %2699 = vmatpush1.xpose.msra.mxu0 0.0
    %2700 = vmatprep.subr.mxu0 0.0
    %2701 = vmatpush1.xpose.msra.mxu0 0.0
    %2702 = vmatprep.subr.mxu0 0.0
    %2703 = vmatpush1.xpose.msra.mxu0 0.0
    %2704 = vmatprep.subr.mxu0 0.0
    %2705 = vmatpush1.xpose.msra.mxu0 0.0
    %2706 = vmatprep.subr.mxu0 0.0
    %2707 = vmatpush1.xpose.msra.mxu0 0.0
    %2708 = vmatprep.subr.mxu0 0.0
    %2709 = vmatpush1.xpose.msra.mxu0 0.0
    %2710 = vmatprep.subr.mxu0 0.0
    %2711 = vmatpush1.xpose.msra.mxu0 0.0
    %2712 = vmatprep.subr.mxu0 0.0
    %2713 = vmatpush1.xpose.msra.mxu0 0.0
    %2714 = vmatprep.subr.mxu0 0.0
    %2715 = vmatpush1.xpose.msra.mxu0 0.0
    %2716 = vmatprep.subr.mxu0 0.0
    %2717 = vmatpush1.xpose.msra.mxu0 0.0
    %2718 = vmatprep.subr.mxu0 0.0
    %2719 = vmatpush1.xpose.msra.mxu0 0.0
    %2720 = vmatprep.subr.mxu0 0.0
    %2721 = vmatpush1.xpose.msra.mxu0 0.0
    %2722 = vmatprep.subr.mxu0 0.0
    %2723 = vmatpush1.xpose.msra.mxu0 0.0
    %2724 = vmatprep.subr.mxu0 0.0
    %2725 = vmatpush1.xpose.msra.mxu0 0.0
    %2726 = vmatprep.subr.mxu0 0.0
    %2727 = vmatpush1.xpose.msra.mxu0 0.0
    %2728 = vmatprep.subr.mxu0 0.0
    %2729 = vmatpush1.xpose.msra.mxu0 0.0
    %2730 = vmatprep.subr.mxu0 0.0
    %2731 = vmatpush1.xpose.msra.mxu0 0.0
    %2732 = vmatprep.mubr.f32.mxu0 0.0
    %2733 = vmatmul.mubr.f32.gmra.mrb[0].mxu0 %v2658
    %v2734 = vpop.f32.mrb[0].mxu0
    %v2735 = vadd.f32 0.0, %v2734
    %v2736 = vpop.f32.mrb[0].mxu0
    %2737 = vmatprep.mubr.f32.mxu0 0.0
    %2738 = vmatmul.mubr.f32.gmra.mrb[0].mxu0 %v2660
    %v2739 = vpop.f32.mrb[0].mxu0
    %v2740 = vadd.f32 0.0, %v2739
    %v2741 = vpop.f32.mrb[0].mxu0
    %2742 = vdwg.mxu0
    %v2743 = vmul.f32 %v2735, 2.0
    %v2744 = vmul.f32 %v2740, 2.0
    %v2745 = vsub.f32 %v2646, %v2743
    %v2746 = vsub.f32 %v2649, %v2744
    %v2749 = vlaneseq
    %v2750 = vand.u32 %v2749, 127
    %v2751 = vlaneseq
    %v2752 = vshrl.u32 %v2751, 7
    %v2753 = vsub.s32 %v2750, %v2752
    %v2754 = vrot.slane %v2654, %v2753
    %v2755 = vadd.s32 %v2750, 4294967288
    %v2756 = vlaneseq
    %v2757 = vshrl.u32 %v2756, 7
    %v2758 = vsub.s32 %v2755, %v2757
    %v2759 = vrot.slane %v2657, %v2758
    %vm2760 = vcmask 130112
    %v2761 = vsel %vm2760, %v2759, %v2754
    %vm2762 = vcmask 1042434
    %v2763 = vsel %vm2762, %v2761, %v2761
    %vm2764 = vcmask 1043459
    %v2765 = vsel %vm2764, %v2761, %v2763
    %vm2766 = vcmask 1044484
    %v2767 = vsel %vm2766, %v2761, %v2765
    %vm2768 = vcmask 1045509
    %v2769 = vsel %vm2768, %v2761, %v2767
    %vm2770 = vcmask 1046534
    %v2771 = vsel %vm2770, %v2761, %v2769
    %vm2772 = vcmask 1047559
    %v2773 = vsel %vm2772, %v2761, %v2771
    %v2775 = vadd.f32 %v2745, %v2773
    %v2776 = vadd.f32 %v2746, %v2773
    %v2777 = vsel %vm514, %v2775, inf
    %2778 = vmin.xlane.f32.xlu0 %v2777
    %v2779 = vpop.xlane.xlu0 %2778
    %v2780 = vsel %vm514, %v2776, inf
    %2781 = vmin.xlane.f32.xlu0 %v2780
    %v2782 = vpop.xlane.xlu0 %2781
    %vm2783 = vcmp.le.f32.partialorder %v2775, %v2779
    %vm2784 = vcmp.le.f32.partialorder %v2776, %v2782
    %v2785 = vsel %vm2783, %v2750, 15
    %v2786 = vsel %vm2784, %v2750, 15
    %v2787 = vsel %vm514, %v2785, 2147483647
    %v2788 = vand.u32 %v2787, 65535
    %v2789 = vshra.s32 %v2787, 16
    %v2790 = vcvt.s32.f32 %v2788
    %v2791 = vcvt.s32.f32 %v2789
    %2792 = vmin.xlane.f32.xlu0 %v2791
    %v2793 = vpop.xlane.xlu0 %2792
    %vm2794 = vcmp.eq.f32.partialorder %v2791, %v2793
    %v2795 = vsel %vm2794, %v2790, inf
    %2796 = vmin.xlane.f32.xlu0 %v2795
    %v2797 = vpop.xlane.xlu0 %2796
    %v2798 = vcvt.f32.s32 %v2797
    %v2799 = vcvt.f32.s32 %v2793
    %v2800 = vshll.u32 %v2799, 16
    %v2801 = vadd.s32 %v2800, %v2798
    %v2802 = vsel %vm514, %v2786, 2147483647
    %v2803 = vand.u32 %v2802, 65535
    %v2804 = vshra.s32 %v2802, 16
    %v2805 = vcvt.s32.f32 %v2803
    %v2806 = vcvt.s32.f32 %v2804
    %2807 = vmin.xlane.f32.xlu0 %v2806
    %v2808 = vpop.xlane.xlu0 %2807
    %vm2809 = vcmp.eq.f32.partialorder %v2806, %v2808
    %v2810 = vsel %vm2809, %v2805, inf
    %2811 = vmin.xlane.f32.xlu0 %v2810
    %v2812 = vpop.xlane.xlu0 %2811
    %v2813 = vcvt.f32.s32 %v2812
    %v2814 = vcvt.f32.s32 %v2808
    %v2815 = vshll.u32 %v2814, 16
    %v2816 = vadd.s32 %v2815, %v2813
    %vm2817 = vcmp.eq.s32.totalorder %v2750, %v2801
    %vm2818 = vcmp.eq.s32.totalorder %v2750, %v2816
    %v2819 = vsel %vm2817, 1, 0
    %v2820 = vsel %vm2818, 1, 0
    %v2821 = vcvt.s32.f32 %v2819
    %v2822 = vcvt.s32.f32 %v2820
    %v2824 = vsel %vm514, %v2821, 0
    %v2827 = vsel %vm514, %v2822, 0
    %2829 = vmatprep.subr.mxu0 0.0
    %2830 = vmatpush1.msra.mxu0 %v2632
    %2831 = vmatprep.subr.mxu0 0.0
    %2832 = vmatpush1.msra.mxu0 %v2633
    %2833 = vmatprep.subr.mxu0 0.0
    %2834 = vmatpush1.msra.mxu0 0.0
    %2835 = vmatprep.subr.mxu0 0.0
    %2836 = vmatpush1.msra.mxu0 0.0
    %2837 = vmatprep.subr.mxu0 0.0
    %2838 = vmatpush1.msra.mxu0 0.0
    %2839 = vmatprep.subr.mxu0 0.0
    %2840 = vmatpush1.msra.mxu0 0.0
    %2841 = vmatprep.subr.mxu0 0.0
    %2842 = vmatpush1.msra.mxu0 0.0
    %2843 = vmatprep.subr.mxu0 0.0
    %2844 = vmatpush1.msra.mxu0 0.0
    %2845 = vmatprep.subr.mxu0 0.0
    %2846 = vmatpush1.msra.mxu0 0.0
    %2847 = vmatprep.subr.mxu0 0.0
    %2848 = vmatpush1.msra.mxu0 0.0
    %2849 = vmatprep.subr.mxu0 0.0
    %2850 = vmatpush1.msra.mxu0 0.0
    %2851 = vmatprep.subr.mxu0 0.0
    %2852 = vmatpush1.msra.mxu0 0.0
    %2853 = vmatprep.subr.mxu0 0.0
    %2854 = vmatpush1.msra.mxu0 0.0
    %2855 = vmatprep.subr.mxu0 0.0
    %2856 = vmatpush1.msra.mxu0 0.0
    %2857 = vmatprep.subr.mxu0 0.0
    %2858 = vmatpush1.msra.mxu0 0.0
    %2859 = vmatprep.subr.mxu0 0.0
    %2860 = vmatpush1.msra.mxu0 0.0
    %2861 = vmatprep.subr.mxu0 0.0
    %2862 = vmatpush1.msra.mxu0 0.0
    %2863 = vmatprep.subr.mxu0 0.0
    %2864 = vmatpush1.msra.mxu0 0.0
    %2865 = vmatprep.subr.mxu0 0.0
    %2866 = vmatpush1.msra.mxu0 0.0
    %2867 = vmatprep.subr.mxu0 0.0
    %2868 = vmatpush1.msra.mxu0 0.0
    %2869 = vmatprep.subr.mxu0 0.0
    %2870 = vmatpush1.msra.mxu0 0.0
    %2871 = vmatprep.subr.mxu0 0.0
    %2872 = vmatpush1.msra.mxu0 0.0
    %2873 = vmatprep.subr.mxu0 0.0
    %2874 = vmatpush1.msra.mxu0 0.0
    %2875 = vmatprep.subr.mxu0 0.0
    %2876 = vmatpush1.msra.mxu0 0.0
    %2877 = vmatprep.subr.mxu0 0.0
    %2878 = vmatpush1.msra.mxu0 0.0
    %2879 = vmatprep.subr.mxu0 0.0
    %2880 = vmatpush1.msra.mxu0 0.0
    %2881 = vmatprep.subr.mxu0 0.0
    %2882 = vmatpush1.msra.mxu0 0.0
    %2883 = vmatprep.subr.mxu0 0.0
    %2884 = vmatpush1.msra.mxu0 0.0
    %2885 = vmatprep.subr.mxu0 0.0
    %2886 = vmatpush1.msra.mxu0 0.0
    %2887 = vmatprep.subr.mxu0 0.0
    %2888 = vmatpush1.msra.mxu0 0.0
    %2889 = vmatprep.subr.mxu0 0.0
    %2890 = vmatpush1.msra.mxu0 0.0
    %2891 = vmatprep.subr.mxu0 0.0
    %2892 = vmatpush1.msra.mxu0 0.0
    %2893 = vmatprep.mubr.f32.mxu0 0.0
    %2894 = vmatmul.mubr.f32.gmra.mrb[0].mxu0 %v2824
    %v2895 = vpop.f32.mrb[0].mxu0
    %v2896 = vadd.f32 0.0, %v2895
    %v2897 = vpop.f32.mrb[0].mxu0
    %2898 = vmatprep.mubr.f32.mxu0 0.0
    %2899 = vmatmul.mubr.f32.gmra.mrb[0].mxu0 %v2827
    %v2900 = vpop.f32.mrb[0].mxu0
    %v2901 = vadd.f32 0.0, %v2900
    %v2902 = vpop.f32.mrb[0].mxu0
    %2903 = vdwg.mxu0
    %2906 = vrot.lane.b32.xlu0 %v2896, 32
    %v2907 = vpop.permute.xlu0 %2906
    %2908 = vrot.lane.b32.xlu0 %v2901, 32
    %v2909 = vpop.permute.xlu0 %2908
    %v2912 = vsub.f32 %v2618, %v2907
    %v2913 = vsub.f32 %v2619, %v2909
    %v2914 = vmul.f32 %v2912, %v2912
    %v2915 = vmul.f32 %v2913, %v2913
    %2918 = vrot.lane.b32.xlu0 %v2914, 96
    %v2919 = vpop.permute.xlu0 %2918
    %2920 = vrot.lane.b32.xlu0 %v2915, 96
    %v2921 = vpop.permute.xlu0 %2920
    %v2924 = vsel %vm47, %v2919, 0.0
    %2925 = vadd.xlane.f32.xlu0 %v2924
    %v2926 = vpop.xlane.xlu0 %2925
    %v2927 = vsel %vm47, %v2921, 0.0
    %2928 = vadd.xlane.f32.xlu0 %v2927
    %v2929 = vpop.xlane.xlu0 %2928
    %v2930 = vmul.f32 %v2926, %v60
    %v2931 = vmul.f32 %v2929, %v60
    %v2934 = vlaneseq
    %v2935 = vshrl.u32 %v2934, 7
    %v2936 = vsub.s32 %v2750, %v2935
    %v2937 = vrot.slane %v2930, %v2936
    %v2938 = vlaneseq
    %v2939 = vshrl.u32 %v2938, 7
    %v2940 = vsub.s32 %v2755, %v2939
    %v2941 = vrot.slane %v2931, %v2940
    %v2942 = vsel %vm2760, %v2941, %v2937
    %vm2944 = vcmask 122880
    %2945 = vst.msk [vmem:[#allocation9] sm:$0x1] %vm2944, %v2942
    %v2946 = vlaneseq
    %v2947 = vshrl.u32 %v2946, 7
    %v2948 = vsub.s32 %v2750, %v2947
    %v2949 = vrot.slane %v2801, %v2948
    %v2950 = vlaneseq
    %v2951 = vshrl.u32 %v2950, 7
    %v2952 = vsub.s32 %v2755, %v2951
    %v2953 = vrot.slane %v2816, %v2952
    %v2954 = vsel %vm2760, %v2953, %v2949
    %2955 = vst.msk [vmem:[#allocation7] sm:$0x1] %vm2944, %v2954
    %v2956 = vld [vmem:[%s5 + $0x3] sm:$0xff]
    %v2957 = vld [vmem:[%s5 + $0xb] sm:$0xff]
    %2958 = vmatprep.subr.mxu0 0.0
    %2959 = vmatpush1.msra.mxu0 %v2956
    %2960 = vmatprep.subr.mxu0 0.0
    %2961 = vmatpush1.msra.mxu0 %v2957
    %2962 = vmatprep.subr.mxu0 0.0
    %2963 = vmatpush1.msra.mxu0 0.0
    %2964 = vmatprep.subr.mxu0 0.0
    %2965 = vmatpush1.msra.mxu0 0.0
    %2966 = vmatprep.subr.mxu0 0.0
    %2967 = vmatpush1.msra.mxu0 0.0
    %2968 = vmatprep.subr.mxu0 0.0
    %2969 = vmatpush1.msra.mxu0 0.0
    %2970 = vmatprep.subr.mxu0 0.0
    %2971 = vmatpush1.msra.mxu0 0.0
    %2972 = vmatprep.subr.mxu0 0.0
    %2973 = vmatpush1.msra.mxu0 0.0
    %2974 = vmatprep.subr.mxu0 0.0
    %2975 = vmatpush1.msra.mxu0 0.0
    %2976 = vmatprep.subr.mxu0 0.0
    %2977 = vmatpush1.msra.mxu0 0.0
    %2978 = vmatprep.subr.mxu0 0.0
    %2979 = vmatpush1.msra.mxu0 0.0
    %2980 = vmatprep.subr.mxu0 0.0
    %2981 = vmatpush1.msra.mxu0 0.0
    %2982 = vmatprep.subr.mxu0 0.0
    %2983 = vmatpush1.msra.mxu0 0.0
    %2984 = vmatprep.subr.mxu0 0.0
    %2985 = vmatpush1.msra.mxu0 0.0
    %2986 = vmatprep.subr.mxu0 0.0
    %2987 = vmatpush1.msra.mxu0 0.0
    %2988 = vmatprep.subr.mxu0 0.0
    %2989 = vmatpush1.msra.mxu0 0.0
    %2990 = vmatprep.subr.mxu0 0.0
    %2991 = vmatpush1.msra.mxu0 0.0
    %2992 = vmatprep.subr.mxu0 0.0
    %2993 = vmatpush1.msra.mxu0 0.0
    %2994 = vmatprep.subr.mxu0 0.0
    %2995 = vmatpush1.msra.mxu0 0.0
    %2996 = vmatprep.subr.mxu0 0.0
    %2997 = vmatpush1.msra.mxu0 0.0
    %2998 = vmatprep.subr.mxu0 0.0
    %2999 = vmatpush1.msra.mxu0 0.0
    %3000 = vmatprep.subr.mxu0 0.0
    %3001 = vmatpush1.msra.mxu0 0.0
    %3002 = vmatprep.subr.mxu0 0.0
    %3003 = vmatpush1.msra.mxu0 0.0
    %3004 = vmatprep.subr.mxu0 0.0
    %3005 = vmatpush1.msra.mxu0 0.0
    %3006 = vmatprep.subr.mxu0 0.0
    %3007 = vmatpush1.msra.mxu0 0.0
    %3008 = vmatprep.subr.mxu0 0.0
    %3009 = vmatpush1.msra.mxu0 0.0
    %3010 = vmatprep.subr.mxu0 0.0
    %3011 = vmatpush1.msra.mxu0 0.0
    %3012 = vmatprep.subr.mxu0 0.0
    %3013 = vmatpush1.msra.mxu0 0.0
    %3014 = vmatprep.subr.mxu0 0.0
    %3015 = vmatpush1.msra.mxu0 0.0
    %3016 = vmatprep.subr.mxu0 0.0
    %3017 = vmatpush1.msra.mxu0 0.0
    %3018 = vmatprep.subr.mxu0 0.0
    %3019 = vmatpush1.msra.mxu0 0.0
    %3020 = vmatprep.subr.mxu0 0.0
    %3021 = vmatpush1.msra.mxu0 0.0
    %3022 = vmatprep.mubr.f32.mxu0 0.0
    %3023 = vmatmul.mubr.f32.gmra.mrb[0].mxu0 %v2824
    %v3024 = vpop.f32.mrb[0].mxu0
    %v3025 = vadd.f32 0.0, %v3024
    %v3026 = vpop.f32.mrb[0].mxu0
    %3027 = vmatprep.mubr.f32.mxu0 0.0
    %3028 = vmatmul.mubr.f32.gmra.mrb[0].mxu0 %v2827
    %v3029 = vpop.f32.mrb[0].mxu0
    %v3030 = vadd.f32 0.0, %v3029
    %v3031 = vpop.f32.mrb[0].mxu0
    %3032 = vdwg.mxu0
    %v3033 = vld [vmem:[#allocation4] sm:$0xff]
    %v3034 = vld [vmem:[#allocation4 + $0x8] sm:$0xff]
    %3035 = vxpose.xlu0.b32.start [1/16] %v3033, 128
    %3036 = vxpose.xlu0.b32.cont [2/16] 0.0, 128
    %3037 = vxpose.xlu0.b32.cont [3/16] 0.0, 128
    %3038 = vxpose.xlu0.b32.cont [4/16] 0.0, 128
    %3039 = vxpose.xlu0.b32.cont [5/16] 0.0, 128
    %3040 = vxpose.xlu0.b32.cont [6/16] 0.0, 128
    %3041 = vxpose.xlu0.b32.cont [7/16] 0.0, 128
    %3042 = vxpose.xlu0.b32.cont [8/16] 0.0, 128
    %3043 = vxpose.xlu0.b32.cont [9/16] 0.0, 128
    %3044 = vxpose.xlu0.b32.cont [10/16] 0.0, 128
    %3045 = vxpose.xlu0.b32.cont [11/16] 0.0, 128
    %3046 = vxpose.xlu0.b32.cont [12/16] 0.0, 128
    %3047 = vxpose.xlu0.b32.cont [13/16] 0.0, 128
    %3048 = vxpose.xlu0.b32.cont [14/16] 0.0, 128
    %3049 = vxpose.xlu0.b32.cont [15/16] 0.0, 128
    %3050 = vxpose.xlu0.b32.end [16/16] 0.0, 128
    %v3051 = vpop.trf.xlu0
    %v3052 = vpop.trf.xlu0
    %v3053 = vpop.trf.xlu0
    %v3054 = vpop.trf.xlu0
    %v3055 = vpop.trf.xlu0
    %v3056 = vpop.trf.xlu0
    %v3057 = vpop.trf.xlu0
    %v3058 = vpop.trf.xlu0
    %v3059 = vpop.trf.xlu0
    %v3060 = vpop.trf.xlu0
    %v3061 = vpop.trf.xlu0
    %v3062 = vpop.trf.xlu0
    %v3063 = vpop.trf.xlu0
    %v3064 = vpop.trf.xlu0
    %v3065 = vpop.trf.xlu0
    %v3066 = vpop.trf.xlu0
    %vm3067 = vcmask 64512
    %v3069 = vsel %vm3067, %v3051, 0
    %v3072 = vsel %vm3067, %v3052, 0
    %3074 = vmatprep.subr.mxu0 0.0
    %3075 = vmatpush1.msra.mxu0 %v3025
    %3076 = vmatprep.subr.mxu0 0.0
    %3077 = vmatpush1.msra.mxu0 0.0
    %3078 = vmatprep.subr.mxu0 0.0
    %3079 = vmatpush1.msra.mxu0 0.0
    %3080 = vmatprep.subr.mxu0 0.0
    %3081 = vmatpush1.msra.mxu0 0.0
    %3082 = vmatprep.subr.mxu0 0.0
    %3083 = vmatpush1.msra.mxu0 0.0
    %3084 = vmatprep.subr.mxu0 0.0
    %3085 = vmatpush1.msra.mxu0 0.0
    %3086 = vmatprep.subr.mxu0 0.0
    %3087 = vmatpush1.msra.mxu0 0.0
    %3088 = vmatprep.subr.mxu0 0.0
    %3089 = vmatpush1.msra.mxu0 0.0
    %3090 = vmatprep.subr.mxu0 0.0
    %3091 = vmatpush1.msra.mxu0 0.0
    %3092 = vmatprep.subr.mxu0 0.0
    %3093 = vmatpush1.msra.mxu0 0.0
    %3094 = vmatprep.subr.mxu0 0.0
    %3095 = vmatpush1.msra.mxu0 0.0
    %3096 = vmatprep.subr.mxu0 0.0
    %3097 = vmatpush1.msra.mxu0 0.0
    %3098 = vmatprep.subr.mxu0 0.0
    %3099 = vmatpush1.msra.mxu0 0.0
    %3100 = vmatprep.subr.mxu0 0.0
    %3101 = vmatpush1.msra.mxu0 0.0
    %3102 = vmatprep.subr.mxu0 0.0
    %3103 = vmatpush1.msra.mxu0 0.0
    %3104 = vmatprep.subr.mxu0 0.0
    %3105 = vmatpush1.msra.mxu0 0.0
    %3106 = vmatprep.subr.mxu0 0.0
    %3107 = vmatpush1.msra.mxu0 0.0
    %3108 = vmatprep.subr.mxu0 0.0
    %3109 = vmatpush1.msra.mxu0 0.0
    %3110 = vmatprep.subr.mxu0 0.0
    %3111 = vmatpush1.msra.mxu0 0.0
    %3112 = vmatprep.subr.mxu0 0.0
    %3113 = vmatpush1.msra.mxu0 0.0
    %3114 = vmatprep.subr.mxu0 0.0
    %3115 = vmatpush1.msra.mxu0 0.0
    %3116 = vmatprep.subr.mxu0 0.0
    %3117 = vmatpush1.msra.mxu0 0.0
    %3118 = vmatprep.subr.mxu0 0.0
    %3119 = vmatpush1.msra.mxu0 0.0
    %3120 = vmatprep.subr.mxu0 0.0
    %3121 = vmatpush1.msra.mxu0 0.0
    %3122 = vmatprep.subr.mxu0 0.0
    %3123 = vmatpush1.msra.mxu0 0.0
    %3124 = vmatprep.subr.mxu0 0.0
    %3125 = vmatpush1.msra.mxu0 0.0
    %3126 = vmatprep.subr.mxu0 0.0
    %3127 = vmatpush1.msra.mxu0 0.0
    %3128 = vmatprep.subr.mxu0 0.0
    %3129 = vmatpush1.msra.mxu0 0.0
    %3130 = vmatprep.subr.mxu0 0.0
    %3131 = vmatpush1.msra.mxu0 0.0
    %3132 = vmatprep.subr.mxu0 0.0
    %3133 = vmatpush1.msra.mxu0 0.0
    %3134 = vmatprep.subr.mxu0 0.0
    %3135 = vmatpush1.msra.mxu0 0.0
    %3136 = vmatprep.subr.mxu0 0.0
    %3137 = vmatpush1.msra.mxu0 0.0
    %3138 = vmatprep.mubr.f32.mxu0 0.0
    %3139 = vmatmul.mubr.f32.gmra.mrb[0].mxu0 %v3069
    %v3140 = vpop.f32.mrb[0].mxu0
    %v3141 = vadd.f32 0.0, %v3140
    %v3142 = vpop.f32.mrb[0].mxu0
    %3143 = vmatprep.mubr.f32.mxu0 0.0
    %3144 = vmatmul.mubr.f32.gmra.mrb[0].mxu0 %v3072
    %v3145 = vpop.f32.mrb[0].mxu0
    %v3146 = vadd.f32 0.0, %v3145
    %v3147 = vpop.f32.mrb[0].mxu0
    %3148 = vdwg.mxu0
    %3149 = vxpose.xlu0.b32.start [1/16] %v3034, 128
    %3150 = vxpose.xlu0.b32.cont [2/16] 0.0, 128
    %3151 = vxpose.xlu0.b32.cont [3/16] 0.0, 128
    %3152 = vxpose.xlu0.b32.cont [4/16] 0.0, 128
    %3153 = vxpose.xlu0.b32.cont [5/16] 0.0, 128
    %3154 = vxpose.xlu0.b32.cont [6/16] 0.0, 128
    %3155 = vxpose.xlu0.b32.cont [7/16] 0.0, 128
    %3156 = vxpose.xlu0.b32.cont [8/16] 0.0, 128
    %3157 = vxpose.xlu0.b32.cont [9/16] 0.0, 128
    %3158 = vxpose.xlu0.b32.cont [10/16] 0.0, 128
    %3159 = vxpose.xlu0.b32.cont [11/16] 0.0, 128
    %3160 = vxpose.xlu0.b32.cont [12/16] 0.0, 128
    %3161 = vxpose.xlu0.b32.cont [13/16] 0.0, 128
    %3162 = vxpose.xlu0.b32.cont [14/16] 0.0, 128
    %3163 = vxpose.xlu0.b32.cont [15/16] 0.0, 128
    %3164 = vxpose.xlu0.b32.end [16/16] 0.0, 128
    %v3165 = vpop.trf.xlu0
    %v3166 = vpop.trf.xlu0
    %v3167 = vpop.trf.xlu0
    %v3168 = vpop.trf.xlu0
    %v3169 = vpop.trf.xlu0
    %v3170 = vpop.trf.xlu0
    %v3171 = vpop.trf.xlu0
    %v3172 = vpop.trf.xlu0
    %v3173 = vpop.trf.xlu0
    %v3174 = vpop.trf.xlu0
    %v3175 = vpop.trf.xlu0
    %v3176 = vpop.trf.xlu0
    %v3177 = vpop.trf.xlu0
    %v3178 = vpop.trf.xlu0
    %v3179 = vpop.trf.xlu0
    %v3180 = vpop.trf.xlu0
    %v3182 = vsel %vm3067, %v3165, 0
    %v3185 = vsel %vm3067, %v3166, 0
    %3187 = vmatprep.subr.mxu0 0.0
    %3188 = vmatpush1.msra.mxu0 %v3030
    %3189 = vmatprep.subr.mxu0 0.0
    %3190 = vmatpush1.msra.mxu0 0.0
    %3191 = vmatprep.subr.mxu0 0.0
    %3192 = vmatpush1.msra.mxu0 0.0
    %3193 = vmatprep.subr.mxu0 0.0
    %3194 = vmatpush1.msra.mxu0 0.0
    %3195 = vmatprep.subr.mxu0 0.0
    %3196 = vmatpush1.msra.mxu0 0.0
    %3197 = vmatprep.subr.mxu0 0.0
    %3198 = vmatpush1.msra.mxu0 0.0
    %3199 = vmatprep.subr.mxu0 0.0
    %3200 = vmatpush1.msra.mxu0 0.0
    %3201 = vmatprep.subr.mxu0 0.0
    %3202 = vmatpush1.msra.mxu0 0.0
    %3203 = vmatprep.subr.mxu0 0.0
    %3204 = vmatpush1.msra.mxu0 0.0
    %3205 = vmatprep.subr.mxu0 0.0
    %3206 = vmatpush1.msra.mxu0 0.0
    %3207 = vmatprep.subr.mxu0 0.0
    %3208 = vmatpush1.msra.mxu0 0.0
    %3209 = vmatprep.subr.mxu0 0.0
    %3210 = vmatpush1.msra.mxu0 0.0
    %3211 = vmatprep.subr.mxu0 0.0
    %3212 = vmatpush1.msra.mxu0 0.0
    %3213 = vmatprep.subr.mxu0 0.0
    %3214 = vmatpush1.msra.mxu0 0.0
    %3215 = vmatprep.subr.mxu0 0.0
    %3216 = vmatpush1.msra.mxu0 0.0
    %3217 = vmatprep.subr.mxu0 0.0
    %3218 = vmatpush1.msra.mxu0 0.0
    %3219 = vmatprep.subr.mxu0 0.0
    %3220 = vmatpush1.msra.mxu0 0.0
    %3221 = vmatprep.subr.mxu0 0.0
    %3222 = vmatpush1.msra.mxu0 0.0
    %3223 = vmatprep.subr.mxu0 0.0
    %3224 = vmatpush1.msra.mxu0 0.0
    %3225 = vmatprep.subr.mxu0 0.0
    %3226 = vmatpush1.msra.mxu0 0.0
    %3227 = vmatprep.subr.mxu0 0.0
    %3228 = vmatpush1.msra.mxu0 0.0
    %3229 = vmatprep.subr.mxu0 0.0
    %3230 = vmatpush1.msra.mxu0 0.0
    %3231 = vmatprep.subr.mxu0 0.0
    %3232 = vmatpush1.msra.mxu0 0.0
    %3233 = vmatprep.subr.mxu0 0.0
    %3234 = vmatpush1.msra.mxu0 0.0
    %3235 = vmatprep.subr.mxu0 0.0
    %3236 = vmatpush1.msra.mxu0 0.0
    %3237 = vmatprep.subr.mxu0 0.0
    %3238 = vmatpush1.msra.mxu0 0.0
    %3239 = vmatprep.subr.mxu0 0.0
    %3240 = vmatpush1.msra.mxu0 0.0
    %3241 = vmatprep.subr.mxu0 0.0
    %3242 = vmatpush1.msra.mxu0 0.0
    %3243 = vmatprep.subr.mxu0 0.0
    %3244 = vmatpush1.msra.mxu0 0.0
    %3245 = vmatprep.subr.mxu0 0.0
    %3246 = vmatpush1.msra.mxu0 0.0
    %3247 = vmatprep.subr.mxu0 0.0
    %3248 = vmatpush1.msra.mxu0 0.0
    %3249 = vmatprep.subr.mxu0 0.0
    %3250 = vmatpush1.msra.mxu0 0.0
    %3251 = vmatprep.mubr.f32.mxu0 0.0
    %3252 = vmatmul.mubr.f32.gmra.mrb[0].mxu0 %v3182
    %v3253 = vpop.f32.mrb[0].mxu0
    %v3254 = vadd.f32 0.0, %v3253
    %v3255 = vpop.f32.mrb[0].mxu0
    %3256 = vmatprep.mubr.f32.mxu0 0.0
    %3257 = vmatmul.mubr.f32.gmra.mrb[0].mxu0 %v3185
    %v3258 = vpop.f32.mrb[0].mxu0
    %v3259 = vadd.f32 0.0, %v3258
    %v3260 = vpop.f32.mrb[0].mxu0
    %3261 = vdwg.mxu0
    %v3262 = vld [vmem:[%s0] sm:$0xff]
    %v3263 = vld [vmem:[%s0 + $0x8] sm:$0xff]
    %v3264 = vld [vmem:[%s0 + $0x10] sm:$0xff]
    %v3265 = vld [vmem:[%s0 + $0x18] sm:$0xff]
    %v3266 = vmul.f32 %v3141, 0.5
    %v3267 = vmul.f32 %v3146, 0.5
    %v3268 = vmul.f32 %v3254, 0.5
    %v3269 = vmul.f32 %v3259, 0.5
    %v3270 = vadd.f32 %v3262, %v3266
    %v3271 = vadd.f32 %v3263, %v3267
    %v3272 = vadd.f32 %v3264, %v3268
    %v3273 = vadd.f32 %v3265, %v3269
    %3274 = vst.msk [vmem:[#allocation6] sm:$0xff] %vm47, %v3141
    %3275 = vst.msk [vmem:[#allocation6 + $0x8] sm:$0xff] %vm47, %v3146
    %3276 = vst.msk [vmem:[#allocation6 + $0x10] sm:$0xff] %vm47, %v3254
    %3277 = vst.msk [vmem:[#allocation6 + $0x18] sm:$0xff] %vm47, %v3259
    %s3278 = scalar_lea.vmem [#allocation6], 32
    %3279 = vst.msk [vmem:[%s3278] sm:$0xff] %vm47, %v3270
    %3280 = vst.msk [vmem:[%s3278 + $0x8] sm:$0xff] %vm47, %v3271
    %3281 = vst.msk [vmem:[%s3278 + $0x10] sm:$0xff] %vm47, %v3272
    %3282 = vst.msk [vmem:[%s3278 + $0x18] sm:$0xff] %vm47, %v3273
    %v3283 = vld [vmem:[%s5] sm:$0x1]
    %v3284 = vld [vmem:[%s5 + $0x1] sm:$0x1]
    %v3285 = vsel %vm47, %v3270, 0.0
    %3286 = vadd.xlane.f32.xlu0 %v3285
    %v3287 = vpop.xlane.xlu0 %3286
    %v3288 = vsel %vm47, %v3271, 0.0
    %3289 = vadd.xlane.f32.xlu0 %v3288
    %v3290 = vpop.xlane.xlu0 %3289
    %v3291 = vsel %vm47, %v3272, 0.0
    %3292 = vadd.xlane.f32.xlu0 %v3291
    %v3293 = vpop.xlane.xlu0 %3292
    %v3294 = vsel %vm47, %v3273, 0.0
    %3295 = vadd.xlane.f32.xlu0 %v3294
    %v3296 = vpop.xlane.xlu0 %3295
    %v3297 = vmul.f32 %v3287, %v60
    %v3298 = vmul.f32 %v3290, %v60
    %v3299 = vmul.f32 %v3293, %v60
    %v3300 = vmul.f32 %v3296, %v60
    %v3301 = vsub.f32 %v3270, %v3297
    %v3302 = vsub.f32 %v3271, %v3298
    %v3303 = vsub.f32 %v3272, %v3299
    %v3304 = vsub.f32 %v3273, %v3300
    %v3305 = vmul.f32 %v3301, %v3301
    %v3306 = vmul.f32 %v3302, %v3302
    %v3307 = vmul.f32 %v3303, %v3303
    %v3308 = vmul.f32 %v3304, %v3304
    %v3309 = vsel %vm47, %v3305, 0.0
    %3310 = vadd.xlane.f32.xlu0 %v3309
    %v3311 = vpop.xlane.xlu0 %3310
    %v3312 = vsel %vm47, %v3306, 0.0
    %3313 = vadd.xlane.f32.xlu0 %v3312
    %v3314 = vpop.xlane.xlu0 %3313
    %v3315 = vsel %vm47, %v3307, 0.0
    %3316 = vadd.xlane.f32.xlu0 %v3315
    %v3317 = vpop.xlane.xlu0 %3316
    %v3318 = vsel %vm47, %v3308, 0.0
    %3319 = vadd.xlane.f32.xlu0 %v3318
    %v3320 = vpop.xlane.xlu0 %3319
    %v3321 = vmul.f32 %v3311, %v60
    %v3322 = vmul.f32 %v3314, %v60
    %v3323 = vmul.f32 %v3317, %v60
    %v3324 = vmul.f32 %v3320, %v60
    %v3325 = vadd.f32 %v3321, 1e-05
    %v3326 = vadd.f32 %v3322, 1e-05
    %v3327 = vadd.f32 %v3323, 1e-05
    %v3328 = vadd.f32 %v3324, 1e-05
    %v3329 = vrsqrt.pop %v3325
    %v3330 = vrsqrt.pop %v3326
    %v3331 = vrsqrt.pop %v3327
    %v3332 = vrsqrt.pop %v3328
    %v3333 = vmul.f32 %v3301, %v3329
    %v3334 = vmul.f32 %v3302, %v3330
    %v3335 = vmul.f32 %v3303, %v3331
    %v3336 = vmul.f32 %v3304, %v3332
    %v3337 = vlaneseq
    %v3338 = vshrl.u32 %v3337, 7
    %v3339 = vsub.s32 0, %v3338
    %v3340 = vrot.slane %v3283, %v3339
    %v3341 = vmul.f32 %v3333, %v3340
    %v3342 = vmul.f32 %v3334, %v3340
    %v3343 = vmul.f32 %v3335, %v3340
    %v3344 = vmul.f32 %v3336, %v3340
    %v3345 = vlaneseq
    %v3346 = vshrl.u32 %v3345, 7
    %v3347 = vsub.s32 0, %v3346
    %v3348 = vrot.slane %v3284, %v3347
    %v3349 = vadd.f32 %v3341, %v3348
    %v3350 = vadd.f32 %v3342, %v3348
    %v3351 = vadd.f32 %v3343, %v3348
    %v3352 = vadd.f32 %v3344, %v3348
    %v3353 = vld [vmem:[%s2] sm:$0xff]
    %v3354 = vld [vmem:[%s2 + $0x8] sm:$0xff]
    %v3355 = vld [vmem:[%s2 + $0x10] sm:$0xff]
    %v3356 = vld [vmem:[%s2 + $0x18] sm:$0xff]
    %v3358 = vsel %vm47, %v3349, 0
    %v3361 = vsel %vm47, %v3350, 0
    %v3364 = vsel %vm47, %v3351, 0
    %v3367 = vsel %vm47, %v3352, 0
    %3369 = vmatprep.subr.mxu0 0.0
    %3370 = vmatpush1.msra.mxu0 %v3353
    %3371 = vmatprep.subr.mxu0 0.0
    %3372 = vmatpush1.msra.mxu0 %v3354
    %3373 = vmatprep.subr.mxu0 0.0
    %3374 = vmatpush1.msra.mxu0 %v3355
    %3375 = vmatprep.subr.mxu0 0.0
    %3376 = vmatpush1.msra.mxu0 %v3356
    %3377 = vmatprep.subr.mxu0 0.0
    %3378 = vmatpush1.msra.mxu0 0.0
    %3379 = vmatprep.subr.mxu0 0.0
    %3380 = vmatpush1.msra.mxu0 0.0
    %3381 = vmatprep.subr.mxu0 0.0
    %3382 = vmatpush1.msra.mxu0 0.0
    %3383 = vmatprep.subr.mxu0 0.0
    %3384 = vmatpush1.msra.mxu0 0.0
    %3385 = vmatprep.subr.mxu0 0.0
    %3386 = vmatpush1.msra.mxu0 0.0
    %3387 = vmatprep.subr.mxu0 0.0
    %3388 = vmatpush1.msra.mxu0 0.0
    %3389 = vmatprep.subr.mxu0 0.0
    %3390 = vmatpush1.msra.mxu0 0.0
    %3391 = vmatprep.subr.mxu0 0.0
    %3392 = vmatpush1.msra.mxu0 0.0
    %3393 = vmatprep.subr.mxu0 0.0
    %3394 = vmatpush1.msra.mxu0 0.0
    %3395 = vmatprep.subr.mxu0 0.0
    %3396 = vmatpush1.msra.mxu0 0.0
    %3397 = vmatprep.subr.mxu0 0.0
    %3398 = vmatpush1.msra.mxu0 0.0
    %3399 = vmatprep.subr.mxu0 0.0
    %3400 = vmatpush1.msra.mxu0 0.0
    %3401 = vmatprep.subr.mxu0 0.0
    %3402 = vmatpush1.msra.mxu0 0.0
    %3403 = vmatprep.subr.mxu0 0.0
    %3404 = vmatpush1.msra.mxu0 0.0
    %3405 = vmatprep.subr.mxu0 0.0
    %3406 = vmatpush1.msra.mxu0 0.0
    %3407 = vmatprep.subr.mxu0 0.0
    %3408 = vmatpush1.msra.mxu0 0.0
    %3409 = vmatprep.subr.mxu0 0.0
    %3410 = vmatpush1.msra.mxu0 0.0
    %3411 = vmatprep.subr.mxu0 0.0
    %3412 = vmatpush1.msra.mxu0 0.0
    %3413 = vmatprep.subr.mxu0 0.0
    %3414 = vmatpush1.msra.mxu0 0.0
    %3415 = vmatprep.subr.mxu0 0.0
    %3416 = vmatpush1.msra.mxu0 0.0
    %3417 = vmatprep.subr.mxu0 0.0
    %3418 = vmatpush1.msra.mxu0 0.0
    %3419 = vmatprep.subr.mxu0 0.0
    %3420 = vmatpush1.msra.mxu0 0.0
    %3421 = vmatprep.subr.mxu0 0.0
    %3422 = vmatpush1.msra.mxu0 0.0
    %3423 = vmatprep.subr.mxu0 0.0
    %3424 = vmatpush1.msra.mxu0 0.0
    %3425 = vmatprep.subr.mxu0 0.0
    %3426 = vmatpush1.msra.mxu0 0.0
    %3427 = vmatprep.subr.mxu0 0.0
    %3428 = vmatpush1.msra.mxu0 0.0
    %3429 = vmatprep.subr.mxu0 0.0
    %3430 = vmatpush1.msra.mxu0 0.0
    %3431 = vmatprep.subr.mxu0 0.0
    %3432 = vmatpush1.msra.mxu0 0.0
    %3433 = vmatprep.mubr.f32.mxu0 0.0
    %3434 = vmatmul.mubr.f32.gmra.mrb[0].mxu0 %v3358
    %v3435 = vpop.f32.mrb[0].mxu0
    %v3436 = vadd.f32 0.0, %v3435
    %v3437 = vpop.f32.mrb[0].mxu0
    %3438 = vmatprep.mubr.f32.mxu0 0.0
    %3439 = vmatmul.mubr.f32.gmra.mrb[0].mxu0 %v3361
    %v3440 = vpop.f32.mrb[0].mxu0
    %v3441 = vadd.f32 0.0, %v3440
    %v3442 = vpop.f32.mrb[0].mxu0
    %3443 = vmatprep.mubr.f32.mxu0 0.0
    %3444 = vmatmul.mubr.f32.gmra.mrb[0].mxu0 %v3364
    %v3445 = vpop.f32.mrb[0].mxu0
    %v3446 = vadd.f32 0.0, %v3445
    %v3447 = vpop.f32.mrb[0].mxu0
    %3448 = vmatprep.mubr.f32.mxu0 0.0
    %3449 = vmatmul.mubr.f32.gmra.mrb[0].mxu0 %v3367
    %v3450 = vpop.f32.mrb[0].mxu0
    %v3451 = vadd.f32 0.0, %v3450
    %v3452 = vpop.f32.mrb[0].mxu0
    %3453 = vdwg.mxu0
    %v3454 = vld [vmem:[%s2 + $0x20] sm:$0xff]
    %v3455 = vld [vmem:[%s2 + $0x28] sm:$0xff]
    %v3456 = vld [vmem:[%s2 + $0x30] sm:$0xff]
    %v3457 = vld [vmem:[%s2 + $0x38] sm:$0xff]
    %3458 = vmatprep.subr.mxu0 0.0
    %3459 = vmatpush1.msra.mxu0 %v3454
    %3460 = vmatprep.subr.mxu0 0.0
    %3461 = vmatpush1.msra.mxu0 %v3455
    %3462 = vmatprep.subr.mxu0 0.0
    %3463 = vmatpush1.msra.mxu0 %v3456
    %3464 = vmatprep.subr.mxu0 0.0
    %3465 = vmatpush1.msra.mxu0 %v3457
    %3466 = vmatprep.subr.mxu0 0.0
    %3467 = vmatpush1.msra.mxu0 0.0
    %3468 = vmatprep.subr.mxu0 0.0
    %3469 = vmatpush1.msra.mxu0 0.0
    %3470 = vmatprep.subr.mxu0 0.0
    %3471 = vmatpush1.msra.mxu0 0.0
    %3472 = vmatprep.subr.mxu0 0.0
    %3473 = vmatpush1.msra.mxu0 0.0
    %3474 = vmatprep.subr.mxu0 0.0
    %3475 = vmatpush1.msra.mxu0 0.0
    %3476 = vmatprep.subr.mxu0 0.0
    %3477 = vmatpush1.msra.mxu0 0.0
    %3478 = vmatprep.subr.mxu0 0.0
    %3479 = vmatpush1.msra.mxu0 0.0
    %3480 = vmatprep.subr.mxu0 0.0
    %3481 = vmatpush1.msra.mxu0 0.0
    %3482 = vmatprep.subr.mxu0 0.0
    %3483 = vmatpush1.msra.mxu0 0.0
    %3484 = vmatprep.subr.mxu0 0.0
    %3485 = vmatpush1.msra.mxu0 0.0
    %3486 = vmatprep.subr.mxu0 0.0
    %3487 = vmatpush1.msra.mxu0 0.0
    %3488 = vmatprep.subr.mxu0 0.0
    %3489 = vmatpush1.msra.mxu0 0.0
    %3490 = vmatprep.subr.mxu0 0.0
    %3491 = vmatpush1.msra.mxu0 0.0
    %3492 = vmatprep.subr.mxu0 0.0
    %3493 = vmatpush1.msra.mxu0 0.0
    %3494 = vmatprep.subr.mxu0 0.0
    %3495 = vmatpush1.msra.mxu0 0.0
    %3496 = vmatprep.subr.mxu0 0.0
    %3497 = vmatpush1.msra.mxu0 0.0
    %3498 = vmatprep.subr.mxu0 0.0
    %3499 = vmatpush1.msra.mxu0 0.0
    %3500 = vmatprep.subr.mxu0 0.0
    %3501 = vmatpush1.msra.mxu0 0.0
    %3502 = vmatprep.subr.mxu0 0.0
    %3503 = vmatpush1.msra.mxu0 0.0
    %3504 = vmatprep.subr.mxu0 0.0
    %3505 = vmatpush1.msra.mxu0 0.0
    %3506 = vmatprep.subr.mxu0 0.0
    %3507 = vmatpush1.msra.mxu0 0.0
    %3508 = vmatprep.subr.mxu0 0.0
    %3509 = vmatpush1.msra.mxu0 0.0
    %3510 = vmatprep.subr.mxu0 0.0
    %3511 = vmatpush1.msra.mxu0 0.0
    %3512 = vmatprep.subr.mxu0 0.0
    %3513 = vmatpush1.msra.mxu0 0.0
    %3514 = vmatprep.subr.mxu0 0.0
    %3515 = vmatpush1.msra.mxu0 0.0
    %3516 = vmatprep.subr.mxu0 0.0
    %3517 = vmatpush1.msra.mxu0 0.0
    %3518 = vmatprep.subr.mxu0 0.0
    %3519 = vmatpush1.msra.mxu0 0.0
    %3520 = vmatprep.subr.mxu0 0.0
    %3521 = vmatpush1.msra.mxu0 0.0
    %3522 = vmatprep.mubr.f32.mxu0 0.0
    %3523 = vmatmul.mubr.f32.gmra.mrb[0].mxu0 %v3358
    %v3524 = vpop.f32.mrb[0].mxu0
    %v3525 = vadd.f32 0.0, %v3524
    %v3526 = vpop.f32.mrb[0].mxu0
    %3527 = vmatprep.mubr.f32.mxu0 0.0
    %3528 = vmatmul.mubr.f32.gmra.mrb[0].mxu0 %v3361
    %v3529 = vpop.f32.mrb[0].mxu0
    %v3530 = vadd.f32 0.0, %v3529
    %v3531 = vpop.f32.mrb[0].mxu0
    %3532 = vmatprep.mubr.f32.mxu0 0.0
    %3533 = vmatmul.mubr.f32.gmra.mrb[0].mxu0 %v3364
    %v3534 = vpop.f32.mrb[0].mxu0
    %v3535 = vadd.f32 0.0, %v3534
    %v3536 = vpop.f32.mrb[0].mxu0
    %3537 = vmatprep.mubr.f32.mxu0 0.0
    %3538 = vmatmul.mubr.f32.gmra.mrb[0].mxu0 %v3367
    %v3539 = vpop.f32.mrb[0].mxu0
    %v3540 = vadd.f32 0.0, %v3539
    %v3541 = vpop.f32.mrb[0].mxu0
    %3542 = vdwg.mxu0
    %v3543 = vld [vmem:[%s1] sm:$0xff]
    %v3544 = vld [vmem:[%s1 + $0x8] sm:$0xff]
    %v3545 = vld [vmem:[%s4 + $0x42] sm:$0x1]
    %v3546 = vld [vmem:[%s4 + $0x43] sm:$0x1]
    %v3547 = vsel %vm47, %v3543, 0.0
    %3548 = vadd.xlane.f32.xlu0 %v3547
    %v3549 = vpop.xlane.xlu0 %3548
    %v3550 = vsel %vm47, %v3544, 0.0
    %3551 = vadd.xlane.f32.xlu0 %v3550
    %v3552 = vpop.xlane.xlu0 %3551
    %v3553 = vmul.f32 %v3549, %v60
    %v3554 = vmul.f32 %v3552, %v60
    %v3555 = vsub.f32 %v3543, %v3553
    %v3556 = vsub.f32 %v3544, %v3554
    %v3557 = vmul.f32 %v3555, %v3555
    %v3558 = vmul.f32 %v3556, %v3556
    %v3559 = vsel %vm47, %v3557, 0.0
    %3560 = vadd.xlane.f32.xlu0 %v3559
    %v3561 = vpop.xlane.xlu0 %3560
    %v3562 = vsel %vm47, %v3558, 0.0
    %3563 = vadd.xlane.f32.xlu0 %v3562
    %v3564 = vpop.xlane.xlu0 %3563
    %v3565 = vmul.f32 %v3561, %v60
    %v3566 = vmul.f32 %v3564, %v60
    %v3567 = vadd.f32 %v3565, 1e-05
    %v3568 = vadd.f32 %v3566, 1e-05
    %v3569 = vrsqrt.pop %v3567
    %v3570 = vrsqrt.pop %v3568
    %v3571 = vmul.f32 %v3555, %v3569
    %v3572 = vmul.f32 %v3556, %v3570
    %v3573 = vlaneseq
    %v3574 = vshrl.u32 %v3573, 7
    %v3575 = vsub.s32 0, %v3574
    %v3576 = vrot.slane %v3545, %v3575
    %v3577 = vmul.f32 %v3571, %v3576
    %v3578 = vmul.f32 %v3572, %v3576
    %v3579 = vlaneseq
    %v3580 = vshrl.u32 %v3579, 7
    %v3581 = vsub.s32 0, %v3580
    %v3582 = vrot.slane %v3546, %v3581
    %v3583 = vadd.f32 %v3577, %v3582
    %v3584 = vadd.f32 %v3578, %v3582
    %v3585 = vld [vmem:[%s2 + $0x40] sm:$0xff]
    %v3586 = vld [vmem:[%s2 + $0x48] sm:$0xff]
    %v3587 = vld [vmem:[%s2 + $0x50] sm:$0xff]
    %v3588 = vld [vmem:[%s2 + $0x58] sm:$0xff]
    %v3590 = vsel %vm47, %v3583, 0
    %v3593 = vsel %vm47, %v3584, 0
    %3595 = vmatprep.subr.mxu0 0.0
    %3596 = vmatpush1.msra.mxu0 %v3585
    %3597 = vmatprep.subr.mxu0 0.0
    %3598 = vmatpush1.msra.mxu0 %v3586
    %3599 = vmatprep.subr.mxu0 0.0
    %3600 = vmatpush1.msra.mxu0 %v3587
    %3601 = vmatprep.subr.mxu0 0.0
    %3602 = vmatpush1.msra.mxu0 %v3588
    %3603 = vmatprep.subr.mxu0 0.0
    %3604 = vmatpush1.msra.mxu0 0.0
    %3605 = vmatprep.subr.mxu0 0.0
    %3606 = vmatpush1.msra.mxu0 0.0
    %3607 = vmatprep.subr.mxu0 0.0
    %3608 = vmatpush1.msra.mxu0 0.0
    %3609 = vmatprep.subr.mxu0 0.0
    %3610 = vmatpush1.msra.mxu0 0.0
    %3611 = vmatprep.subr.mxu0 0.0
    %3612 = vmatpush1.msra.mxu0 0.0
    %3613 = vmatprep.subr.mxu0 0.0
    %3614 = vmatpush1.msra.mxu0 0.0
    %3615 = vmatprep.subr.mxu0 0.0
    %3616 = vmatpush1.msra.mxu0 0.0
    %3617 = vmatprep.subr.mxu0 0.0
    %3618 = vmatpush1.msra.mxu0 0.0
    %3619 = vmatprep.subr.mxu0 0.0
    %3620 = vmatpush1.msra.mxu0 0.0
    %3621 = vmatprep.subr.mxu0 0.0
    %3622 = vmatpush1.msra.mxu0 0.0
    %3623 = vmatprep.subr.mxu0 0.0
    %3624 = vmatpush1.msra.mxu0 0.0
    %3625 = vmatprep.subr.mxu0 0.0
    %3626 = vmatpush1.msra.mxu0 0.0
    %3627 = vmatprep.subr.mxu0 0.0
    %3628 = vmatpush1.msra.mxu0 0.0
    %3629 = vmatprep.subr.mxu0 0.0
    %3630 = vmatpush1.msra.mxu0 0.0
    %3631 = vmatprep.subr.mxu0 0.0
    %3632 = vmatpush1.msra.mxu0 0.0
    %3633 = vmatprep.subr.mxu0 0.0
    %3634 = vmatpush1.msra.mxu0 0.0
    %3635 = vmatprep.subr.mxu0 0.0
    %3636 = vmatpush1.msra.mxu0 0.0
    %3637 = vmatprep.subr.mxu0 0.0
    %3638 = vmatpush1.msra.mxu0 0.0
    %3639 = vmatprep.subr.mxu0 0.0
    %3640 = vmatpush1.msra.mxu0 0.0
    %3641 = vmatprep.subr.mxu0 0.0
    %3642 = vmatpush1.msra.mxu0 0.0
    %3643 = vmatprep.subr.mxu0 0.0
    %3644 = vmatpush1.msra.mxu0 0.0
    %3645 = vmatprep.subr.mxu0 0.0
    %3646 = vmatpush1.msra.mxu0 0.0
    %3647 = vmatprep.subr.mxu0 0.0
    %3648 = vmatpush1.msra.mxu0 0.0
    %3649 = vmatprep.subr.mxu0 0.0
    %3650 = vmatpush1.msra.mxu0 0.0
    %3651 = vmatprep.subr.mxu0 0.0
    %3652 = vmatpush1.msra.mxu0 0.0
    %3653 = vmatprep.subr.mxu0 0.0
    %3654 = vmatpush1.msra.mxu0 0.0
    %3655 = vmatprep.subr.mxu0 0.0
    %3656 = vmatpush1.msra.mxu0 0.0
    %3657 = vmatprep.subr.mxu0 0.0
    %3658 = vmatpush1.msra.mxu0 0.0
    %3659 = vmatprep.mubr.f32.mxu0 0.0
    %3660 = vmatmul.mubr.f32.gmra.mrb[0].mxu0 %v3590
    %v3661 = vpop.f32.mrb[0].mxu0
    %v3662 = vadd.f32 0.0, %v3661
    %v3663 = vpop.f32.mrb[0].mxu0
    %3664 = vmatprep.mubr.f32.mxu0 0.0
    %3665 = vmatmul.mubr.f32.gmra.mrb[0].mxu0 %v3593
    %v3666 = vpop.f32.mrb[0].mxu0
    %v3667 = vadd.f32 0.0, %v3666
    %v3668 = vpop.f32.mrb[0].mxu0
    %3669 = vdwg.mxu0
    %v3671 = vsel %vm47, %v3662, 0
    %v3674 = vsel %vm47, %v3436, 0
    %v3677 = vsel %vm47, %v3441, 0
    %3679 = vmatprep.subr.mxu0 0.0
    %3680 = vmatpush1.xpose.msra.mxu0 %v3674
    %3681 = vmatprep.subr.mxu0 0.0
    %3682 = vmatpush1.xpose.msra.mxu0 %v3677
    %3683 = vmatprep.subr.mxu0 0.0
    %3684 = vmatpush1.xpose.msra.mxu0 0.0
    %3685 = vmatprep.subr.mxu0 0.0
    %3686 = vmatpush1.xpose.msra.mxu0 0.0
    %3687 = vmatprep.subr.mxu0 0.0
    %3688 = vmatpush1.xpose.msra.mxu0 0.0
    %3689 = vmatprep.subr.mxu0 0.0
    %3690 = vmatpush1.xpose.msra.mxu0 0.0
    %3691 = vmatprep.subr.mxu0 0.0
    %3692 = vmatpush1.xpose.msra.mxu0 0.0
    %3693 = vmatprep.subr.mxu0 0.0
    %3694 = vmatpush1.xpose.msra.mxu0 0.0
    %3695 = vmatprep.subr.mxu0 0.0
    %3696 = vmatpush1.xpose.msra.mxu0 0.0
    %3697 = vmatprep.subr.mxu0 0.0
    %3698 = vmatpush1.xpose.msra.mxu0 0.0
    %3699 = vmatprep.subr.mxu0 0.0
    %3700 = vmatpush1.xpose.msra.mxu0 0.0
    %3701 = vmatprep.subr.mxu0 0.0
    %3702 = vmatpush1.xpose.msra.mxu0 0.0
    %3703 = vmatprep.subr.mxu0 0.0
    %3704 = vmatpush1.xpose.msra.mxu0 0.0
    %3705 = vmatprep.subr.mxu0 0.0
    %3706 = vmatpush1.xpose.msra.mxu0 0.0
    %3707 = vmatprep.subr.mxu0 0.0
    %3708 = vmatpush1.xpose.msra.mxu0 0.0
    %3709 = vmatprep.subr.mxu0 0.0
    %3710 = vmatpush1.xpose.msra.mxu0 0.0
    %3711 = vmatprep.subr.mxu0 0.0
    %3712 = vmatpush1.xpose.msra.mxu0 0.0
    %3713 = vmatprep.subr.mxu0 0.0
    %3714 = vmatpush1.xpose.msra.mxu0 0.0
    %3715 = vmatprep.subr.mxu0 0.0
    %3716 = vmatpush1.xpose.msra.mxu0 0.0
    %3717 = vmatprep.subr.mxu0 0.0
    %3718 = vmatpush1.xpose.msra.mxu0 0.0
    %3719 = vmatprep.subr.mxu0 0.0
    %3720 = vmatpush1.xpose.msra.mxu0 0.0
    %3721 = vmatprep.subr.mxu0 0.0
    %3722 = vmatpush1.xpose.msra.mxu0 0.0
    %3723 = vmatprep.subr.mxu0 0.0
    %3724 = vmatpush1.xpose.msra.mxu0 0.0
    %3725 = vmatprep.subr.mxu0 0.0
    %3726 = vmatpush1.xpose.msra.mxu0 0.0
    %3727 = vmatprep.subr.mxu0 0.0
    %3728 = vmatpush1.xpose.msra.mxu0 0.0
    %3729 = vmatprep.subr.mxu0 0.0
    %3730 = vmatpush1.xpose.msra.mxu0 0.0
    %3731 = vmatprep.subr.mxu0 0.0
    %3732 = vmatpush1.xpose.msra.mxu0 0.0
    %3733 = vmatprep.subr.mxu0 0.0
    %3734 = vmatpush1.xpose.msra.mxu0 0.0
    %3735 = vmatprep.subr.mxu0 0.0
    %3736 = vmatpush1.xpose.msra.mxu0 0.0
    %3737 = vmatprep.subr.mxu0 0.0
    %3738 = vmatpush1.xpose.msra.mxu0 0.0
    %3739 = vmatprep.subr.mxu0 0.0
    %3740 = vmatpush1.xpose.msra.mxu0 0.0
    %3741 = vmatprep.subr.mxu0 0.0
    %3742 = vmatpush1.xpose.msra.mxu0 0.0
    %3743 = vmatprep.mubr.f32.mxu0 0.0
    %3744 = vmatmul.mubr.f32.gmra.mrb[0].mxu0 %v3671
    %v3745 = vpop.f32.mrb[0].mxu0
    %v3746 = vadd.f32 0.0, %v3745
    %v3747 = vpop.f32.mrb[0].mxu0
    %3748 = vdwg.mxu0
    %v3749 = vmul.f32 %v3746, 0.17677669
    %v3750 = vsel %vm514, %v3749, -inf
    %v3751 = vrot.slane %v3750, 4
    %v3752 = vmax.f32 %v3750, %v3751
    %v3753 = vrot.slane %v3752, 2
    %v3754 = vmax.f32 %v3752, %v3753
    %v3755 = vrot.slane %v3754, 1
    %v3756 = vmax.f32 %v3754, %v3755
    %v3757 = vsub.f32 %v3749, %v3756
    %v3758 = vmul.f32 %v3757, 1.442695
    %v3759 = vpow.pop %v3758
    %v3760 = vsel %vm514, %v3759, 0.0
    %v3761 = vrot.slane %v3760, 4
    %v3762 = vadd.f32 %v3760, %v3761
    %v3763 = vrot.slane %v3762, 2
    %v3764 = vadd.f32 %v3762, %v3763
    %v3765 = vrot.slane %v3764, 1
    %v3766 = vadd.f32 %v3764, %v3765
    %v3767 = vrcp.pop %v3766
    %v3768 = vmul.f32 %v3759, %v3767
    %v3769 = vadd.f32 %v3768, 1e-08
    %v3770 = vsel %vm514, %v3769, 0.0
    %3771 = vadd.xlane.f32.xlu0 %v3770
    %v3772 = vpop.xlane.xlu0 %3771
    %v3773 = vrcp.pop %v3772
    %v3774 = vmul.f32 %v3769, %v3773
    %v3776 = vsel %vm514, %v3774, 0
    %3778 = vmatprep.subr.mxu0 0.0
    %3779 = vmatpush1.msra.mxu0 %v3525
    %3780 = vmatprep.subr.mxu0 0.0
    %3781 = vmatpush1.msra.mxu0 %v3530
    %3782 = vmatprep.subr.mxu0 0.0
    %3783 = vmatpush1.msra.mxu0 0.0
    %3784 = vmatprep.subr.mxu0 0.0
    %3785 = vmatpush1.msra.mxu0 0.0
    %3786 = vmatprep.subr.mxu0 0.0
    %3787 = vmatpush1.msra.mxu0 0.0
    %3788 = vmatprep.subr.mxu0 0.0
    %3789 = vmatpush1.msra.mxu0 0.0
    %3790 = vmatprep.subr.mxu0 0.0
    %3791 = vmatpush1.msra.mxu0 0.0
    %3792 = vmatprep.subr.mxu0 0.0
    %3793 = vmatpush1.msra.mxu0 0.0
    %3794 = vmatprep.subr.mxu0 0.0
    %3795 = vmatpush1.msra.mxu0 0.0
    %3796 = vmatprep.subr.mxu0 0.0
    %3797 = vmatpush1.msra.mxu0 0.0
    %3798 = vmatprep.subr.mxu0 0.0
    %3799 = vmatpush1.msra.mxu0 0.0
    %3800 = vmatprep.subr.mxu0 0.0
    %3801 = vmatpush1.msra.mxu0 0.0
    %3802 = vmatprep.subr.mxu0 0.0
    %3803 = vmatpush1.msra.mxu0 0.0
    %3804 = vmatprep.subr.mxu0 0.0
    %3805 = vmatpush1.msra.mxu0 0.0
    %3806 = vmatprep.subr.mxu0 0.0
    %3807 = vmatpush1.msra.mxu0 0.0
    %3808 = vmatprep.subr.mxu0 0.0
    %3809 = vmatpush1.msra.mxu0 0.0
    %3810 = vmatprep.subr.mxu0 0.0
    %3811 = vmatpush1.msra.mxu0 0.0
    %3812 = vmatprep.subr.mxu0 0.0
    %3813 = vmatpush1.msra.mxu0 0.0
    %3814 = vmatprep.subr.mxu0 0.0
    %3815 = vmatpush1.msra.mxu0 0.0
    %3816 = vmatprep.subr.mxu0 0.0
    %3817 = vmatpush1.msra.mxu0 0.0
    %3818 = vmatprep.subr.mxu0 0.0
    %3819 = vmatpush1.msra.mxu0 0.0
    %3820 = vmatprep.subr.mxu0 0.0
    %3821 = vmatpush1.msra.mxu0 0.0
    %3822 = vmatprep.subr.mxu0 0.0
    %3823 = vmatpush1.msra.mxu0 0.0
    %3824 = vmatprep.subr.mxu0 0.0
    %3825 = vmatpush1.msra.mxu0 0.0
    %3826 = vmatprep.subr.mxu0 0.0
    %3827 = vmatpush1.msra.mxu0 0.0
    %3828 = vmatprep.subr.mxu0 0.0
    %3829 = vmatpush1.msra.mxu0 0.0
    %3830 = vmatprep.subr.mxu0 0.0
    %3831 = vmatpush1.msra.mxu0 0.0
    %3832 = vmatprep.subr.mxu0 0.0
    %3833 = vmatpush1.msra.mxu0 0.0
    %3834 = vmatprep.subr.mxu0 0.0
    %3835 = vmatpush1.msra.mxu0 0.0
    %3836 = vmatprep.subr.mxu0 0.0
    %3837 = vmatpush1.msra.mxu0 0.0
    %3838 = vmatprep.subr.mxu0 0.0
    %3839 = vmatpush1.msra.mxu0 0.0
    %3840 = vmatprep.subr.mxu0 0.0
    %3841 = vmatpush1.msra.mxu0 0.0
    %3842 = vmatprep.mubr.f32.mxu0 0.0
    %3843 = vmatmul.mubr.f32.gmra.mrb[0].mxu0 %v3776
    %v3844 = vpop.f32.mrb[0].mxu0
    %v3845 = vadd.f32 0.0, %v3844
    %v3846 = vpop.f32.mrb[0].mxu0
    %3847 = vdwg.mxu0
    %v3849 = vsel %vm47, %v3667, 0
    %v3852 = vsel %vm47, %v3446, 0
    %v3855 = vsel %vm47, %v3451, 0
    %3857 = vmatprep.subr.mxu0 0.0
    %3858 = vmatpush1.xpose.msra.mxu0 %v3852
    %3859 = vmatprep.subr.mxu0 0.0
    %3860 = vmatpush1.xpose.msra.mxu0 %v3855
    %3861 = vmatprep.subr.mxu0 0.0
    %3862 = vmatpush1.xpose.msra.mxu0 0.0
    %3863 = vmatprep.subr.mxu0 0.0
    %3864 = vmatpush1.xpose.msra.mxu0 0.0
    %3865 = vmatprep.subr.mxu0 0.0
    %3866 = vmatpush1.xpose.msra.mxu0 0.0
    %3867 = vmatprep.subr.mxu0 0.0
    %3868 = vmatpush1.xpose.msra.mxu0 0.0
    %3869 = vmatprep.subr.mxu0 0.0
    %3870 = vmatpush1.xpose.msra.mxu0 0.0
    %3871 = vmatprep.subr.mxu0 0.0
    %3872 = vmatpush1.xpose.msra.mxu0 0.0
    %3873 = vmatprep.subr.mxu0 0.0
    %3874 = vmatpush1.xpose.msra.mxu0 0.0
    %3875 = vmatprep.subr.mxu0 0.0
    %3876 = vmatpush1.xpose.msra.mxu0 0.0
    %3877 = vmatprep.subr.mxu0 0.0
    %3878 = vmatpush1.xpose.msra.mxu0 0.0
    %3879 = vmatprep.subr.mxu0 0.0
    %3880 = vmatpush1.xpose.msra.mxu0 0.0
    %3881 = vmatprep.subr.mxu0 0.0
    %3882 = vmatpush1.xpose.msra.mxu0 0.0
    %3883 = vmatprep.subr.mxu0 0.0
    %3884 = vmatpush1.xpose.msra.mxu0 0.0
    %3885 = vmatprep.subr.mxu0 0.0
    %3886 = vmatpush1.xpose.msra.mxu0 0.0
    %3887 = vmatprep.subr.mxu0 0.0
    %3888 = vmatpush1.xpose.msra.mxu0 0.0
    %3889 = vmatprep.subr.mxu0 0.0
    %3890 = vmatpush1.xpose.msra.mxu0 0.0
    %3891 = vmatprep.subr.mxu0 0.0
    %3892 = vmatpush1.xpose.msra.mxu0 0.0
    %3893 = vmatprep.subr.mxu0 0.0
    %3894 = vmatpush1.xpose.msra.mxu0 0.0
    %3895 = vmatprep.subr.mxu0 0.0
    %3896 = vmatpush1.xpose.msra.mxu0 0.0
    %3897 = vmatprep.subr.mxu0 0.0
    %3898 = vmatpush1.xpose.msra.mxu0 0.0
    %3899 = vmatprep.subr.mxu0 0.0
    %3900 = vmatpush1.xpose.msra.mxu0 0.0
    %3901 = vmatprep.subr.mxu0 0.0
    %3902 = vmatpush1.xpose.msra.mxu0 0.0
    %3903 = vmatprep.subr.mxu0 0.0
    %3904 = vmatpush1.xpose.msra.mxu0 0.0
    %3905 = vmatprep.subr.mxu0 0.0
    %3906 = vmatpush1.xpose.msra.mxu0 0.0
    %3907 = vmatprep.subr.mxu0 0.0
    %3908 = vmatpush1.xpose.msra.mxu0 0.0
    %3909 = vmatprep.subr.mxu0 0.0
    %3910 = vmatpush1.xpose.msra.mxu0 0.0
    %3911 = vmatprep.subr.mxu0 0.0
    %3912 = vmatpush1.xpose.msra.mxu0 0.0
    %3913 = vmatprep.subr.mxu0 0.0
    %3914 = vmatpush1.xpose.msra.mxu0 0.0
    %3915 = vmatprep.subr.mxu0 0.0
    %3916 = vmatpush1.xpose.msra.mxu0 0.0
    %3917 = vmatprep.subr.mxu0 0.0
    %3918 = vmatpush1.xpose.msra.mxu0 0.0
    %3919 = vmatprep.subr.mxu0 0.0
    %3920 = vmatpush1.xpose.msra.mxu0 0.0
    %3921 = vmatprep.mubr.f32.mxu0 0.0
    %3922 = vmatmul.mubr.f32.gmra.mrb[0].mxu0 %v3849
    %v3923 = vpop.f32.mrb[0].mxu0
    %v3924 = vadd.f32 0.0, %v3923
    %v3925 = vpop.f32.mrb[0].mxu0
    %3926 = vdwg.mxu0
    %v3927 = vmul.f32 %v3924, 0.17677669
    %v3928 = vsel %vm514, %v3927, -inf
    %v3929 = vrot.slane %v3928, 4
    %v3930 = vmax.f32 %v3928, %v3929
    %v3931 = vrot.slane %v3930, 2
    %v3932 = vmax.f32 %v3930, %v3931
    %v3933 = vrot.slane %v3932, 1
    %v3934 = vmax.f32 %v3932, %v3933
    %v3935 = vsub.f32 %v3927, %v3934
    %v3936 = vmul.f32 %v3935, 1.442695
    %v3937 = vpow.pop %v3936
    %v3938 = vsel %vm514, %v3937, 0.0
    %v3939 = vrot.slane %v3938, 4
    %v3940 = vadd.f32 %v3938, %v3939
    %v3941 = vrot.slane %v3940, 2
    %v3942 = vadd.f32 %v3940, %v3941
    %v3943 = vrot.slane %v3942, 1
    %v3944 = vadd.f32 %v3942, %v3943
    %v3945 = vrcp.pop %v3944
    %v3946 = vmul.f32 %v3937, %v3945
    %v3947 = vadd.f32 %v3946, 1e-08
    %v3948 = vsel %vm514, %v3947, 0.0
    %3949 = vadd.xlane.f32.xlu0 %v3948
    %v3950 = vpop.xlane.xlu0 %3949
    %v3951 = vrcp.pop %v3950
    %v3952 = vmul.f32 %v3947, %v3951
    %v3954 = vsel %vm514, %v3952, 0
    %3956 = vmatprep.subr.mxu0 0.0
    %3957 = vmatpush1.msra.mxu0 %v3535
    %3958 = vmatprep.subr.mxu0 0.0
    %3959 = vmatpush1.msra.mxu0 %v3540
    %3960 = vmatprep.subr.mxu0 0.0
    %3961 = vmatpush1.msra.mxu0 0.0
    %3962 = vmatprep.subr.mxu0 0.0
    %3963 = vmatpush1.msra.mxu0 0.0
    %3964 = vmatprep.subr.mxu0 0.0
    %3965 = vmatpush1.msra.mxu0 0.0
    %3966 = vmatprep.subr.mxu0 0.0
    %3967 = vmatpush1.msra.mxu0 0.0
    %3968 = vmatprep.subr.mxu0 0.0
    %3969 = vmatpush1.msra.mxu0 0.0
    %3970 = vmatprep.subr.mxu0 0.0
    %3971 = vmatpush1.msra.mxu0 0.0
    %3972 = vmatprep.subr.mxu0 0.0
    %3973 = vmatpush1.msra.mxu0 0.0
    %3974 = vmatprep.subr.mxu0 0.0
    %3975 = vmatpush1.msra.mxu0 0.0
    %3976 = vmatprep.subr.mxu0 0.0
    %3977 = vmatpush1.msra.mxu0 0.0
    %3978 = vmatprep.subr.mxu0 0.0
    %3979 = vmatpush1.msra.mxu0 0.0
    %3980 = vmatprep.subr.mxu0 0.0
    %3981 = vmatpush1.msra.mxu0 0.0
    %3982 = vmatprep.subr.mxu0 0.0
    %3983 = vmatpush1.msra.mxu0 0.0
    %3984 = vmatprep.subr.mxu0 0.0
    %3985 = vmatpush1.msra.mxu0 0.0
    %3986 = vmatprep.subr.mxu0 0.0
    %3987 = vmatpush1.msra.mxu0 0.0
    %3988 = vmatprep.subr.mxu0 0.0
    %3989 = vmatpush1.msra.mxu0 0.0
    %3990 = vmatprep.subr.mxu0 0.0
    %3991 = vmatpush1.msra.mxu0 0.0
    %3992 = vmatprep.subr.mxu0 0.0
    %3993 = vmatpush1.msra.mxu0 0.0
    %3994 = vmatprep.subr.mxu0 0.0
    %3995 = vmatpush1.msra.mxu0 0.0
    %3996 = vmatprep.subr.mxu0 0.0
    %3997 = vmatpush1.msra.mxu0 0.0
    %3998 = vmatprep.subr.mxu0 0.0
    %3999 = vmatpush1.msra.mxu0 0.0
    %4000 = vmatprep.subr.mxu0 0.0
    %4001 = vmatpush1.msra.mxu0 0.0
    %4002 = vmatprep.subr.mxu0 0.0
    %4003 = vmatpush1.msra.mxu0 0.0
    %4004 = vmatprep.subr.mxu0 0.0
    %4005 = vmatpush1.msra.mxu0 0.0
    %4006 = vmatprep.subr.mxu0 0.0
    %4007 = vmatpush1.msra.mxu0 0.0
    %4008 = vmatprep.subr.mxu0 0.0
    %4009 = vmatpush1.msra.mxu0 0.0
    %4010 = vmatprep.subr.mxu0 0.0
    %4011 = vmatpush1.msra.mxu0 0.0
    %4012 = vmatprep.subr.mxu0 0.0
    %4013 = vmatpush1.msra.mxu0 0.0
    %4014 = vmatprep.subr.mxu0 0.0
    %4015 = vmatpush1.msra.mxu0 0.0
    %4016 = vmatprep.subr.mxu0 0.0
    %4017 = vmatpush1.msra.mxu0 0.0
    %4018 = vmatprep.subr.mxu0 0.0
    %4019 = vmatpush1.msra.mxu0 0.0
    %4020 = vmatprep.mubr.f32.mxu0 0.0
    %4021 = vmatmul.mubr.f32.gmra.mrb[0].mxu0 %v3954
    %v4022 = vpop.f32.mrb[0].mxu0
    %v4023 = vadd.f32 0.0, %v4022
    %v4024 = vpop.f32.mrb[0].mxu0
    %4025 = vdwg.mxu0
    %4028 = vrot.lane.b32.xlu0 %v3543, 32
    %v4029 = vpop.permute.xlu0 %4028
    %4030 = vrot.lane.b32.xlu0 %v3544, 32
    %v4031 = vpop.permute.xlu0 %4030
    %v4034 = vsel %vm47, %v3845, %v4029
    %v4035 = vsel %vm47, %v4023, %v4031
    %v4036 = vld [vmem:[%s3] sm:$0xff]
    %v4037 = vld [vmem:[%s3 + $0x8] sm:$0xff]
    %v4038 = vld [vmem:[%s3 + $0x10] sm:$0xff]
    %v4039 = vld [vmem:[%s3 + $0x18] sm:$0xff]
    %v4040 = vld [vmem:[%s3 + $0x20] sm:$0xff]
    %v4041 = vld [vmem:[%s3 + $0x28] sm:$0xff]
    %v4042 = vld [vmem:[%s3 + $0x30] sm:$0xff]
    %v4043 = vld [vmem:[%s3 + $0x38] sm:$0xff]
    %v4044 = vld [vmem:[%s3 + $0x40] sm:$0x1]
    %v4045 = vlaneseq
    %v4046 = vshrl.u32 %v4045, 7
    %v4047 = vsub.s32 0, %v4046
    %v4048 = vrot.slane %v4044, %v4047
    %v4050 = vsel %vm814, %v4034, 0
    %v4053 = vsel %vm814, %v4035, 0
    %4055 = vmatprep.subr.mxu0 0.0
    %4056 = vmatpush1.msra.mxu0 %v4036
    %4057 = vmatprep.subr.mxu0 0.0
    %4058 = vmatpush1.msra.mxu0 %v4037
    %4059 = vmatprep.subr.mxu0 0.0
    %4060 = vmatpush1.msra.mxu0 %v4038
    %4061 = vmatprep.subr.mxu0 0.0
    %4062 = vmatpush1.msra.mxu0 %v4039
    %4063 = vmatprep.subr.mxu0 0.0
    %4064 = vmatpush1.msra.mxu0 %v4040
    %4065 = vmatprep.subr.mxu0 0.0
    %4066 = vmatpush1.msra.mxu0 %v4041
    %4067 = vmatprep.subr.mxu0 0.0
    %4068 = vmatpush1.msra.mxu0 %v4042
    %4069 = vmatprep.subr.mxu0 0.0
    %4070 = vmatpush1.msra.mxu0 %v4043
    %4071 = vmatprep.subr.mxu0 0.0
    %4072 = vmatpush1.msra.mxu0 0.0
    %4073 = vmatprep.subr.mxu0 0.0
    %4074 = vmatpush1.msra.mxu0 0.0
    %4075 = vmatprep.subr.mxu0 0.0
    %4076 = vmatpush1.msra.mxu0 0.0
    %4077 = vmatprep.subr.mxu0 0.0
    %4078 = vmatpush1.msra.mxu0 0.0
    %4079 = vmatprep.subr.mxu0 0.0
    %4080 = vmatpush1.msra.mxu0 0.0
    %4081 = vmatprep.subr.mxu0 0.0
    %4082 = vmatpush1.msra.mxu0 0.0
    %4083 = vmatprep.subr.mxu0 0.0
    %4084 = vmatpush1.msra.mxu0 0.0
    %4085 = vmatprep.subr.mxu0 0.0
    %4086 = vmatpush1.msra.mxu0 0.0
    %4087 = vmatprep.subr.mxu0 0.0
    %4088 = vmatpush1.msra.mxu0 0.0
    %4089 = vmatprep.subr.mxu0 0.0
    %4090 = vmatpush1.msra.mxu0 0.0
    %4091 = vmatprep.subr.mxu0 0.0
    %4092 = vmatpush1.msra.mxu0 0.0
    %4093 = vmatprep.subr.mxu0 0.0
    %4094 = vmatpush1.msra.mxu0 0.0
    %4095 = vmatprep.subr.mxu0 0.0
    %4096 = vmatpush1.msra.mxu0 0.0
    %4097 = vmatprep.subr.mxu0 0.0
    %4098 = vmatpush1.msra.mxu0 0.0
    %4099 = vmatprep.subr.mxu0 0.0
    %4100 = vmatpush1.msra.mxu0 0.0
    %4101 = vmatprep.subr.mxu0 0.0
    %4102 = vmatpush1.msra.mxu0 0.0
    %4103 = vmatprep.subr.mxu0 0.0
    %4104 = vmatpush1.msra.mxu0 0.0
    %4105 = vmatprep.subr.mxu0 0.0
    %4106 = vmatpush1.msra.mxu0 0.0
    %4107 = vmatprep.subr.mxu0 0.0
    %4108 = vmatpush1.msra.mxu0 0.0
    %4109 = vmatprep.subr.mxu0 0.0
    %4110 = vmatpush1.msra.mxu0 0.0
    %4111 = vmatprep.subr.mxu0 0.0
    %4112 = vmatpush1.msra.mxu0 0.0
    %4113 = vmatprep.subr.mxu0 0.0
    %4114 = vmatpush1.msra.mxu0 0.0
    %4115 = vmatprep.subr.mxu0 0.0
    %4116 = vmatpush1.msra.mxu0 0.0
    %4117 = vmatprep.subr.mxu0 0.0
    %4118 = vmatpush1.msra.mxu0 0.0
    %4119 = vmatprep.mubr.f32.mxu0 0.0
    %4120 = vmatmul.mubr.f32.gmra.mrb[0].mxu0 %v4050
    %v4121 = vpop.f32.mrb[0].mxu0
    %v4122 = vadd.f32 %v4048, %v4121
    %v4123 = vpop.f32.mrb[0].mxu0
    %4124 = vmatprep.mubr.f32.mxu0 0.0
    %4125 = vmatmul.mubr.f32.gmra.mrb[0].mxu0 %v4053
    %v4126 = vpop.f32.mrb[0].mxu0
    %v4127 = vadd.f32 %v4048, %v4126
    %v4128 = vpop.f32.mrb[0].mxu0
    %4129 = vdwg.mxu0
    %v4130 = vxor.u32 %v4122, 2147483648
    %v4131 = vxor.u32 %v4127, 2147483648
    %v4132 = vmul.f32 %v4130, 1.442695
    %v4133 = vpow.pop %v4132
    %v4134 = vmul.f32 %v4131, 1.442695
    %v4135 = vpow.pop %v4134
    %v4136 = vadd.f32 %v4133, 1.0
    %v4137 = vadd.f32 %v4135, 1.0
    %v4138 = vrcp.pop %v4136
    %v4139 = vmul.f32 1.0, %v4138
    %v4140 = vrcp.pop %v4137
    %v4141 = vmul.f32 1.0, %v4140
    %v4142 = vld [vmem:[%s4] sm:$0xff]
    %v4143 = vld [vmem:[%s4 + $0x8] sm:$0xff]
    %v4144 = vld [vmem:[%s4 + $0x10] sm:$0xff]
    %v4145 = vld [vmem:[%s4 + $0x18] sm:$0xff]
    %v4146 = vld [vmem:[%s4 + $0x40] sm:$0x1]
    %v4147 = vlaneseq
    %v4148 = vshrl.u32 %v4147, 7
    %v4149 = vsub.s32 0, %v4148
    %v4150 = vrot.slane %v4146, %v4149
    %v4152 = vsel %vm47, %v3845, 0
    %v4155 = vsel %vm47, %v4023, 0
    %4157 = vmatprep.subr.mxu0 0.0
    %4158 = vmatpush1.msra.mxu0 %v4142
    %4159 = vmatprep.subr.mxu0 0.0
    %4160 = vmatpush1.msra.mxu0 %v4143
    %4161 = vmatprep.subr.mxu0 0.0
    %4162 = vmatpush1.msra.mxu0 %v4144
    %4163 = vmatprep.subr.mxu0 0.0
    %4164 = vmatpush1.msra.mxu0 %v4145
    %4165 = vmatprep.subr.mxu0 0.0
    %4166 = vmatpush1.msra.mxu0 0.0
    %4167 = vmatprep.subr.mxu0 0.0
    %4168 = vmatpush1.msra.mxu0 0.0
    %4169 = vmatprep.subr.mxu0 0.0
    %4170 = vmatpush1.msra.mxu0 0.0
    %4171 = vmatprep.subr.mxu0 0.0
    %4172 = vmatpush1.msra.mxu0 0.0
    %4173 = vmatprep.subr.mxu0 0.0
    %4174 = vmatpush1.msra.mxu0 0.0
    %4175 = vmatprep.subr.mxu0 0.0
    %4176 = vmatpush1.msra.mxu0 0.0
    %4177 = vmatprep.subr.mxu0 0.0
    %4178 = vmatpush1.msra.mxu0 0.0
    %4179 = vmatprep.subr.mxu0 0.0
    %4180 = vmatpush1.msra.mxu0 0.0
    %4181 = vmatprep.subr.mxu0 0.0
    %4182 = vmatpush1.msra.mxu0 0.0
    %4183 = vmatprep.subr.mxu0 0.0
    %4184 = vmatpush1.msra.mxu0 0.0
    %4185 = vmatprep.subr.mxu0 0.0
    %4186 = vmatpush1.msra.mxu0 0.0
    %4187 = vmatprep.subr.mxu0 0.0
    %4188 = vmatpush1.msra.mxu0 0.0
    %4189 = vmatprep.subr.mxu0 0.0
    %4190 = vmatpush1.msra.mxu0 0.0
    %4191 = vmatprep.subr.mxu0 0.0
    %4192 = vmatpush1.msra.mxu0 0.0
    %4193 = vmatprep.subr.mxu0 0.0
    %4194 = vmatpush1.msra.mxu0 0.0
    %4195 = vmatprep.subr.mxu0 0.0
    %4196 = vmatpush1.msra.mxu0 0.0
    %4197 = vmatprep.subr.mxu0 0.0
    %4198 = vmatpush1.msra.mxu0 0.0
    %4199 = vmatprep.subr.mxu0 0.0
    %4200 = vmatpush1.msra.mxu0 0.0
    %4201 = vmatprep.subr.mxu0 0.0
    %4202 = vmatpush1.msra.mxu0 0.0
    %4203 = vmatprep.subr.mxu0 0.0
    %4204 = vmatpush1.msra.mxu0 0.0
    %4205 = vmatprep.subr.mxu0 0.0
    %4206 = vmatpush1.msra.mxu0 0.0
    %4207 = vmatprep.subr.mxu0 0.0
    %4208 = vmatpush1.msra.mxu0 0.0
    %4209 = vmatprep.subr.mxu0 0.0
    %4210 = vmatpush1.msra.mxu0 0.0
    %4211 = vmatprep.subr.mxu0 0.0
    %4212 = vmatpush1.msra.mxu0 0.0
    %4213 = vmatprep.subr.mxu0 0.0
    %4214 = vmatpush1.msra.mxu0 0.0
    %4215 = vmatprep.subr.mxu0 0.0
    %4216 = vmatpush1.msra.mxu0 0.0
    %4217 = vmatprep.subr.mxu0 0.0
    %4218 = vmatpush1.msra.mxu0 0.0
    %4219 = vmatprep.subr.mxu0 0.0
    %4220 = vmatpush1.msra.mxu0 0.0
    %4221 = vmatprep.mubr.f32.mxu0 0.0
    %4222 = vmatmul.mubr.f32.gmra.mrb[0].mxu0 %v4152
    %v4223 = vpop.f32.mrb[0].mxu0
    %v4224 = vadd.f32 %v4150, %v4223
    %v4225 = vpop.f32.mrb[0].mxu0
    %4226 = vmatprep.mubr.f32.mxu0 0.0
    %4227 = vmatmul.mubr.f32.gmra.mrb[0].mxu0 %v4155
    %v4228 = vpop.f32.mrb[0].mxu0
    %v4229 = vadd.f32 %v4150, %v4228
    %v4230 = vpop.f32.mrb[0].mxu0
    %4231 = vdwg.mxu0
    %v4232 = vld [vmem:[%s4 + $0x20] sm:$0xff]
    %v4233 = vld [vmem:[%s4 + $0x28] sm:$0xff]
    %v4234 = vld [vmem:[%s4 + $0x30] sm:$0xff]
    %v4235 = vld [vmem:[%s4 + $0x38] sm:$0xff]
    %v4236 = vld [vmem:[%s4 + $0x41] sm:$0x1]
    %v4237 = vlaneseq
    %v4238 = vshrl.u32 %v4237, 7
    %v4239 = vsub.s32 0, %v4238
    %v4240 = vrot.slane %v4236, %v4239
    %v4241 = vsel %vm47, %v3543, 0
    %v4243 = vsel %vm47, %v3544, 0
    %4245 = vmatprep.subr.mxu0 0.0
    %4246 = vmatpush1.msra.mxu0 %v4232
    %4247 = vmatprep.subr.mxu0 0.0
    %4248 = vmatpush1.msra.mxu0 %v4233
    %4249 = vmatprep.subr.mxu0 0.0
    %4250 = vmatpush1.msra.mxu0 %v4234
    %4251 = vmatprep.subr.mxu0 0.0
    %4252 = vmatpush1.msra.mxu0 %v4235
    %4253 = vmatprep.subr.mxu0 0.0
    %4254 = vmatpush1.msra.mxu0 0.0
    %4255 = vmatprep.subr.mxu0 0.0
    %4256 = vmatpush1.msra.mxu0 0.0
    %4257 = vmatprep.subr.mxu0 0.0
    %4258 = vmatpush1.msra.mxu0 0.0
    %4259 = vmatprep.subr.mxu0 0.0
    %4260 = vmatpush1.msra.mxu0 0.0
    %4261 = vmatprep.subr.mxu0 0.0
    %4262 = vmatpush1.msra.mxu0 0.0
    %4263 = vmatprep.subr.mxu0 0.0
    %4264 = vmatpush1.msra.mxu0 0.0
    %4265 = vmatprep.subr.mxu0 0.0
    %4266 = vmatpush1.msra.mxu0 0.0
    %4267 = vmatprep.subr.mxu0 0.0
    %4268 = vmatpush1.msra.mxu0 0.0
    %4269 = vmatprep.subr.mxu0 0.0
    %4270 = vmatpush1.msra.mxu0 0.0
    %4271 = vmatprep.subr.mxu0 0.0
    %4272 = vmatpush1.msra.mxu0 0.0
    %4273 = vmatprep.subr.mxu0 0.0
    %4274 = vmatpush1.msra.mxu0 0.0
    %4275 = vmatprep.subr.mxu0 0.0
    %4276 = vmatpush1.msra.mxu0 0.0
    %4277 = vmatprep.subr.mxu0 0.0
    %4278 = vmatpush1.msra.mxu0 0.0
    %4279 = vmatprep.subr.mxu0 0.0
    %4280 = vmatpush1.msra.mxu0 0.0
    %4281 = vmatprep.subr.mxu0 0.0
    %4282 = vmatpush1.msra.mxu0 0.0
    %4283 = vmatprep.subr.mxu0 0.0
    %4284 = vmatpush1.msra.mxu0 0.0
    %4285 = vmatprep.subr.mxu0 0.0
    %4286 = vmatpush1.msra.mxu0 0.0
    %4287 = vmatprep.subr.mxu0 0.0
    %4288 = vmatpush1.msra.mxu0 0.0
    %4289 = vmatprep.subr.mxu0 0.0
    %4290 = vmatpush1.msra.mxu0 0.0
    %4291 = vmatprep.subr.mxu0 0.0
    %4292 = vmatpush1.msra.mxu0 0.0
    %4293 = vmatprep.subr.mxu0 0.0
    %4294 = vmatpush1.msra.mxu0 0.0
    %4295 = vmatprep.subr.mxu0 0.0
    %4296 = vmatpush1.msra.mxu0 0.0
    %4297 = vmatprep.subr.mxu0 0.0
    %4298 = vmatpush1.msra.mxu0 0.0
    %4299 = vmatprep.subr.mxu0 0.0
    %4300 = vmatpush1.msra.mxu0 0.0
    %4301 = vmatprep.subr.mxu0 0.0
    %4302 = vmatpush1.msra.mxu0 0.0
    %4303 = vmatprep.subr.mxu0 0.0
    %4304 = vmatpush1.msra.mxu0 0.0
    %4305 = vmatprep.subr.mxu0 0.0
    %4306 = vmatpush1.msra.mxu0 0.0
    %4307 = vmatprep.subr.mxu0 0.0
    %4308 = vmatpush1.msra.mxu0 0.0
    %4309 = vmatprep.mubr.f32.mxu0 0.0
    %4310 = vmatmul.mubr.f32.gmra.mrb[0].mxu0 %v4241
    %v4311 = vpop.f32.mrb[0].mxu0
    %v4312 = vadd.f32 %v4240, %v4311
    %v4313 = vpop.f32.mrb[0].mxu0
    %4314 = vmatprep.mubr.f32.mxu0 0.0
    %4315 = vmatmul.mubr.f32.gmra.mrb[0].mxu0 %v4243
    %v4316 = vpop.f32.mrb[0].mxu0
    %v4317 = vadd.f32 %v4240, %v4316
    %v4318 = vpop.f32.mrb[0].mxu0
    %4319 = vdwg.mxu0
    %v4320 = vmul.f32 %v4139, %v4312
    %v4321 = vmul.f32 %v4141, %v4317
    %v4322 = vadd.f32 %v4224, %v4320
    %v4323 = vadd.f32 %v4229, %v4321
    %v4324 = vtanh.pop %v4322
    %v4325 = vtanh.pop %v4323
    %v4326 = vsub.f32 1.0, %v4139
    %v4327 = vsub.f32 1.0, %v4141
    %4330 = vrot.lane.b32.xlu0 %v4324, 32
    %v4331 = vpop.permute.xlu0 %4330
    %4332 = vrot.lane.b32.xlu0 %v4325, 32
    %v4333 = vpop.permute.xlu0 %4332
    %v4336 = vmul.f32 %v4326, %v4331
    %v4337 = vmul.f32 %v4327, %v4333
    %v4338 = vmul.f32 %v4139, %v4029
    %v4339 = vmul.f32 %v4141, %v4031
    %v4340 = vadd.f32 %v4336, %v4338
    %v4341 = vadd.f32 %v4337, %v4339
    %4344 = vrot.lane.b32.xlu0 %v4340, 96
    %v4345 = vpop.permute.xlu0 %4344
    %4346 = vrot.lane.b32.xlu0 %v4341, 96
    %v4347 = vpop.permute.xlu0 %4346
    %v4350 = vsel %vm47, %v4345, 0.0
    %4351 = vadd.xlane.f32.xlu0 %v4350
    %v4352 = vpop.xlane.xlu0 %4351
    %v4353 = vsel %vm47, %v4347, 0.0
    %4354 = vadd.xlane.f32.xlu0 %v4353
    %v4355 = vpop.xlane.xlu0 %4354
    %v4356 = vmul.f32 %v4352, %v60
    %v4357 = vmul.f32 %v4355, %v60
    %v4358 = vsub.f32 %v4340, %v4356
    %v4359 = vsub.f32 %v4341, %v4357
    %v4360 = vmul.f32 %v4358, %v4358
    %v4361 = vmul.f32 %v4359, %v4359
    %4364 = vrot.lane.b32.xlu0 %v4360, 96
    %v4365 = vpop.permute.xlu0 %4364
    %4366 = vrot.lane.b32.xlu0 %v4361, 96
    %v4367 = vpop.permute.xlu0 %4366
    %v4370 = vsel %vm47, %v4365, 0.0
    %4371 = vadd.xlane.f32.xlu0 %v4370
    %v4372 = vpop.xlane.xlu0 %4371
    %v4373 = vsel %vm47, %v4367, 0.0
    %4374 = vadd.xlane.f32.xlu0 %v4373
    %v4375 = vpop.xlane.xlu0 %4374
    %v4376 = vmul.f32 %v4372, %v60
    %v4377 = vmul.f32 %v4375, %v60
    %v4378 = vadd.f32 %v4376, 1e-05
    %v4379 = vadd.f32 %v4377, 1e-05
    %v4380 = vrsqrt.pop %v4378
    %v4381 = vrsqrt.pop %v4379
    %v4382 = vmul.f32 %v4358, %v4380
    %v4383 = vmul.f32 %v4359, %v4381
    %4385 = vrot.lane.b32.xlu0 %v3576, 32
    %v4386 = vpop.permute.xlu0 %4385
    %v4388 = vmul.f32 %v4382, %v4386
    %v4389 = vmul.f32 %v4383, %v4386
    %4391 = vrot.lane.b32.xlu0 %v3582, 32
    %v4392 = vpop.permute.xlu0 %4391
    %v4394 = vadd.f32 %v4388, %v4392
    %v4395 = vadd.f32 %v4389, %v4392
    %4398 = vrot.lane.b32.xlu0 %v4394, 96
    %v4399 = vpop.permute.xlu0 %4398
    %4400 = vrot.lane.b32.xlu0 %v4395, 96
    %v4401 = vpop.permute.xlu0 %4400
    %v4402 = vsel %vm47, %v4399, 0
    %v4404 = vsel %vm47, %v4401, 0
    %4406 = vmatprep.subr.mxu0 0.0
    %4407 = vmatpush1.msra.mxu0 %v3585
    %4408 = vmatprep.subr.mxu0 0.0
    %4409 = vmatpush1.msra.mxu0 %v3586
    %4410 = vmatprep.subr.mxu0 0.0
    %4411 = vmatpush1.msra.mxu0 %v3587
    %4412 = vmatprep.subr.mxu0 0.0
    %4413 = vmatpush1.msra.mxu0 %v3588
    %4414 = vmatprep.subr.mxu0 0.0
    %4415 = vmatpush1.msra.mxu0 0.0
    %4416 = vmatprep.subr.mxu0 0.0
    %4417 = vmatpush1.msra.mxu0 0.0
    %4418 = vmatprep.subr.mxu0 0.0
    %4419 = vmatpush1.msra.mxu0 0.0
    %4420 = vmatprep.subr.mxu0 0.0
    %4421 = vmatpush1.msra.mxu0 0.0
    %4422 = vmatprep.subr.mxu0 0.0
    %4423 = vmatpush1.msra.mxu0 0.0
    %4424 = vmatprep.subr.mxu0 0.0
    %4425 = vmatpush1.msra.mxu0 0.0
    %4426 = vmatprep.subr.mxu0 0.0
    %4427 = vmatpush1.msra.mxu0 0.0
    %4428 = vmatprep.subr.mxu0 0.0
    %4429 = vmatpush1.msra.mxu0 0.0
    %4430 = vmatprep.subr.mxu0 0.0
    %4431 = vmatpush1.msra.mxu0 0.0
    %4432 = vmatprep.subr.mxu0 0.0
    %4433 = vmatpush1.msra.mxu0 0.0
    %4434 = vmatprep.subr.mxu0 0.0
    %4435 = vmatpush1.msra.mxu0 0.0
    %4436 = vmatprep.subr.mxu0 0.0
    %4437 = vmatpush1.msra.mxu0 0.0
    %4438 = vmatprep.subr.mxu0 0.0
    %4439 = vmatpush1.msra.mxu0 0.0
    %4440 = vmatprep.subr.mxu0 0.0
    %4441 = vmatpush1.msra.mxu0 0.0
    %4442 = vmatprep.subr.mxu0 0.0
    %4443 = vmatpush1.msra.mxu0 0.0
    %4444 = vmatprep.subr.mxu0 0.0
    %4445 = vmatpush1.msra.mxu0 0.0
    %4446 = vmatprep.subr.mxu0 0.0
    %4447 = vmatpush1.msra.mxu0 0.0
    %4448 = vmatprep.subr.mxu0 0.0
    %4449 = vmatpush1.msra.mxu0 0.0
    %4450 = vmatprep.subr.mxu0 0.0
    %4451 = vmatpush1.msra.mxu0 0.0
    %4452 = vmatprep.subr.mxu0 0.0
    %4453 = vmatpush1.msra.mxu0 0.0
    %4454 = vmatprep.subr.mxu0 0.0
    %4455 = vmatpush1.msra.mxu0 0.0
    %4456 = vmatprep.subr.mxu0 0.0
    %4457 = vmatpush1.msra.mxu0 0.0
    %4458 = vmatprep.subr.mxu0 0.0
    %4459 = vmatpush1.msra.mxu0 0.0
    %4460 = vmatprep.subr.mxu0 0.0
    %4461 = vmatpush1.msra.mxu0 0.0
    %4462 = vmatprep.subr.mxu0 0.0
    %4463 = vmatpush1.msra.mxu0 0.0
    %4464 = vmatprep.subr.mxu0 0.0
    %4465 = vmatpush1.msra.mxu0 0.0
    %4466 = vmatprep.subr.mxu0 0.0
    %4467 = vmatpush1.msra.mxu0 0.0
    %4468 = vmatprep.subr.mxu0 0.0
    %4469 = vmatpush1.msra.mxu0 0.0
    %4470 = vmatprep.mubr.f32.mxu0 0.0
    %4471 = vmatmul.mubr.f32.gmra.mrb[0].mxu0 %v4402
    %v4472 = vpop.f32.mrb[0].mxu0
    %v4473 = vadd.f32 0.0, %v4472
    %v4474 = vpop.f32.mrb[0].mxu0
    %4475 = vmatprep.mubr.f32.mxu0 0.0
    %4476 = vmatmul.mubr.f32.gmra.mrb[0].mxu0 %v4404
    %v4477 = vpop.f32.mrb[0].mxu0
    %v4478 = vadd.f32 0.0, %v4477
    %v4479 = vpop.f32.mrb[0].mxu0
    %4480 = vdwg.mxu0
    %v4482 = vsel %vm47, %v4473, 0
    %4484 = vmatprep.subr.mxu0 0.0
    %4485 = vmatpush1.xpose.msra.mxu0 %v3674
    %4486 = vmatprep.subr.mxu0 0.0
    %4487 = vmatpush1.xpose.msra.mxu0 %v3677
    %4488 = vmatprep.subr.mxu0 0.0
    %4489 = vmatpush1.xpose.msra.mxu0 0.0
    %4490 = vmatprep.subr.mxu0 0.0
    %4491 = vmatpush1.xpose.msra.mxu0 0.0
    %4492 = vmatprep.subr.mxu0 0.0
    %4493 = vmatpush1.xpose.msra.mxu0 0.0
    %4494 = vmatprep.subr.mxu0 0.0
    %4495 = vmatpush1.xpose.msra.mxu0 0.0
    %4496 = vmatprep.subr.mxu0 0.0
    %4497 = vmatpush1.xpose.msra.mxu0 0.0
    %4498 = vmatprep.subr.mxu0 0.0
    %4499 = vmatpush1.xpose.msra.mxu0 0.0
    %4500 = vmatprep.subr.mxu0 0.0
    %4501 = vmatpush1.xpose.msra.mxu0 0.0
    %4502 = vmatprep.subr.mxu0 0.0
    %4503 = vmatpush1.xpose.msra.mxu0 0.0
    %4504 = vmatprep.subr.mxu0 0.0
    %4505 = vmatpush1.xpose.msra.mxu0 0.0
    %4506 = vmatprep.subr.mxu0 0.0
    %4507 = vmatpush1.xpose.msra.mxu0 0.0
    %4508 = vmatprep.subr.mxu0 0.0
    %4509 = vmatpush1.xpose.msra.mxu0 0.0
    %4510 = vmatprep.subr.mxu0 0.0
    %4511 = vmatpush1.xpose.msra.mxu0 0.0
    %4512 = vmatprep.subr.mxu0 0.0
    %4513 = vmatpush1.xpose.msra.mxu0 0.0
    %4514 = vmatprep.subr.mxu0 0.0
    %4515 = vmatpush1.xpose.msra.mxu0 0.0
    %4516 = vmatprep.subr.mxu0 0.0
    %4517 = vmatpush1.xpose.msra.mxu0 0.0
    %4518 = vmatprep.subr.mxu0 0.0
    %4519 = vmatpush1.xpose.msra.mxu0 0.0
    %4520 = vmatprep.subr.mxu0 0.0
    %4521 = vmatpush1.xpose.msra.mxu0 0.0
    %4522 = vmatprep.subr.mxu0 0.0
    %4523 = vmatpush1.xpose.msra.mxu0 0.0
    %4524 = vmatprep.subr.mxu0 0.0
    %4525 = vmatpush1.xpose.msra.mxu0 0.0
    %4526 = vmatprep.subr.mxu0 0.0
    %4527 = vmatpush1.xpose.msra.mxu0 0.0
    %4528 = vmatprep.subr.mxu0 0.0
    %4529 = vmatpush1.xpose.msra.mxu0 0.0
    %4530 = vmatprep.subr.mxu0 0.0
    %4531 = vmatpush1.xpose.msra.mxu0 0.0
    %4532 = vmatprep.subr.mxu0 0.0
    %4533 = vmatpush1.xpose.msra.mxu0 0.0
    %4534 = vmatprep.subr.mxu0 0.0
    %4535 = vmatpush1.xpose.msra.mxu0 0.0
    %4536 = vmatprep.subr.mxu0 0.0
    %4537 = vmatpush1.xpose.msra.mxu0 0.0
    %4538 = vmatprep.subr.mxu0 0.0
    %4539 = vmatpush1.xpose.msra.mxu0 0.0
    %4540 = vmatprep.subr.mxu0 0.0
    %4541 = vmatpush1.xpose.msra.mxu0 0.0
    %4542 = vmatprep.subr.mxu0 0.0
    %4543 = vmatpush1.xpose.msra.mxu0 0.0
    %4544 = vmatprep.subr.mxu0 0.0
    %4545 = vmatpush1.xpose.msra.mxu0 0.0
    %4546 = vmatprep.subr.mxu0 0.0
    %4547 = vmatpush1.xpose.msra.mxu0 0.0
    %4548 = vmatprep.mubr.f32.mxu0 0.0
    %4549 = vmatmul.mubr.f32.gmra.mrb[0].mxu0 %v4482
    %v4550 = vpop.f32.mrb[0].mxu0
    %v4551 = vadd.f32 0.0, %v4550
    %v4552 = vpop.f32.mrb[0].mxu0
    %4553 = vdwg.mxu0
    %v4554 = vmul.f32 %v4551, 0.17677669
    %v4555 = vsel %vm514, %v4554, -inf
    %v4556 = vrot.slane %v4555, 4
    %v4557 = vmax.f32 %v4555, %v4556
    %v4558 = vrot.slane %v4557, 2
    %v4559 = vmax.f32 %v4557, %v4558
    %v4560 = vrot.slane %v4559, 1
    %v4561 = vmax.f32 %v4559, %v4560
    %v4562 = vsub.f32 %v4554, %v4561
    %v4563 = vmul.f32 %v4562, 1.442695
    %v4564 = vpow.pop %v4563
    %v4565 = vsel %vm514, %v4564, 0.0
    %v4566 = vrot.slane %v4565, 4
    %v4567 = vadd.f32 %v4565, %v4566
    %v4568 = vrot.slane %v4567, 2
    %v4569 = vadd.f32 %v4567, %v4568
    %v4570 = vrot.slane %v4569, 1
    %v4571 = vadd.f32 %v4569, %v4570
    %v4572 = vrcp.pop %v4571
    %v4573 = vmul.f32 %v4564, %v4572
    %v4574 = vadd.f32 %v4573, 1e-08
    %v4575 = vsel %vm514, %v4574, 0.0
    %4576 = vadd.xlane.f32.xlu0 %v4575
    %v4577 = vpop.xlane.xlu0 %4576
    %v4578 = vrcp.pop %v4577
    %v4579 = vmul.f32 %v4574, %v4578
    %v4581 = vsel %vm514, %v4579, 0
    %4583 = vmatprep.subr.mxu0 0.0
    %4584 = vmatpush1.msra.mxu0 %v3525
    %4585 = vmatprep.subr.mxu0 0.0
    %4586 = vmatpush1.msra.mxu0 %v3530
    %4587 = vmatprep.subr.mxu0 0.0
    %4588 = vmatpush1.msra.mxu0 0.0
    %4589 = vmatprep.subr.mxu0 0.0
    %4590 = vmatpush1.msra.mxu0 0.0
    %4591 = vmatprep.subr.mxu0 0.0
    %4592 = vmatpush1.msra.mxu0 0.0
    %4593 = vmatprep.subr.mxu0 0.0
    %4594 = vmatpush1.msra.mxu0 0.0
    %4595 = vmatprep.subr.mxu0 0.0
    %4596 = vmatpush1.msra.mxu0 0.0
    %4597 = vmatprep.subr.mxu0 0.0
    %4598 = vmatpush1.msra.mxu0 0.0
    %4599 = vmatprep.subr.mxu0 0.0
    %4600 = vmatpush1.msra.mxu0 0.0
    %4601 = vmatprep.subr.mxu0 0.0
    %4602 = vmatpush1.msra.mxu0 0.0
    %4603 = vmatprep.subr.mxu0 0.0
    %4604 = vmatpush1.msra.mxu0 0.0
    %4605 = vmatprep.subr.mxu0 0.0
    %4606 = vmatpush1.msra.mxu0 0.0
    %4607 = vmatprep.subr.mxu0 0.0
    %4608 = vmatpush1.msra.mxu0 0.0
    %4609 = vmatprep.subr.mxu0 0.0
    %4610 = vmatpush1.msra.mxu0 0.0
    %4611 = vmatprep.subr.mxu0 0.0
    %4612 = vmatpush1.msra.mxu0 0.0
    %4613 = vmatprep.subr.mxu0 0.0
    %4614 = vmatpush1.msra.mxu0 0.0
    %4615 = vmatprep.subr.mxu0 0.0
    %4616 = vmatpush1.msra.mxu0 0.0
    %4617 = vmatprep.subr.mxu0 0.0
    %4618 = vmatpush1.msra.mxu0 0.0
    %4619 = vmatprep.subr.mxu0 0.0
    %4620 = vmatpush1.msra.mxu0 0.0
    %4621 = vmatprep.subr.mxu0 0.0
    %4622 = vmatpush1.msra.mxu0 0.0
    %4623 = vmatprep.subr.mxu0 0.0
    %4624 = vmatpush1.msra.mxu0 0.0
    %4625 = vmatprep.subr.mxu0 0.0
    %4626 = vmatpush1.msra.mxu0 0.0
    %4627 = vmatprep.subr.mxu0 0.0
    %4628 = vmatpush1.msra.mxu0 0.0
    %4629 = vmatprep.subr.mxu0 0.0
    %4630 = vmatpush1.msra.mxu0 0.0
    %4631 = vmatprep.subr.mxu0 0.0
    %4632 = vmatpush1.msra.mxu0 0.0
    %4633 = vmatprep.subr.mxu0 0.0
    %4634 = vmatpush1.msra.mxu0 0.0
    %4635 = vmatprep.subr.mxu0 0.0
    %4636 = vmatpush1.msra.mxu0 0.0
    %4637 = vmatprep.subr.mxu0 0.0
    %4638 = vmatpush1.msra.mxu0 0.0
    %4639 = vmatprep.subr.mxu0 0.0
    %4640 = vmatpush1.msra.mxu0 0.0
    %4641 = vmatprep.subr.mxu0 0.0
    %4642 = vmatpush1.msra.mxu0 0.0
    %4643 = vmatprep.subr.mxu0 0.0
    %4644 = vmatpush1.msra.mxu0 0.0
    %4645 = vmatprep.subr.mxu0 0.0
    %4646 = vmatpush1.msra.mxu0 0.0
    %4647 = vmatprep.mubr.f32.mxu0 0.0
    %4648 = vmatmul.mubr.f32.gmra.mrb[0].mxu0 %v4581
    %v4649 = vpop.f32.mrb[0].mxu0
    %v4650 = vadd.f32 0.0, %v4649
    %v4651 = vpop.f32.mrb[0].mxu0
    %4652 = vdwg.mxu0
    %v4654 = vsel %vm47, %v4478, 0
    %4656 = vmatprep.subr.mxu0 0.0
    %4657 = vmatpush1.xpose.msra.mxu0 %v3852
    %4658 = vmatprep.subr.mxu0 0.0
    %4659 = vmatpush1.xpose.msra.mxu0 %v3855
    %4660 = vmatprep.subr.mxu0 0.0
    %4661 = vmatpush1.xpose.msra.mxu0 0.0
    %4662 = vmatprep.subr.mxu0 0.0
    %4663 = vmatpush1.xpose.msra.mxu0 0.0
    %4664 = vmatprep.subr.mxu0 0.0
    %4665 = vmatpush1.xpose.msra.mxu0 0.0
    %4666 = vmatprep.subr.mxu0 0.0
    %4667 = vmatpush1.xpose.msra.mxu0 0.0
    %4668 = vmatprep.subr.mxu0 0.0
    %4669 = vmatpush1.xpose.msra.mxu0 0.0
    %4670 = vmatprep.subr.mxu0 0.0
    %4671 = vmatpush1.xpose.msra.mxu0 0.0
    %4672 = vmatprep.subr.mxu0 0.0
    %4673 = vmatpush1.xpose.msra.mxu0 0.0
    %4674 = vmatprep.subr.mxu0 0.0
    %4675 = vmatpush1.xpose.msra.mxu0 0.0
    %4676 = vmatprep.subr.mxu0 0.0
    %4677 = vmatpush1.xpose.msra.mxu0 0.0
    %4678 = vmatprep.subr.mxu0 0.0
    %4679 = vmatpush1.xpose.msra.mxu0 0.0
    %4680 = vmatprep.subr.mxu0 0.0
    %4681 = vmatpush1.xpose.msra.mxu0 0.0
    %4682 = vmatprep.subr.mxu0 0.0
    %4683 = vmatpush1.xpose.msra.mxu0 0.0
    %4684 = vmatprep.subr.mxu0 0.0
    %4685 = vmatpush1.xpose.msra.mxu0 0.0
    %4686 = vmatprep.subr.mxu0 0.0
    %4687 = vmatpush1.xpose.msra.mxu0 0.0
    %4688 = vmatprep.subr.mxu0 0.0
    %4689 = vmatpush1.xpose.msra.mxu0 0.0
    %4690 = vmatprep.subr.mxu0 0.0
    %4691 = vmatpush1.xpose.msra.mxu0 0.0
    %4692 = vmatprep.subr.mxu0 0.0
    %4693 = vmatpush1.xpose.msra.mxu0 0.0
    %4694 = vmatprep.subr.mxu0 0.0
    %4695 = vmatpush1.xpose.msra.mxu0 0.0
    %4696 = vmatprep.subr.mxu0 0.0
    %4697 = vmatpush1.xpose.msra.mxu0 0.0
    %4698 = vmatprep.subr.mxu0 0.0
    %4699 = vmatpush1.xpose.msra.mxu0 0.0
    %4700 = vmatprep.subr.mxu0 0.0
    %4701 = vmatpush1.xpose.msra.mxu0 0.0
    %4702 = vmatprep.subr.mxu0 0.0
    %4703 = vmatpush1.xpose.msra.mxu0 0.0
    %4704 = vmatprep.subr.mxu0 0.0
    %4705 = vmatpush1.xpose.msra.mxu0 0.0
    %4706 = vmatprep.subr.mxu0 0.0
    %4707 = vmatpush1.xpose.msra.mxu0 0.0
    %4708 = vmatprep.subr.mxu0 0.0
    %4709 = vmatpush1.xpose.msra.mxu0 0.0
    %4710 = vmatprep.subr.mxu0 0.0
    %4711 = vmatpush1.xpose.msra.mxu0 0.0
    %4712 = vmatprep.subr.mxu0 0.0
    %4713 = vmatpush1.xpose.msra.mxu0 0.0
    %4714 = vmatprep.subr.mxu0 0.0
    %4715 = vmatpush1.xpose.msra.mxu0 0.0
    %4716 = vmatprep.subr.mxu0 0.0
    %4717 = vmatpush1.xpose.msra.mxu0 0.0
    %4718 = vmatprep.subr.mxu0 0.0
    %4719 = vmatpush1.xpose.msra.mxu0 0.0
    %4720 = vmatprep.mubr.f32.mxu0 0.0
    %4721 = vmatmul.mubr.f32.gmra.mrb[0].mxu0 %v4654
    %v4722 = vpop.f32.mrb[0].mxu0
    %v4723 = vadd.f32 0.0, %v4722
    %v4724 = vpop.f32.mrb[0].mxu0
    %4725 = vdwg.mxu0
    %v4726 = vmul.f32 %v4723, 0.17677669
    %v4727 = vsel %vm514, %v4726, -inf
    %v4728 = vrot.slane %v4727, 4
    %v4729 = vmax.f32 %v4727, %v4728
    %v4730 = vrot.slane %v4729, 2
    %v4731 = vmax.f32 %v4729, %v4730
    %v4732 = vrot.slane %v4731, 1
    %v4733 = vmax.f32 %v4731, %v4732
    %v4734 = vsub.f32 %v4726, %v4733
    %v4735 = vmul.f32 %v4734, 1.442695
    %v4736 = vpow.pop %v4735
    %v4737 = vsel %vm514, %v4736, 0.0
    %v4738 = vrot.slane %v4737, 4
    %v4739 = vadd.f32 %v4737, %v4738
    %v4740 = vrot.slane %v4739, 2
    %v4741 = vadd.f32 %v4739, %v4740
    %v4742 = vrot.slane %v4741, 1
    %v4743 = vadd.f32 %v4741, %v4742
    %v4744 = vrcp.pop %v4743
    %v4745 = vmul.f32 %v4736, %v4744
    %v4746 = vadd.f32 %v4745, 1e-08
    %v4747 = vsel %vm514, %v4746, 0.0
    %4748 = vadd.xlane.f32.xlu0 %v4747
    %v4749 = vpop.xlane.xlu0 %4748
    %v4750 = vrcp.pop %v4749
    %v4751 = vmul.f32 %v4746, %v4750
    %v4753 = vsel %vm514, %v4751, 0
    %4755 = vmatprep.subr.mxu0 0.0
    %4756 = vmatpush1.msra.mxu0 %v3535
    %4757 = vmatprep.subr.mxu0 0.0
    %4758 = vmatpush1.msra.mxu0 %v3540
    %4759 = vmatprep.subr.mxu0 0.0
    %4760 = vmatpush1.msra.mxu0 0.0
    %4761 = vmatprep.subr.mxu0 0.0
    %4762 = vmatpush1.msra.mxu0 0.0
    %4763 = vmatprep.subr.mxu0 0.0
    %4764 = vmatpush1.msra.mxu0 0.0
    %4765 = vmatprep.subr.mxu0 0.0
    %4766 = vmatpush1.msra.mxu0 0.0
    %4767 = vmatprep.subr.mxu0 0.0
    %4768 = vmatpush1.msra.mxu0 0.0
    %4769 = vmatprep.subr.mxu0 0.0
    %4770 = vmatpush1.msra.mxu0 0.0
    %4771 = vmatprep.subr.mxu0 0.0
    %4772 = vmatpush1.msra.mxu0 0.0
    %4773 = vmatprep.subr.mxu0 0.0
    %4774 = vmatpush1.msra.mxu0 0.0
    %4775 = vmatprep.subr.mxu0 0.0
    %4776 = vmatpush1.msra.mxu0 0.0
    %4777 = vmatprep.subr.mxu0 0.0
    %4778 = vmatpush1.msra.mxu0 0.0
    %4779 = vmatprep.subr.mxu0 0.0
    %4780 = vmatpush1.msra.mxu0 0.0
    %4781 = vmatprep.subr.mxu0 0.0
    %4782 = vmatpush1.msra.mxu0 0.0
    %4783 = vmatprep.subr.mxu0 0.0
    %4784 = vmatpush1.msra.mxu0 0.0
    %4785 = vmatprep.subr.mxu0 0.0
    %4786 = vmatpush1.msra.mxu0 0.0
    %4787 = vmatprep.subr.mxu0 0.0
    %4788 = vmatpush1.msra.mxu0 0.0
    %4789 = vmatprep.subr.mxu0 0.0
    %4790 = vmatpush1.msra.mxu0 0.0
    %4791 = vmatprep.subr.mxu0 0.0
    %4792 = vmatpush1.msra.mxu0 0.0
    %4793 = vmatprep.subr.mxu0 0.0
    %4794 = vmatpush1.msra.mxu0 0.0
    %4795 = vmatprep.subr.mxu0 0.0
    %4796 = vmatpush1.msra.mxu0 0.0
    %4797 = vmatprep.subr.mxu0 0.0
    %4798 = vmatpush1.msra.mxu0 0.0
    %4799 = vmatprep.subr.mxu0 0.0
    %4800 = vmatpush1.msra.mxu0 0.0
    %4801 = vmatprep.subr.mxu0 0.0
    %4802 = vmatpush1.msra.mxu0 0.0
    %4803 = vmatprep.subr.mxu0 0.0
    %4804 = vmatpush1.msra.mxu0 0.0
    %4805 = vmatprep.subr.mxu0 0.0
    %4806 = vmatpush1.msra.mxu0 0.0
    %4807 = vmatprep.subr.mxu0 0.0
    %4808 = vmatpush1.msra.mxu0 0.0
    %4809 = vmatprep.subr.mxu0 0.0
    %4810 = vmatpush1.msra.mxu0 0.0
    %4811 = vmatprep.subr.mxu0 0.0
    %4812 = vmatpush1.msra.mxu0 0.0
    %4813 = vmatprep.subr.mxu0 0.0
    %4814 = vmatpush1.msra.mxu0 0.0
    %4815 = vmatprep.subr.mxu0 0.0
    %4816 = vmatpush1.msra.mxu0 0.0
    %4817 = vmatprep.subr.mxu0 0.0
    %4818 = vmatpush1.msra.mxu0 0.0
    %4819 = vmatprep.mubr.f32.mxu0 0.0
    %4820 = vmatmul.mubr.f32.gmra.mrb[0].mxu0 %v4753
    %v4821 = vpop.f32.mrb[0].mxu0
    %v4822 = vadd.f32 0.0, %v4821
    %v4823 = vpop.f32.mrb[0].mxu0
    %4824 = vdwg.mxu0
    %v4825 = vsel %vm47, %v4650, %v4340
    %v4826 = vsel %vm47, %v4822, %v4341
    %v4828 = vsel %vm814, %v4825, 0
    %v4831 = vsel %vm814, %v4826, 0
    %4833 = vmatprep.subr.mxu0 0.0
    %4834 = vmatpush1.msra.mxu0 %v4036
    %4835 = vmatprep.subr.mxu0 0.0
    %4836 = vmatpush1.msra.mxu0 %v4037
    %4837 = vmatprep.subr.mxu0 0.0
    %4838 = vmatpush1.msra.mxu0 %v4038
    %4839 = vmatprep.subr.mxu0 0.0
    %4840 = vmatpush1.msra.mxu0 %v4039
    %4841 = vmatprep.subr.mxu0 0.0
    %4842 = vmatpush1.msra.mxu0 %v4040
    %4843 = vmatprep.subr.mxu0 0.0
    %4844 = vmatpush1.msra.mxu0 %v4041
    %4845 = vmatprep.subr.mxu0 0.0
    %4846 = vmatpush1.msra.mxu0 %v4042
    %4847 = vmatprep.subr.mxu0 0.0
    %4848 = vmatpush1.msra.mxu0 %v4043
    %4849 = vmatprep.subr.mxu0 0.0
    %4850 = vmatpush1.msra.mxu0 0.0
    %4851 = vmatprep.subr.mxu0 0.0
    %4852 = vmatpush1.msra.mxu0 0.0
    %4853 = vmatprep.subr.mxu0 0.0
    %4854 = vmatpush1.msra.mxu0 0.0
    %4855 = vmatprep.subr.mxu0 0.0
    %4856 = vmatpush1.msra.mxu0 0.0
    %4857 = vmatprep.subr.mxu0 0.0
    %4858 = vmatpush1.msra.mxu0 0.0
    %4859 = vmatprep.subr.mxu0 0.0
    %4860 = vmatpush1.msra.mxu0 0.0
    %4861 = vmatprep.subr.mxu0 0.0
    %4862 = vmatpush1.msra.mxu0 0.0
    %4863 = vmatprep.subr.mxu0 0.0
    %4864 = vmatpush1.msra.mxu0 0.0
    %4865 = vmatprep.subr.mxu0 0.0
    %4866 = vmatpush1.msra.mxu0 0.0
    %4867 = vmatprep.subr.mxu0 0.0
    %4868 = vmatpush1.msra.mxu0 0.0
    %4869 = vmatprep.subr.mxu0 0.0
    %4870 = vmatpush1.msra.mxu0 0.0
    %4871 = vmatprep.subr.mxu0 0.0
    %4872 = vmatpush1.msra.mxu0 0.0
    %4873 = vmatprep.subr.mxu0 0.0
    %4874 = vmatpush1.msra.mxu0 0.0
    %4875 = vmatprep.subr.mxu0 0.0
    %4876 = vmatpush1.msra.mxu0 0.0
    %4877 = vmatprep.subr.mxu0 0.0
    %4878 = vmatpush1.msra.mxu0 0.0
    %4879 = vmatprep.subr.mxu0 0.0
    %4880 = vmatpush1.msra.mxu0 0.0
    %4881 = vmatprep.subr.mxu0 0.0
    %4882 = vmatpush1.msra.mxu0 0.0
    %4883 = vmatprep.subr.mxu0 0.0
    %4884 = vmatpush1.msra.mxu0 0.0
    %4885 = vmatprep.subr.mxu0 0.0
    %4886 = vmatpush1.msra.mxu0 0.0
    %4887 = vmatprep.subr.mxu0 0.0
    %4888 = vmatpush1.msra.mxu0 0.0
    %4889 = vmatprep.subr.mxu0 0.0
    %4890 = vmatpush1.msra.mxu0 0.0
    %4891 = vmatprep.subr.mxu0 0.0
    %4892 = vmatpush1.msra.mxu0 0.0
    %4893 = vmatprep.subr.mxu0 0.0
    %4894 = vmatpush1.msra.mxu0 0.0
    %4895 = vmatprep.subr.mxu0 0.0
    %4896 = vmatpush1.msra.mxu0 0.0
    %4897 = vmatprep.mubr.f32.mxu0 0.0
    %4898 = vmatmul.mubr.f32.gmra.mrb[0].mxu0 %v4828
    %v4899 = vpop.f32.mrb[0].mxu0
    %v4900 = vadd.f32 %v4048, %v4899
    %v4901 = vpop.f32.mrb[0].mxu0
    %4902 = vmatprep.mubr.f32.mxu0 0.0
    %4903 = vmatmul.mubr.f32.gmra.mrb[0].mxu0 %v4831
    %v4904 = vpop.f32.mrb[0].mxu0
    %v4905 = vadd.f32 %v4048, %v4904
    %v4906 = vpop.f32.mrb[0].mxu0
    %4907 = vdwg.mxu0
    %v4908 = vxor.u32 %v4900, 2147483648
    %v4909 = vxor.u32 %v4905, 2147483648
    %v4910 = vmul.f32 %v4908, 1.442695
    %v4911 = vpow.pop %v4910
    %v4912 = vmul.f32 %v4909, 1.442695
    %v4913 = vpow.pop %v4912
    %v4914 = vadd.f32 %v4911, 1.0
    %v4915 = vadd.f32 %v4913, 1.0
    %v4916 = vrcp.pop %v4914
    %v4917 = vmul.f32 1.0, %v4916
    %v4918 = vrcp.pop %v4915
    %v4919 = vmul.f32 1.0, %v4918
    %v4921 = vsel %vm47, %v4650, 0
    %v4924 = vsel %vm47, %v4822, 0
    %4926 = vmatprep.subr.mxu0 0.0
    %4927 = vmatpush1.msra.mxu0 %v4142
    %4928 = vmatprep.subr.mxu0 0.0
    %4929 = vmatpush1.msra.mxu0 %v4143
    %4930 = vmatprep.subr.mxu0 0.0
    %4931 = vmatpush1.msra.mxu0 %v4144
    %4932 = vmatprep.subr.mxu0 0.0
    %4933 = vmatpush1.msra.mxu0 %v4145
    %4934 = vmatprep.subr.mxu0 0.0
    %4935 = vmatpush1.msra.mxu0 0.0
    %4936 = vmatprep.subr.mxu0 0.0
    %4937 = vmatpush1.msra.mxu0 0.0
    %4938 = vmatprep.subr.mxu0 0.0
    %4939 = vmatpush1.msra.mxu0 0.0
    %4940 = vmatprep.subr.mxu0 0.0
    %4941 = vmatpush1.msra.mxu0 0.0
    %4942 = vmatprep.subr.mxu0 0.0
    %4943 = vmatpush1.msra.mxu0 0.0
    %4944 = vmatprep.subr.mxu0 0.0
    %4945 = vmatpush1.msra.mxu0 0.0
    %4946 = vmatprep.subr.mxu0 0.0
    %4947 = vmatpush1.msra.mxu0 0.0
    %4948 = vmatprep.subr.mxu0 0.0
    %4949 = vmatpush1.msra.mxu0 0.0
    %4950 = vmatprep.subr.mxu0 0.0
    %4951 = vmatpush1.msra.mxu0 0.0
    %4952 = vmatprep.subr.mxu0 0.0
    %4953 = vmatpush1.msra.mxu0 0.0
    %4954 = vmatprep.subr.mxu0 0.0
    %4955 = vmatpush1.msra.mxu0 0.0
    %4956 = vmatprep.subr.mxu0 0.0
    %4957 = vmatpush1.msra.mxu0 0.0
    %4958 = vmatprep.subr.mxu0 0.0
    %4959 = vmatpush1.msra.mxu0 0.0
    %4960 = vmatprep.subr.mxu0 0.0
    %4961 = vmatpush1.msra.mxu0 0.0
    %4962 = vmatprep.subr.mxu0 0.0
    %4963 = vmatpush1.msra.mxu0 0.0
    %4964 = vmatprep.subr.mxu0 0.0
    %4965 = vmatpush1.msra.mxu0 0.0
    %4966 = vmatprep.subr.mxu0 0.0
    %4967 = vmatpush1.msra.mxu0 0.0
    %4968 = vmatprep.subr.mxu0 0.0
    %4969 = vmatpush1.msra.mxu0 0.0
    %4970 = vmatprep.subr.mxu0 0.0
    %4971 = vmatpush1.msra.mxu0 0.0
    %4972 = vmatprep.subr.mxu0 0.0
    %4973 = vmatpush1.msra.mxu0 0.0
    %4974 = vmatprep.subr.mxu0 0.0
    %4975 = vmatpush1.msra.mxu0 0.0
    %4976 = vmatprep.subr.mxu0 0.0
    %4977 = vmatpush1.msra.mxu0 0.0
    %4978 = vmatprep.subr.mxu0 0.0
    %4979 = vmatpush1.msra.mxu0 0.0
    %4980 = vmatprep.subr.mxu0 0.0
    %4981 = vmatpush1.msra.mxu0 0.0
    %4982 = vmatprep.subr.mxu0 0.0
    %4983 = vmatpush1.msra.mxu0 0.0
    %4984 = vmatprep.subr.mxu0 0.0
    %4985 = vmatpush1.msra.mxu0 0.0
    %4986 = vmatprep.subr.mxu0 0.0
    %4987 = vmatpush1.msra.mxu0 0.0
    %4988 = vmatprep.subr.mxu0 0.0
    %4989 = vmatpush1.msra.mxu0 0.0
    %4990 = vmatprep.mubr.f32.mxu0 0.0
    %4991 = vmatmul.mubr.f32.gmra.mrb[0].mxu0 %v4921
    %v4992 = vpop.f32.mrb[0].mxu0
    %v4993 = vadd.f32 %v4150, %v4992
    %v4994 = vpop.f32.mrb[0].mxu0
    %4995 = vmatprep.mubr.f32.mxu0 0.0
    %4996 = vmatmul.mubr.f32.gmra.mrb[0].mxu0 %v4924
    %v4997 = vpop.f32.mrb[0].mxu0
    %v4998 = vadd.f32 %v4150, %v4997
    %v4999 = vpop.f32.mrb[0].mxu0
    %5000 = vdwg.mxu0
    %v5001 = vsel %vm47, %v4345, 0
    %v5003 = vsel %vm47, %v4347, 0
    %5005 = vmatprep.subr.mxu0 0.0
    %5006 = vmatpush1.msra.mxu0 %v4232
    %5007 = vmatprep.subr.mxu0 0.0
    %5008 = vmatpush1.msra.mxu0 %v4233
    %5009 = vmatprep.subr.mxu0 0.0
    %5010 = vmatpush1.msra.mxu0 %v4234
    %5011 = vmatprep.subr.mxu0 0.0
    %5012 = vmatpush1.msra.mxu0 %v4235
    %5013 = vmatprep.subr.mxu0 0.0
    %5014 = vmatpush1.msra.mxu0 0.0
    %5015 = vmatprep.subr.mxu0 0.0
    %5016 = vmatpush1.msra.mxu0 0.0
    %5017 = vmatprep.subr.mxu0 0.0
    %5018 = vmatpush1.msra.mxu0 0.0
    %5019 = vmatprep.subr.mxu0 0.0
    %5020 = vmatpush1.msra.mxu0 0.0
    %5021 = vmatprep.subr.mxu0 0.0
    %5022 = vmatpush1.msra.mxu0 0.0
    %5023 = vmatprep.subr.mxu0 0.0
    %5024 = vmatpush1.msra.mxu0 0.0
    %5025 = vmatprep.subr.mxu0 0.0
    %5026 = vmatpush1.msra.mxu0 0.0
    %5027 = vmatprep.subr.mxu0 0.0
    %5028 = vmatpush1.msra.mxu0 0.0
    %5029 = vmatprep.subr.mxu0 0.0
    %5030 = vmatpush1.msra.mxu0 0.0
    %5031 = vmatprep.subr.mxu0 0.0
    %5032 = vmatpush1.msra.mxu0 0.0
    %5033 = vmatprep.subr.mxu0 0.0
    %5034 = vmatpush1.msra.mxu0 0.0
    %5035 = vmatprep.subr.mxu0 0.0
    %5036 = vmatpush1.msra.mxu0 0.0
    %5037 = vmatprep.subr.mxu0 0.0
    %5038 = vmatpush1.msra.mxu0 0.0
    %5039 = vmatprep.subr.mxu0 0.0
    %5040 = vmatpush1.msra.mxu0 0.0
    %5041 = vmatprep.subr.mxu0 0.0
    %5042 = vmatpush1.msra.mxu0 0.0
    %5043 = vmatprep.subr.mxu0 0.0
    %5044 = vmatpush1.msra.mxu0 0.0
    %5045 = vmatprep.subr.mxu0 0.0
    %5046 = vmatpush1.msra.mxu0 0.0
    %5047 = vmatprep.subr.mxu0 0.0
    %5048 = vmatpush1.msra.mxu0 0.0
    %5049 = vmatprep.subr.mxu0 0.0
    %5050 = vmatpush1.msra.mxu0 0.0
    %5051 = vmatprep.subr.mxu0 0.0
    %5052 = vmatpush1.msra.mxu0 0.0
    %5053 = vmatprep.subr.mxu0 0.0
    %5054 = vmatpush1.msra.mxu0 0.0
    %5055 = vmatprep.subr.mxu0 0.0
    %5056 = vmatpush1.msra.mxu0 0.0
    %5057 = vmatprep.subr.mxu0 0.0
    %5058 = vmatpush1.msra.mxu0 0.0
    %5059 = vmatprep.subr.mxu0 0.0
    %5060 = vmatpush1.msra.mxu0 0.0
    %5061 = vmatprep.subr.mxu0 0.0
    %5062 = vmatpush1.msra.mxu0 0.0
    %5063 = vmatprep.subr.mxu0 0.0
    %5064 = vmatpush1.msra.mxu0 0.0
    %5065 = vmatprep.subr.mxu0 0.0
    %5066 = vmatpush1.msra.mxu0 0.0
    %5067 = vmatprep.subr.mxu0 0.0
    %5068 = vmatpush1.msra.mxu0 0.0
    %5069 = vmatprep.mubr.f32.mxu0 0.0
    %5070 = vmatmul.mubr.f32.gmra.mrb[0].mxu0 %v5001
    %v5071 = vpop.f32.mrb[0].mxu0
    %v5072 = vadd.f32 %v4240, %v5071
    %v5073 = vpop.f32.mrb[0].mxu0
    %5074 = vmatprep.mubr.f32.mxu0 0.0
    %5075 = vmatmul.mubr.f32.gmra.mrb[0].mxu0 %v5003
    %v5076 = vpop.f32.mrb[0].mxu0
    %v5077 = vadd.f32 %v4240, %v5076
    %v5078 = vpop.f32.mrb[0].mxu0
    %5079 = vdwg.mxu0
    %v5080 = vmul.f32 %v4917, %v5072
    %v5081 = vmul.f32 %v4919, %v5077
    %v5082 = vadd.f32 %v4993, %v5080
    %v5083 = vadd.f32 %v4998, %v5081
    %v5084 = vtanh.pop %v5082
    %v5085 = vtanh.pop %v5083
    %v5086 = vsub.f32 1.0, %v4917
    %v5087 = vsub.f32 1.0, %v4919
    %5090 = vrot.lane.b32.xlu0 %v5084, 32
    %v5091 = vpop.permute.xlu0 %5090
    %5092 = vrot.lane.b32.xlu0 %v5085, 32
    %v5093 = vpop.permute.xlu0 %5092
    %v5096 = vmul.f32 %v5086, %v5091
    %v5097 = vmul.f32 %v5087, %v5093
    %v5098 = vmul.f32 %v4917, %v4340
    %v5099 = vmul.f32 %v4919, %v4341
    %v5100 = vadd.f32 %v5096, %v5098
    %v5101 = vadd.f32 %v5097, %v5099
    %5104 = vrot.lane.b32.xlu0 %v5100, 96
    %v5105 = vpop.permute.xlu0 %5104
    %5106 = vrot.lane.b32.xlu0 %v5101, 96
    %v5107 = vpop.permute.xlu0 %5106
    %v5110 = vsel %vm47, %v5105, 0.0
    %5111 = vadd.xlane.f32.xlu0 %v5110
    %v5112 = vpop.xlane.xlu0 %5111
    %v5113 = vsel %vm47, %v5107, 0.0
    %5114 = vadd.xlane.f32.xlu0 %v5113
    %v5115 = vpop.xlane.xlu0 %5114
    %v5116 = vmul.f32 %v5112, %v60
    %v5117 = vmul.f32 %v5115, %v60
    %v5118 = vsub.f32 %v5100, %v5116
    %v5119 = vsub.f32 %v5101, %v5117
    %v5120 = vmul.f32 %v5118, %v5118
    %v5121 = vmul.f32 %v5119, %v5119
    %5124 = vrot.lane.b32.xlu0 %v5120, 96
    %v5125 = vpop.permute.xlu0 %5124
    %5126 = vrot.lane.b32.xlu0 %v5121, 96
    %v5127 = vpop.permute.xlu0 %5126
    %v5130 = vsel %vm47, %v5125, 0.0
    %5131 = vadd.xlane.f32.xlu0 %v5130
    %v5132 = vpop.xlane.xlu0 %5131
    %v5133 = vsel %vm47, %v5127, 0.0
    %5134 = vadd.xlane.f32.xlu0 %v5133
    %v5135 = vpop.xlane.xlu0 %5134
    %v5136 = vmul.f32 %v5132, %v60
    %v5137 = vmul.f32 %v5135, %v60
    %v5138 = vadd.f32 %v5136, 1e-05
    %v5139 = vadd.f32 %v5137, 1e-05
    %v5140 = vrsqrt.pop %v5138
    %v5141 = vrsqrt.pop %v5139
    %v5142 = vmul.f32 %v5118, %v5140
    %v5143 = vmul.f32 %v5119, %v5141
    %v5144 = vmul.f32 %v5142, %v4386
    %v5145 = vmul.f32 %v5143, %v4386
    %v5146 = vadd.f32 %v5144, %v4392
    %v5147 = vadd.f32 %v5145, %v4392
    %5150 = vrot.lane.b32.xlu0 %v5146, 96
    %v5151 = vpop.permute.xlu0 %5150
    %5152 = vrot.lane.b32.xlu0 %v5147, 96
    %v5153 = vpop.permute.xlu0 %5152
    %v5154 = vsel %vm47, %v5151, 0
    %v5156 = vsel %vm47, %v5153, 0
    %5158 = vmatprep.subr.mxu0 0.0
    %5159 = vmatpush1.msra.mxu0 %v3585
    %5160 = vmatprep.subr.mxu0 0.0
    %5161 = vmatpush1.msra.mxu0 %v3586
    %5162 = vmatprep.subr.mxu0 0.0
    %5163 = vmatpush1.msra.mxu0 %v3587
    %5164 = vmatprep.subr.mxu0 0.0
    %5165 = vmatpush1.msra.mxu0 %v3588
    %5166 = vmatprep.subr.mxu0 0.0
    %5167 = vmatpush1.msra.mxu0 0.0
    %5168 = vmatprep.subr.mxu0 0.0
    %5169 = vmatpush1.msra.mxu0 0.0
    %5170 = vmatprep.subr.mxu0 0.0
    %5171 = vmatpush1.msra.mxu0 0.0
    %5172 = vmatprep.subr.mxu0 0.0
    %5173 = vmatpush1.msra.mxu0 0.0
    %5174 = vmatprep.subr.mxu0 0.0
    %5175 = vmatpush1.msra.mxu0 0.0
    %5176 = vmatprep.subr.mxu0 0.0
    %5177 = vmatpush1.msra.mxu0 0.0
    %5178 = vmatprep.subr.mxu0 0.0
    %5179 = vmatpush1.msra.mxu0 0.0
    %5180 = vmatprep.subr.mxu0 0.0
    %5181 = vmatpush1.msra.mxu0 0.0
    %5182 = vmatprep.subr.mxu0 0.0
    %5183 = vmatpush1.msra.mxu0 0.0
    %5184 = vmatprep.subr.mxu0 0.0
    %5185 = vmatpush1.msra.mxu0 0.0
    %5186 = vmatprep.subr.mxu0 0.0
    %5187 = vmatpush1.msra.mxu0 0.0
    %5188 = vmatprep.subr.mxu0 0.0
    %5189 = vmatpush1.msra.mxu0 0.0
    %5190 = vmatprep.subr.mxu0 0.0
    %5191 = vmatpush1.msra.mxu0 0.0
    %5192 = vmatprep.subr.mxu0 0.0
    %5193 = vmatpush1.msra.mxu0 0.0
    %5194 = vmatprep.subr.mxu0 0.0
    %5195 = vmatpush1.msra.mxu0 0.0
    %5196 = vmatprep.subr.mxu0 0.0
    %5197 = vmatpush1.msra.mxu0 0.0
    %5198 = vmatprep.subr.mxu0 0.0
    %5199 = vmatpush1.msra.mxu0 0.0
    %5200 = vmatprep.subr.mxu0 0.0
    %5201 = vmatpush1.msra.mxu0 0.0
    %5202 = vmatprep.subr.mxu0 0.0
    %5203 = vmatpush1.msra.mxu0 0.0
    %5204 = vmatprep.subr.mxu0 0.0
    %5205 = vmatpush1.msra.mxu0 0.0
    %5206 = vmatprep.subr.mxu0 0.0
    %5207 = vmatpush1.msra.mxu0 0.0
    %5208 = vmatprep.subr.mxu0 0.0
    %5209 = vmatpush1.msra.mxu0 0.0
    %5210 = vmatprep.subr.mxu0 0.0
    %5211 = vmatpush1.msra.mxu0 0.0
    %5212 = vmatprep.subr.mxu0 0.0
    %5213 = vmatpush1.msra.mxu0 0.0
    %5214 = vmatprep.subr.mxu0 0.0
    %5215 = vmatpush1.msra.mxu0 0.0
    %5216 = vmatprep.subr.mxu0 0.0
    %5217 = vmatpush1.msra.mxu0 0.0
    %5218 = vmatprep.subr.mxu0 0.0
    %5219 = vmatpush1.msra.mxu0 0.0
    %5220 = vmatprep.subr.mxu0 0.0
    %5221 = vmatpush1.msra.mxu0 0.0
    %5222 = vmatprep.mubr.f32.mxu0 0.0
    %5223 = vmatmul.mubr.f32.gmra.mrb[0].mxu0 %v5154
    %v5224 = vpop.f32.mrb[0].mxu0
    %v5225 = vadd.f32 0.0, %v5224
    %v5226 = vpop.f32.mrb[0].mxu0
    %5227 = vmatprep.mubr.f32.mxu0 0.0
    %5228 = vmatmul.mubr.f32.gmra.mrb[0].mxu0 %v5156
    %v5229 = vpop.f32.mrb[0].mxu0
    %v5230 = vadd.f32 0.0, %v5229
    %v5231 = vpop.f32.mrb[0].mxu0
    %5232 = vdwg.mxu0
    %v5234 = vsel %vm47, %v5225, 0
    %5236 = vmatprep.subr.mxu0 0.0
    %5237 = vmatpush1.xpose.msra.mxu0 %v3674
    %5238 = vmatprep.subr.mxu0 0.0
    %5239 = vmatpush1.xpose.msra.mxu0 %v3677
    %5240 = vmatprep.subr.mxu0 0.0
    %5241 = vmatpush1.xpose.msra.mxu0 0.0
    %5242 = vmatprep.subr.mxu0 0.0
    %5243 = vmatpush1.xpose.msra.mxu0 0.0
    %5244 = vmatprep.subr.mxu0 0.0
    %5245 = vmatpush1.xpose.msra.mxu0 0.0
    %5246 = vmatprep.subr.mxu0 0.0
    %5247 = vmatpush1.xpose.msra.mxu0 0.0
    %5248 = vmatprep.subr.mxu0 0.0
    %5249 = vmatpush1.xpose.msra.mxu0 0.0
    %5250 = vmatprep.subr.mxu0 0.0
    %5251 = vmatpush1.xpose.msra.mxu0 0.0
    %5252 = vmatprep.subr.mxu0 0.0
    %5253 = vmatpush1.xpose.msra.mxu0 0.0
    %5254 = vmatprep.subr.mxu0 0.0
    %5255 = vmatpush1.xpose.msra.mxu0 0.0
    %5256 = vmatprep.subr.mxu0 0.0
    %5257 = vmatpush1.xpose.msra.mxu0 0.0
    %5258 = vmatprep.subr.mxu0 0.0
    %5259 = vmatpush1.xpose.msra.mxu0 0.0
    %5260 = vmatprep.subr.mxu0 0.0
    %5261 = vmatpush1.xpose.msra.mxu0 0.0
    %5262 = vmatprep.subr.mxu0 0.0
    %5263 = vmatpush1.xpose.msra.mxu0 0.0
    %5264 = vmatprep.subr.mxu0 0.0
    %5265 = vmatpush1.xpose.msra.mxu0 0.0
    %5266 = vmatprep.subr.mxu0 0.0
    %5267 = vmatpush1.xpose.msra.mxu0 0.0
    %5268 = vmatprep.subr.mxu0 0.0
    %5269 = vmatpush1.xpose.msra.mxu0 0.0
    %5270 = vmatprep.subr.mxu0 0.0
    %5271 = vmatpush1.xpose.msra.mxu0 0.0
    %5272 = vmatprep.subr.mxu0 0.0
    %5273 = vmatpush1.xpose.msra.mxu0 0.0
    %5274 = vmatprep.subr.mxu0 0.0
    %5275 = vmatpush1.xpose.msra.mxu0 0.0
    %5276 = vmatprep.subr.mxu0 0.0
    %5277 = vmatpush1.xpose.msra.mxu0 0.0
    %5278 = vmatprep.subr.mxu0 0.0
    %5279 = vmatpush1.xpose.msra.mxu0 0.0
    %5280 = vmatprep.subr.mxu0 0.0
    %5281 = vmatpush1.xpose.msra.mxu0 0.0
    %5282 = vmatprep.subr.mxu0 0.0
    %5283 = vmatpush1.xpose.msra.mxu0 0.0
    %5284 = vmatprep.subr.mxu0 0.0
    %5285 = vmatpush1.xpose.msra.mxu0 0.0
    %5286 = vmatprep.subr.mxu0 0.0
    %5287 = vmatpush1.xpose.msra.mxu0 0.0
    %5288 = vmatprep.subr.mxu0 0.0
    %5289 = vmatpush1.xpose.msra.mxu0 0.0
    %5290 = vmatprep.subr.mxu0 0.0
    %5291 = vmatpush1.xpose.msra.mxu0 0.0
    %5292 = vmatprep.subr.mxu0 0.0
    %5293 = vmatpush1.xpose.msra.mxu0 0.0
    %5294 = vmatprep.subr.mxu0 0.0
    %5295 = vmatpush1.xpose.msra.mxu0 0.0
    %5296 = vmatprep.subr.mxu0 0.0
    %5297 = vmatpush1.xpose.msra.mxu0 0.0
    %5298 = vmatprep.subr.mxu0 0.0
    %5299 = vmatpush1.xpose.msra.mxu0 0.0
    %5300 = vmatprep.mubr.f32.mxu0 0.0
    %5301 = vmatmul.mubr.f32.gmra.mrb[0].mxu0 %v5234
    %v5302 = vpop.f32.mrb[0].mxu0
    %v5303 = vadd.f32 0.0, %v5302
    %v5304 = vpop.f32.mrb[0].mxu0
    %5305 = vdwg.mxu0
    %v5306 = vmul.f32 %v5303, 0.17677669
    %v5307 = vsel %vm514, %v5306, -inf
    %v5308 = vrot.slane %v5307, 4
    %v5309 = vmax.f32 %v5307, %v5308
    %v5310 = vrot.slane %v5309, 2
    %v5311 = vmax.f32 %v5309, %v5310
    %v5312 = vrot.slane %v5311, 1
    %v5313 = vmax.f32 %v5311, %v5312
    %v5314 = vsub.f32 %v5306, %v5313
    %v5315 = vmul.f32 %v5314, 1.442695
    %v5316 = vpow.pop %v5315
    %v5317 = vsel %vm514, %v5316, 0.0
    %v5318 = vrot.slane %v5317, 4
    %v5319 = vadd.f32 %v5317, %v5318
    %v5320 = vrot.slane %v5319, 2
    %v5321 = vadd.f32 %v5319, %v5320
    %v5322 = vrot.slane %v5321, 1
    %v5323 = vadd.f32 %v5321, %v5322
    %v5324 = vrcp.pop %v5323
    %v5325 = vmul.f32 %v5316, %v5324
    %v5326 = vadd.f32 %v5325, 1e-08
    %v5327 = vsel %vm514, %v5326, 0.0
    %5328 = vadd.xlane.f32.xlu0 %v5327
    %v5329 = vpop.xlane.xlu0 %5328
    %v5330 = vrcp.pop %v5329
    %v5331 = vmul.f32 %v5326, %v5330
    %v5333 = vsel %vm514, %v5331, 0
    %5335 = vmatprep.subr.mxu0 0.0
    %5336 = vmatpush1.msra.mxu0 %v3525
    %5337 = vmatprep.subr.mxu0 0.0
    %5338 = vmatpush1.msra.mxu0 %v3530
    %5339 = vmatprep.subr.mxu0 0.0
    %5340 = vmatpush1.msra.mxu0 0.0
    %5341 = vmatprep.subr.mxu0 0.0
    %5342 = vmatpush1.msra.mxu0 0.0
    %5343 = vmatprep.subr.mxu0 0.0
    %5344 = vmatpush1.msra.mxu0 0.0
    %5345 = vmatprep.subr.mxu0 0.0
    %5346 = vmatpush1.msra.mxu0 0.0
    %5347 = vmatprep.subr.mxu0 0.0
    %5348 = vmatpush1.msra.mxu0 0.0
    %5349 = vmatprep.subr.mxu0 0.0
    %5350 = vmatpush1.msra.mxu0 0.0
    %5351 = vmatprep.subr.mxu0 0.0
    %5352 = vmatpush1.msra.mxu0 0.0
    %5353 = vmatprep.subr.mxu0 0.0
    %5354 = vmatpush1.msra.mxu0 0.0
    %5355 = vmatprep.subr.mxu0 0.0
    %5356 = vmatpush1.msra.mxu0 0.0
    %5357 = vmatprep.subr.mxu0 0.0
    %5358 = vmatpush1.msra.mxu0 0.0
    %5359 = vmatprep.subr.mxu0 0.0
    %5360 = vmatpush1.msra.mxu0 0.0
    %5361 = vmatprep.subr.mxu0 0.0
    %5362 = vmatpush1.msra.mxu0 0.0
    %5363 = vmatprep.subr.mxu0 0.0
    %5364 = vmatpush1.msra.mxu0 0.0
    %5365 = vmatprep.subr.mxu0 0.0
    %5366 = vmatpush1.msra.mxu0 0.0
    %5367 = vmatprep.subr.mxu0 0.0
    %5368 = vmatpush1.msra.mxu0 0.0
    %5369 = vmatprep.subr.mxu0 0.0
    %5370 = vmatpush1.msra.mxu0 0.0
    %5371 = vmatprep.subr.mxu0 0.0
    %5372 = vmatpush1.msra.mxu0 0.0
    %5373 = vmatprep.subr.mxu0 0.0
    %5374 = vmatpush1.msra.mxu0 0.0
    %5375 = vmatprep.subr.mxu0 0.0
    %5376 = vmatpush1.msra.mxu0 0.0
    %5377 = vmatprep.subr.mxu0 0.0
    %5378 = vmatpush1.msra.mxu0 0.0
    %5379 = vmatprep.subr.mxu0 0.0
    %5380 = vmatpush1.msra.mxu0 0.0
    %5381 = vmatprep.subr.mxu0 0.0
    %5382 = vmatpush1.msra.mxu0 0.0
    %5383 = vmatprep.subr.mxu0 0.0
    %5384 = vmatpush1.msra.mxu0 0.0
    %5385 = vmatprep.subr.mxu0 0.0
    %5386 = vmatpush1.msra.mxu0 0.0
    %5387 = vmatprep.subr.mxu0 0.0
    %5388 = vmatpush1.msra.mxu0 0.0
    %5389 = vmatprep.subr.mxu0 0.0
    %5390 = vmatpush1.msra.mxu0 0.0
    %5391 = vmatprep.subr.mxu0 0.0
    %5392 = vmatpush1.msra.mxu0 0.0
    %5393 = vmatprep.subr.mxu0 0.0
    %5394 = vmatpush1.msra.mxu0 0.0
    %5395 = vmatprep.subr.mxu0 0.0
    %5396 = vmatpush1.msra.mxu0 0.0
    %5397 = vmatprep.subr.mxu0 0.0
    %5398 = vmatpush1.msra.mxu0 0.0
    %5399 = vmatprep.mubr.f32.mxu0 0.0
    %5400 = vmatmul.mubr.f32.gmra.mrb[0].mxu0 %v5333
    %v5401 = vpop.f32.mrb[0].mxu0
    %v5402 = vadd.f32 0.0, %v5401
    %v5403 = vpop.f32.mrb[0].mxu0
    %5404 = vdwg.mxu0
    %v5406 = vsel %vm47, %v5230, 0
    %5408 = vmatprep.subr.mxu0 0.0
    %5409 = vmatpush1.xpose.msra.mxu0 %v3852
    %5410 = vmatprep.subr.mxu0 0.0
    %5411 = vmatpush1.xpose.msra.mxu0 %v3855
    %5412 = vmatprep.subr.mxu0 0.0
    %5413 = vmatpush1.xpose.msra.mxu0 0.0
    %5414 = vmatprep.subr.mxu0 0.0
    %5415 = vmatpush1.xpose.msra.mxu0 0.0
    %5416 = vmatprep.subr.mxu0 0.0
    %5417 = vmatpush1.xpose.msra.mxu0 0.0
    %5418 = vmatprep.subr.mxu0 0.0
    %5419 = vmatpush1.xpose.msra.mxu0 0.0
    %5420 = vmatprep.subr.mxu0 0.0
    %5421 = vmatpush1.xpose.msra.mxu0 0.0
    %5422 = vmatprep.subr.mxu0 0.0
    %5423 = vmatpush1.xpose.msra.mxu0 0.0
    %5424 = vmatprep.subr.mxu0 0.0
    %5425 = vmatpush1.xpose.msra.mxu0 0.0
    %5426 = vmatprep.subr.mxu0 0.0
    %5427 = vmatpush1.xpose.msra.mxu0 0.0
    %5428 = vmatprep.subr.mxu0 0.0
    %5429 = vmatpush1.xpose.msra.mxu0 0.0
    %5430 = vmatprep.subr.mxu0 0.0
    %5431 = vmatpush1.xpose.msra.mxu0 0.0
    %5432 = vmatprep.subr.mxu0 0.0
    %5433 = vmatpush1.xpose.msra.mxu0 0.0
    %5434 = vmatprep.subr.mxu0 0.0
    %5435 = vmatpush1.xpose.msra.mxu0 0.0
    %5436 = vmatprep.subr.mxu0 0.0
    %5437 = vmatpush1.xpose.msra.mxu0 0.0
    %5438 = vmatprep.subr.mxu0 0.0
    %5439 = vmatpush1.xpose.msra.mxu0 0.0
    %5440 = vmatprep.subr.mxu0 0.0
    %5441 = vmatpush1.xpose.msra.mxu0 0.0
    %5442 = vmatprep.subr.mxu0 0.0
    %5443 = vmatpush1.xpose.msra.mxu0 0.0
    %5444 = vmatprep.subr.mxu0 0.0
    %5445 = vmatpush1.xpose.msra.mxu0 0.0
    %5446 = vmatprep.subr.mxu0 0.0
    %5447 = vmatpush1.xpose.msra.mxu0 0.0
    %5448 = vmatprep.subr.mxu0 0.0
    %5449 = vmatpush1.xpose.msra.mxu0 0.0
    %5450 = vmatprep.subr.mxu0 0.0
    %5451 = vmatpush1.xpose.msra.mxu0 0.0
    %5452 = vmatprep.subr.mxu0 0.0
    %5453 = vmatpush1.xpose.msra.mxu0 0.0
    %5454 = vmatprep.subr.mxu0 0.0
    %5455 = vmatpush1.xpose.msra.mxu0 0.0
    %5456 = vmatprep.subr.mxu0 0.0
    %5457 = vmatpush1.xpose.msra.mxu0 0.0
    %5458 = vmatprep.subr.mxu0 0.0
    %5459 = vmatpush1.xpose.msra.mxu0 0.0
    %5460 = vmatprep.subr.mxu0 0.0
    %5461 = vmatpush1.xpose.msra.mxu0 0.0
    %5462 = vmatprep.subr.mxu0 0.0
    %5463 = vmatpush1.xpose.msra.mxu0 0.0
    %5464 = vmatprep.subr.mxu0 0.0
    %5465 = vmatpush1.xpose.msra.mxu0 0.0
    %5466 = vmatprep.subr.mxu0 0.0
    %5467 = vmatpush1.xpose.msra.mxu0 0.0
    %5468 = vmatprep.subr.mxu0 0.0
    %5469 = vmatpush1.xpose.msra.mxu0 0.0
    %5470 = vmatprep.subr.mxu0 0.0
    %5471 = vmatpush1.xpose.msra.mxu0 0.0
    %5472 = vmatprep.mubr.f32.mxu0 0.0
    %5473 = vmatmul.mubr.f32.gmra.mrb[0].mxu0 %v5406
    %v5474 = vpop.f32.mrb[0].mxu0
    %v5475 = vadd.f32 0.0, %v5474
    %v5476 = vpop.f32.mrb[0].mxu0
    %5477 = vdwg.mxu0
    %v5478 = vmul.f32 %v5475, 0.17677669
    %v5479 = vsel %vm514, %v5478, -inf
    %v5480 = vrot.slane %v5479, 4
    %v5481 = vmax.f32 %v5479, %v5480
    %v5482 = vrot.slane %v5481, 2
    %v5483 = vmax.f32 %v5481, %v5482
    %v5484 = vrot.slane %v5483, 1
    %v5485 = vmax.f32 %v5483, %v5484
    %v5486 = vsub.f32 %v5478, %v5485
    %v5487 = vmul.f32 %v5486, 1.442695
    %v5488 = vpow.pop %v5487
    %v5489 = vsel %vm514, %v5488, 0.0
    %v5490 = vrot.slane %v5489, 4
    %v5491 = vadd.f32 %v5489, %v5490
    %v5492 = vrot.slane %v5491, 2
    %v5493 = vadd.f32 %v5491, %v5492
    %v5494 = vrot.slane %v5493, 1
    %v5495 = vadd.f32 %v5493, %v5494
    %v5496 = vrcp.pop %v5495
    %v5497 = vmul.f32 %v5488, %v5496
    %v5498 = vadd.f32 %v5497, 1e-08
    %v5499 = vsel %vm514, %v5498, 0.0
    %5500 = vadd.xlane.f32.xlu0 %v5499
    %v5501 = vpop.xlane.xlu0 %5500
    %v5502 = vrcp.pop %v5501
    %v5503 = vmul.f32 %v5498, %v5502
    %v5505 = vsel %vm514, %v5503, 0
    %5507 = vmatprep.subr.mxu0 0.0
    %5508 = vmatpush1.msra.mxu0 %v3535
    %5509 = vmatprep.subr.mxu0 0.0
    %5510 = vmatpush1.msra.mxu0 %v3540
    %5511 = vmatprep.subr.mxu0 0.0
    %5512 = vmatpush1.msra.mxu0 0.0
    %5513 = vmatprep.subr.mxu0 0.0
    %5514 = vmatpush1.msra.mxu0 0.0
    %5515 = vmatprep.subr.mxu0 0.0
    %5516 = vmatpush1.msra.mxu0 0.0
    %5517 = vmatprep.subr.mxu0 0.0
    %5518 = vmatpush1.msra.mxu0 0.0
    %5519 = vmatprep.subr.mxu0 0.0
    %5520 = vmatpush1.msra.mxu0 0.0
    %5521 = vmatprep.subr.mxu0 0.0
    %5522 = vmatpush1.msra.mxu0 0.0
    %5523 = vmatprep.subr.mxu0 0.0
    %5524 = vmatpush1.msra.mxu0 0.0
    %5525 = vmatprep.subr.mxu0 0.0
    %5526 = vmatpush1.msra.mxu0 0.0
    %5527 = vmatprep.subr.mxu0 0.0
    %5528 = vmatpush1.msra.mxu0 0.0
    %5529 = vmatprep.subr.mxu0 0.0
    %5530 = vmatpush1.msra.mxu0 0.0
    %5531 = vmatprep.subr.mxu0 0.0
    %5532 = vmatpush1.msra.mxu0 0.0
    %5533 = vmatprep.subr.mxu0 0.0
    %5534 = vmatpush1.msra.mxu0 0.0
    %5535 = vmatprep.subr.mxu0 0.0
    %5536 = vmatpush1.msra.mxu0 0.0
    %5537 = vmatprep.subr.mxu0 0.0
    %5538 = vmatpush1.msra.mxu0 0.0
    %5539 = vmatprep.subr.mxu0 0.0
    %5540 = vmatpush1.msra.mxu0 0.0
    %5541 = vmatprep.subr.mxu0 0.0
    %5542 = vmatpush1.msra.mxu0 0.0
    %5543 = vmatprep.subr.mxu0 0.0
    %5544 = vmatpush1.msra.mxu0 0.0
    %5545 = vmatprep.subr.mxu0 0.0
    %5546 = vmatpush1.msra.mxu0 0.0
    %5547 = vmatprep.subr.mxu0 0.0
    %5548 = vmatpush1.msra.mxu0 0.0
    %5549 = vmatprep.subr.mxu0 0.0
    %5550 = vmatpush1.msra.mxu0 0.0
    %5551 = vmatprep.subr.mxu0 0.0
    %5552 = vmatpush1.msra.mxu0 0.0
    %5553 = vmatprep.subr.mxu0 0.0
    %5554 = vmatpush1.msra.mxu0 0.0
    %5555 = vmatprep.subr.mxu0 0.0
    %5556 = vmatpush1.msra.mxu0 0.0
    %5557 = vmatprep.subr.mxu0 0.0
    %5558 = vmatpush1.msra.mxu0 0.0
    %5559 = vmatprep.subr.mxu0 0.0
    %5560 = vmatpush1.msra.mxu0 0.0
    %5561 = vmatprep.subr.mxu0 0.0
    %5562 = vmatpush1.msra.mxu0 0.0
    %5563 = vmatprep.subr.mxu0 0.0
    %5564 = vmatpush1.msra.mxu0 0.0
    %5565 = vmatprep.subr.mxu0 0.0
    %5566 = vmatpush1.msra.mxu0 0.0
    %5567 = vmatprep.subr.mxu0 0.0
    %5568 = vmatpush1.msra.mxu0 0.0
    %5569 = vmatprep.subr.mxu0 0.0
    %5570 = vmatpush1.msra.mxu0 0.0
    %5571 = vmatprep.mubr.f32.mxu0 0.0
    %5572 = vmatmul.mubr.f32.gmra.mrb[0].mxu0 %v5505
    %v5573 = vpop.f32.mrb[0].mxu0
    %v5574 = vadd.f32 0.0, %v5573
    %v5575 = vpop.f32.mrb[0].mxu0
    %5576 = vdwg.mxu0
    %v5577 = vsel %vm47, %v5402, %v5100
    %v5578 = vsel %vm47, %v5574, %v5101
    %v5580 = vsel %vm814, %v5577, 0
    %v5583 = vsel %vm814, %v5578, 0
    %5585 = vmatprep.subr.mxu0 0.0
    %5586 = vmatpush1.msra.mxu0 %v4036
    %5587 = vmatprep.subr.mxu0 0.0
    %5588 = vmatpush1.msra.mxu0 %v4037
    %5589 = vmatprep.subr.mxu0 0.0
    %5590 = vmatpush1.msra.mxu0 %v4038
    %5591 = vmatprep.subr.mxu0 0.0
    %5592 = vmatpush1.msra.mxu0 %v4039
    %5593 = vmatprep.subr.mxu0 0.0
    %5594 = vmatpush1.msra.mxu0 %v4040
    %5595 = vmatprep.subr.mxu0 0.0
    %5596 = vmatpush1.msra.mxu0 %v4041
    %5597 = vmatprep.subr.mxu0 0.0
    %5598 = vmatpush1.msra.mxu0 %v4042
    %5599 = vmatprep.subr.mxu0 0.0
    %5600 = vmatpush1.msra.mxu0 %v4043
    %5601 = vmatprep.subr.mxu0 0.0
    %5602 = vmatpush1.msra.mxu0 0.0
    %5603 = vmatprep.subr.mxu0 0.0
    %5604 = vmatpush1.msra.mxu0 0.0
    %5605 = vmatprep.subr.mxu0 0.0
    %5606 = vmatpush1.msra.mxu0 0.0
    %5607 = vmatprep.subr.mxu0 0.0
    %5608 = vmatpush1.msra.mxu0 0.0
    %5609 = vmatprep.subr.mxu0 0.0
    %5610 = vmatpush1.msra.mxu0 0.0
    %5611 = vmatprep.subr.mxu0 0.0
    %5612 = vmatpush1.msra.mxu0 0.0
    %5613 = vmatprep.subr.mxu0 0.0
    %5614 = vmatpush1.msra.mxu0 0.0
    %5615 = vmatprep.subr.mxu0 0.0
    %5616 = vmatpush1.msra.mxu0 0.0
    %5617 = vmatprep.subr.mxu0 0.0
    %5618 = vmatpush1.msra.mxu0 0.0
    %5619 = vmatprep.subr.mxu0 0.0
    %5620 = vmatpush1.msra.mxu0 0.0
    %5621 = vmatprep.subr.mxu0 0.0
    %5622 = vmatpush1.msra.mxu0 0.0
    %5623 = vmatprep.subr.mxu0 0.0
    %5624 = vmatpush1.msra.mxu0 0.0
    %5625 = vmatprep.subr.mxu0 0.0
    %5626 = vmatpush1.msra.mxu0 0.0
    %5627 = vmatprep.subr.mxu0 0.0
    %5628 = vmatpush1.msra.mxu0 0.0
    %5629 = vmatprep.subr.mxu0 0.0
    %5630 = vmatpush1.msra.mxu0 0.0
    %5631 = vmatprep.subr.mxu0 0.0
    %5632 = vmatpush1.msra.mxu0 0.0
    %5633 = vmatprep.subr.mxu0 0.0
    %5634 = vmatpush1.msra.mxu0 0.0
    %5635 = vmatprep.subr.mxu0 0.0
    %5636 = vmatpush1.msra.mxu0 0.0
    %5637 = vmatprep.subr.mxu0 0.0
    %5638 = vmatpush1.msra.mxu0 0.0
    %5639 = vmatprep.subr.mxu0 0.0
    %5640 = vmatpush1.msra.mxu0 0.0
    %5641 = vmatprep.subr.mxu0 0.0
    %5642 = vmatpush1.msra.mxu0 0.0
    %5643 = vmatprep.subr.mxu0 0.0
    %5644 = vmatpush1.msra.mxu0 0.0
    %5645 = vmatprep.subr.mxu0 0.0
    %5646 = vmatpush1.msra.mxu0 0.0
    %5647 = vmatprep.subr.mxu0 0.0
    %5648 = vmatpush1.msra.mxu0 0.0
    %5649 = vmatprep.mubr.f32.mxu0 0.0
    %5650 = vmatmul.mubr.f32.gmra.mrb[0].mxu0 %v5580
    %v5651 = vpop.f32.mrb[0].mxu0
    %v5652 = vadd.f32 %v4048, %v5651
    %v5653 = vpop.f32.mrb[0].mxu0
    %5654 = vmatprep.mubr.f32.mxu0 0.0
    %5655 = vmatmul.mubr.f32.gmra.mrb[0].mxu0 %v5583
    %v5656 = vpop.f32.mrb[0].mxu0
    %v5657 = vadd.f32 %v4048, %v5656
    %v5658 = vpop.f32.mrb[0].mxu0
    %5659 = vdwg.mxu0
    %v5660 = vxor.u32 %v5652, 2147483648
    %v5661 = vxor.u32 %v5657, 2147483648
    %v5662 = vmul.f32 %v5660, 1.442695
    %v5663 = vpow.pop %v5662
    %v5664 = vmul.f32 %v5661, 1.442695
    %v5665 = vpow.pop %v5664
    %v5666 = vadd.f32 %v5663, 1.0
    %v5667 = vadd.f32 %v5665, 1.0
    %v5668 = vrcp.pop %v5666
    %v5669 = vmul.f32 1.0, %v5668
    %v5670 = vrcp.pop %v5667
    %v5671 = vmul.f32 1.0, %v5670
    %v5673 = vsel %vm47, %v5402, 0
    %v5676 = vsel %vm47, %v5574, 0
    %5678 = vmatprep.subr.mxu0 0.0
    %5679 = vmatpush1.msra.mxu0 %v4142
    %5680 = vmatprep.subr.mxu0 0.0
    %5681 = vmatpush1.msra.mxu0 %v4143
    %5682 = vmatprep.subr.mxu0 0.0
    %5683 = vmatpush1.msra.mxu0 %v4144
    %5684 = vmatprep.subr.mxu0 0.0
    %5685 = vmatpush1.msra.mxu0 %v4145
    %5686 = vmatprep.subr.mxu0 0.0
    %5687 = vmatpush1.msra.mxu0 0.0
    %5688 = vmatprep.subr.mxu0 0.0
    %5689 = vmatpush1.msra.mxu0 0.0
    %5690 = vmatprep.subr.mxu0 0.0
    %5691 = vmatpush1.msra.mxu0 0.0
    %5692 = vmatprep.subr.mxu0 0.0
    %5693 = vmatpush1.msra.mxu0 0.0
    %5694 = vmatprep.subr.mxu0 0.0
    %5695 = vmatpush1.msra.mxu0 0.0
    %5696 = vmatprep.subr.mxu0 0.0
    %5697 = vmatpush1.msra.mxu0 0.0
    %5698 = vmatprep.subr.mxu0 0.0
    %5699 = vmatpush1.msra.mxu0 0.0
    %5700 = vmatprep.subr.mxu0 0.0
    %5701 = vmatpush1.msra.mxu0 0.0
    %5702 = vmatprep.subr.mxu0 0.0
    %5703 = vmatpush1.msra.mxu0 0.0
    %5704 = vmatprep.subr.mxu0 0.0
    %5705 = vmatpush1.msra.mxu0 0.0
    %5706 = vmatprep.subr.mxu0 0.0
    %5707 = vmatpush1.msra.mxu0 0.0
    %5708 = vmatprep.subr.mxu0 0.0
    %5709 = vmatpush1.msra.mxu0 0.0
    %5710 = vmatprep.subr.mxu0 0.0
    %5711 = vmatpush1.msra.mxu0 0.0
    %5712 = vmatprep.subr.mxu0 0.0
    %5713 = vmatpush1.msra.mxu0 0.0
    %5714 = vmatprep.subr.mxu0 0.0
    %5715 = vmatpush1.msra.mxu0 0.0
    %5716 = vmatprep.subr.mxu0 0.0
    %5717 = vmatpush1.msra.mxu0 0.0
    %5718 = vmatprep.subr.mxu0 0.0
    %5719 = vmatpush1.msra.mxu0 0.0
    %5720 = vmatprep.subr.mxu0 0.0
    %5721 = vmatpush1.msra.mxu0 0.0
    %5722 = vmatprep.subr.mxu0 0.0
    %5723 = vmatpush1.msra.mxu0 0.0
    %5724 = vmatprep.subr.mxu0 0.0
    %5725 = vmatpush1.msra.mxu0 0.0
    %5726 = vmatprep.subr.mxu0 0.0
    %5727 = vmatpush1.msra.mxu0 0.0
    %5728 = vmatprep.subr.mxu0 0.0
    %5729 = vmatpush1.msra.mxu0 0.0
    %5730 = vmatprep.subr.mxu0 0.0
    %5731 = vmatpush1.msra.mxu0 0.0
    %5732 = vmatprep.subr.mxu0 0.0
    %5733 = vmatpush1.msra.mxu0 0.0
    %5734 = vmatprep.subr.mxu0 0.0
    %5735 = vmatpush1.msra.mxu0 0.0
    %5736 = vmatprep.subr.mxu0 0.0
    %5737 = vmatpush1.msra.mxu0 0.0
    %5738 = vmatprep.subr.mxu0 0.0
    %5739 = vmatpush1.msra.mxu0 0.0
    %5740 = vmatprep.subr.mxu0 0.0
    %5741 = vmatpush1.msra.mxu0 0.0
    %5742 = vmatprep.mubr.f32.mxu0 0.0
    %5743 = vmatmul.mubr.f32.gmra.mrb[0].mxu0 %v5673
    %v5744 = vpop.f32.mrb[0].mxu0
    %v5745 = vadd.f32 %v4150, %v5744
    %v5746 = vpop.f32.mrb[0].mxu0
    %5747 = vmatprep.mubr.f32.mxu0 0.0
    %5748 = vmatmul.mubr.f32.gmra.mrb[0].mxu0 %v5676
    %v5749 = vpop.f32.mrb[0].mxu0
    %v5750 = vadd.f32 %v4150, %v5749
    %v5751 = vpop.f32.mrb[0].mxu0
    %5752 = vdwg.mxu0
    %v5753 = vsel %vm47, %v5105, 0
    %v5755 = vsel %vm47, %v5107, 0
    %5757 = vmatprep.subr.mxu0 0.0
    %5758 = vmatpush1.msra.mxu0 %v4232
    %5759 = vmatprep.subr.mxu0 0.0
    %5760 = vmatpush1.msra.mxu0 %v4233
    %5761 = vmatprep.subr.mxu0 0.0
    %5762 = vmatpush1.msra.mxu0 %v4234
    %5763 = vmatprep.subr.mxu0 0.0
    %5764 = vmatpush1.msra.mxu0 %v4235
    %5765 = vmatprep.subr.mxu0 0.0
    %5766 = vmatpush1.msra.mxu0 0.0
    %5767 = vmatprep.subr.mxu0 0.0
    %5768 = vmatpush1.msra.mxu0 0.0
    %5769 = vmatprep.subr.mxu0 0.0
    %5770 = vmatpush1.msra.mxu0 0.0
    %5771 = vmatprep.subr.mxu0 0.0
    %5772 = vmatpush1.msra.mxu0 0.0
    %5773 = vmatprep.subr.mxu0 0.0
    %5774 = vmatpush1.msra.mxu0 0.0
    %5775 = vmatprep.subr.mxu0 0.0
    %5776 = vmatpush1.msra.mxu0 0.0
    %5777 = vmatprep.subr.mxu0 0.0
    %5778 = vmatpush1.msra.mxu0 0.0
    %5779 = vmatprep.subr.mxu0 0.0
    %5780 = vmatpush1.msra.mxu0 0.0
    %5781 = vmatprep.subr.mxu0 0.0
    %5782 = vmatpush1.msra.mxu0 0.0
    %5783 = vmatprep.subr.mxu0 0.0
    %5784 = vmatpush1.msra.mxu0 0.0
    %5785 = vmatprep.subr.mxu0 0.0
    %5786 = vmatpush1.msra.mxu0 0.0
    %5787 = vmatprep.subr.mxu0 0.0
    %5788 = vmatpush1.msra.mxu0 0.0
    %5789 = vmatprep.subr.mxu0 0.0
    %5790 = vmatpush1.msra.mxu0 0.0
    %5791 = vmatprep.subr.mxu0 0.0
    %5792 = vmatpush1.msra.mxu0 0.0
    %5793 = vmatprep.subr.mxu0 0.0
    %5794 = vmatpush1.msra.mxu0 0.0
    %5795 = vmatprep.subr.mxu0 0.0
    %5796 = vmatpush1.msra.mxu0 0.0
    %5797 = vmatprep.subr.mxu0 0.0
    %5798 = vmatpush1.msra.mxu0 0.0
    %5799 = vmatprep.subr.mxu0 0.0
    %5800 = vmatpush1.msra.mxu0 0.0
    %5801 = vmatprep.subr.mxu0 0.0
    %5802 = vmatpush1.msra.mxu0 0.0
    %5803 = vmatprep.subr.mxu0 0.0
    %5804 = vmatpush1.msra.mxu0 0.0
    %5805 = vmatprep.subr.mxu0 0.0
    %5806 = vmatpush1.msra.mxu0 0.0
    %5807 = vmatprep.subr.mxu0 0.0
    %5808 = vmatpush1.msra.mxu0 0.0
    %5809 = vmatprep.subr.mxu0 0.0
    %5810 = vmatpush1.msra.mxu0 0.0
    %5811 = vmatprep.subr.mxu0 0.0
    %5812 = vmatpush1.msra.mxu0 0.0
    %5813 = vmatprep.subr.mxu0 0.0
    %5814 = vmatpush1.msra.mxu0 0.0
    %5815 = vmatprep.subr.mxu0 0.0
    %5816 = vmatpush1.msra.mxu0 0.0
    %5817 = vmatprep.subr.mxu0 0.0
    %5818 = vmatpush1.msra.mxu0 0.0
    %5819 = vmatprep.subr.mxu0 0.0
    %5820 = vmatpush1.msra.mxu0 0.0
    %5821 = vmatprep.mubr.f32.mxu0 0.0
    %5822 = vmatmul.mubr.f32.gmra.mrb[0].mxu0 %v5753
    %v5823 = vpop.f32.mrb[0].mxu0
    %v5824 = vadd.f32 %v4240, %v5823
    %v5825 = vpop.f32.mrb[0].mxu0
    %5826 = vmatprep.mubr.f32.mxu0 0.0
    %5827 = vmatmul.mubr.f32.gmra.mrb[0].mxu0 %v5755
    %v5828 = vpop.f32.mrb[0].mxu0
    %v5829 = vadd.f32 %v4240, %v5828
    %v5830 = vpop.f32.mrb[0].mxu0
    %5831 = vdwg.mxu0
    %v5832 = vmul.f32 %v5669, %v5824
    %v5833 = vmul.f32 %v5671, %v5829
    %v5834 = vadd.f32 %v5745, %v5832
    %v5835 = vadd.f32 %v5750, %v5833
    %v5836 = vtanh.pop %v5834
    %v5837 = vtanh.pop %v5835
    %v5838 = vsub.f32 1.0, %v5669
    %v5839 = vsub.f32 1.0, %v5671
    %5842 = vrot.lane.b32.xlu0 %v5836, 32
    %v5843 = vpop.permute.xlu0 %5842
    %5844 = vrot.lane.b32.xlu0 %v5837, 32
    %v5845 = vpop.permute.xlu0 %5844
    %v5848 = vmul.f32 %v5838, %v5843
    %v5849 = vmul.f32 %v5839, %v5845
    %v5850 = vmul.f32 %v5669, %v5100
    %v5851 = vmul.f32 %v5671, %v5101
    %v5852 = vadd.f32 %v5848, %v5850
    %v5853 = vadd.f32 %v5849, %v5851
    %5856 = vrot.lane.b32.xlu0 %v5852, 96
    %v5857 = vpop.permute.xlu0 %5856
    %5858 = vrot.lane.b32.xlu0 %v5853, 96
    %v5859 = vpop.permute.xlu0 %5858
    %s5862 = scalar_lea.vmem [#allocation2], 16
    %5863 = vst.msk [vmem:[%s5862] sm:$0xff] %vm47, %v5857
    %5864 = vst.msk [vmem:[%s5862 + $0x8] sm:$0xff] %vm47, %v5859
    %s5865 = scalar_lea.vmem [#allocation4], 16
    %5866 = vst.msk [vmem:[%s5865] sm:$0xff] %vm514, %v5325
    %5867 = vst.msk [vmem:[%s5865 + $0x8] sm:$0xff] %vm514, %v5497
    // Predicated region
    $region26: #{tpu_custom_call.1} parent=1 // pred_check
      _
    $region27: #{tpu_custom_call.1} parent=1 // pred_check_branch
      %5869 = sbr.rel (0) target = $region29
    $region28: #{tpu_custom_call.1} parent=1 // pred_region
      %s5871 = ssub.s32 512, 512
      %5872 = vsyncadd [#allocation3], %s5871
      %s5873 = sshll.u32 [#allocation2], 4
      %s5874 = int_to_ptr.vmem [resolvable:$true] %s5873
      %5879 = dma.vmem_to_hbm [thread:$0]  %s5874, 512, %s6, [#allocation3], 128, 128, 8
    $region29: #{tpu_custom_call.1} parent=1 // pred_fallthru
      _
    // Predicated region
    $region30: #{tpu_custom_call.1} parent=1 // pred_check
      _
    $region31: #{tpu_custom_call.1} parent=1 // pred_check_branch
      %5881 = sbr.rel (0) target = $region33
    $region32: #{tpu_custom_call.1} parent=1 // pred_region
      %s5883 = ssub.s32 512, 512
      %5884 = vsyncadd [#allocation5], %s5883
      %s5885 = sshll.u32 [#allocation4], 4
      %s5886 = int_to_ptr.vmem [resolvable:$true] %s5885
      %5891 = dma.vmem_to_hbm [thread:$0]  %s5886, 512, %s7, [#allocation5], 128, 128, 8
    $region33: #{tpu_custom_call.1} parent=1 // pred_fallthru
      _
    // Predicated region
    $region34: #{tpu_custom_call.1} parent=1 // pred_check
      _
    $region35: #{tpu_custom_call.1} parent=1 // pred_check_branch
      %5893 = sbr.rel (0) target = $region37
    $region36: #{tpu_custom_call.1} parent=1 // pred_region
      %s5895 = ssub.s32 1024, 1024
      %5896 = vsyncadd [#allocation5], %s5895
      %s5897 = sshll.u32 [#allocation6], 4
      %s5898 = int_to_ptr.vmem [resolvable:$true] %s5897
      %5903 = dma.vmem_to_hbm [thread:$0]  %s5898, 1024, %s8, [#allocation5], 128, 128, 8
    $region37: #{tpu_custom_call.1} parent=1 // pred_fallthru
      _
    // Predicated region
    $region38: #{tpu_custom_call.1} parent=1 // pred_check
      _
    $region39: #{tpu_custom_call.1} parent=1 // pred_check_branch
      %5905 = sbr.rel (0) target = $region41
    $region40: #{tpu_custom_call.1} parent=1 // pred_region
      %s5907 = ssub.s32 16, 16
      %5908 = vsyncadd [#allocation8], %s5907
      %s5910 = sshll.u32 [#allocation7], 4
      %s5911 = int_to_ptr.vmem [resolvable:$true] %s5910
      %5913 = dma.vmem_to_hbm [thread:$0]  %s5911, 16, %s9, [#allocation8]
    $region41: #{tpu_custom_call.1} parent=1 // pred_fallthru
      _
    // Predicated region
    $region42: #{tpu_custom_call.1} parent=1 // pred_check
      _
    $region43: #{tpu_custom_call.1} parent=1 // pred_check_branch
      %5915 = sbr.rel (0) target = $region45
    $region44: #{tpu_custom_call.1} parent=1 // pred_region
      %s5917 = ssub.s32 16, 16
      %5918 = vsyncadd [#allocation8], %s5917
      %s5920 = sshll.u32 [#allocation9], 4
      %s5921 = int_to_ptr.vmem [resolvable:$true] %s5920
      %5923 = dma.vmem_to_hbm [thread:$0]  %s5921, 16, %s10, [#allocation8]
    $region45: #{tpu_custom_call.1} parent=1 // pred_fallthru
      _
    // Predicated region
    $region46: #{tpu_custom_call.1} parent=1 // pred_check
      _
    $region47: #{tpu_custom_call.1} parent=1 // pred_check_branch
      %5925 = sbr.rel (0) target = $region49
    $region48: #{tpu_custom_call.1} parent=1 // pred_region
      %5926 = dma.done [#allocation3], 512
    $region49: #{tpu_custom_call.1} parent=1 // pred_fallthru
      _
    // Predicated region
    $region50: #{tpu_custom_call.1} parent=1 // pred_check
      _
    $region51: #{tpu_custom_call.1} parent=1 // pred_check_branch
      %5928 = sbr.rel (0) target = $region53
    $region52: #{tpu_custom_call.1} parent=1 // pred_region
      %5929 = dma.done [#allocation5], 512
    $region53: #{tpu_custom_call.1} parent=1 // pred_fallthru
      _
    // Predicated region
    $region54: #{tpu_custom_call.1} parent=1 // pred_check
      _
    $region55: #{tpu_custom_call.1} parent=1 // pred_check_branch
      %5931 = sbr.rel (0) target = $region57
    $region56: #{tpu_custom_call.1} parent=1 // pred_region
      %5932 = dma.done [#allocation5], 1024
    $region57: #{tpu_custom_call.1} parent=1 // pred_fallthru
      _
    // Predicated region
    $region58: #{tpu_custom_call.1} parent=1 // pred_check
      _
    $region59: #{tpu_custom_call.1} parent=1 // pred_check_branch
      %5934 = sbr.rel (0) target = $region61
    $region60: #{tpu_custom_call.1} parent=1 // pred_region
      %5935 = dma.done [#allocation8], 16
    $region61: #{tpu_custom_call.1} parent=1 // pred_fallthru
      _
    // Predicated region
    $region62: #{tpu_custom_call.1} parent=1 // pred_check
      _
    $region63: #{tpu_custom_call.1} parent=1 // pred_check_branch
      %5937 = sbr.rel (0) target = $region65
    $region64: #{tpu_custom_call.1} parent=1 // pred_region
      %5938 = dma.done [#allocation8], 16
    $region65: #{tpu_custom_call.1} parent=1 // pred_fallthru
      _
    %5939 = vsyncpa [#allocation3], 1
    %5940 = vsyncpa [#allocation5], 1
    %5941 = vsyncpa [#allocation8], 1

</llo_original>
